<compile_context>
chip_gen: v7x
topology: tpu7x:2x2x1
jax: 0.10.0
libtpu: 0.0.40
codegen_flags: <defaults>
</compile_context>

<pallas_src>
import functools

import jax
import jax.numpy as jnp
from jax.experimental import pallas as pl
from jax.experimental.pallas import tpu as pltpu


NEG_SLOPE = 0.2                 # LeakyReLU slope assumed for the repo MLP helper
DEFAULT_TILE = 256              # query-row tile (fits comfortably in scoped VMEM)
VMEM_LIMIT = 32 * 1024 * 1024   # explicit scoped-VMEM cap (>= v5e default, <= v7x physical)
BIG = 1e30


def _round_up(v, m):
    return ((v + m - 1) // m) * m


def _leaky(v, slope):
    return jnp.where(v >= 0, v, slope * v)


# ----------------------------------------------------------------------------
# Kernel 1: fused DynamicEdgeConv
#   dists -> iterative kNN argmin -> one-hot MXU gather of Q -> running max
# ----------------------------------------------------------------------------
def edge_conv_kernel(x_ref, sq_ref, wab_ref, wb_ref, b_ref, o_ref,
                     *, k, n_valid, tile_i, neg_slope):
    i = pl.program_id(0)
    x_all = x_ref[...]                                        # (N_pad, CinP) f32
    n_pad = x_all.shape[0]

    start = pl.multiple_of(i * tile_i, tile_i)
    xq = x_ref[pl.ds(start, tile_i), :]                       # (tile_i, CinP) f32

    # Pairwise (shifted) squared distances, f32 for kNN correctness.
    # d'[i,j] = ||x_j||^2 - 2 x_i . x_j  (the ||x_i||^2 term is per-row constant
    # and does not change the per-row argmin).
    xxT = jax.lax.dot_general(xq, x_all, (((1,), (1,)), ((), ())),
                              preferred_element_type=jnp.float32)   # (tile_i, N_pad)
    big = jnp.float32(BIG)
    col = jax.lax.broadcasted_iota(jnp.int32, (tile_i, n_pad), 1)
    d = sq_ref[...] - 2.0 * xxT
    d = jnp.where(col < n_valid, d, big)                      # never select padded points

    # Edge MLP linear parts on the MXU in bf16, accumulate f32.
    # P_i = x_i (A - B) + b ;  Q_j = x_j B
    P = jnp.dot(xq.astype(jnp.bfloat16), wab_ref[...],
                preferred_element_type=jnp.float32) + b_ref[...]    # (tile_i, H_PAD)
    Q = jnp.dot(x_all.astype(jnp.bfloat16), wb_ref[...],
                preferred_element_type=jnp.float32)                 # (N_pad, H_PAD)

    acc0 = jnp.full((tile_i, Q.shape[1]), -big, dtype=jnp.float32)

    def body(_, carry):
        dc, acc = carry
        row_min = jnp.min(dc, axis=-1, keepdims=True)                     # (tile_i, 1)
        is_min = dc <= row_min
        first_idx = jnp.min(jnp.where(is_min, col, n_pad),
                            axis=-1, keepdims=True)                       # tie-break: lowest idx
        sel = col == first_idx                                            # exactly one per row
        one_hot = sel.astype(jnp.float32)
        # Gather the selected neighbor's Q row via the MXU (exact for 0/1 one-hot).
        q = jnp.dot(one_hot, Q, preferred_element_type=jnp.float32)       # (tile_i, H_PAD)
        acc = jnp.maximum(acc, _leaky(P + q, neg_slope))
        dc = jnp.where(sel, big, dc)
        return dc, acc

    # k is a small static constant -> fully unroll for LLO scheduling visibility.
    _, acc = jax.lax.fori_loop(0, k, body, (d, acc0), unroll=True)

    o_ref[...] = acc                                          # (tile_i, H_PAD), lane-dense


def edge_conv(x_pad, W, b, k, *, cin, n_valid, tile_i, neg_slope=NEG_SLOPE):
    """x_pad: (N_pad, CinP) f32 (real features in first `cin` cols, real rows first
    `n_valid`).  W: (H, 2*cin) torch Linear weight; b: (H,).  Returns (N_pad, H_PAD) f32
    with real channels in the first H columns (padded channels are exactly zero)."""
    n_pad, cinp = x_pad.shape
    H = W.shape[0]
    h_pad = _round_up(H, 128)

    A = W[:, :cin].T.astype(jnp.float32)                      # (cin, H): x_i path
    B = W[:, cin:].T.astype(jnp.float32)                      # (cin, H): (x_j - x_i) path
    wab = jnp.zeros((cinp, h_pad), jnp.float32).at[:cin, :H].set(A - B).astype(jnp.bfloat16)
    wbp = jnp.zeros((cinp, h_pad), jnp.float32).at[:cin, :H].set(B).astype(jnp.bfloat16)
    bp = jnp.zeros((1, h_pad), jnp.float32).at[0, :H].set(b.astype(jnp.float32))
    sq = jnp.sum(x_pad * x_pad, axis=1).reshape(1, n_pad)     # column term of the distances

    grid = (n_pad // tile_i,)
    flops = int(2 * n_pad * n_pad * cinp                       # distance matmul
                + 2 * n_pad * cinp * h_pad * (1 + grid[0])     # P + per-tile Q
                + 2 * k * n_pad * n_pad * h_pad)               # one-hot gathers
    bytes_accessed = int(4 * (x_pad.size + sq.size + n_pad * h_pad + bp.size)
                         + 2 * (wab.size + wbp.size))

    kern = functools.partial(edge_conv_kernel, k=k, n_valid=n_valid,
                             tile_i=tile_i, neg_slope=neg_slope)
    return pl.pallas_call(
        kern,
        grid=grid,
        in_specs=[
            pl.BlockSpec((n_pad, cinp), lambda i: (0, 0)),     # x: resident
            pl.BlockSpec((1, n_pad), lambda i: (0, 0)),        # sq: resident
            pl.BlockSpec((cinp, h_pad), lambda i: (0, 0)),     # (A - B): resident
            pl.BlockSpec((cinp, h_pad), lambda i: (0, 0)),     # B: resident
            pl.BlockSpec((1, h_pad), lambda i: (0, 0)),        # bias: resident
        ],
        out_specs=pl.BlockSpec((tile_i, h_pad), lambda i: (i, 0)),
        out_shape=jax.ShapeDtypeStruct((n_pad, h_pad), jnp.float32),
        compiler_params=pltpu.CompilerParams(
            dimension_semantics=("parallel",),
            vmem_limit_bytes=VMEM_LIMIT),
        cost_estimate=pl.CostEstimate(flops=flops, transcendentals=0,
                                      bytes_accessed=bytes_accessed),
    )(x_pad, sq, wab, wbp, bp)


# ----------------------------------------------------------------------------
# Kernel 2: fused head
#   lin1 (3 split dots, no concat) -> MLP(1024,256) -> MLP(256,128)
#   -> Linear(128, C) -> masked log_softmax over padded class dim
# ----------------------------------------------------------------------------
def head_kernel(x1_ref, x2_ref, x3_ref, w1a_ref, w1b_ref, w1c_ref, b1_ref,
                w2_ref, b2_ref, w3_ref, b3_ref, w4_ref, b4_ref, o_ref,
                *, neg_slope, num_classes):
    bf = jnp.bfloat16
    f32 = jnp.float32
    h = (jnp.dot(x1_ref[...].astype(bf), w1a_ref[...], preferred_element_type=f32)
         + jnp.dot(x2_ref[...].astype(bf), w1b_ref[...], preferred_element_type=f32)
         + jnp.dot(x3_ref[...].astype(bf), w1c_ref[...], preferred_element_type=f32)
         + b1_ref[...])
    h = _leaky(h, neg_slope)
    h = jnp.dot(h.astype(bf), w2_ref[...], preferred_element_type=f32) + b2_ref[...]
    h = _leaky(h, neg_slope)
    # Dropout -> identity at inference
    h = jnp.dot(h.astype(bf), w3_ref[...], preferred_element_type=f32) + b3_ref[...]
    h = _leaky(h, neg_slope)
    logits = jnp.dot(h.astype(bf), w4_ref[...], preferred_element_type=f32) + b4_ref[...]

    # masked log_softmax over the first num_classes lanes (class dim padded to 128)
    lane = jax.lax.broadcasted_iota(jnp.int32, logits.shape, 1)
    valid = lane < num_classes
    logits = jnp.where(valid, logits, jnp.float32(-BIG))
    m = jnp.max(logits, axis=-1, keepdims=True)
    z = logits - m
    ez = jnp.where(valid, jnp.exp(z), jnp.float32(0.0))
    lse = jnp.log(jnp.sum(ez, axis=-1, keepdims=True))
    o_ref[...] = z - lse


def head(x1, x2, x3, params, *, num_classes, tile_n, neg_slope=NEG_SLOPE):
    """x1/x2/x3: (N_pad, H_PAD) f32 edge-conv outputs. Returns (N_pad, C_PAD) log-probs."""
    n_pad, h_pad = x1.shape
    H = params["w_conv1"].shape[0]
    c_pad = _round_up(num_classes, 128)

    def pad_rows(w_t):  # (in, out) -> (h_pad, out), zero padded rows, bf16
        return (jnp.zeros((h_pad, w_t.shape[1]), jnp.float32)
                .at[:w_t.shape[0], :].set(w_t).astype(jnp.bfloat16))

    W1 = params["w_lin1"].astype(jnp.float32)                   # (1024, 3H)
    w1a = pad_rows(W1[:, 0 * H:1 * H].T)
    w1b = pad_rows(W1[:, 1 * H:2 * H].T)
    w1c = pad_rows(W1[:, 2 * H:3 * H].T)
    b1 = params["b_lin1"].reshape(1, -1).astype(jnp.float32)
    w2 = params["w_m1"].T.astype(jnp.bfloat16)                  # (1024, 256)
    b2 = params["b_m1"].reshape(1, -1).astype(jnp.float32)
    w3 = params["w_m2"].T.astype(jnp.bfloat16)                  # (256, 128)
    b3 = params["b_m2"].reshape(1, -1).astype(jnp.float32)
    w4t = params["w_out"].T.astype(jnp.float32)                 # (128, C)
    w4 = (jnp.zeros((w4t.shape[0], c_pad), jnp.float32)
          .at[:, :num_classes].set(w4t).astype(jnp.bfloat16))
    b4 = (jnp.zeros((1, c_pad), jnp.float32)
          .at[0, :num_classes].set(params["b_out"].astype(jnp.float32)))

    grid = (n_pad // tile_n,)
    flops = int(2 * n_pad * (3 * h_pad * 1024 + 1024 * 256 + 256 * 128 + 128 * c_pad))
    bytes_accessed = int(4 * (3 * x1.size + n_pad * c_pad)
                         + 2 * (w1a.size * 3 + w2.size + w3.size + w4.size)
                         + 4 * (b1.size + b2.size + b3.size + b4.size))

    kern = functools.partial(head_kernel, neg_slope=neg_slope, num_classes=num_classes)
    return pl.pallas_call(
        kern,
        grid=grid,
        in_specs=[
            pl.BlockSpec((tile_n, h_pad), lambda i: (i, 0)),    # x1 tile
            pl.BlockSpec((tile_n, h_pad), lambda i: (i, 0)),    # x2 tile
            pl.BlockSpec((tile_n, h_pad), lambda i: (i, 0)),    # x3 tile
            pl.BlockSpec(w1a.shape, lambda i: (0, 0)),
            pl.BlockSpec(w1b.shape, lambda i: (0, 0)),
            pl.BlockSpec(w1c.shape, lambda i: (0, 0)),
            pl.BlockSpec(b1.shape, lambda i: (0, 0)),
            pl.BlockSpec(w2.shape, lambda i: (0, 0)),
            pl.BlockSpec(b2.shape, lambda i: (0, 0)),
            pl.BlockSpec(w3.shape, lambda i: (0, 0)),
            pl.BlockSpec(b3.shape, lambda i: (0, 0)),
            pl.BlockSpec(w4.shape, lambda i: (0, 0)),
            pl.BlockSpec(b4.shape, lambda i: (0, 0)),
        ],
        out_specs=pl.BlockSpec((tile_n, c_pad), lambda i: (i, 0)),
        out_shape=jax.ShapeDtypeStruct((n_pad, c_pad), jnp.float32),
        compiler_params=pltpu.CompilerParams(
            dimension_semantics=("parallel",),
            vmem_limit_bytes=VMEM_LIMIT),
        cost_estimate=pl.CostEstimate(flops=flops, transcendentals=n_pad * c_pad,
                                      bytes_accessed=bytes_accessed),
    )(x1, x2, x3, w1a, w1b, w1c, b1, w2, b2, w3, b3, w4, b4)


# ----------------------------------------------------------------------------
# DGCNN forward (transform=False, batch=None)
# ----------------------------------------------------------------------------
def dgcnn_forward(x, params, k):
    N, cin = x.shape
    H = params["w_conv1"].shape[0]
    num_classes = params["w_out"].shape[0]

    tile = min(DEFAULT_TILE, _round_up(N, 8))
    n_pad = _round_up(N, tile)
    cinp = _round_up(cin, 8)
    x_pad = jnp.zeros((n_pad, cinp), jnp.float32).at[:N, :cin].set(x.astype(jnp.float32))

    x1 = edge_conv(x_pad, params["w_conv1"], params["b_conv1"], k,
                   cin=cin, n_valid=N, tile_i=tile)            # (N_pad, 128)
    x2 = edge_conv(x1, params["w_conv2"], params["b_conv2"], k,
                   cin=H, n_valid=N, tile_i=tile)              # (N_pad, 128)
    x3 = edge_conv(x2, params["w_conv3"], params["b_conv3"], k,
                   cin=H, n_valid=N, tile_i=tile)              # (N_pad, 128)
    logp = head(x1, x2, x3, params, num_classes=num_classes, tile_n=tile)
    return logp[:N, :num_classes]                              # (N, C) log-probs


def init_params(key, hidden_feat, num_classes):
    ks = jax.random.split(key, 14)
    H = hidden_feat
    s = 0.1
    return {
        "w_conv1": s * jax.random.normal(ks[0], (H, 2 * 3), jnp.float32),
        "b_conv1": s * jax.random.normal(ks[1], (H,), jnp.float32),
        "w_conv2": s * jax.random.normal(ks[2], (H, 2 * H), jnp.float32),
        "b_conv2": s * jax.random.normal(ks[3], (H,), jnp.float32),
        "w_conv3": s * jax.random.normal(ks[4], (H, 2 * H), jnp.float32),
        "b_conv3": s * jax.random.normal(ks[5], (H,), jnp.float32),
        "w_lin1": s * jax.random.normal(ks[6], (1024, 3 * H), jnp.float32),
        "b_lin1": s * jax.random.normal(ks[7], (1024,), jnp.float32),
        "w_m1": s * jax.random.normal(ks[8], (256, 1024), jnp.float32),
        "b_m1": s * jax.random.normal(ks[9], (256,), jnp.float32),
        "w_m2": s * jax.random.normal(ks[10], (128, 256), jnp.float32),
        "b_m2": s * jax.random.normal(ks[11], (128,), jnp.float32),
        "w_out": s * jax.random.normal(ks[12], (num_classes, 128), jnp.float32),
        "b_out": s * jax.random.normal(ks[13], (num_classes,), jnp.float32),
    }


if __name__ == "__main__":
    N = 64            # number of points (single cloud, batch=None)
    k = 8             # kNN
    hidden_feat = 64  # module default
    num_classes = 8

    key = jax.random.PRNGKey(0)
    kx, kp = jax.random.split(key)
    x = jax.random.normal(kx, (N, 3), jnp.float32)
    params = init_params(kp, hidden_feat, num_classes)

    fwd = jax.jit(lambda xx, pp: dgcnn_forward(xx, pp, k))
    out = jax.block_until_ready(fwd(x, params))

    assert out.shape == (N, num_classes), out.shape
    # log_softmax rows must exponentiate to a probability distribution
    row_sums = jnp.exp(out).sum(axis=-1)
    assert jnp.allclose(row_sums, 1.0, atol=1e-3), row_sums
    assert bool(jnp.all(jnp.isfinite(out))), "non-finite log-probs"
    print("KERNEL_OK")
</pallas_src>

<mosaic_0001>
module attributes {stable_mosaic.version = 11 : i64} {
  func.func @edge_conv_kernel(%arg0: i32, %arg1: memref<64x8xf32, #tpu.memory_space<vmem>>, %arg2: memref<1x64xf32, #tpu.memory_space<vmem>>, %arg3: memref<8x128xbf16, #tpu.memory_space<vmem>>, %arg4: memref<8x128xbf16, #tpu.memory_space<vmem>>, %arg5: memref<1x128xf32, #tpu.memory_space<vmem>>, %arg6: memref<64x128xf32, #tpu.memory_space<vmem>>) attributes {dimension_semantics = [#tpu.dimension_semantics<parallel>], iteration_bounds = array<i64: 1>, scalar_prefetch = 0 : i64, scratch_operands = 0 : i64, tpu.core_type = #tpu.core_type<tc>, window_params = [{pipeline_mode = #tpu.pipeline_mode<synchronous>, transform_indices = @transform_0, window_bounds = array<i64: 64, 8>}, {pipeline_mode = #tpu.pipeline_mode<synchronous>, transform_indices = @transform_1, window_bounds = array<i64: 1, 64>}, {pipeline_mode = #tpu.pipeline_mode<synchronous>, transform_indices = @transform_2, window_bounds = array<i64: 8, 128>}, {pipeline_mode = #tpu.pipeline_mode<synchronous>, transform_indices = @transform_3, window_bounds = array<i64: 8, 128>}, {pipeline_mode = #tpu.pipeline_mode<synchronous>, transform_indices = @transform_4, window_bounds = array<i64: 1, 128>}, {transform_indices = @transform_5, window_bounds = array<i64: 64, 128>}]} {
    %c0 = arith.constant 0 : index
    %c0_0 = arith.constant 0 : index
    %0 = vector.load %arg1[%c0, %c0_0] : memref<64x8xf32, #tpu.memory_space<vmem>>, vector<64x8xf32>
    %c64_i32 = arith.constant 64 : i32
    %1 = arith.muli %arg0, %c64_i32 : i32
    %2 = tpu.assume_multiple %1, 64 : i32
    %3 = arith.index_cast %2 : i32 to index
    %c0_1 = arith.constant 0 : index
    %4 = vector.load %arg1[%3, %c0_1] : memref<64x8xf32, #tpu.memory_space<vmem>>, vector<64x8xf32>
    %cst = arith.constant dense<0.000000e+00> : vector<64x64xf32>
    %5 = tpu.matmul %4, %0, %cst {dimension_numbers = #tpu.dot_dimension_numbers<[1], [1], [0], [0], [0, 0, 1, 0], [], []>} : vector<64x8xf32>, vector<64x8xf32>, vector<64x64xf32> -> vector<64x64xf32>
    %6 = tpu.iota {dimensions = array<i32: 1>} : vector<64x64xi32>
    %c0_2 = arith.constant 0 : index
    %c0_3 = arith.constant 0 : index
    %7 = vector.load %arg2[%c0_2, %c0_3] : memref<1x64xf32, #tpu.memory_space<vmem>>, vector<1x64xf32>
    %cst_4 = arith.constant 2.000000e+00 : f32
    %8 = vector.broadcast %cst_4 : f32 to vector<64x64xf32>
    %9 = arith.mulf %8, %5 : vector<64x64xf32>
    %10 = vector.broadcast %7 : vector<1x64xf32> to vector<64x64xf32>
    %11 = arith.subf %10, %9 : vector<64x64xf32>
    %c64_i32_5 = arith.constant 64 : i32
    %12 = vector.broadcast %c64_i32_5 : i32 to vector<64x64xi32>
    %13 = arith.cmpi slt, %6, %12 : vector<64x64xi32>
    %cst_6 = arith.constant 1.000000e+30 : f32
    %14 = vector.broadcast %cst_6 : f32 to vector<64x64xf32>
    %15 = arith.select %13, %11, %14 : vector<64x64xi1>, vector<64x64xf32>
    %16 = arith.truncf %4 : vector<64x8xf32> to vector<64x8xbf16>
    %c0_7 = arith.constant 0 : index
    %c0_8 = arith.constant 0 : index
    %17 = vector.load %arg3[%c0_7, %c0_8] : memref<8x128xbf16, #tpu.memory_space<vmem>>, vector<8x128xbf16>
    %cst_9 = arith.constant dense<0.000000e+00> : vector<64x128xf32>
    %18 = tpu.matmul %16, %17, %cst_9 {dimension_numbers = #tpu.dot_dimension_numbers<[1], [0], [0], [1], [0, 0, 1, 1], [], []>} : vector<64x8xbf16>, vector<8x128xbf16>, vector<64x128xf32> -> vector<64x128xf32>
    %c0_10 = arith.constant 0 : index
    %c0_11 = arith.constant 0 : index
    %19 = vector.load %arg5[%c0_10, %c0_11] : memref<1x128xf32, #tpu.memory_space<vmem>>, vector<1x128xf32>
    %20 = vector.broadcast %19 : vector<1x128xf32> to vector<64x128xf32>
    %21 = arith.addf %18, %20 : vector<64x128xf32>
    %22 = arith.truncf %0 : vector<64x8xf32> to vector<64x8xbf16>
    %c0_12 = arith.constant 0 : index
    %c0_13 = arith.constant 0 : index
    %23 = vector.load %arg4[%c0_12, %c0_13] : memref<8x128xbf16, #tpu.memory_space<vmem>>, vector<8x128xbf16>
    %cst_14 = arith.constant dense<0.000000e+00> : vector<64x128xf32>
    %24 = tpu.matmul %22, %23, %cst_14 {dimension_numbers = #tpu.dot_dimension_numbers<[1], [0], [0], [1], [0, 0, 1, 1], [], []>} : vector<64x8xbf16>, vector<8x128xbf16>, vector<64x128xf32> -> vector<64x128xf32>
    %cst_15 = arith.constant 0.000000e+00 : f32
    %cst_16 = arith.constant 1.000000e+30 : f32
    %25 = arith.subf %cst_15, %cst_16 : f32
    %26 = vector.broadcast %25 : f32 to vector<64x128xf32>
    %cst_17 = arith.constant 1.000000e+30 : f32
    %c0_i32 = arith.constant 0 : i32
    %cst_18 = arith.constant dense<0x7F800000> : vector<64xf32>
    %27 = vector.multi_reduction <minimumf>, %15, %cst_18 [1] : vector<64x64xf32> to vector<64xf32>
    %28 = vector.shape_cast %27 : vector<64xf32> to vector<64x1xf32>
    %29 = vector.broadcast %28 : vector<64x1xf32> to vector<64x64xf32>
    %30 = arith.cmpf ole, %15, %29 : vector<64x64xf32>
    %c64_i32_19 = arith.constant 64 : i32
    %31 = vector.broadcast %c64_i32_19 : i32 to vector<64x64xi32>
    %32 = arith.select %30, %6, %31 : vector<64x64xi1>, vector<64x64xi32>
    %cst_20 = arith.constant dense<2147483647> : vector<64xi32>
    %33 = vector.multi_reduction <minsi>, %32, %cst_20 [1] : vector<64x64xi32> to vector<64xi32>
    %34 = vector.shape_cast %33 : vector<64xi32> to vector<64x1xi32>
    %35 = vector.broadcast %34 : vector<64x1xi32> to vector<64x64xi32>
    %36 = arith.cmpi eq, %6, %35 : vector<64x64xi32>
    %37 = arith.extui %36 : vector<64x64xi1> to vector<64x64xi32>
    %38 = arith.sitofp %37 : vector<64x64xi32> to vector<64x64xf32>
    %cst_21 = arith.constant dense<0.000000e+00> : vector<64x128xf32>
    %39 = tpu.matmul %38, %24, %cst_21 {dimension_numbers = #tpu.dot_dimension_numbers<[1], [0], [0], [1], [0, 0, 1, 1], [], []>} : vector<64x64xf32>, vector<64x128xf32>, vector<64x128xf32> -> vector<64x128xf32>
    %40 = arith.addf %21, %39 : vector<64x128xf32>
    %cst_22 = arith.constant 0.000000e+00 : f32
    %41 = vector.broadcast %cst_22 : f32 to vector<64x128xf32>
    %42 = arith.cmpf oge, %40, %41 : vector<64x128xf32>
    %cst_23 = arith.constant 2.000000e-01 : f32
    %43 = vector.broadcast %cst_23 : f32 to vector<64x128xf32>
    %44 = arith.mulf %43, %40 : vector<64x128xf32>
    %45 = arith.select %42, %40, %44 : vector<64x128xi1>, vector<64x128xf32>
    %46 = arith.maximumf %26, %45 : vector<64x128xf32>
    %47 = vector.broadcast %cst_17 : f32 to vector<64x64xf32>
    %48 = arith.select %36, %47, %15 : vector<64x64xi1>, vector<64x64xf32>
    %c1_i32 = arith.constant 1 : i32
    %cst_24 = arith.constant dense<0x7F800000> : vector<64xf32>
    %49 = vector.multi_reduction <minimumf>, %48, %cst_24 [1] : vector<64x64xf32> to vector<64xf32>
    %50 = vector.shape_cast %49 : vector<64xf32> to vector<64x1xf32>
    %51 = vector.broadcast %50 : vector<64x1xf32> to vector<64x64xf32>
    %52 = arith.cmpf ole, %48, %51 : vector<64x64xf32>
    %c64_i32_25 = arith.constant 64 : i32
    %53 = vector.broadcast %c64_i32_25 : i32 to vector<64x64xi32>
    %54 = arith.select %52, %6, %53 : vector<64x64xi1>, vector<64x64xi32>
    %cst_26 = arith.constant dense<2147483647> : vector<64xi32>
    %55 = vector.multi_reduction <minsi>, %54, %cst_26 [1] : vector<64x64xi32> to vector<64xi32>
    %56 = vector.shape_cast %55 : vector<64xi32> to vector<64x1xi32>
    %57 = vector.broadcast %56 : vector<64x1xi32> to vector<64x64xi32>
    %58 = arith.cmpi eq, %6, %57 : vector<64x64xi32>
    %59 = arith.extui %58 : vector<64x64xi1> to vector<64x64xi32>
    %60 = arith.sitofp %59 : vector<64x64xi32> to vector<64x64xf32>
    %cst_27 = arith.constant dense<0.000000e+00> : vector<64x128xf32>
    %61 = tpu.matmul %60, %24, %cst_27 {dimension_numbers = #tpu.dot_dimension_numbers<[1], [0], [0], [1], [0, 0, 1, 1], [], []>} : vector<64x64xf32>, vector<64x128xf32>, vector<64x128xf32> -> vector<64x128xf32>
    %62 = arith.addf %21, %61 : vector<64x128xf32>
    %cst_28 = arith.constant 0.000000e+00 : f32
    %63 = vector.broadcast %cst_28 : f32 to vector<64x128xf32>
    %64 = arith.cmpf oge, %62, %63 : vector<64x128xf32>
    %cst_29 = arith.constant 2.000000e-01 : f32
    %65 = vector.broadcast %cst_29 : f32 to vector<64x128xf32>
    %66 = arith.mulf %65, %62 : vector<64x128xf32>
    %67 = arith.select %64, %62, %66 : vector<64x128xi1>, vector<64x128xf32>
    %68 = arith.maximumf %46, %67 : vector<64x128xf32>
    %69 = vector.broadcast %cst_17 : f32 to vector<64x64xf32>
    %70 = arith.select %58, %69, %48 : vector<64x64xi1>, vector<64x64xf32>
    %c2_i32 = arith.constant 2 : i32
    %cst_30 = arith.constant dense<0x7F800000> : vector<64xf32>
    %71 = vector.multi_reduction <minimumf>, %70, %cst_30 [1] : vector<64x64xf32> to vector<64xf32>
    %72 = vector.shape_cast %71 : vector<64xf32> to vector<64x1xf32>
    %73 = vector.broadcast %72 : vector<64x1xf32> to vector<64x64xf32>
    %74 = arith.cmpf ole, %70, %73 : vector<64x64xf32>
    %c64_i32_31 = arith.constant 64 : i32
    %75 = vector.broadcast %c64_i32_31 : i32 to vector<64x64xi32>
    %76 = arith.select %74, %6, %75 : vector<64x64xi1>, vector<64x64xi32>
    %cst_32 = arith.constant dense<2147483647> : vector<64xi32>
    %77 = vector.multi_reduction <minsi>, %76, %cst_32 [1] : vector<64x64xi32> to vector<64xi32>
    %78 = vector.shape_cast %77 : vector<64xi32> to vector<64x1xi32>
    %79 = vector.broadcast %78 : vector<64x1xi32> to vector<64x64xi32>
    %80 = arith.cmpi eq, %6, %79 : vector<64x64xi32>
    %81 = arith.extui %80 : vector<64x64xi1> to vector<64x64xi32>
    %82 = arith.sitofp %81 : vector<64x64xi32> to vector<64x64xf32>
    %cst_33 = arith.constant dense<0.000000e+00> : vector<64x128xf32>
    %83 = tpu.matmul %82, %24, %cst_33 {dimension_numbers = #tpu.dot_dimension_numbers<[1], [0], [0], [1], [0, 0, 1, 1], [], []>} : vector<64x64xf32>, vector<64x128xf32>, vector<64x128xf32> -> vector<64x128xf32>
    %84 = arith.addf %21, %83 : vector<64x128xf32>
    %cst_34 = arith.constant 0.000000e+00 : f32
    %85 = vector.broadcast %cst_34 : f32 to vector<64x128xf32>
    %86 = arith.cmpf oge, %84, %85 : vector<64x128xf32>
    %cst_35 = arith.constant 2.000000e-01 : f32
    %87 = vector.broadcast %cst_35 : f32 to vector<64x128xf32>
    %88 = arith.mulf %87, %84 : vector<64x128xf32>
    %89 = arith.select %86, %84, %88 : vector<64x128xi1>, vector<64x128xf32>
    %90 = arith.maximumf %68, %89 : vector<64x128xf32>
    %91 = vector.broadcast %cst_17 : f32 to vector<64x64xf32>
    %92 = arith.select %80, %91, %70 : vector<64x64xi1>, vector<64x64xf32>
    %c3_i32 = arith.constant 3 : i32
    %cst_36 = arith.constant dense<0x7F800000> : vector<64xf32>
    %93 = vector.multi_reduction <minimumf>, %92, %cst_36 [1] : vector<64x64xf32> to vector<64xf32>
    %94 = vector.shape_cast %93 : vector<64xf32> to vector<64x1xf32>
    %95 = vector.broadcast %94 : vector<64x1xf32> to vector<64x64xf32>
    %96 = arith.cmpf ole, %92, %95 : vector<64x64xf32>
    %c64_i32_37 = arith.constant 64 : i32
    %97 = vector.broadcast %c64_i32_37 : i32 to vector<64x64xi32>
    %98 = arith.select %96, %6, %97 : vector<64x64xi1>, vector<64x64xi32>
    %cst_38 = arith.constant dense<2147483647> : vector<64xi32>
    %99 = vector.multi_reduction <minsi>, %98, %cst_38 [1] : vector<64x64xi32> to vector<64xi32>
    %100 = vector.shape_cast %99 : vector<64xi32> to vector<64x1xi32>
    %101 = vector.broadcast %100 : vector<64x1xi32> to vector<64x64xi32>
    %102 = arith.cmpi eq, %6, %101 : vector<64x64xi32>
    %103 = arith.extui %102 : vector<64x64xi1> to vector<64x64xi32>
    %104 = arith.sitofp %103 : vector<64x64xi32> to vector<64x64xf32>
    %cst_39 = arith.constant dense<0.000000e+00> : vector<64x128xf32>
    %105 = tpu.matmul %104, %24, %cst_39 {dimension_numbers = #tpu.dot_dimension_numbers<[1], [0], [0], [1], [0, 0, 1, 1], [], []>} : vector<64x64xf32>, vector<64x128xf32>, vector<64x128xf32> -> vector<64x128xf32>
    %106 = arith.addf %21, %105 : vector<64x128xf32>
    %cst_40 = arith.constant 0.000000e+00 : f32
    %107 = vector.broadcast %cst_40 : f32 to vector<64x128xf32>
    %108 = arith.cmpf oge, %106, %107 : vector<64x128xf32>
    %cst_41 = arith.constant 2.000000e-01 : f32
    %109 = vector.broadcast %cst_41 : f32 to vector<64x128xf32>
    %110 = arith.mulf %109, %106 : vector<64x128xf32>
    %111 = arith.select %108, %106, %110 : vector<64x128xi1>, vector<64x128xf32>
    %112 = arith.maximumf %90, %111 : vector<64x128xf32>
    %113 = vector.broadcast %cst_17 : f32 to vector<64x64xf32>
    %114 = arith.select %102, %113, %92 : vector<64x64xi1>, vector<64x64xf32>
    %c4_i32 = arith.constant 4 : i32
    %cst_42 = arith.constant dense<0x7F800000> : vector<64xf32>
    %115 = vector.multi_reduction <minimumf>, %114, %cst_42 [1] : vector<64x64xf32> to vector<64xf32>
    %116 = vector.shape_cast %115 : vector<64xf32> to vector<64x1xf32>
    %117 = vector.broadcast %116 : vector<64x1xf32> to vector<64x64xf32>
    %118 = arith.cmpf ole, %114, %117 : vector<64x64xf32>
    %c64_i32_43 = arith.constant 64 : i32
    %119 = vector.broadcast %c64_i32_43 : i32 to vector<64x64xi32>
    %120 = arith.select %118, %6, %119 : vector<64x64xi1>, vector<64x64xi32>
    %cst_44 = arith.constant dense<2147483647> : vector<64xi32>
    %121 = vector.multi_reduction <minsi>, %120, %cst_44 [1] : vector<64x64xi32> to vector<64xi32>
    %122 = vector.shape_cast %121 : vector<64xi32> to vector<64x1xi32>
    %123 = vector.broadcast %122 : vector<64x1xi32> to vector<64x64xi32>
    %124 = arith.cmpi eq, %6, %123 : vector<64x64xi32>
    %125 = arith.extui %124 : vector<64x64xi1> to vector<64x64xi32>
    %126 = arith.sitofp %125 : vector<64x64xi32> to vector<64x64xf32>
    %cst_45 = arith.constant dense<0.000000e+00> : vector<64x128xf32>
    %127 = tpu.matmul %126, %24, %cst_45 {dimension_numbers = #tpu.dot_dimension_numbers<[1], [0], [0], [1], [0, 0, 1, 1], [], []>} : vector<64x64xf32>, vector<64x128xf32>, vector<64x128xf32> -> vector<64x128xf32>
    %128 = arith.addf %21, %127 : vector<64x128xf32>
    %cst_46 = arith.constant 0.000000e+00 : f32
    %129 = vector.broadcast %cst_46 : f32 to vector<64x128xf32>
    %130 = arith.cmpf oge, %128, %129 : vector<64x128xf32>
    %cst_47 = arith.constant 2.000000e-01 : f32
    %131 = vector.broadcast %cst_47 : f32 to vector<64x128xf32>
    %132 = arith.mulf %131, %128 : vector<64x128xf32>
    %133 = arith.select %130, %128, %132 : vector<64x128xi1>, vector<64x128xf32>
    %134 = arith.maximumf %112, %133 : vector<64x128xf32>
    %135 = vector.broadcast %cst_17 : f32 to vector<64x64xf32>
    %136 = arith.select %124, %135, %114 : vector<64x64xi1>, vector<64x64xf32>
    %c5_i32 = arith.constant 5 : i32
    %cst_48 = arith.constant dense<0x7F800000> : vector<64xf32>
    %137 = vector.multi_reduction <minimumf>, %136, %cst_48 [1] : vector<64x64xf32> to vector<64xf32>
    %138 = vector.shape_cast %137 : vector<64xf32> to vector<64x1xf32>
    %139 = vector.broadcast %138 : vector<64x1xf32> to vector<64x64xf32>
    %140 = arith.cmpf ole, %136, %139 : vector<64x64xf32>
    %c64_i32_49 = arith.constant 64 : i32
    %141 = vector.broadcast %c64_i32_49 : i32 to vector<64x64xi32>
    %142 = arith.select %140, %6, %141 : vector<64x64xi1>, vector<64x64xi32>
    %cst_50 = arith.constant dense<2147483647> : vector<64xi32>
    %143 = vector.multi_reduction <minsi>, %142, %cst_50 [1] : vector<64x64xi32> to vector<64xi32>
    %144 = vector.shape_cast %143 : vector<64xi32> to vector<64x1xi32>
    %145 = vector.broadcast %144 : vector<64x1xi32> to vector<64x64xi32>
    %146 = arith.cmpi eq, %6, %145 : vector<64x64xi32>
    %147 = arith.extui %146 : vector<64x64xi1> to vector<64x64xi32>
    %148 = arith.sitofp %147 : vector<64x64xi32> to vector<64x64xf32>
    %cst_51 = arith.constant dense<0.000000e+00> : vector<64x128xf32>
    %149 = tpu.matmul %148, %24, %cst_51 {dimension_numbers = #tpu.dot_dimension_numbers<[1], [0], [0], [1], [0, 0, 1, 1], [], []>} : vector<64x64xf32>, vector<64x128xf32>, vector<64x128xf32> -> vector<64x128xf32>
    %150 = arith.addf %21, %149 : vector<64x128xf32>
    %cst_52 = arith.constant 0.000000e+00 : f32
    %151 = vector.broadcast %cst_52 : f32 to vector<64x128xf32>
    %152 = arith.cmpf oge, %150, %151 : vector<64x128xf32>
    %cst_53 = arith.constant 2.000000e-01 : f32
    %153 = vector.broadcast %cst_53 : f32 to vector<64x128xf32>
    %154 = arith.mulf %153, %150 : vector<64x128xf32>
    %155 = arith.select %152, %150, %154 : vector<64x128xi1>, vector<64x128xf32>
    %156 = arith.maximumf %134, %155 : vector<64x128xf32>
    %157 = vector.broadcast %cst_17 : f32 to vector<64x64xf32>
    %158 = arith.select %146, %157, %136 : vector<64x64xi1>, vector<64x64xf32>
    %c6_i32 = arith.constant 6 : i32
    %cst_54 = arith.constant dense<0x7F800000> : vector<64xf32>
    %159 = vector.multi_reduction <minimumf>, %158, %cst_54 [1] : vector<64x64xf32> to vector<64xf32>
    %160 = vector.shape_cast %159 : vector<64xf32> to vector<64x1xf32>
    %161 = vector.broadcast %160 : vector<64x1xf32> to vector<64x64xf32>
    %162 = arith.cmpf ole, %158, %161 : vector<64x64xf32>
    %c64_i32_55 = arith.constant 64 : i32
    %163 = vector.broadcast %c64_i32_55 : i32 to vector<64x64xi32>
    %164 = arith.select %162, %6, %163 : vector<64x64xi1>, vector<64x64xi32>
    %cst_56 = arith.constant dense<2147483647> : vector<64xi32>
    %165 = vector.multi_reduction <minsi>, %164, %cst_56 [1] : vector<64x64xi32> to vector<64xi32>
    %166 = vector.shape_cast %165 : vector<64xi32> to vector<64x1xi32>
    %167 = vector.broadcast %166 : vector<64x1xi32> to vector<64x64xi32>
    %168 = arith.cmpi eq, %6, %167 : vector<64x64xi32>
    %169 = arith.extui %168 : vector<64x64xi1> to vector<64x64xi32>
    %170 = arith.sitofp %169 : vector<64x64xi32> to vector<64x64xf32>
    %cst_57 = arith.constant dense<0.000000e+00> : vector<64x128xf32>
    %171 = tpu.matmul %170, %24, %cst_57 {dimension_numbers = #tpu.dot_dimension_numbers<[1], [0], [0], [1], [0, 0, 1, 1], [], []>} : vector<64x64xf32>, vector<64x128xf32>, vector<64x128xf32> -> vector<64x128xf32>
    %172 = arith.addf %21, %171 : vector<64x128xf32>
    %cst_58 = arith.constant 0.000000e+00 : f32
    %173 = vector.broadcast %cst_58 : f32 to vector<64x128xf32>
    %174 = arith.cmpf oge, %172, %173 : vector<64x128xf32>
    %cst_59 = arith.constant 2.000000e-01 : f32
    %175 = vector.broadcast %cst_59 : f32 to vector<64x128xf32>
    %176 = arith.mulf %175, %172 : vector<64x128xf32>
    %177 = arith.select %174, %172, %176 : vector<64x128xi1>, vector<64x128xf32>
    %178 = arith.maximumf %156, %177 : vector<64x128xf32>
    %179 = vector.broadcast %cst_17 : f32 to vector<64x64xf32>
    %180 = arith.select %168, %179, %158 : vector<64x64xi1>, vector<64x64xf32>
    %c7_i32 = arith.constant 7 : i32
    %cst_60 = arith.constant dense<0x7F800000> : vector<64xf32>
    %181 = vector.multi_reduction <minimumf>, %180, %cst_60 [1] : vector<64x64xf32> to vector<64xf32>
    %182 = vector.shape_cast %181 : vector<64xf32> to vector<64x1xf32>
    %183 = vector.broadcast %182 : vector<64x1xf32> to vector<64x64xf32>
    %184 = arith.cmpf ole, %180, %183 : vector<64x64xf32>
    %c64_i32_61 = arith.constant 64 : i32
    %185 = vector.broadcast %c64_i32_61 : i32 to vector<64x64xi32>
    %186 = arith.select %184, %6, %185 : vector<64x64xi1>, vector<64x64xi32>
    %cst_62 = arith.constant dense<2147483647> : vector<64xi32>
    %187 = vector.multi_reduction <minsi>, %186, %cst_62 [1] : vector<64x64xi32> to vector<64xi32>
    %188 = vector.shape_cast %187 : vector<64xi32> to vector<64x1xi32>
    %189 = vector.broadcast %188 : vector<64x1xi32> to vector<64x64xi32>
    %190 = arith.cmpi eq, %6, %189 : vector<64x64xi32>
    %191 = arith.extui %190 : vector<64x64xi1> to vector<64x64xi32>
    %192 = arith.sitofp %191 : vector<64x64xi32> to vector<64x64xf32>
    %cst_63 = arith.constant dense<0.000000e+00> : vector<64x128xf32>
    %193 = tpu.matmul %192, %24, %cst_63 {dimension_numbers = #tpu.dot_dimension_numbers<[1], [0], [0], [1], [0, 0, 1, 1], [], []>} : vector<64x64xf32>, vector<64x128xf32>, vector<64x128xf32> -> vector<64x128xf32>
    %194 = arith.addf %21, %193 : vector<64x128xf32>
    %cst_64 = arith.constant 0.000000e+00 : f32
    %195 = vector.broadcast %cst_64 : f32 to vector<64x128xf32>
    %196 = arith.cmpf oge, %194, %195 : vector<64x128xf32>
    %cst_65 = arith.constant 2.000000e-01 : f32
    %197 = vector.broadcast %cst_65 : f32 to vector<64x128xf32>
    %198 = arith.mulf %197, %194 : vector<64x128xf32>
    %199 = arith.select %196, %194, %198 : vector<64x128xi1>, vector<64x128xf32>
    %200 = arith.maximumf %178, %199 : vector<64x128xf32>
    %201 = vector.broadcast %cst_17 : f32 to vector<64x64xf32>
    %202 = arith.select %190, %201, %180 : vector<64x64xi1>, vector<64x64xf32>
    %c0_66 = arith.constant 0 : index
    %c0_67 = arith.constant 0 : index
    %203 = vector.load %arg6[%c0_66, %c0_67] : memref<64x128xf32, #tpu.memory_space<vmem>>, vector<64x128xf32>
    tpu.vector_store %arg6[%c0_66, %c0_67], %200 {strides = array<i32>} : memref<64x128xf32, #tpu.memory_space<vmem>>, vector<64x128xf32>,
    return
  }
  func.func @transform_0(%arg0: i32) -> (i32, i32) {
    %c0_i32 = arith.constant 0 : i32
    %c0_i32_0 = arith.constant 0 : i32
    %c0_i32_1 = arith.constant 0 : i32
    return %c0_i32, %c0_i32_0 : i32, i32
  }
  func.func @transform_1(%arg0: i32) -> (i32, i32) {
    %c0_i32 = arith.constant 0 : i32
    %c0_i32_0 = arith.constant 0 : i32
    %c0_i32_1 = arith.constant 0 : i32
    return %c0_i32, %c0_i32_0 : i32, i32
  }
  func.func @transform_2(%arg0: i32) -> (i32, i32) {
    %c0_i32 = arith.constant 0 : i32
    %c0_i32_0 = arith.constant 0 : i32
    %c0_i32_1 = arith.constant 0 : i32
    return %c0_i32, %c0_i32_0 : i32, i32
  }
  func.func @transform_3(%arg0: i32) -> (i32, i32) {
    %c0_i32 = arith.constant 0 : i32
    %c0_i32_0 = arith.constant 0 : i32
    %c0_i32_1 = arith.constant 0 : i32
    return %c0_i32, %c0_i32_0 : i32, i32
  }
  func.func @transform_4(%arg0: i32) -> (i32, i32) {
    %c0_i32 = arith.constant 0 : i32
    %c0_i32_0 = arith.constant 0 : i32
    %c0_i32_1 = arith.constant 0 : i32
    return %c0_i32, %c0_i32_0 : i32, i32
  }
  func.func @transform_5(%arg0: i32) -> (i32, i32) {
    %c0_i32 = arith.constant 0 : i32
    %c0_i32_0 = arith.constant 0 : i32
    return %arg0, %c0_i32 : i32, i32
  }
}

module attributes {stable_mosaic.version = 11 : i64} {
  func.func @edge_conv_kernel(%arg0: i32, %arg1: memref<64x128xf32, #tpu.memory_space<vmem>>, %arg2: memref<1x64xf32, #tpu.memory_space<vmem>>, %arg3: memref<128x128xbf16, #tpu.memory_space<vmem>>, %arg4: memref<128x128xbf16, #tpu.memory_space<vmem>>, %arg5: memref<1x128xf32, #tpu.memory_space<vmem>>, %arg6: memref<64x128xf32, #tpu.memory_space<vmem>>) attributes {dimension_semantics = [#tpu.dimension_semantics<parallel>], iteration_bounds = array<i64: 1>, scalar_prefetch = 0 : i64, scratch_operands = 0 : i64, tpu.core_type = #tpu.core_type<tc>, window_params = [{pipeline_mode = #tpu.pipeline_mode<synchronous>, transform_indices = @transform_0, window_bounds = array<i64: 64, 128>}, {pipeline_mode = #tpu.pipeline_mode<synchronous>, transform_indices = @transform_1, window_bounds = array<i64: 1, 64>}, {pipeline_mode = #tpu.pipeline_mode<synchronous>, transform_indices = @transform_2, window_bounds = array<i64: 128, 128>}, {pipeline_mode = #tpu.pipeline_mode<synchronous>, transform_indices = @transform_3, window_bounds = array<i64: 128, 128>}, {pipeline_mode = #tpu.pipeline_mode<synchronous>, transform_indices = @transform_4, window_bounds = array<i64: 1, 128>}, {transform_indices = @transform_5, window_bounds = array<i64: 64, 128>}]} {
    %c0 = arith.constant 0 : index
    %c0_0 = arith.constant 0 : index
    %0 = vector.load %arg1[%c0, %c0_0] : memref<64x128xf32, #tpu.memory_space<vmem>>, vector<64x128xf32>
    %c64_i32 = arith.constant 64 : i32
    %1 = arith.muli %arg0, %c64_i32 : i32
    %2 = tpu.assume_multiple %1, 64 : i32
    %3 = arith.index_cast %2 : i32 to index
    %c0_1 = arith.constant 0 : index
    %4 = vector.load %arg1[%3, %c0_1] : memref<64x128xf32, #tpu.memory_space<vmem>>, vector<64x128xf32>
    %cst = arith.constant dense<0.000000e+00> : vector<64x64xf32>
    %5 = tpu.matmul %4, %0, %cst {dimension_numbers = #tpu.dot_dimension_numbers<[1], [1], [0], [0], [0, 0, 1, 0], [], []>} : vector<64x128xf32>, vector<64x128xf32>, vector<64x64xf32> -> vector<64x64xf32>
    %6 = tpu.iota {dimensions = array<i32: 1>} : vector<64x64xi32>
    %c0_2 = arith.constant 0 : index
    %c0_3 = arith.constant 0 : index
    %7 = vector.load %arg2[%c0_2, %c0_3] : memref<1x64xf32, #tpu.memory_space<vmem>>, vector<1x64xf32>
    %cst_4 = arith.constant 2.000000e+00 : f32
    %8 = vector.broadcast %cst_4 : f32 to vector<64x64xf32>
    %9 = arith.mulf %8, %5 : vector<64x64xf32>
    %10 = vector.broadcast %7 : vector<1x64xf32> to vector<64x64xf32>
    %11 = arith.subf %10, %9 : vector<64x64xf32>
    %c64_i32_5 = arith.constant 64 : i32
    %12 = vector.broadcast %c64_i32_5 : i32 to vector<64x64xi32>
    %13 = arith.cmpi slt, %6, %12 : vector<64x64xi32>
    %cst_6 = arith.constant 1.000000e+30 : f32
    %14 = vector.broadcast %cst_6 : f32 to vector<64x64xf32>
    %15 = arith.select %13, %11, %14 : vector<64x64xi1>, vector<64x64xf32>
    %16 = arith.truncf %4 : vector<64x128xf32> to vector<64x128xbf16>
    %c0_7 = arith.constant 0 : index
    %c0_8 = arith.constant 0 : index
    %17 = vector.load %arg3[%c0_7, %c0_8] : memref<128x128xbf16, #tpu.memory_space<vmem>>, vector<128x128xbf16>
    %cst_9 = arith.constant dense<0.000000e+00> : vector<64x128xf32>
    %18 = tpu.matmul %16, %17, %cst_9 {dimension_numbers = #tpu.dot_dimension_numbers<[1], [0], [0], [1], [0, 0, 1, 1], [], []>} : vector<64x128xbf16>, vector<128x128xbf16>, vector<64x128xf32> -> vector<64x128xf32>
    %c0_10 = arith.constant 0 : index
    %c0_11 = arith.constant 0 : index
    %19 = vector.load %arg5[%c0_10, %c0_11] : memref<1x128xf32, #tpu.memory_space<vmem>>, vector<1x128xf32>
    %20 = vector.broadcast %19 : vector<1x128xf32> to vector<64x128xf32>
    %21 = arith.addf %18, %20 : vector<64x128xf32>
    %22 = arith.truncf %0 : vector<64x128xf32> to vector<64x128xbf16>
    %c0_12 = arith.constant 0 : index
    %c0_13 = arith.constant 0 : index
    %23 = vector.load %arg4[%c0_12, %c0_13] : memref<128x128xbf16, #tpu.memory_space<vmem>>, vector<128x128xbf16>
    %cst_14 = arith.constant dense<0.000000e+00> : vector<64x128xf32>
    %24 = tpu.matmul %22, %23, %cst_14 {dimension_numbers = #tpu.dot_dimension_numbers<[1], [0], [0], [1], [0, 0, 1, 1], [], []>} : vector<64x128xbf16>, vector<128x128xbf16>, vector<64x128xf32> -> vector<64x128xf32>
    %cst_15 = arith.constant 0.000000e+00 : f32
    %cst_16 = arith.constant 1.000000e+30 : f32
    %25 = arith.subf %cst_15, %cst_16 : f32
    %26 = vector.broadcast %25 : f32 to vector<64x128xf32>
    %cst_17 = arith.constant 1.000000e+30 : f32
    %c0_i32 = arith.constant 0 : i32
    %cst_18 = arith.constant dense<0x7F800000> : vector<64xf32>
    %27 = vector.multi_reduction <minimumf>, %15, %cst_18 [1] : vector<64x64xf32> to vector<64xf32>
    %28 = vector.shape_cast %27 : vector<64xf32> to vector<64x1xf32>
    %29 = vector.broadcast %28 : vector<64x1xf32> to vector<64x64xf32>
    %30 = arith.cmpf ole, %15, %29 : vector<64x64xf32>
    %c64_i32_19 = arith.constant 64 : i32
    %31 = vector.broadcast %c64_i32_19 : i32 to vector<64x64xi32>
    %32 = arith.select %30, %6, %31 : vector<64x64xi1>, vector<64x64xi32>
    %cst_20 = arith.constant dense<2147483647> : vector<64xi32>
    %33 = vector.multi_reduction <minsi>, %32, %cst_20 [1] : vector<64x64xi32> to vector<64xi32>
    %34 = vector.shape_cast %33 : vector<64xi32> to vector<64x1xi32>
    %35 = vector.broadcast %34 : vector<64x1xi32> to vector<64x64xi32>
    %36 = arith.cmpi eq, %6, %35 : vector<64x64xi32>
    %37 = arith.extui %36 : vector<64x64xi1> to vector<64x64xi32>
    %38 = arith.sitofp %37 : vector<64x64xi32> to vector<64x64xf32>
    %cst_21 = arith.constant dense<0.000000e+00> : vector<64x128xf32>
    %39 = tpu.matmul %38, %24, %cst_21 {dimension_numbers = #tpu.dot_dimension_numbers<[1], [0], [0], [1], [0, 0, 1, 1], [], []>} : vector<64x64xf32>, vector<64x128xf32>, vector<64x128xf32> -> vector<64x128xf32>
    %40 = arith.addf %21, %39 : vector<64x128xf32>
    %cst_22 = arith.constant 0.000000e+00 : f32
    %41 = vector.broadcast %cst_22 : f32 to vector<64x128xf32>
    %42 = arith.cmpf oge, %40, %41 : vector<64x128xf32>
    %cst_23 = arith.constant 2.000000e-01 : f32
    %43 = vector.broadcast %cst_23 : f32 to vector<64x128xf32>
    %44 = arith.mulf %43, %40 : vector<64x128xf32>
    %45 = arith.select %42, %40, %44 : vector<64x128xi1>, vector<64x128xf32>
    %46 = arith.maximumf %26, %45 : vector<64x128xf32>
    %47 = vector.broadcast %cst_17 : f32 to vector<64x64xf32>
    %48 = arith.select %36, %47, %15 : vector<64x64xi1>, vector<64x64xf32>
    %c1_i32 = arith.constant 1 : i32
    %cst_24 = arith.constant dense<0x7F800000> : vector<64xf32>
    %49 = vector.multi_reduction <minimumf>, %48, %cst_24 [1] : vector<64x64xf32> to vector<64xf32>
    %50 = vector.shape_cast %49 : vector<64xf32> to vector<64x1xf32>
    %51 = vector.broadcast %50 : vector<64x1xf32> to vector<64x64xf32>
    %52 = arith.cmpf ole, %48, %51 : vector<64x64xf32>
    %c64_i32_25 = arith.constant 64 : i32
    %53 = vector.broadcast %c64_i32_25 : i32 to vector<64x64xi32>
    %54 = arith.select %52, %6, %53 : vector<64x64xi1>, vector<64x64xi32>
    %cst_26 = arith.constant dense<2147483647> : vector<64xi32>
    %55 = vector.multi_reduction <minsi>, %54, %cst_26 [1] : vector<64x64xi32> to vector<64xi32>
    %56 = vector.shape_cast %55 : vector<64xi32> to vector<64x1xi32>
    %57 = vector.broadcast %56 : vector<64x1xi32> to vector<64x64xi32>
    %58 = arith.cmpi eq, %6, %57 : vector<64x64xi32>
    %59 = arith.extui %58 : vector<64x64xi1> to vector<64x64xi32>
    %60 = arith.sitofp %59 : vector<64x64xi32> to vector<64x64xf32>
    %cst_27 = arith.constant dense<0.000000e+00> : vector<64x128xf32>
    %61 = tpu.matmul %60, %24, %cst_27 {dimension_numbers = #tpu.dot_dimension_numbers<[1], [0], [0], [1], [0, 0, 1, 1], [], []>} : vector<64x64xf32>, vector<64x128xf32>, vector<64x128xf32> -> vector<64x128xf32>
    %62 = arith.addf %21, %61 : vector<64x128xf32>
    %cst_28 = arith.constant 0.000000e+00 : f32
    %63 = vector.broadcast %cst_28 : f32 to vector<64x128xf32>
    %64 = arith.cmpf oge, %62, %63 : vector<64x128xf32>
    %cst_29 = arith.constant 2.000000e-01 : f32
    %65 = vector.broadcast %cst_29 : f32 to vector<64x128xf32>
    %66 = arith.mulf %65, %62 : vector<64x128xf32>
    %67 = arith.select %64, %62, %66 : vector<64x128xi1>, vector<64x128xf32>
    %68 = arith.maximumf %46, %67 : vector<64x128xf32>
    %69 = vector.broadcast %cst_17 : f32 to vector<64x64xf32>
    %70 = arith.select %58, %69, %48 : vector<64x64xi1>, vector<64x64xf32>
    %c2_i32 = arith.constant 2 : i32
    %cst_30 = arith.constant dense<0x7F800000> : vector<64xf32>
    %71 = vector.multi_reduction <minimumf>, %70, %cst_30 [1] : vector<64x64xf32> to vector<64xf32>
    %72 = vector.shape_cast %71 : vector<64xf32> to vector<64x1xf32>
    %73 = vector.broadcast %72 : vector<64x1xf32> to vector<64x64xf32>
    %74 = arith.cmpf ole, %70, %73 : vector<64x64xf32>
    %c64_i32_31 = arith.constant 64 : i32
    %75 = vector.broadcast %c64_i32_31 : i32 to vector<64x64xi32>
    %76 = arith.select %74, %6, %75 : vector<64x64xi1>, vector<64x64xi32>
    %cst_32 = arith.constant dense<2147483647> : vector<64xi32>
    %77 = vector.multi_reduction <minsi>, %76, %cst_32 [1] : vector<64x64xi32> to vector<64xi32>
    %78 = vector.shape_cast %77 : vector<64xi32> to vector<64x1xi32>
    %79 = vector.broadcast %78 : vector<64x1xi32> to vector<64x64xi32>
    %80 = arith.cmpi eq, %6, %79 : vector<64x64xi32>
    %81 = arith.extui %80 : vector<64x64xi1> to vector<64x64xi32>
    %82 = arith.sitofp %81 : vector<64x64xi32> to vector<64x64xf32>
    %cst_33 = arith.constant dense<0.000000e+00> : vector<64x128xf32>
    %83 = tpu.matmul %82, %24, %cst_33 {dimension_numbers = #tpu.dot_dimension_numbers<[1], [0], [0], [1], [0, 0, 1, 1], [], []>} : vector<64x64xf32>, vector<64x128xf32>, vector<64x128xf32> -> vector<64x128xf32>
    %84 = arith.addf %21, %83 : vector<64x128xf32>
    %cst_34 = arith.constant 0.000000e+00 : f32
    %85 = vector.broadcast %cst_34 : f32 to vector<64x128xf32>
    %86 = arith.cmpf oge, %84, %85 : vector<64x128xf32>
    %cst_35 = arith.constant 2.000000e-01 : f32
    %87 = vector.broadcast %cst_35 : f32 to vector<64x128xf32>
    %88 = arith.mulf %87, %84 : vector<64x128xf32>
    %89 = arith.select %86, %84, %88 : vector<64x128xi1>, vector<64x128xf32>
    %90 = arith.maximumf %68, %89 : vector<64x128xf32>
    %91 = vector.broadcast %cst_17 : f32 to vector<64x64xf32>
    %92 = arith.select %80, %91, %70 : vector<64x64xi1>, vector<64x64xf32>
    %c3_i32 = arith.constant 3 : i32
    %cst_36 = arith.constant dense<0x7F800000> : vector<64xf32>
    %93 = vector.multi_reduction <minimumf>, %92, %cst_36 [1] : vector<64x64xf32> to vector<64xf32>
    %94 = vector.shape_cast %93 : vector<64xf32> to vector<64x1xf32>
    %95 = vector.broadcast %94 : vector<64x1xf32> to vector<64x64xf32>
    %96 = arith.cmpf ole, %92, %95 : vector<64x64xf32>
    %c64_i32_37 = arith.constant 64 : i32
    %97 = vector.broadcast %c64_i32_37 : i32 to vector<64x64xi32>
    %98 = arith.select %96, %6, %97 : vector<64x64xi1>, vector<64x64xi32>
    %cst_38 = arith.constant dense<2147483647> : vector<64xi32>
    %99 = vector.multi_reduction <minsi>, %98, %cst_38 [1] : vector<64x64xi32> to vector<64xi32>
    %100 = vector.shape_cast %99 : vector<64xi32> to vector<64x1xi32>
    %101 = vector.broadcast %100 : vector<64x1xi32> to vector<64x64xi32>
    %102 = arith.cmpi eq, %6, %101 : vector<64x64xi32>
    %103 = arith.extui %102 : vector<64x64xi1> to vector<64x64xi32>
    %104 = arith.sitofp %103 : vector<64x64xi32> to vector<64x64xf32>
    %cst_39 = arith.constant dense<0.000000e+00> : vector<64x128xf32>
    %105 = tpu.matmul %104, %24, %cst_39 {dimension_numbers = #tpu.dot_dimension_numbers<[1], [0], [0], [1], [0, 0, 1, 1], [], []>} : vector<64x64xf32>, vector<64x128xf32>, vector<64x128xf32> -> vector<64x128xf32>
    %106 = arith.addf %21, %105 : vector<64x128xf32>
    %cst_40 = arith.constant 0.000000e+00 : f32
    %107 = vector.broadcast %cst_40 : f32 to vector<64x128xf32>
    %108 = arith.cmpf oge, %106, %107 : vector<64x128xf32>
    %cst_41 = arith.constant 2.000000e-01 : f32
    %109 = vector.broadcast %cst_41 : f32 to vector<64x128xf32>
    %110 = arith.mulf %109, %106 : vector<64x128xf32>
    %111 = arith.select %108, %106, %110 : vector<64x128xi1>, vector<64x128xf32>
    %112 = arith.maximumf %90, %111 : vector<64x128xf32>
    %113 = vector.broadcast %cst_17 : f32 to vector<64x64xf32>
    %114 = arith.select %102, %113, %92 : vector<64x64xi1>, vector<64x64xf32>
    %c4_i32 = arith.constant 4 : i32
    %cst_42 = arith.constant dense<0x7F800000> : vector<64xf32>
    %115 = vector.multi_reduction <minimumf>, %114, %cst_42 [1] : vector<64x64xf32> to vector<64xf32>
    %116 = vector.shape_cast %115 : vector<64xf32> to vector<64x1xf32>
    %117 = vector.broadcast %116 : vector<64x1xf32> to vector<64x64xf32>
    %118 = arith.cmpf ole, %114, %117 : vector<64x64xf32>
    %c64_i32_43 = arith.constant 64 : i32
    %119 = vector.broadcast %c64_i32_43 : i32 to vector<64x64xi32>
    %120 = arith.select %118, %6, %119 : vector<64x64xi1>, vector<64x64xi32>
    %cst_44 = arith.constant dense<2147483647> : vector<64xi32>
    %121 = vector.multi_reduction <minsi>, %120, %cst_44 [1] : vector<64x64xi32> to vector<64xi32>
    %122 = vector.shape_cast %121 : vector<64xi32> to vector<64x1xi32>
    %123 = vector.broadcast %122 : vector<64x1xi32> to vector<64x64xi32>
    %124 = arith.cmpi eq, %6, %123 : vector<64x64xi32>
    %125 = arith.extui %124 : vector<64x64xi1> to vector<64x64xi32>
    %126 = arith.sitofp %125 : vector<64x64xi32> to vector<64x64xf32>
    %cst_45 = arith.constant dense<0.000000e+00> : vector<64x128xf32>
    %127 = tpu.matmul %126, %24, %cst_45 {dimension_numbers = #tpu.dot_dimension_numbers<[1], [0], [0], [1], [0, 0, 1, 1], [], []>} : vector<64x64xf32>, vector<64x128xf32>, vector<64x128xf32> -> vector<64x128xf32>
    %128 = arith.addf %21, %127 : vector<64x128xf32>
    %cst_46 = arith.constant 0.000000e+00 : f32
    %129 = vector.broadcast %cst_46 : f32 to vector<64x128xf32>
    %130 = arith.cmpf oge, %128, %129 : vector<64x128xf32>
    %cst_47 = arith.constant 2.000000e-01 : f32
    %131 = vector.broadcast %cst_47 : f32 to vector<64x128xf32>
    %132 = arith.mulf %131, %128 : vector<64x128xf32>
    %133 = arith.select %130, %128, %132 : vector<64x128xi1>, vector<64x128xf32>
    %134 = arith.maximumf %112, %133 : vector<64x128xf32>
    %135 = vector.broadcast %cst_17 : f32 to vector<64x64xf32>
    %136 = arith.select %124, %135, %114 : vector<64x64xi1>, vector<64x64xf32>
    %c5_i32 = arith.constant 5 : i32
    %cst_48 = arith.constant dense<0x7F800000> : vector<64xf32>
    %137 = vector.multi_reduction <minimumf>, %136, %cst_48 [1] : vector<64x64xf32> to vector<64xf32>
    %138 = vector.shape_cast %137 : vector<64xf32> to vector<64x1xf32>
    %139 = vector.broadcast %138 : vector<64x1xf32> to vector<64x64xf32>
    %140 = arith.cmpf ole, %136, %139 : vector<64x64xf32>
    %c64_i32_49 = arith.constant 64 : i32
    %141 = vector.broadcast %c64_i32_49 : i32 to vector<64x64xi32>
    %142 = arith.select %140, %6, %141 : vector<64x64xi1>, vector<64x64xi32>
    %cst_50 = arith.constant dense<2147483647> : vector<64xi32>
    %143 = vector.multi_reduction <minsi>, %142, %cst_50 [1] : vector<64x64xi32> to vector<64xi32>
    %144 = vector.shape_cast %143 : vector<64xi32> to vector<64x1xi32>
    %145 = vector.broadcast %144 : vector<64x1xi32> to vector<64x64xi32>
    %146 = arith.cmpi eq, %6, %145 : vector<64x64xi32>
    %147 = arith.extui %146 : vector<64x64xi1> to vector<64x64xi32>
    %148 = arith.sitofp %147 : vector<64x64xi32> to vector<64x64xf32>
    %cst_51 = arith.constant dense<0.000000e+00> : vector<64x128xf32>
    %149 = tpu.matmul %148, %24, %cst_51 {dimension_numbers = #tpu.dot_dimension_numbers<[1], [0], [0], [1], [0, 0, 1, 1], [], []>} : vector<64x64xf32>, vector<64x128xf32>, vector<64x128xf32> -> vector<64x128xf32>
    %150 = arith.addf %21, %149 : vector<64x128xf32>
    %cst_52 = arith.constant 0.000000e+00 : f32
    %151 = vector.broadcast %cst_52 : f32 to vector<64x128xf32>
    %152 = arith.cmpf oge, %150, %151 : vector<64x128xf32>
    %cst_53 = arith.constant 2.000000e-01 : f32
    %153 = vector.broadcast %cst_53 : f32 to vector<64x128xf32>
    %154 = arith.mulf %153, %150 : vector<64x128xf32>
    %155 = arith.select %152, %150, %154 : vector<64x128xi1>, vector<64x128xf32>
    %156 = arith.maximumf %134, %155 : vector<64x128xf32>
    %157 = vector.broadcast %cst_17 : f32 to vector<64x64xf32>
    %158 = arith.select %146, %157, %136 : vector<64x64xi1>, vector<64x64xf32>
    %c6_i32 = arith.constant 6 : i32
    %cst_54 = arith.constant dense<0x7F800000> : vector<64xf32>
    %159 = vector.multi_reduction <minimumf>, %158, %cst_54 [1] : vector<64x64xf32> to vector<64xf32>
    %160 = vector.shape_cast %159 : vector<64xf32> to vector<64x1xf32>
    %161 = vector.broadcast %160 : vector<64x1xf32> to vector<64x64xf32>
    %162 = arith.cmpf ole, %158, %161 : vector<64x64xf32>
    %c64_i32_55 = arith.constant 64 : i32
    %163 = vector.broadcast %c64_i32_55 : i32 to vector<64x64xi32>
    %164 = arith.select %162, %6, %163 : vector<64x64xi1>, vector<64x64xi32>
    %cst_56 = arith.constant dense<2147483647> : vector<64xi32>
    %165 = vector.multi_reduction <minsi>, %164, %cst_56 [1] : vector<64x64xi32> to vector<64xi32>
    %166 = vector.shape_cast %165 : vector<64xi32> to vector<64x1xi32>
    %167 = vector.broadcast %166 : vector<64x1xi32> to vector<64x64xi32>
    %168 = arith.cmpi eq, %6, %167 : vector<64x64xi32>
    %169 = arith.extui %168 : vector<64x64xi1> to vector<64x64xi32>
    %170 = arith.sitofp %169 : vector<64x64xi32> to vector<64x64xf32>
    %cst_57 = arith.constant dense<0.000000e+00> : vector<64x128xf32>
    %171 = tpu.matmul %170, %24, %cst_57 {dimension_numbers = #tpu.dot_dimension_numbers<[1], [0], [0], [1], [0, 0, 1, 1], [], []>} : vector<64x64xf32>, vector<64x128xf32>, vector<64x128xf32> -> vector<64x128xf32>
    %172 = arith.addf %21, %171 : vector<64x128xf32>
    %cst_58 = arith.constant 0.000000e+00 : f32
    %173 = vector.broadcast %cst_58 : f32 to vector<64x128xf32>
    %174 = arith.cmpf oge, %172, %173 : vector<64x128xf32>
    %cst_59 = arith.constant 2.000000e-01 : f32
    %175 = vector.broadcast %cst_59 : f32 to vector<64x128xf32>
    %176 = arith.mulf %175, %172 : vector<64x128xf32>
    %177 = arith.select %174, %172, %176 : vector<64x128xi1>, vector<64x128xf32>
    %178 = arith.maximumf %156, %177 : vector<64x128xf32>
    %179 = vector.broadcast %cst_17 : f32 to vector<64x64xf32>
    %180 = arith.select %168, %179, %158 : vector<64x64xi1>, vector<64x64xf32>
    %c7_i32 = arith.constant 7 : i32
    %cst_60 = arith.constant dense<0x7F800000> : vector<64xf32>
    %181 = vector.multi_reduction <minimumf>, %180, %cst_60 [1] : vector<64x64xf32> to vector<64xf32>
    %182 = vector.shape_cast %181 : vector<64xf32> to vector<64x1xf32>
    %183 = vector.broadcast %182 : vector<64x1xf32> to vector<64x64xf32>
    %184 = arith.cmpf ole, %180, %183 : vector<64x64xf32>
    %c64_i32_61 = arith.constant 64 : i32
    %185 = vector.broadcast %c64_i32_61 : i32 to vector<64x64xi32>
    %186 = arith.select %184, %6, %185 : vector<64x64xi1>, vector<64x64xi32>
    %cst_62 = arith.constant dense<2147483647> : vector<64xi32>
    %187 = vector.multi_reduction <minsi>, %186, %cst_62 [1] : vector<64x64xi32> to vector<64xi32>
    %188 = vector.shape_cast %187 : vector<64xi32> to vector<64x1xi32>
    %189 = vector.broadcast %188 : vector<64x1xi32> to vector<64x64xi32>
    %190 = arith.cmpi eq, %6, %189 : vector<64x64xi32>
    %191 = arith.extui %190 : vector<64x64xi1> to vector<64x64xi32>
    %192 = arith.sitofp %191 : vector<64x64xi32> to vector<64x64xf32>
    %cst_63 = arith.constant dense<0.000000e+00> : vector<64x128xf32>
    %193 = tpu.matmul %192, %24, %cst_63 {dimension_numbers = #tpu.dot_dimension_numbers<[1], [0], [0], [1], [0, 0, 1, 1], [], []>} : vector<64x64xf32>, vector<64x128xf32>, vector<64x128xf32> -> vector<64x128xf32>
    %194 = arith.addf %21, %193 : vector<64x128xf32>
    %cst_64 = arith.constant 0.000000e+00 : f32
    %195 = vector.broadcast %cst_64 : f32 to vector<64x128xf32>
    %196 = arith.cmpf oge, %194, %195 : vector<64x128xf32>
    %cst_65 = arith.constant 2.000000e-01 : f32
    %197 = vector.broadcast %cst_65 : f32 to vector<64x128xf32>
    %198 = arith.mulf %197, %194 : vector<64x128xf32>
    %199 = arith.select %196, %194, %198 : vector<64x128xi1>, vector<64x128xf32>
    %200 = arith.maximumf %178, %199 : vector<64x128xf32>
    %201 = vector.broadcast %cst_17 : f32 to vector<64x64xf32>
    %202 = arith.select %190, %201, %180 : vector<64x64xi1>, vector<64x64xf32>
    %c0_66 = arith.constant 0 : index
    %c0_67 = arith.constant 0 : index
    %203 = vector.load %arg6[%c0_66, %c0_67] : memref<64x128xf32, #tpu.memory_space<vmem>>, vector<64x128xf32>
    tpu.vector_store %arg6[%c0_66, %c0_67], %200 {strides = array<i32>} : memref<64x128xf32, #tpu.memory_space<vmem>>, vector<64x128xf32>,
    return
  }
  func.func @transform_0(%arg0: i32) -> (i32, i32) {
    %c0_i32 = arith.constant 0 : i32
    %c0_i32_0 = arith.constant 0 : i32
    %c0_i32_1 = arith.constant 0 : i32
    return %c0_i32, %c0_i32_0 : i32, i32
  }
  func.func @transform_1(%arg0: i32) -> (i32, i32) {
    %c0_i32 = arith.constant 0 : i32
    %c0_i32_0 = arith.constant 0 : i32
    %c0_i32_1 = arith.constant 0 : i32
    return %c0_i32, %c0_i32_0 : i32, i32
  }
  func.func @transform_2(%arg0: i32) -> (i32, i32) {
    %c0_i32 = arith.constant 0 : i32
    %c0_i32_0 = arith.constant 0 : i32
    %c0_i32_1 = arith.constant 0 : i32
    return %c0_i32, %c0_i32_0 : i32, i32
  }
  func.func @transform_3(%arg0: i32) -> (i32, i32) {
    %c0_i32 = arith.constant 0 : i32
    %c0_i32_0 = arith.constant 0 : i32
    %c0_i32_1 = arith.constant 0 : i32
    return %c0_i32, %c0_i32_0 : i32, i32
  }
  func.func @transform_4(%arg0: i32) -> (i32, i32) {
    %c0_i32 = arith.constant 0 : i32
    %c0_i32_0 = arith.constant 0 : i32
    %c0_i32_1 = arith.constant 0 : i32
    return %c0_i32, %c0_i32_0 : i32, i32
  }
  func.func @transform_5(%arg0: i32) -> (i32, i32) {
    %c0_i32 = arith.constant 0 : i32
    %c0_i32_0 = arith.constant 0 : i32
    return %arg0, %c0_i32 : i32, i32
  }
}

module attributes {stable_mosaic.version = 11 : i64} {
  func.func @head_kernel(%arg0: i32, %arg1: memref<64x128xf32, #tpu.memory_space<vmem>>, %arg2: memref<64x128xf32, #tpu.memory_space<vmem>>, %arg3: memref<64x128xf32, #tpu.memory_space<vmem>>, %arg4: memref<128x1024xbf16, #tpu.memory_space<vmem>>, %arg5: memref<128x1024xbf16, #tpu.memory_space<vmem>>, %arg6: memref<128x1024xbf16, #tpu.memory_space<vmem>>, %arg7: memref<1x1024xf32, #tpu.memory_space<vmem>>, %arg8: memref<1024x256xbf16, #tpu.memory_space<vmem>>, %arg9: memref<1x256xf32, #tpu.memory_space<vmem>>, %arg10: memref<256x128xbf16, #tpu.memory_space<vmem>>, %arg11: memref<1x128xf32, #tpu.memory_space<vmem>>, %arg12: memref<128x128xbf16, #tpu.memory_space<vmem>>, %arg13: memref<1x128xf32, #tpu.memory_space<vmem>>, %arg14: memref<64x128xf32, #tpu.memory_space<vmem>>) attributes {dimension_semantics = [#tpu.dimension_semantics<parallel>], iteration_bounds = array<i64: 1>, scalar_prefetch = 0 : i64, scratch_operands = 0 : i64, tpu.core_type = #tpu.core_type<tc>, window_params = [{transform_indices = @transform_0, window_bounds = array<i64: 64, 128>}, {transform_indices = @transform_1, window_bounds = array<i64: 64, 128>}, {transform_indices = @transform_2, window_bounds = array<i64: 64, 128>}, {pipeline_mode = #tpu.pipeline_mode<synchronous>, transform_indices = @transform_3, window_bounds = array<i64: 128, 1024>}, {pipeline_mode = #tpu.pipeline_mode<synchronous>, transform_indices = @transform_4, window_bounds = array<i64: 128, 1024>}, {pipeline_mode = #tpu.pipeline_mode<synchronous>, transform_indices = @transform_5, window_bounds = array<i64: 128, 1024>}, {pipeline_mode = #tpu.pipeline_mode<synchronous>, transform_indices = @transform_6, window_bounds = array<i64: 1, 1024>}, {pipeline_mode = #tpu.pipeline_mode<synchronous>, transform_indices = @transform_7, window_bounds = array<i64: 1024, 256>}, {pipeline_mode = #tpu.pipeline_mode<synchronous>, transform_indices = @transform_8, window_bounds = array<i64: 1, 256>}, {pipeline_mode = #tpu.pipeline_mode<synchronous>, transform_indices = @transform_9, window_bounds = array<i64: 256, 128>}, {pipeline_mode = #tpu.pipeline_mode<synchronous>, transform_indices = @transform_10, window_bounds = array<i64: 1, 128>}, {pipeline_mode = #tpu.pipeline_mode<synchronous>, transform_indices = @transform_11, window_bounds = array<i64: 128, 128>}, {pipeline_mode = #tpu.pipeline_mode<synchronous>, transform_indices = @transform_12, window_bounds = array<i64: 1, 128>}, {transform_indices = @transform_13, window_bounds = array<i64: 64, 128>}]} {
    %c0 = arith.constant 0 : index
    %c0_0 = arith.constant 0 : index
    %0 = vector.load %arg1[%c0, %c0_0] : memref<64x128xf32, #tpu.memory_space<vmem>>, vector<64x128xf32>
    %1 = arith.truncf %0 : vector<64x128xf32> to vector<64x128xbf16>
    %c0_1 = arith.constant 0 : index
    %c0_2 = arith.constant 0 : index
    %2 = vector.load %arg4[%c0_1, %c0_2] : memref<128x1024xbf16, #tpu.memory_space<vmem>>, vector<128x1024xbf16>
    %cst = arith.constant dense<0.000000e+00> : vector<64x1024xf32>
    %3 = tpu.matmul %1, %2, %cst {dimension_numbers = #tpu.dot_dimension_numbers<[1], [0], [0], [1], [0, 0, 1, 1], [], []>} : vector<64x128xbf16>, vector<128x1024xbf16>, vector<64x1024xf32> -> vector<64x1024xf32>
    %c0_3 = arith.constant 0 : index
    %c0_4 = arith.constant 0 : index
    %4 = vector.load %arg2[%c0_3, %c0_4] : memref<64x128xf32, #tpu.memory_space<vmem>>, vector<64x128xf32>
    %5 = arith.truncf %4 : vector<64x128xf32> to vector<64x128xbf16>
    %c0_5 = arith.constant 0 : index
    %c0_6 = arith.constant 0 : index
    %6 = vector.load %arg5[%c0_5, %c0_6] : memref<128x1024xbf16, #tpu.memory_space<vmem>>, vector<128x1024xbf16>
    %cst_7 = arith.constant dense<0.000000e+00> : vector<64x1024xf32>
    %7 = tpu.matmul %5, %6, %cst_7 {dimension_numbers = #tpu.dot_dimension_numbers<[1], [0], [0], [1], [0, 0, 1, 1], [], []>} : vector<64x128xbf16>, vector<128x1024xbf16>, vector<64x1024xf32> -> vector<64x1024xf32>
    %8 = arith.addf %3, %7 : vector<64x1024xf32>
    %c0_8 = arith.constant 0 : index
    %c0_9 = arith.constant 0 : index
    %9 = vector.load %arg3[%c0_8, %c0_9] : memref<64x128xf32, #tpu.memory_space<vmem>>, vector<64x128xf32>
    %10 = arith.truncf %9 : vector<64x128xf32> to vector<64x128xbf16>
    %c0_10 = arith.constant 0 : index
    %c0_11 = arith.constant 0 : index
    %11 = vector.load %arg6[%c0_10, %c0_11] : memref<128x1024xbf16, #tpu.memory_space<vmem>>, vector<128x1024xbf16>
    %cst_12 = arith.constant dense<0.000000e+00> : vector<64x1024xf32>
    %12 = tpu.matmul %10, %11, %cst_12 {dimension_numbers = #tpu.dot_dimension_numbers<[1], [0], [0], [1], [0, 0, 1, 1], [], []>} : vector<64x128xbf16>, vector<128x1024xbf16>, vector<64x1024xf32> -> vector<64x1024xf32>
    %13 = arith.addf %8, %12 : vector<64x1024xf32>
    %c0_13 = arith.constant 0 : index
    %c0_14 = arith.constant 0 : index
    %14 = vector.load %arg7[%c0_13, %c0_14] : memref<1x1024xf32, #tpu.memory_space<vmem>>, vector<1x1024xf32>
    %15 = vector.broadcast %14 : vector<1x1024xf32> to vector<64x1024xf32>
    %16 = arith.addf %13, %15 : vector<64x1024xf32>
    %cst_15 = arith.constant 0.000000e+00 : f32
    %17 = vector.broadcast %cst_15 : f32 to vector<64x1024xf32>
    %18 = arith.cmpf oge, %16, %17 : vector<64x1024xf32>
    %cst_16 = arith.constant 2.000000e-01 : f32
    %19 = vector.broadcast %cst_16 : f32 to vector<64x1024xf32>
    %20 = arith.mulf %19, %16 : vector<64x1024xf32>
    %21 = arith.select %18, %16, %20 : vector<64x1024xi1>, vector<64x1024xf32>
    %22 = arith.truncf %21 : vector<64x1024xf32> to vector<64x1024xbf16>
    %c0_17 = arith.constant 0 : index
    %c0_18 = arith.constant 0 : index
    %23 = vector.load %arg8[%c0_17, %c0_18] : memref<1024x256xbf16, #tpu.memory_space<vmem>>, vector<1024x256xbf16>
    %cst_19 = arith.constant dense<0.000000e+00> : vector<64x256xf32>
    %24 = tpu.matmul %22, %23, %cst_19 {dimension_numbers = #tpu.dot_dimension_numbers<[1], [0], [0], [1], [0, 0, 1, 1], [], []>} : vector<64x1024xbf16>, vector<1024x256xbf16>, vector<64x256xf32> -> vector<64x256xf32>
    %c0_20 = arith.constant 0 : index
    %c0_21 = arith.constant 0 : index
    %25 = vector.load %arg9[%c0_20, %c0_21] : memref<1x256xf32, #tpu.memory_space<vmem>>, vector<1x256xf32>
    %26 = vector.broadcast %25 : vector<1x256xf32> to vector<64x256xf32>
    %27 = arith.addf %24, %26 : vector<64x256xf32>
    %cst_22 = arith.constant 0.000000e+00 : f32
    %28 = vector.broadcast %cst_22 : f32 to vector<64x256xf32>
    %29 = arith.cmpf oge, %27, %28 : vector<64x256xf32>
    %cst_23 = arith.constant 2.000000e-01 : f32
    %30 = vector.broadcast %cst_23 : f32 to vector<64x256xf32>
    %31 = arith.mulf %30, %27 : vector<64x256xf32>
    %32 = arith.select %29, %27, %31 : vector<64x256xi1>, vector<64x256xf32>
    %33 = arith.truncf %32 : vector<64x256xf32> to vector<64x256xbf16>
    %c0_24 = arith.constant 0 : index
    %c0_25 = arith.constant 0 : index
    %34 = vector.load %arg10[%c0_24, %c0_25] : memref<256x128xbf16, #tpu.memory_space<vmem>>, vector<256x128xbf16>
    %cst_26 = arith.constant dense<0.000000e+00> : vector<64x128xf32>
    %35 = tpu.matmul %33, %34, %cst_26 {dimension_numbers = #tpu.dot_dimension_numbers<[1], [0], [0], [1], [0, 0, 1, 1], [], []>} : vector<64x256xbf16>, vector<256x128xbf16>, vector<64x128xf32> -> vector<64x128xf32>
    %c0_27 = arith.constant 0 : index
    %c0_28 = arith.constant 0 : index
    %36 = vector.load %arg11[%c0_27, %c0_28] : memref<1x128xf32, #tpu.memory_space<vmem>>, vector<1x128xf32>
    %37 = vector.broadcast %36 : vector<1x128xf32> to vector<64x128xf32>
    %38 = arith.addf %35, %37 : vector<64x128xf32>
    %cst_29 = arith.constant 0.000000e+00 : f32
    %39 = vector.broadcast %cst_29 : f32 to vector<64x128xf32>
    %40 = arith.cmpf oge, %38, %39 : vector<64x128xf32>
    %cst_30 = arith.constant 2.000000e-01 : f32
    %41 = vector.broadcast %cst_30 : f32 to vector<64x128xf32>
    %42 = arith.mulf %41, %38 : vector<64x128xf32>
    %43 = arith.select %40, %38, %42 : vector<64x128xi1>, vector<64x128xf32>
    %44 = arith.truncf %43 : vector<64x128xf32> to vector<64x128xbf16>
    %c0_31 = arith.constant 0 : index
    %c0_32 = arith.constant 0 : index
    %45 = vector.load %arg12[%c0_31, %c0_32] : memref<128x128xbf16, #tpu.memory_space<vmem>>, vector<128x128xbf16>
    %cst_33 = arith.constant dense<0.000000e+00> : vector<64x128xf32>
    %46 = tpu.matmul %44, %45, %cst_33 {dimension_numbers = #tpu.dot_dimension_numbers<[1], [0], [0], [1], [0, 0, 1, 1], [], []>} : vector<64x128xbf16>, vector<128x128xbf16>, vector<64x128xf32> -> vector<64x128xf32>
    %c0_34 = arith.constant 0 : index
    %c0_35 = arith.constant 0 : index
    %47 = vector.load %arg13[%c0_34, %c0_35] : memref<1x128xf32, #tpu.memory_space<vmem>>, vector<1x128xf32>
    %48 = vector.broadcast %47 : vector<1x128xf32> to vector<64x128xf32>
    %49 = arith.addf %46, %48 : vector<64x128xf32>
    %50 = tpu.iota {dimensions = array<i32: 1>} : vector<64x128xi32>
    %c8_i32 = arith.constant 8 : i32
    %51 = vector.broadcast %c8_i32 : i32 to vector<64x128xi32>
    %52 = arith.cmpi slt, %50, %51 : vector<64x128xi32>
    %cst_36 = arith.constant -1.000000e+30 : f32
    %53 = vector.broadcast %cst_36 : f32 to vector<64x128xf32>
    %54 = arith.select %52, %49, %53 : vector<64x128xi1>, vector<64x128xf32>
    %cst_37 = arith.constant dense<0xFF800000> : vector<64xf32>
    %55 = vector.multi_reduction <maximumf>, %54, %cst_37 [1] : vector<64x128xf32> to vector<64xf32>
    %56 = vector.shape_cast %55 : vector<64xf32> to vector<64x1xf32>
    %57 = vector.broadcast %56 : vector<64x1xf32> to vector<64x128xf32>
    %58 = arith.subf %54, %57 : vector<64x128xf32>
    %59 = math.exp %58 : vector<64x128xf32>
    %cst_38 = arith.constant 0.000000e+00 : f32
    %60 = vector.broadcast %cst_38 : f32 to vector<64x128xf32>
    %61 = arith.select %52, %59, %60 : vector<64x128xi1>, vector<64x128xf32>
    %cst_39 = arith.constant dense<0.000000e+00> : vector<64xf32>
    %62 = vector.multi_reduction <add>, %61, %cst_39 [1] : vector<64x128xf32> to vector<64xf32>
    %63 = vector.shape_cast %62 : vector<64xf32> to vector<64x1xf32>
    %64 = math.log %63 : vector<64x1xf32>
    %65 = vector.broadcast %64 : vector<64x1xf32> to vector<64x128xf32>
    %66 = arith.subf %58, %65 : vector<64x128xf32>
    %c0_40 = arith.constant 0 : index
    %c0_41 = arith.constant 0 : index
    %67 = vector.load %arg14[%c0_40, %c0_41] : memref<64x128xf32, #tpu.memory_space<vmem>>, vector<64x128xf32>
    tpu.vector_store %arg14[%c0_40, %c0_41], %66 {strides = array<i32>} : memref<64x128xf32, #tpu.memory_space<vmem>>, vector<64x128xf32>,
    return
  }
  func.func @transform_0(%arg0: i32) -> (i32, i32) {
    %c0_i32 = arith.constant 0 : i32
    %c0_i32_0 = arith.constant 0 : i32
    return %arg0, %c0_i32 : i32, i32
  }
  func.func @transform_1(%arg0: i32) -> (i32, i32) {
    %c0_i32 = arith.constant 0 : i32
    %c0_i32_0 = arith.constant 0 : i32
    return %arg0, %c0_i32 : i32, i32
  }
  func.func @transform_2(%arg0: i32) -> (i32, i32) {
    %c0_i32 = arith.constant 0 : i32
    %c0_i32_0 = arith.constant 0 : i32
    return %arg0, %c0_i32 : i32, i32
  }
  func.func @transform_3(%arg0: i32) -> (i32, i32) {
    %c0_i32 = arith.constant 0 : i32
    %c0_i32_0 = arith.constant 0 : i32
    %c0_i32_1 = arith.constant 0 : i32
    return %c0_i32, %c0_i32_0 : i32, i32
  }
  func.func @transform_4(%arg0: i32) -> (i32, i32) {
    %c0_i32 = arith.constant 0 : i32
    %c0_i32_0 = arith.constant 0 : i32
    %c0_i32_1 = arith.constant 0 : i32
    return %c0_i32, %c0_i32_0 : i32, i32
  }
  func.func @transform_5(%arg0: i32) -> (i32, i32) {
    %c0_i32 = arith.constant 0 : i32
    %c0_i32_0 = arith.constant 0 : i32
    %c0_i32_1 = arith.constant 0 : i32
    return %c0_i32, %c0_i32_0 : i32, i32
  }
  func.func @transform_6(%arg0: i32) -> (i32, i32) {
    %c0_i32 = arith.constant 0 : i32
    %c0_i32_0 = arith.constant 0 : i32
    %c0_i32_1 = arith.constant 0 : i32
    return %c0_i32, %c0_i32_0 : i32, i32
  }
  func.func @transform_7(%arg0: i32) -> (i32, i32) {
    %c0_i32 = arith.constant 0 : i32
    %c0_i32_0 = arith.constant 0 : i32
    %c0_i32_1 = arith.constant 0 : i32
    return %c0_i32, %c0_i32_0 : i32, i32
  }
  func.func @transform_8(%arg0: i32) -> (i32, i32) {
    %c0_i32 = arith.constant 0 : i32
    %c0_i32_0 = arith.constant 0 : i32
    %c0_i32_1 = arith.constant 0 : i32
    return %c0_i32, %c0_i32_0 : i32, i32
  }
  func.func @transform_9(%arg0: i32) -> (i32, i32) {
    %c0_i32 = arith.constant 0 : i32
    %c0_i32_0 = arith.constant 0 : i32
    %c0_i32_1 = arith.constant 0 : i32
    return %c0_i32, %c0_i32_0 : i32, i32
  }
  func.func @transform_10(%arg0: i32) -> (i32, i32) {
    %c0_i32 = arith.constant 0 : i32
    %c0_i32_0 = arith.constant 0 : i32
    %c0_i32_1 = arith.constant 0 : i32
    return %c0_i32, %c0_i32_0 : i32, i32
  }
  func.func @transform_11(%arg0: i32) -> (i32, i32) {
    %c0_i32 = arith.constant 0 : i32
    %c0_i32_0 = arith.constant 0 : i32
    %c0_i32_1 = arith.constant 0 : i32
    return %c0_i32, %c0_i32_0 : i32, i32
  }
  func.func @transform_12(%arg0: i32) -> (i32, i32) {
    %c0_i32 = arith.constant 0 : i32
    %c0_i32_0 = arith.constant 0 : i32
    %c0_i32_1 = arith.constant 0 : i32
    return %c0_i32, %c0_i32_0 : i32, i32
  }
  func.func @transform_13(%arg0: i32) -> (i32, i32) {
    %c0_i32 = arith.constant 0 : i32
    %c0_i32_0 = arith.constant 0 : i32
    return %arg0, %c0_i32 : i32, i32
  }
}

</mosaic_0001>

<llo_original>
// kernel: _lambda_.5
$region0: #{_lambda_.5}
  #allocation0 [shape = 'u32[]', space=smem, size = 0x4, offset = 0x4, fixed_abs, tag = 'smem constant byte address 0x4 - core index']
  #allocation1 [shape = 'u32[144,128]{1,0:T(1,128)}', space=vmem, size = 0x12000, scoped, tag = 'internal scratch']
  %s0 = inlined_call_operand.vmem [shape: f32[64,128], index: 0, kind: input, shape index: {}]
  %s1 = inlined_call_operand.vmem [shape: f32[1,64], index: 1, kind: input, shape index: {}]
  %s2 = inlined_call_operand.vmem [shape: bf16[128,128], index: 2, kind: input, shape index: {}]
  %s3 = inlined_call_operand.vmem [shape: bf16[128,128], index: 3, kind: input, shape index: {}]
  %s4 = inlined_call_operand.vmem [shape: f32[1,128], index: 4, kind: input, shape index: {}]
  %s5 = inlined_call_operand.vmem [shape: f32[64,128], index: 5, kind: output, shape index: {}]
  %s6 = sld [smem:[#allocation0]]
  $region30: #{_lambda_.5} parent=0
    _
  %s8 = ssub.s32 1, %s6
  %s9 = scalar_select 0, %s8, %s6
  // Predicated region
  $region2: #{_lambda_.5} parent=0 // pred_check
    _
  $region3: #{_lambda_.5} parent=0 // pred_check_branch
    %11 = sbr.rel (0) target = $region5
  $region4: #{_lambda_.5} parent=0 // pred_region
    _
  $region5: #{_lambda_.5} parent=0 // pred_fallthru
    _
  // Predicated region
  $region6: #{_lambda_.5} parent=0 // pred_check
    _
  $region7: #{_lambda_.5} parent=0 // pred_check_branch
    %13 = sbr.rel (0) target = $region9
  $region8: #{_lambda_.5} parent=0 // pred_region
    _
  $region9: #{_lambda_.5} parent=0 // pred_fallthru
    _
  // Predicated region
  $region10: #{_lambda_.5} parent=0 // pred_check
    _
  $region11: #{_lambda_.5} parent=0 // pred_check_branch
    %15 = sbr.rel (0) target = $region13
  $region12: #{_lambda_.5} parent=0 // pred_region
    _
  $region13: #{_lambda_.5} parent=0 // pred_fallthru
    _
  // Predicated region
  $region14: #{_lambda_.5} parent=0 // pred_check
    _
  $region15: #{_lambda_.5} parent=0 // pred_check_branch
    %17 = sbr.rel (0) target = $region17
  $region16: #{_lambda_.5} parent=0 // pred_region
    _
  $region17: #{_lambda_.5} parent=0 // pred_fallthru
    _
  // Predicated region
  $region18: #{_lambda_.5} parent=0 // pred_check
    _
  $region19: #{_lambda_.5} parent=0 // pred_check_branch
    %19 = sbr.rel (0) target = $region21
  $region20: #{_lambda_.5} parent=0 // pred_region
    _
  $region21: #{_lambda_.5} parent=0 // pred_fallthru
    _
  %v21 = vld [vmem:[%s0] sm:$0xff]
  %v22 = vld [vmem:[%s0 + $0x8] sm:$0xff]
  %v23 = vld [vmem:[%s0 + $0x10] sm:$0xff]
  %v24 = vld [vmem:[%s0 + $0x18] sm:$0xff]
  %v25 = vld [vmem:[%s0 + $0x20] sm:$0xff]
  %v26 = vld [vmem:[%s0 + $0x28] sm:$0xff]
  %v27 = vld [vmem:[%s0 + $0x30] sm:$0xff]
  %v28 = vld [vmem:[%s0 + $0x38] sm:$0xff]
  %s29 = smul.u32 0, 64
  %s30 = scalar_lea.vmem %s0, %s29
  %v31 = vld [vmem:[%s30] sm:$0xff]
  %v32 = vld [vmem:[%s30 + $0x8] sm:$0xff]
  %v33 = vld [vmem:[%s30 + $0x10] sm:$0xff]
  %v34 = vld [vmem:[%s30 + $0x18] sm:$0xff]
  %v35 = vld [vmem:[%s30 + $0x20] sm:$0xff]
  %v36 = vld [vmem:[%s30 + $0x28] sm:$0xff]
  %v37 = vld [vmem:[%s30 + $0x30] sm:$0xff]
  %v38 = vld [vmem:[%s30 + $0x38] sm:$0xff]
  %39 = vmatprep.subr.mxu0 0.0
  %40 = vmatpush1.xpose.msra.mxu0 %v21
  %41 = vmatprep.subr.mxu0 0.0
  %42 = vmatpush1.xpose.msra.mxu0 %v22
  %43 = vmatprep.subr.mxu0 0.0
  %44 = vmatpush1.xpose.msra.mxu0 %v23
  %45 = vmatprep.subr.mxu0 0.0
  %46 = vmatpush1.xpose.msra.mxu0 %v24
  %47 = vmatprep.subr.mxu0 0.0
  %48 = vmatpush1.xpose.msra.mxu0 %v25
  %49 = vmatprep.subr.mxu0 0.0
  %50 = vmatpush1.xpose.msra.mxu0 %v26
  %51 = vmatprep.subr.mxu0 0.0
  %52 = vmatpush1.xpose.msra.mxu0 %v27
  %53 = vmatprep.subr.mxu0 0.0
  %54 = vmatpush1.xpose.msra.mxu0 %v28
  %55 = vmatprep.subr.mxu0 0.0
  %56 = vmatpush1.xpose.msra.mxu0 0.0
  %57 = vmatprep.subr.mxu0 0.0
  %58 = vmatpush1.xpose.msra.mxu0 0.0
  %59 = vmatprep.subr.mxu0 0.0
  %60 = vmatpush1.xpose.msra.mxu0 0.0
  %61 = vmatprep.subr.mxu0 0.0
  %62 = vmatpush1.xpose.msra.mxu0 0.0
  %63 = vmatprep.subr.mxu0 0.0
  %64 = vmatpush1.xpose.msra.mxu0 0.0
  %65 = vmatprep.subr.mxu0 0.0
  %66 = vmatpush1.xpose.msra.mxu0 0.0
  %67 = vmatprep.subr.mxu0 0.0
  %68 = vmatpush1.xpose.msra.mxu0 0.0
  %69 = vmatprep.subr.mxu0 0.0
  %70 = vmatpush1.xpose.msra.mxu0 0.0
  %71 = vmatprep.subr.mxu0 0.0
  %72 = vmatpush1.xpose.msra.mxu0 0.0
  %73 = vmatprep.subr.mxu0 0.0
  %74 = vmatpush1.xpose.msra.mxu0 0.0
  %75 = vmatprep.subr.mxu0 0.0
  %76 = vmatpush1.xpose.msra.mxu0 0.0
  %77 = vmatprep.subr.mxu0 0.0
  %78 = vmatpush1.xpose.msra.mxu0 0.0
  %79 = vmatprep.subr.mxu0 0.0
  %80 = vmatpush1.xpose.msra.mxu0 0.0
  %81 = vmatprep.subr.mxu0 0.0
  %82 = vmatpush1.xpose.msra.mxu0 0.0
  %83 = vmatprep.subr.mxu0 0.0
  %84 = vmatpush1.xpose.msra.mxu0 0.0
  %85 = vmatprep.subr.mxu0 0.0
  %86 = vmatpush1.xpose.msra.mxu0 0.0
  %87 = vmatprep.subr.mxu0 0.0
  %88 = vmatpush1.xpose.msra.mxu0 0.0
  %89 = vmatprep.subr.mxu0 0.0
  %90 = vmatpush1.xpose.msra.mxu0 0.0
  %91 = vmatprep.subr.mxu0 0.0
  %92 = vmatpush1.xpose.msra.mxu0 0.0
  %93 = vmatprep.subr.mxu0 0.0
  %94 = vmatpush1.xpose.msra.mxu0 0.0
  %95 = vmatprep.subr.mxu0 0.0
  %96 = vmatpush1.xpose.msra.mxu0 0.0
  %97 = vmatprep.subr.mxu0 0.0
  %98 = vmatpush1.xpose.msra.mxu0 0.0
  %99 = vmatprep.subr.mxu0 0.0
  %100 = vmatpush1.xpose.msra.mxu0 0.0
  %101 = vmatprep.subr.mxu0 0.0
  %102 = vmatpush1.xpose.msra.mxu0 0.0
  %103 = vmatprep.mubr.f32.mxu0 0.0
  %104 = vmatmul.mubr.f32.gmra.mrb[0].mxu0 %v31
  %v105 = vpop.f32.mrb[0].mxu0
  %v106 = vadd.f32 0.0, %v105
  %v107 = vpop.f32.mrb[0].mxu0
  %108 = vmatprep.mubr.f32.mxu0 0.0
  %109 = vmatmul.mubr.f32.gmra.mrb[0].mxu0 %v32
  %v110 = vpop.f32.mrb[0].mxu0
  %v111 = vadd.f32 0.0, %v110
  %v112 = vpop.f32.mrb[0].mxu0
  %113 = vmatprep.mubr.f32.mxu0 0.0
  %114 = vmatmul.mubr.f32.gmra.mrb[0].mxu0 %v33
  %v115 = vpop.f32.mrb[0].mxu0
  %v116 = vadd.f32 0.0, %v115
  %v117 = vpop.f32.mrb[0].mxu0
  %118 = vmatprep.mubr.f32.mxu0 0.0
  %119 = vmatmul.mubr.f32.gmra.mrb[0].mxu0 %v34
  %v120 = vpop.f32.mrb[0].mxu0
  %v121 = vadd.f32 0.0, %v120
  %v122 = vpop.f32.mrb[0].mxu0
  %123 = vmatprep.mubr.f32.mxu0 0.0
  %124 = vmatmul.mubr.f32.gmra.mrb[0].mxu0 %v35
  %v125 = vpop.f32.mrb[0].mxu0
  %v126 = vadd.f32 0.0, %v125
  %v127 = vpop.f32.mrb[0].mxu0
  %128 = vmatprep.mubr.f32.mxu0 0.0
  %129 = vmatmul.mubr.f32.gmra.mrb[0].mxu0 %v36
  %v130 = vpop.f32.mrb[0].mxu0
  %v131 = vadd.f32 0.0, %v130
  %v132 = vpop.f32.mrb[0].mxu0
  %133 = vmatprep.mubr.f32.mxu0 0.0
  %134 = vmatmul.mubr.f32.gmra.mrb[0].mxu0 %v37
  %v135 = vpop.f32.mrb[0].mxu0
  %v136 = vadd.f32 0.0, %v135
  %v137 = vpop.f32.mrb[0].mxu0
  %138 = vmatprep.mubr.f32.mxu0 0.0
  %139 = vmatmul.mubr.f32.gmra.mrb[0].mxu0 %v38
  %v140 = vpop.f32.mrb[0].mxu0
  %v141 = vadd.f32 0.0, %v140
  %v142 = vpop.f32.mrb[0].mxu0
  %143 = vdwg.mxu0
  %v144 = vlaneseq
  %v145 = vand.u32 %v144, 127
  %v146 = vld [vmem:[%s1] sm:$0x1]
  %v147 = vmul.f32 %v106, 2.0
  %v148 = vmul.f32 %v111, 2.0
  %v149 = vmul.f32 %v116, 2.0
  %v150 = vmul.f32 %v121, 2.0
  %v151 = vmul.f32 %v126, 2.0
  %v152 = vmul.f32 %v131, 2.0
  %v153 = vmul.f32 %v136, 2.0
  %v154 = vmul.f32 %v141, 2.0
  %v156 = vlaneseq
  %v157 = vshrl.u32 %v156, 7
  %v158 = vsub.s32 0, %v157
  %v159 = vrot.slane %v146, %v158
  %v161 = vsub.f32 %v159, %v147
  %v162 = vsub.f32 %v159, %v148
  %v163 = vsub.f32 %v159, %v149
  %v164 = vsub.f32 %v159, %v150
  %v165 = vsub.f32 %v159, %v151
  %v166 = vsub.f32 %v159, %v152
  %v167 = vsub.f32 %v159, %v153
  %v168 = vsub.f32 %v159, %v154
  %vm169 = vcmp.lt.s32.totalorder %v145, 64
  %v170 = vsel %vm169, %v161, 1e+30
  %v171 = vsel %vm169, %v162, 1e+30
  %v172 = vsel %vm169, %v163, 1e+30
  %v173 = vsel %vm169, %v164, 1e+30
  %v174 = vsel %vm169, %v165, 1e+30
  %v175 = vsel %vm169, %v166, 1e+30
  %v176 = vsel %vm169, %v167, 1e+30
  %v177 = vsel %vm169, %v168, 1e+30
  %v178 = vpack.c.bf16 %v32, %v31
  %v179 = vpack.c.bf16 %v34, %v33
  %v180 = vpack.c.bf16 %v36, %v35
  %v181 = vpack.c.bf16 %v38, %v37
  %v182 = vld [vmem:[%s2] sm:$0xf]
  %v183 = vld [vmem:[%s2 + $0x4] sm:$0xf]
  %v184 = vld [vmem:[%s2 + $0x8] sm:$0xf]
  %v185 = vld [vmem:[%s2 + $0xc] sm:$0xf]
  %v186 = vld [vmem:[%s2 + $0x10] sm:$0xf]
  %v187 = vld [vmem:[%s2 + $0x14] sm:$0xf]
  %v188 = vld [vmem:[%s2 + $0x18] sm:$0xf]
  %v189 = vld [vmem:[%s2 + $0x1c] sm:$0xf]
  %v190 = vld [vmem:[%s2 + $0x20] sm:$0xf]
  %v191 = vld [vmem:[%s2 + $0x24] sm:$0xf]
  %v192 = vld [vmem:[%s2 + $0x28] sm:$0xf]
  %v193 = vld [vmem:[%s2 + $0x2c] sm:$0xf]
  %v194 = vld [vmem:[%s2 + $0x30] sm:$0xf]
  %v195 = vld [vmem:[%s2 + $0x34] sm:$0xf]
  %v196 = vld [vmem:[%s2 + $0x38] sm:$0xf]
  %v197 = vld [vmem:[%s2 + $0x3c] sm:$0xf]
  %v198 = vld [vmem:[%s4] sm:$0x1]
  %v200 = vlaneseq
  %v201 = vshrl.u32 %v200, 7
  %v202 = vsub.s32 0, %v201
  %v203 = vrot.slane %v198, %v202
  %v221 = vunpack.c.l.b16 %v182
  %v222 = vunpack.c.l.b16 %v183
  %v223 = vunpack.c.l.b16 %v184
  %v224 = vunpack.c.l.b16 %v185
  %v225 = vunpack.c.l.b16 %v186
  %v226 = vunpack.c.l.b16 %v187
  %v227 = vunpack.c.l.b16 %v188
  %v228 = vunpack.c.l.b16 %v189
  %v229 = vunpack.c.l.b16 %v190
  %v230 = vunpack.c.l.b16 %v191
  %v231 = vunpack.c.l.b16 %v192
  %v232 = vunpack.c.l.b16 %v193
  %v233 = vunpack.c.l.b16 %v194
  %v234 = vunpack.c.l.b16 %v195
  %v235 = vunpack.c.l.b16 %v196
  %v236 = vunpack.c.l.b16 %v197
  %v237 = vpack.c.b16 %v222, %v221
  %v238 = vpack.c.b16 %v224, %v223
  %v239 = vpack.c.b16 %v226, %v225
  %v240 = vpack.c.b16 %v228, %v227
  %v241 = vpack.c.b16 %v230, %v229
  %v242 = vpack.c.b16 %v232, %v231
  %v243 = vpack.c.b16 %v234, %v233
  %v244 = vpack.c.b16 %v236, %v235
  %253 = vmatprep.subr.bf16.mxu0 0
  %254 = vmatpush1.bf16.msra.mxu0 %v237
  %255 = vmatprep.subr.bf16.mxu0 0
  %256 = vmatpush1.bf16.msra.mxu0 %v238
  %257 = vmatprep.subr.bf16.mxu0 0
  %258 = vmatpush1.bf16.msra.mxu0 %v239
  %259 = vmatprep.subr.bf16.mxu0 0
  %260 = vmatpush1.bf16.msra.mxu0 %v240
  %261 = vmatprep.subr.bf16.mxu0 0
  %262 = vmatpush1.bf16.msra.mxu0 %v241
  %263 = vmatprep.subr.bf16.mxu0 0
  %264 = vmatpush1.bf16.msra.mxu0 %v242
  %265 = vmatprep.subr.bf16.mxu0 0
  %266 = vmatpush1.bf16.msra.mxu0 %v243
  %267 = vmatprep.subr.bf16.mxu0 0
  %268 = vmatpush1.bf16.msra.mxu0 %v244
  %269 = vmatprep.subr.bf16.mxu0 0
  %270 = vmatpush1.bf16.msra.mxu0 0
  %271 = vmatprep.subr.bf16.mxu0 0
  %272 = vmatpush1.bf16.msra.mxu0 0
  %273 = vmatprep.subr.bf16.mxu0 0
  %274 = vmatpush1.bf16.msra.mxu0 0
  %275 = vmatprep.subr.bf16.mxu0 0
  %276 = vmatpush1.bf16.msra.mxu0 0
  %277 = vmatprep.subr.bf16.mxu0 0
  %278 = vmatpush1.bf16.msra.mxu0 0
  %279 = vmatprep.subr.bf16.mxu0 0
  %280 = vmatpush1.bf16.msra.mxu0 0
  %281 = vmatprep.subr.bf16.mxu0 0
  %282 = vmatpush1.bf16.msra.mxu0 0
  %283 = vmatprep.subr.bf16.mxu0 0
  %284 = vmatpush1.bf16.msra.mxu0 0
  %285 = vmatprep.mubr.bf16.mxu0 0
  %286 = vmatmul.mubr.bf16.gmra.mrb[0].mxu0 %v178
  %v287 = vpop.f32.mrb[0].mxu0
  %v288 = vadd.f32 %v203, %v287
  %v289 = vpop.f32.mrb[0].mxu0
  %v290 = vpop.f32.mrb[0].mxu0
  %v291 = vadd.f32 %v203, %v290
  %v292 = vpop.f32.mrb[0].mxu0
  %293 = vmatprep.mubr.bf16.mxu0 0
  %294 = vmatmul.mubr.bf16.gmra.mrb[0].mxu0 %v179
  %v295 = vpop.f32.mrb[0].mxu0
  %v296 = vadd.f32 %v203, %v295
  %v297 = vpop.f32.mrb[0].mxu0
  %v298 = vpop.f32.mrb[0].mxu0
  %v299 = vadd.f32 %v203, %v298
  %v300 = vpop.f32.mrb[0].mxu0
  %301 = vmatprep.mubr.bf16.mxu0 0
  %302 = vmatmul.mubr.bf16.gmra.mrb[0].mxu0 %v180
  %v303 = vpop.f32.mrb[0].mxu0
  %v304 = vadd.f32 %v203, %v303
  %v305 = vpop.f32.mrb[0].mxu0
  %v306 = vpop.f32.mrb[0].mxu0
  %v307 = vadd.f32 %v203, %v306
  %v308 = vpop.f32.mrb[0].mxu0
  %309 = vmatprep.mubr.bf16.mxu0 0
  %310 = vmatmul.mubr.bf16.gmra.mrb[0].mxu0 %v181
  %v311 = vpop.f32.mrb[0].mxu0
  %v312 = vadd.f32 %v203, %v311
  %v313 = vpop.f32.mrb[0].mxu0
  %v314 = vpop.f32.mrb[0].mxu0
  %v315 = vadd.f32 %v203, %v314
  %v316 = vpop.f32.mrb[0].mxu0
  %317 = vdwg.mxu0
  %v318 = vpack.c.bf16 %v22, %v21
  %v319 = vpack.c.bf16 %v24, %v23
  %v320 = vpack.c.bf16 %v26, %v25
  %v321 = vpack.c.bf16 %v28, %v27
  %v322 = vld [vmem:[%s3] sm:$0xf]
  %v323 = vld [vmem:[%s3 + $0x4] sm:$0xf]
  %v324 = vld [vmem:[%s3 + $0x8] sm:$0xf]
  %v325 = vld [vmem:[%s3 + $0xc] sm:$0xf]
  %v326 = vld [vmem:[%s3 + $0x10] sm:$0xf]
  %v327 = vld [vmem:[%s3 + $0x14] sm:$0xf]
  %v328 = vld [vmem:[%s3 + $0x18] sm:$0xf]
  %v329 = vld [vmem:[%s3 + $0x1c] sm:$0xf]
  %v330 = vld [vmem:[%s3 + $0x20] sm:$0xf]
  %v331 = vld [vmem:[%s3 + $0x24] sm:$0xf]
  %v332 = vld [vmem:[%s3 + $0x28] sm:$0xf]
  %v333 = vld [vmem:[%s3 + $0x2c] sm:$0xf]
  %v334 = vld [vmem:[%s3 + $0x30] sm:$0xf]
  %v335 = vld [vmem:[%s3 + $0x34] sm:$0xf]
  %v336 = vld [vmem:[%s3 + $0x38] sm:$0xf]
  %v337 = vld [vmem:[%s3 + $0x3c] sm:$0xf]
  %v354 = vunpack.c.l.b16 %v322
  %v355 = vunpack.c.l.b16 %v323
  %v356 = vunpack.c.l.b16 %v324
  %v357 = vunpack.c.l.b16 %v325
  %v358 = vunpack.c.l.b16 %v326
  %v359 = vunpack.c.l.b16 %v327
  %v360 = vunpack.c.l.b16 %v328
  %v361 = vunpack.c.l.b16 %v329
  %v362 = vunpack.c.l.b16 %v330
  %v363 = vunpack.c.l.b16 %v331
  %v364 = vunpack.c.l.b16 %v332
  %v365 = vunpack.c.l.b16 %v333
  %v366 = vunpack.c.l.b16 %v334
  %v367 = vunpack.c.l.b16 %v335
  %v368 = vunpack.c.l.b16 %v336
  %v369 = vunpack.c.l.b16 %v337
  %v370 = vpack.c.b16 %v355, %v354
  %v371 = vpack.c.b16 %v357, %v356
  %v372 = vpack.c.b16 %v359, %v358
  %v373 = vpack.c.b16 %v361, %v360
  %v374 = vpack.c.b16 %v363, %v362
  %v375 = vpack.c.b16 %v365, %v364
  %v376 = vpack.c.b16 %v367, %v366
  %v377 = vpack.c.b16 %v369, %v368
  %386 = vmatprep.subr.bf16.mxu0 0
  %387 = vmatpush1.bf16.msra.mxu0 %v370
  %388 = vmatprep.subr.bf16.mxu0 0
  %389 = vmatpush1.bf16.msra.mxu0 %v371
  %390 = vmatprep.subr.bf16.mxu0 0
  %391 = vmatpush1.bf16.msra.mxu0 %v372
  %392 = vmatprep.subr.bf16.mxu0 0
  %393 = vmatpush1.bf16.msra.mxu0 %v373
  %394 = vmatprep.subr.bf16.mxu0 0
  %395 = vmatpush1.bf16.msra.mxu0 %v374
  %396 = vmatprep.subr.bf16.mxu0 0
  %397 = vmatpush1.bf16.msra.mxu0 %v375
  %398 = vmatprep.subr.bf16.mxu0 0
  %399 = vmatpush1.bf16.msra.mxu0 %v376
  %400 = vmatprep.subr.bf16.mxu0 0
  %401 = vmatpush1.bf16.msra.mxu0 %v377
  %402 = vmatprep.subr.bf16.mxu0 0
  %403 = vmatpush1.bf16.msra.mxu0 0
  %404 = vmatprep.subr.bf16.mxu0 0
  %405 = vmatpush1.bf16.msra.mxu0 0
  %406 = vmatprep.subr.bf16.mxu0 0
  %407 = vmatpush1.bf16.msra.mxu0 0
  %408 = vmatprep.subr.bf16.mxu0 0
  %409 = vmatpush1.bf16.msra.mxu0 0
  %410 = vmatprep.subr.bf16.mxu0 0
  %411 = vmatpush1.bf16.msra.mxu0 0
  %412 = vmatprep.subr.bf16.mxu0 0
  %413 = vmatpush1.bf16.msra.mxu0 0
  %414 = vmatprep.subr.bf16.mxu0 0
  %415 = vmatpush1.bf16.msra.mxu0 0
  %416 = vmatprep.subr.bf16.mxu0 0
  %417 = vmatpush1.bf16.msra.mxu0 0
  %418 = vmatprep.mubr.bf16.mxu0 0
  %419 = vmatmul.mubr.bf16.gmra.mrb[0].mxu0 %v318
  %v420 = vpop.f32.mrb[0].mxu0
  %v421 = vadd.f32 0.0, %v420
  %v422 = vpop.f32.mrb[0].mxu0
  %v423 = vpop.f32.mrb[0].mxu0
  %v424 = vadd.f32 0.0, %v423
  %v425 = vpop.f32.mrb[0].mxu0
  %426 = vmatprep.mubr.bf16.mxu0 0
  %427 = vmatmul.mubr.bf16.gmra.mrb[0].mxu0 %v319
  %v428 = vpop.f32.mrb[0].mxu0
  %v429 = vadd.f32 0.0, %v428
  %v430 = vpop.f32.mrb[0].mxu0
  %v431 = vpop.f32.mrb[0].mxu0
  %v432 = vadd.f32 0.0, %v431
  %v433 = vpop.f32.mrb[0].mxu0
  %434 = vmatprep.mubr.bf16.mxu0 0
  %435 = vmatmul.mubr.bf16.gmra.mrb[0].mxu0 %v320
  %v436 = vpop.f32.mrb[0].mxu0
  %v437 = vadd.f32 0.0, %v436
  %v438 = vpop.f32.mrb[0].mxu0
  %v439 = vpop.f32.mrb[0].mxu0
  %v440 = vadd.f32 0.0, %v439
  %v441 = vpop.f32.mrb[0].mxu0
  %442 = vmatprep.mubr.bf16.mxu0 0
  %443 = vmatmul.mubr.bf16.gmra.mrb[0].mxu0 %v321
  %v444 = vpop.f32.mrb[0].mxu0
  %v445 = vadd.f32 0.0, %v444
  %v446 = vpop.f32.mrb[0].mxu0
  %v447 = vpop.f32.mrb[0].mxu0
  %v448 = vadd.f32 0.0, %v447
  %v449 = vpop.f32.mrb[0].mxu0
  %450 = vdwg.mxu0
  %vm451 = vcmask 523264
  %v452 = vsel %vm451, %v170, inf
  %453 = vmin.xlane.f32.xlu0 %v452
  %v454 = vpop.xlane.xlu0 %453
  %v455 = vsel %vm451, %v171, inf
  %456 = vmin.xlane.f32.xlu0 %v455
  %v457 = vpop.xlane.xlu0 %456
  %v458 = vsel %vm451, %v172, inf
  %459 = vmin.xlane.f32.xlu0 %v458
  %v460 = vpop.xlane.xlu0 %459
  %v461 = vsel %vm451, %v173, inf
  %462 = vmin.xlane.f32.xlu0 %v461
  %v463 = vpop.xlane.xlu0 %462
  %v464 = vsel %vm451, %v174, inf
  %465 = vmin.xlane.f32.xlu0 %v464
  %v466 = vpop.xlane.xlu0 %465
  %v467 = vsel %vm451, %v175, inf
  %468 = vmin.xlane.f32.xlu0 %v467
  %v469 = vpop.xlane.xlu0 %468
  %v470 = vsel %vm451, %v176, inf
  %471 = vmin.xlane.f32.xlu0 %v470
  %v472 = vpop.xlane.xlu0 %471
  %v473 = vsel %vm451, %v177, inf
  %474 = vmin.xlane.f32.xlu0 %v473
  %v475 = vpop.xlane.xlu0 %474
  %vm476 = vcmp.le.f32.partialorder %v170, %v454
  %vm477 = vcmp.le.f32.partialorder %v171, %v457
  %vm478 = vcmp.le.f32.partialorder %v172, %v460
  %vm479 = vcmp.le.f32.partialorder %v173, %v463
  %vm480 = vcmp.le.f32.partialorder %v174, %v466
  %vm481 = vcmp.le.f32.partialorder %v175, %v469
  %vm482 = vcmp.le.f32.partialorder %v176, %v472
  %vm483 = vcmp.le.f32.partialorder %v177, %v475
  %v484 = vsel %vm476, %v145, 64
  %v485 = vsel %vm477, %v145, 64
  %v486 = vsel %vm478, %v145, 64
  %v487 = vsel %vm479, %v145, 64
  %v488 = vsel %vm480, %v145, 64
  %v489 = vsel %vm481, %v145, 64
  %v490 = vsel %vm482, %v145, 64
  %v491 = vsel %vm483, %v145, 64
  %v492 = vsel %vm451, %v484, 2147483647
  %v493 = vand.u32 %v492, 65535
  %v494 = vshra.s32 %v492, 16
  %v495 = vcvt.s32.f32 %v493
  %v496 = vcvt.s32.f32 %v494
  %497 = vmin.xlane.f32.xlu0 %v496
  %v498 = vpop.xlane.xlu0 %497
  %vm499 = vcmp.eq.f32.partialorder %v496, %v498
  %v500 = vsel %vm499, %v495, inf
  %501 = vmin.xlane.f32.xlu0 %v500
  %v502 = vpop.xlane.xlu0 %501
  %v503 = vcvt.f32.s32 %v502
  %v504 = vcvt.f32.s32 %v498
  %v505 = vshll.u32 %v504, 16
  %v506 = vadd.s32 %v505, %v503
  %v507 = vsel %vm451, %v485, 2147483647
  %v508 = vand.u32 %v507, 65535
  %v509 = vshra.s32 %v507, 16
  %v510 = vcvt.s32.f32 %v508
  %v511 = vcvt.s32.f32 %v509
  %512 = vmin.xlane.f32.xlu0 %v511
  %v513 = vpop.xlane.xlu0 %512
  %vm514 = vcmp.eq.f32.partialorder %v511, %v513
  %v515 = vsel %vm514, %v510, inf
  %516 = vmin.xlane.f32.xlu0 %v515
  %v517 = vpop.xlane.xlu0 %516
  %v518 = vcvt.f32.s32 %v517
  %v519 = vcvt.f32.s32 %v513
  %v520 = vshll.u32 %v519, 16
  %v521 = vadd.s32 %v520, %v518
  %v522 = vsel %vm451, %v486, 2147483647
  %v523 = vand.u32 %v522, 65535
  %v524 = vshra.s32 %v522, 16
  %v525 = vcvt.s32.f32 %v523
  %v526 = vcvt.s32.f32 %v524
  %527 = vmin.xlane.f32.xlu0 %v526
  %v528 = vpop.xlane.xlu0 %527
  %vm529 = vcmp.eq.f32.partialorder %v526, %v528
  %v530 = vsel %vm529, %v525, inf
  %531 = vmin.xlane.f32.xlu0 %v530
  %v532 = vpop.xlane.xlu0 %531
  %v533 = vcvt.f32.s32 %v532
  %v534 = vcvt.f32.s32 %v528
  %v535 = vshll.u32 %v534, 16
  %v536 = vadd.s32 %v535, %v533
  %v537 = vsel %vm451, %v487, 2147483647
  %v538 = vand.u32 %v537, 65535
  %v539 = vshra.s32 %v537, 16
  %v540 = vcvt.s32.f32 %v538
  %v541 = vcvt.s32.f32 %v539
  %542 = vmin.xlane.f32.xlu0 %v541
  %v543 = vpop.xlane.xlu0 %542
  %vm544 = vcmp.eq.f32.partialorder %v541, %v543
  %v545 = vsel %vm544, %v540, inf
  %546 = vmin.xlane.f32.xlu0 %v545
  %v547 = vpop.xlane.xlu0 %546
  %v548 = vcvt.f32.s32 %v547
  %v549 = vcvt.f32.s32 %v543
  %v550 = vshll.u32 %v549, 16
  %v551 = vadd.s32 %v550, %v548
  %v552 = vsel %vm451, %v488, 2147483647
  %v553 = vand.u32 %v552, 65535
  %v554 = vshra.s32 %v552, 16
  %v555 = vcvt.s32.f32 %v553
  %v556 = vcvt.s32.f32 %v554
  %557 = vmin.xlane.f32.xlu0 %v556
  %v558 = vpop.xlane.xlu0 %557
  %vm559 = vcmp.eq.f32.partialorder %v556, %v558
  %v560 = vsel %vm559, %v555, inf
  %561 = vmin.xlane.f32.xlu0 %v560
  %v562 = vpop.xlane.xlu0 %561
  %v563 = vcvt.f32.s32 %v562
  %v564 = vcvt.f32.s32 %v558
  %v565 = vshll.u32 %v564, 16
  %v566 = vadd.s32 %v565, %v563
  %v567 = vsel %vm451, %v489, 2147483647
  %v568 = vand.u32 %v567, 65535
  %v569 = vshra.s32 %v567, 16
  %v570 = vcvt.s32.f32 %v568
  %v571 = vcvt.s32.f32 %v569
  %572 = vmin.xlane.f32.xlu0 %v571
  %v573 = vpop.xlane.xlu0 %572
  %vm574 = vcmp.eq.f32.partialorder %v571, %v573
  %v575 = vsel %vm574, %v570, inf
  %576 = vmin.xlane.f32.xlu0 %v575
  %v577 = vpop.xlane.xlu0 %576
  %v578 = vcvt.f32.s32 %v577
  %v579 = vcvt.f32.s32 %v573
  %v580 = vshll.u32 %v579, 16
  %v581 = vadd.s32 %v580, %v578
  %v582 = vsel %vm451, %v490, 2147483647
  %v583 = vand.u32 %v582, 65535
  %v584 = vshra.s32 %v582, 16
  %v585 = vcvt.s32.f32 %v583
  %v586 = vcvt.s32.f32 %v584
  %587 = vmin.xlane.f32.xlu0 %v586
  %v588 = vpop.xlane.xlu0 %587
  %vm589 = vcmp.eq.f32.partialorder %v586, %v588
  %v590 = vsel %vm589, %v585, inf
  %591 = vmin.xlane.f32.xlu0 %v590
  %v592 = vpop.xlane.xlu0 %591
  %v593 = vcvt.f32.s32 %v592
  %v594 = vcvt.f32.s32 %v588
  %v595 = vshll.u32 %v594, 16
  %v596 = vadd.s32 %v595, %v593
  %v597 = vsel %vm451, %v491, 2147483647
  %v598 = vand.u32 %v597, 65535
  %v599 = vshra.s32 %v597, 16
  %v600 = vcvt.s32.f32 %v598
  %v601 = vcvt.s32.f32 %v599
  %602 = vmin.xlane.f32.xlu0 %v601
  %v603 = vpop.xlane.xlu0 %602
  %vm604 = vcmp.eq.f32.partialorder %v601, %v603
  %v605 = vsel %vm604, %v600, inf
  %606 = vmin.xlane.f32.xlu0 %v605
  %v607 = vpop.xlane.xlu0 %606
  %v608 = vcvt.f32.s32 %v607
  %v609 = vcvt.f32.s32 %v603
  %v610 = vshll.u32 %v609, 16
  %v611 = vadd.s32 %v610, %v608
  %vm612 = vcmp.eq.s32.totalorder %v145, %v506
  %vm613 = vcmp.eq.s32.totalorder %v145, %v521
  %vm614 = vcmp.eq.s32.totalorder %v145, %v536
  %vm615 = vcmp.eq.s32.totalorder %v145, %v551
  %vm616 = vcmp.eq.s32.totalorder %v145, %v566
  %vm617 = vcmp.eq.s32.totalorder %v145, %v581
  %vm618 = vcmp.eq.s32.totalorder %v145, %v596
  %vm619 = vcmp.eq.s32.totalorder %v145, %v611
  %v620 = vsel %vm612, 1, 0
  %v621 = vsel %vm613, 1, 0
  %v622 = vsel %vm614, 1, 0
  %v623 = vsel %vm615, 1, 0
  %v624 = vsel %vm616, 1, 0
  %v625 = vsel %vm617, 1, 0
  %v626 = vsel %vm618, 1, 0
  %v627 = vsel %vm619, 1, 0
  %v628 = vcvt.s32.f32 %v620
  %v629 = vcvt.s32.f32 %v621
  %v630 = vcvt.s32.f32 %v622
  %v631 = vcvt.s32.f32 %v623
  %v632 = vcvt.s32.f32 %v624
  %v633 = vcvt.s32.f32 %v625
  %v634 = vcvt.s32.f32 %v626
  %v635 = vcvt.s32.f32 %v627
  %v637 = vsel %vm451, %v628, 0
  %v640 = vsel %vm451, %v629, 0
  %v643 = vsel %vm451, %v630, 0
  %v646 = vsel %vm451, %v631, 0
  %v649 = vsel %vm451, %v632, 0
  %v652 = vsel %vm451, %v633, 0
  %v655 = vsel %vm451, %v634, 0
  %v658 = vsel %vm451, %v635, 0
  %660 = vmatprep.subr.mxu0 0.0
  %661 = vmatpush1.msra.mxu0 %v421
  %662 = vmatprep.subr.mxu0 0.0
  %663 = vmatpush1.msra.mxu0 %v424
  %664 = vmatprep.subr.mxu0 0.0
  %665 = vmatpush1.msra.mxu0 %v429
  %666 = vmatprep.subr.mxu0 0.0
  %667 = vmatpush1.msra.mxu0 %v432
  %668 = vmatprep.subr.mxu0 0.0
  %669 = vmatpush1.msra.mxu0 %v437
  %670 = vmatprep.subr.mxu0 0.0
  %671 = vmatpush1.msra.mxu0 %v440
  %672 = vmatprep.subr.mxu0 0.0
  %673 = vmatpush1.msra.mxu0 %v445
  %674 = vmatprep.subr.mxu0 0.0
  %675 = vmatpush1.msra.mxu0 %v448
  %676 = vmatprep.subr.mxu0 0.0
  %677 = vmatpush1.msra.mxu0 0.0
  %678 = vmatprep.subr.mxu0 0.0
  %679 = vmatpush1.msra.mxu0 0.0
  %680 = vmatprep.subr.mxu0 0.0
  %681 = vmatpush1.msra.mxu0 0.0
  %682 = vmatprep.subr.mxu0 0.0
  %683 = vmatpush1.msra.mxu0 0.0
  %684 = vmatprep.subr.mxu0 0.0
  %685 = vmatpush1.msra.mxu0 0.0
  %686 = vmatprep.subr.mxu0 0.0
  %687 = vmatpush1.msra.mxu0 0.0
  %688 = vmatprep.subr.mxu0 0.0
  %689 = vmatpush1.msra.mxu0 0.0
  %690 = vmatprep.subr.mxu0 0.0
  %691 = vmatpush1.msra.mxu0 0.0
  %692 = vmatprep.subr.mxu0 0.0
  %693 = vmatpush1.msra.mxu0 0.0
  %694 = vmatprep.subr.mxu0 0.0
  %695 = vmatpush1.msra.mxu0 0.0
  %696 = vmatprep.subr.mxu0 0.0
  %697 = vmatpush1.msra.mxu0 0.0
  %698 = vmatprep.subr.mxu0 0.0
  %699 = vmatpush1.msra.mxu0 0.0
  %700 = vmatprep.subr.mxu0 0.0
  %701 = vmatpush1.msra.mxu0 0.0
  %702 = vmatprep.subr.mxu0 0.0
  %703 = vmatpush1.msra.mxu0 0.0
  %704 = vmatprep.subr.mxu0 0.0
  %705 = vmatpush1.msra.mxu0 0.0
  %706 = vmatprep.subr.mxu0 0.0
  %707 = vmatpush1.msra.mxu0 0.0
  %708 = vmatprep.subr.mxu0 0.0
  %709 = vmatpush1.msra.mxu0 0.0
  %710 = vmatprep.subr.mxu0 0.0
  %711 = vmatpush1.msra.mxu0 0.0
  %712 = vmatprep.subr.mxu0 0.0
  %713 = vmatpush1.msra.mxu0 0.0
  %714 = vmatprep.subr.mxu0 0.0
  %715 = vmatpush1.msra.mxu0 0.0
  %716 = vmatprep.subr.mxu0 0.0
  %717 = vmatpush1.msra.mxu0 0.0
  %718 = vmatprep.subr.mxu0 0.0
  %719 = vmatpush1.msra.mxu0 0.0
  %720 = vmatprep.subr.mxu0 0.0
  %721 = vmatpush1.msra.mxu0 0.0
  %722 = vmatprep.subr.mxu0 0.0
  %723 = vmatpush1.msra.mxu0 0.0
  %724 = vmatprep.mubr.f32.mxu0 0.0
  %725 = vmatmul.mubr.f32.gmra.mrb[0].mxu0 %v637
  %v726 = vpop.f32.mrb[0].mxu0
  %v727 = vadd.f32 0.0, %v726
  %v728 = vpop.f32.mrb[0].mxu0
  %729 = vmatprep.mubr.f32.mxu0 0.0
  %730 = vmatmul.mubr.f32.gmra.mrb[0].mxu0 %v640
  %v731 = vpop.f32.mrb[0].mxu0
  %v732 = vadd.f32 0.0, %v731
  %v733 = vpop.f32.mrb[0].mxu0
  %734 = vmatprep.mubr.f32.mxu0 0.0
  %735 = vmatmul.mubr.f32.gmra.mrb[0].mxu0 %v643
  %v736 = vpop.f32.mrb[0].mxu0
  %v737 = vadd.f32 0.0, %v736
  %v738 = vpop.f32.mrb[0].mxu0
  %739 = vmatprep.mubr.f32.mxu0 0.0
  %740 = vmatmul.mubr.f32.gmra.mrb[0].mxu0 %v646
  %v741 = vpop.f32.mrb[0].mxu0
  %v742 = vadd.f32 0.0, %v741
  %v743 = vpop.f32.mrb[0].mxu0
  %744 = vmatprep.mubr.f32.mxu0 0.0
  %745 = vmatmul.mubr.f32.gmra.mrb[0].mxu0 %v649
  %v746 = vpop.f32.mrb[0].mxu0
  %v747 = vadd.f32 0.0, %v746
  %v748 = vpop.f32.mrb[0].mxu0
  %749 = vmatprep.mubr.f32.mxu0 0.0
  %750 = vmatmul.mubr.f32.gmra.mrb[0].mxu0 %v652
  %v751 = vpop.f32.mrb[0].mxu0
  %v752 = vadd.f32 0.0, %v751
  %v753 = vpop.f32.mrb[0].mxu0
  %754 = vmatprep.mubr.f32.mxu0 0.0
  %755 = vmatmul.mubr.f32.gmra.mrb[0].mxu0 %v655
  %v756 = vpop.f32.mrb[0].mxu0
  %v757 = vadd.f32 0.0, %v756
  %v758 = vpop.f32.mrb[0].mxu0
  %759 = vmatprep.mubr.f32.mxu0 0.0
  %760 = vmatmul.mubr.f32.gmra.mrb[0].mxu0 %v658
  %v761 = vpop.f32.mrb[0].mxu0
  %v762 = vadd.f32 0.0, %v761
  %v763 = vpop.f32.mrb[0].mxu0
  %764 = vdwg.mxu0
  %v765 = vadd.f32 %v288, %v727
  %v766 = vadd.f32 %v291, %v732
  %v767 = vadd.f32 %v296, %v737
  %v768 = vadd.f32 %v299, %v742
  %v769 = vadd.f32 %v304, %v747
  %v770 = vadd.f32 %v307, %v752
  %v771 = vadd.f32 %v312, %v757
  %v772 = vadd.f32 %v315, %v762
  %vm773 = vcmp.ge.f32.partialorder %v765, 0.0
  %vm774 = vcmp.ge.f32.partialorder %v766, 0.0
  %vm775 = vcmp.ge.f32.partialorder %v767, 0.0
  %vm776 = vcmp.ge.f32.partialorder %v768, 0.0
  %vm777 = vcmp.ge.f32.partialorder %v769, 0.0
  %vm778 = vcmp.ge.f32.partialorder %v770, 0.0
  %vm779 = vcmp.ge.f32.partialorder %v771, 0.0
  %vm780 = vcmp.ge.f32.partialorder %v772, 0.0
  %v781 = vmul.f32 %v765, 0.2
  %v782 = vmul.f32 %v766, 0.2
  %v783 = vmul.f32 %v767, 0.2
  %v784 = vmul.f32 %v768, 0.2
  %v785 = vmul.f32 %v769, 0.2
  %v786 = vmul.f32 %v770, 0.2
  %v787 = vmul.f32 %v771, 0.2
  %v788 = vmul.f32 %v772, 0.2
  %v789 = vsel %vm773, %v765, %v781
  %v790 = vsel %vm774, %v766, %v782
  %v791 = vsel %vm775, %v767, %v783
  %v792 = vsel %vm776, %v768, %v784
  %v793 = vsel %vm777, %v769, %v785
  %v794 = vsel %vm778, %v770, %v786
  %v795 = vsel %vm779, %v771, %v787
  %v796 = vsel %vm780, %v772, %v788
  %v797 = vmax.f32 %v789, -1e+30
  %v798 = vmax.f32 %v790, -1e+30
  %v799 = vmax.f32 %v791, -1e+30
  %v800 = vmax.f32 %v792, -1e+30
  %v801 = vmax.f32 %v793, -1e+30
  %v802 = vmax.f32 %v794, -1e+30
  %v803 = vmax.f32 %v795, -1e+30
  %v804 = vmax.f32 %v796, -1e+30
  %v805 = vsel %vm612, 1e+30, %v170
  %v806 = vsel %vm613, 1e+30, %v171
  %v807 = vsel %vm614, 1e+30, %v172
  %v808 = vsel %vm615, 1e+30, %v173
  %v809 = vsel %vm616, 1e+30, %v174
  %v810 = vsel %vm617, 1e+30, %v175
  %v811 = vsel %vm618, 1e+30, %v176
  %v812 = vsel %vm619, 1e+30, %v177
  %v813 = vsel %vm451, %v805, inf
  %814 = vmin.xlane.f32.xlu0 %v813
  %v815 = vpop.xlane.xlu0 %814
  %v816 = vsel %vm451, %v806, inf
  %817 = vmin.xlane.f32.xlu0 %v816
  %v818 = vpop.xlane.xlu0 %817
  %v819 = vsel %vm451, %v807, inf
  %820 = vmin.xlane.f32.xlu0 %v819
  %v821 = vpop.xlane.xlu0 %820
  %v822 = vsel %vm451, %v808, inf
  %823 = vmin.xlane.f32.xlu0 %v822
  %v824 = vpop.xlane.xlu0 %823
  %v825 = vsel %vm451, %v809, inf
  %826 = vmin.xlane.f32.xlu0 %v825
  %v827 = vpop.xlane.xlu0 %826
  %v828 = vsel %vm451, %v810, inf
  %829 = vmin.xlane.f32.xlu0 %v828
  %v830 = vpop.xlane.xlu0 %829
  %v831 = vsel %vm451, %v811, inf
  %832 = vmin.xlane.f32.xlu0 %v831
  %v833 = vpop.xlane.xlu0 %832
  %v834 = vsel %vm451, %v812, inf
  %835 = vmin.xlane.f32.xlu0 %v834
  %v836 = vpop.xlane.xlu0 %835
  %vm837 = vcmp.le.f32.partialorder %v805, %v815
  %vm838 = vcmp.le.f32.partialorder %v806, %v818
  %vm839 = vcmp.le.f32.partialorder %v807, %v821
  %vm840 = vcmp.le.f32.partialorder %v808, %v824
  %vm841 = vcmp.le.f32.partialorder %v809, %v827
  %vm842 = vcmp.le.f32.partialorder %v810, %v830
  %vm843 = vcmp.le.f32.partialorder %v811, %v833
  %vm844 = vcmp.le.f32.partialorder %v812, %v836
  %v845 = vsel %vm837, %v145, 64
  %v846 = vsel %vm838, %v145, 64
  %v847 = vsel %vm839, %v145, 64
  %v848 = vsel %vm840, %v145, 64
  %v849 = vsel %vm841, %v145, 64
  %v850 = vsel %vm842, %v145, 64
  %v851 = vsel %vm843, %v145, 64
  %v852 = vsel %vm844, %v145, 64
  %v853 = vsel %vm451, %v845, 2147483647
  %v854 = vand.u32 %v853, 65535
  %v855 = vshra.s32 %v853, 16
  %v856 = vcvt.s32.f32 %v854
  %v857 = vcvt.s32.f32 %v855
  %858 = vmin.xlane.f32.xlu0 %v857
  %v859 = vpop.xlane.xlu0 %858
  %vm860 = vcmp.eq.f32.partialorder %v857, %v859
  %v861 = vsel %vm860, %v856, inf
  %862 = vmin.xlane.f32.xlu0 %v861
  %v863 = vpop.xlane.xlu0 %862
  %v864 = vcvt.f32.s32 %v863
  %v865 = vcvt.f32.s32 %v859
  %v866 = vshll.u32 %v865, 16
  %v867 = vadd.s32 %v866, %v864
  %v868 = vsel %vm451, %v846, 2147483647
  %v869 = vand.u32 %v868, 65535
  %v870 = vshra.s32 %v868, 16
  %v871 = vcvt.s32.f32 %v869
  %v872 = vcvt.s32.f32 %v870
  %873 = vmin.xlane.f32.xlu0 %v872
  %v874 = vpop.xlane.xlu0 %873
  %vm875 = vcmp.eq.f32.partialorder %v872, %v874
  %v876 = vsel %vm875, %v871, inf
  %877 = vmin.xlane.f32.xlu0 %v876
  %v878 = vpop.xlane.xlu0 %877
  %v879 = vcvt.f32.s32 %v878
  %v880 = vcvt.f32.s32 %v874
  %v881 = vshll.u32 %v880, 16
  %v882 = vadd.s32 %v881, %v879
  %v883 = vsel %vm451, %v847, 2147483647
  %v884 = vand.u32 %v883, 65535
  %v885 = vshra.s32 %v883, 16
  %v886 = vcvt.s32.f32 %v884
  %v887 = vcvt.s32.f32 %v885
  %888 = vmin.xlane.f32.xlu0 %v887
  %v889 = vpop.xlane.xlu0 %888
  %vm890 = vcmp.eq.f32.partialorder %v887, %v889
  %v891 = vsel %vm890, %v886, inf
  %892 = vmin.xlane.f32.xlu0 %v891
  %v893 = vpop.xlane.xlu0 %892
  %v894 = vcvt.f32.s32 %v893
  %v895 = vcvt.f32.s32 %v889
  %v896 = vshll.u32 %v895, 16
  %v897 = vadd.s32 %v896, %v894
  %v898 = vsel %vm451, %v848, 2147483647
  %v899 = vand.u32 %v898, 65535
  %v900 = vshra.s32 %v898, 16
  %v901 = vcvt.s32.f32 %v899
  %v902 = vcvt.s32.f32 %v900
  %903 = vmin.xlane.f32.xlu0 %v902
  %v904 = vpop.xlane.xlu0 %903
  %vm905 = vcmp.eq.f32.partialorder %v902, %v904
  %v906 = vsel %vm905, %v901, inf
  %907 = vmin.xlane.f32.xlu0 %v906
  %v908 = vpop.xlane.xlu0 %907
  %v909 = vcvt.f32.s32 %v908
  %v910 = vcvt.f32.s32 %v904
  %v911 = vshll.u32 %v910, 16
  %v912 = vadd.s32 %v911, %v909
  %v913 = vsel %vm451, %v849, 2147483647
  %v914 = vand.u32 %v913, 65535
  %v915 = vshra.s32 %v913, 16
  %v916 = vcvt.s32.f32 %v914
  %v917 = vcvt.s32.f32 %v915
  %918 = vmin.xlane.f32.xlu0 %v917
  %v919 = vpop.xlane.xlu0 %918
  %vm920 = vcmp.eq.f32.partialorder %v917, %v919
  %v921 = vsel %vm920, %v916, inf
  %922 = vmin.xlane.f32.xlu0 %v921
  %v923 = vpop.xlane.xlu0 %922
  %v924 = vcvt.f32.s32 %v923
  %v925 = vcvt.f32.s32 %v919
  %v926 = vshll.u32 %v925, 16
  %v927 = vadd.s32 %v926, %v924
  %v928 = vsel %vm451, %v850, 2147483647
  %v929 = vand.u32 %v928, 65535
  %v930 = vshra.s32 %v928, 16
  %v931 = vcvt.s32.f32 %v929
  %v932 = vcvt.s32.f32 %v930
  %933 = vmin.xlane.f32.xlu0 %v932
  %v934 = vpop.xlane.xlu0 %933
  %vm935 = vcmp.eq.f32.partialorder %v932, %v934
  %v936 = vsel %vm935, %v931, inf
  %937 = vmin.xlane.f32.xlu0 %v936
  %v938 = vpop.xlane.xlu0 %937
  %v939 = vcvt.f32.s32 %v938
  %v940 = vcvt.f32.s32 %v934
  %v941 = vshll.u32 %v940, 16
  %v942 = vadd.s32 %v941, %v939
  %v943 = vsel %vm451, %v851, 2147483647
  %v944 = vand.u32 %v943, 65535
  %v945 = vshra.s32 %v943, 16
  %v946 = vcvt.s32.f32 %v944
  %v947 = vcvt.s32.f32 %v945
  %948 = vmin.xlane.f32.xlu0 %v947
  %v949 = vpop.xlane.xlu0 %948
  %vm950 = vcmp.eq.f32.partialorder %v947, %v949
  %v951 = vsel %vm950, %v946, inf
  %952 = vmin.xlane.f32.xlu0 %v951
  %v953 = vpop.xlane.xlu0 %952
  %v954 = vcvt.f32.s32 %v953
  %v955 = vcvt.f32.s32 %v949
  %v956 = vshll.u32 %v955, 16
  %v957 = vadd.s32 %v956, %v954
  %v958 = vsel %vm451, %v852, 2147483647
  %v959 = vand.u32 %v958, 65535
  %v960 = vshra.s32 %v958, 16
  %v961 = vcvt.s32.f32 %v959
  %v962 = vcvt.s32.f32 %v960
  %963 = vmin.xlane.f32.xlu0 %v962
  %v964 = vpop.xlane.xlu0 %963
  %vm965 = vcmp.eq.f32.partialorder %v962, %v964
  %v966 = vsel %vm965, %v961, inf
  %967 = vmin.xlane.f32.xlu0 %v966
  %v968 = vpop.xlane.xlu0 %967
  %v969 = vcvt.f32.s32 %v968
  %v970 = vcvt.f32.s32 %v964
  %v971 = vshll.u32 %v970, 16
  %v972 = vadd.s32 %v971, %v969
  %vm973 = vcmp.eq.s32.totalorder %v145, %v867
  %vm974 = vcmp.eq.s32.totalorder %v145, %v882
  %vm975 = vcmp.eq.s32.totalorder %v145, %v897
  %vm976 = vcmp.eq.s32.totalorder %v145, %v912
  %vm977 = vcmp.eq.s32.totalorder %v145, %v927
  %vm978 = vcmp.eq.s32.totalorder %v145, %v942
  %vm979 = vcmp.eq.s32.totalorder %v145, %v957
  %vm980 = vcmp.eq.s32.totalorder %v145, %v972
  %v981 = vsel %vm973, 1, 0
  %v982 = vsel %vm974, 1, 0
  %v983 = vsel %vm975, 1, 0
  %v984 = vsel %vm976, 1, 0
  %v985 = vsel %vm977, 1, 0
  %v986 = vsel %vm978, 1, 0
  %v987 = vsel %vm979, 1, 0
  %v988 = vsel %vm980, 1, 0
  %v989 = vcvt.s32.f32 %v981
  %v990 = vcvt.s32.f32 %v982
  %v991 = vcvt.s32.f32 %v983
  %v992 = vcvt.s32.f32 %v984
  %v993 = vcvt.s32.f32 %v985
  %v994 = vcvt.s32.f32 %v986
  %v995 = vcvt.s32.f32 %v987
  %v996 = vcvt.s32.f32 %v988
  %v998 = vsel %vm451, %v989, 0
  %v1001 = vsel %vm451, %v990, 0
  %v1004 = vsel %vm451, %v991, 0
  %v1007 = vsel %vm451, %v992, 0
  %v1010 = vsel %vm451, %v993, 0
  %v1013 = vsel %vm451, %v994, 0
  %v1016 = vsel %vm451, %v995, 0
  %v1019 = vsel %vm451, %v996, 0
  %1021 = vmatprep.subr.mxu0 0.0
  %1022 = vmatpush1.msra.mxu0 %v421
  %1023 = vmatprep.subr.mxu0 0.0
  %1024 = vmatpush1.msra.mxu0 %v424
  %1025 = vmatprep.subr.mxu0 0.0
  %1026 = vmatpush1.msra.mxu0 %v429
  %1027 = vmatprep.subr.mxu0 0.0
  %1028 = vmatpush1.msra.mxu0 %v432
  %1029 = vmatprep.subr.mxu0 0.0
  %1030 = vmatpush1.msra.mxu0 %v437
  %1031 = vmatprep.subr.mxu0 0.0
  %1032 = vmatpush1.msra.mxu0 %v440
  %1033 = vmatprep.subr.mxu0 0.0
  %1034 = vmatpush1.msra.mxu0 %v445
  %1035 = vmatprep.subr.mxu0 0.0
  %1036 = vmatpush1.msra.mxu0 %v448
  %1037 = vmatprep.subr.mxu0 0.0
  %1038 = vmatpush1.msra.mxu0 0.0
  %1039 = vmatprep.subr.mxu0 0.0
  %1040 = vmatpush1.msra.mxu0 0.0
  %1041 = vmatprep.subr.mxu0 0.0
  %1042 = vmatpush1.msra.mxu0 0.0
  %1043 = vmatprep.subr.mxu0 0.0
  %1044 = vmatpush1.msra.mxu0 0.0
  %1045 = vmatprep.subr.mxu0 0.0
  %1046 = vmatpush1.msra.mxu0 0.0
  %1047 = vmatprep.subr.mxu0 0.0
  %1048 = vmatpush1.msra.mxu0 0.0
  %1049 = vmatprep.subr.mxu0 0.0
  %1050 = vmatpush1.msra.mxu0 0.0
  %1051 = vmatprep.subr.mxu0 0.0
  %1052 = vmatpush1.msra.mxu0 0.0
  %1053 = vmatprep.subr.mxu0 0.0
  %1054 = vmatpush1.msra.mxu0 0.0
  %1055 = vmatprep.subr.mxu0 0.0
  %1056 = vmatpush1.msra.mxu0 0.0
  %1057 = vmatprep.subr.mxu0 0.0
  %1058 = vmatpush1.msra.mxu0 0.0
  %1059 = vmatprep.subr.mxu0 0.0
  %1060 = vmatpush1.msra.mxu0 0.0
  %1061 = vmatprep.subr.mxu0 0.0
  %1062 = vmatpush1.msra.mxu0 0.0
  %1063 = vmatprep.subr.mxu0 0.0
  %1064 = vmatpush1.msra.mxu0 0.0
  %1065 = vmatprep.subr.mxu0 0.0
  %1066 = vmatpush1.msra.mxu0 0.0
  %1067 = vmatprep.subr.mxu0 0.0
  %1068 = vmatpush1.msra.mxu0 0.0
  %1069 = vmatprep.subr.mxu0 0.0
  %1070 = vmatpush1.msra.mxu0 0.0
  %1071 = vmatprep.subr.mxu0 0.0
  %1072 = vmatpush1.msra.mxu0 0.0
  %1073 = vmatprep.subr.mxu0 0.0
  %1074 = vmatpush1.msra.mxu0 0.0
  %1075 = vmatprep.subr.mxu0 0.0
  %1076 = vmatpush1.msra.mxu0 0.0
  %1077 = vmatprep.subr.mxu0 0.0
  %1078 = vmatpush1.msra.mxu0 0.0
  %1079 = vmatprep.subr.mxu0 0.0
  %1080 = vmatpush1.msra.mxu0 0.0
  %1081 = vmatprep.subr.mxu0 0.0
  %1082 = vmatpush1.msra.mxu0 0.0
  %1083 = vmatprep.subr.mxu0 0.0
  %1084 = vmatpush1.msra.mxu0 0.0
  %1085 = vmatprep.mubr.f32.mxu0 0.0
  %1086 = vmatmul.mubr.f32.gmra.mrb[0].mxu0 %v998
  %v1087 = vpop.f32.mrb[0].mxu0
  %v1088 = vadd.f32 0.0, %v1087
  %v1089 = vpop.f32.mrb[0].mxu0
  %1090 = vmatprep.mubr.f32.mxu0 0.0
  %1091 = vmatmul.mubr.f32.gmra.mrb[0].mxu0 %v1001
  %v1092 = vpop.f32.mrb[0].mxu0
  %v1093 = vadd.f32 0.0, %v1092
  %v1094 = vpop.f32.mrb[0].mxu0
  %1095 = vmatprep.mubr.f32.mxu0 0.0
  %1096 = vmatmul.mubr.f32.gmra.mrb[0].mxu0 %v1004
  %v1097 = vpop.f32.mrb[0].mxu0
  %v1098 = vadd.f32 0.0, %v1097
  %v1099 = vpop.f32.mrb[0].mxu0
  %1100 = vmatprep.mubr.f32.mxu0 0.0
  %1101 = vmatmul.mubr.f32.gmra.mrb[0].mxu0 %v1007
  %v1102 = vpop.f32.mrb[0].mxu0
  %v1103 = vadd.f32 0.0, %v1102
  %v1104 = vpop.f32.mrb[0].mxu0
  %1105 = vmatprep.mubr.f32.mxu0 0.0
  %1106 = vmatmul.mubr.f32.gmra.mrb[0].mxu0 %v1010
  %v1107 = vpop.f32.mrb[0].mxu0
  %v1108 = vadd.f32 0.0, %v1107
  %v1109 = vpop.f32.mrb[0].mxu0
  %1110 = vmatprep.mubr.f32.mxu0 0.0
  %1111 = vmatmul.mubr.f32.gmra.mrb[0].mxu0 %v1013
  %v1112 = vpop.f32.mrb[0].mxu0
  %v1113 = vadd.f32 0.0, %v1112
  %v1114 = vpop.f32.mrb[0].mxu0
  %1115 = vmatprep.mubr.f32.mxu0 0.0
  %1116 = vmatmul.mubr.f32.gmra.mrb[0].mxu0 %v1016
  %v1117 = vpop.f32.mrb[0].mxu0
  %v1118 = vadd.f32 0.0, %v1117
  %v1119 = vpop.f32.mrb[0].mxu0
  %1120 = vmatprep.mubr.f32.mxu0 0.0
  %1121 = vmatmul.mubr.f32.gmra.mrb[0].mxu0 %v1019
  %v1122 = vpop.f32.mrb[0].mxu0
  %v1123 = vadd.f32 0.0, %v1122
  %v1124 = vpop.f32.mrb[0].mxu0
  %1125 = vdwg.mxu0
  %v1126 = vadd.f32 %v288, %v1088
  %v1127 = vadd.f32 %v291, %v1093
  %v1128 = vadd.f32 %v296, %v1098
  %v1129 = vadd.f32 %v299, %v1103
  %v1130 = vadd.f32 %v304, %v1108
  %v1131 = vadd.f32 %v307, %v1113
  %v1132 = vadd.f32 %v312, %v1118
  %v1133 = vadd.f32 %v315, %v1123
  %vm1134 = vcmp.ge.f32.partialorder %v1126, 0.0
  %vm1135 = vcmp.ge.f32.partialorder %v1127, 0.0
  %vm1136 = vcmp.ge.f32.partialorder %v1128, 0.0
  %vm1137 = vcmp.ge.f32.partialorder %v1129, 0.0
  %vm1138 = vcmp.ge.f32.partialorder %v1130, 0.0
  %vm1139 = vcmp.ge.f32.partialorder %v1131, 0.0
  %vm1140 = vcmp.ge.f32.partialorder %v1132, 0.0
  %vm1141 = vcmp.ge.f32.partialorder %v1133, 0.0
  %v1142 = vmul.f32 %v1126, 0.2
  %v1143 = vmul.f32 %v1127, 0.2
  %v1144 = vmul.f32 %v1128, 0.2
  %v1145 = vmul.f32 %v1129, 0.2
  %v1146 = vmul.f32 %v1130, 0.2
  %v1147 = vmul.f32 %v1131, 0.2
  %v1148 = vmul.f32 %v1132, 0.2
  %v1149 = vmul.f32 %v1133, 0.2
  %v1150 = vsel %vm1134, %v1126, %v1142
  %v1151 = vsel %vm1135, %v1127, %v1143
  %v1152 = vsel %vm1136, %v1128, %v1144
  %v1153 = vsel %vm1137, %v1129, %v1145
  %v1154 = vsel %vm1138, %v1130, %v1146
  %v1155 = vsel %vm1139, %v1131, %v1147
  %v1156 = vsel %vm1140, %v1132, %v1148
  %v1157 = vsel %vm1141, %v1133, %v1149
  %v1158 = vmax.f32 %v797, %v1150
  %v1159 = vmax.f32 %v798, %v1151
  %v1160 = vmax.f32 %v799, %v1152
  %v1161 = vmax.f32 %v800, %v1153
  %v1162 = vmax.f32 %v801, %v1154
  %v1163 = vmax.f32 %v802, %v1155
  %v1164 = vmax.f32 %v803, %v1156
  %v1165 = vmax.f32 %v804, %v1157
  %v1166 = vsel %vm973, 1e+30, %v805
  %v1167 = vsel %vm974, 1e+30, %v806
  %v1168 = vsel %vm975, 1e+30, %v807
  %v1169 = vsel %vm976, 1e+30, %v808
  %v1170 = vsel %vm977, 1e+30, %v809
  %v1171 = vsel %vm978, 1e+30, %v810
  %v1172 = vsel %vm979, 1e+30, %v811
  %v1173 = vsel %vm980, 1e+30, %v812
  %v1174 = vsel %vm451, %v1166, inf
  %1175 = vmin.xlane.f32.xlu0 %v1174
  %v1176 = vpop.xlane.xlu0 %1175
  %v1177 = vsel %vm451, %v1167, inf
  %1178 = vmin.xlane.f32.xlu0 %v1177
  %v1179 = vpop.xlane.xlu0 %1178
  %v1180 = vsel %vm451, %v1168, inf
  %1181 = vmin.xlane.f32.xlu0 %v1180
  %v1182 = vpop.xlane.xlu0 %1181
  %v1183 = vsel %vm451, %v1169, inf
  %1184 = vmin.xlane.f32.xlu0 %v1183
  %v1185 = vpop.xlane.xlu0 %1184
  %v1186 = vsel %vm451, %v1170, inf
  %1187 = vmin.xlane.f32.xlu0 %v1186
  %v1188 = vpop.xlane.xlu0 %1187
  %v1189 = vsel %vm451, %v1171, inf
  %1190 = vmin.xlane.f32.xlu0 %v1189
  %v1191 = vpop.xlane.xlu0 %1190
  %v1192 = vsel %vm451, %v1172, inf
  %1193 = vmin.xlane.f32.xlu0 %v1192
  %v1194 = vpop.xlane.xlu0 %1193
  %v1195 = vsel %vm451, %v1173, inf
  %1196 = vmin.xlane.f32.xlu0 %v1195
  %v1197 = vpop.xlane.xlu0 %1196
  %vm1198 = vcmp.le.f32.partialorder %v1166, %v1176
  %vm1199 = vcmp.le.f32.partialorder %v1167, %v1179
  %vm1200 = vcmp.le.f32.partialorder %v1168, %v1182
  %vm1201 = vcmp.le.f32.partialorder %v1169, %v1185
  %vm1202 = vcmp.le.f32.partialorder %v1170, %v1188
  %vm1203 = vcmp.le.f32.partialorder %v1171, %v1191
  %vm1204 = vcmp.le.f32.partialorder %v1172, %v1194
  %vm1205 = vcmp.le.f32.partialorder %v1173, %v1197
  %v1206 = vsel %vm1198, %v145, 64
  %v1207 = vsel %vm1199, %v145, 64
  %v1208 = vsel %vm1200, %v145, 64
  %v1209 = vsel %vm1201, %v145, 64
  %v1210 = vsel %vm1202, %v145, 64
  %v1211 = vsel %vm1203, %v145, 64
  %v1212 = vsel %vm1204, %v145, 64
  %v1213 = vsel %vm1205, %v145, 64
  %v1214 = vsel %vm451, %v1206, 2147483647
  %v1215 = vand.u32 %v1214, 65535
  %v1216 = vshra.s32 %v1214, 16
  %v1217 = vcvt.s32.f32 %v1215
  %v1218 = vcvt.s32.f32 %v1216
  %1219 = vmin.xlane.f32.xlu0 %v1218
  %v1220 = vpop.xlane.xlu0 %1219
  %vm1221 = vcmp.eq.f32.partialorder %v1218, %v1220
  %v1222 = vsel %vm1221, %v1217, inf
  %1223 = vmin.xlane.f32.xlu0 %v1222
  %v1224 = vpop.xlane.xlu0 %1223
  %v1225 = vcvt.f32.s32 %v1224
  %v1226 = vcvt.f32.s32 %v1220
  %v1227 = vshll.u32 %v1226, 16
  %v1228 = vadd.s32 %v1227, %v1225
  %v1229 = vsel %vm451, %v1207, 2147483647
  %v1230 = vand.u32 %v1229, 65535
  %v1231 = vshra.s32 %v1229, 16
  %v1232 = vcvt.s32.f32 %v1230
  %v1233 = vcvt.s32.f32 %v1231
  %1234 = vmin.xlane.f32.xlu0 %v1233
  %v1235 = vpop.xlane.xlu0 %1234
  %vm1236 = vcmp.eq.f32.partialorder %v1233, %v1235
  %v1237 = vsel %vm1236, %v1232, inf
  %1238 = vmin.xlane.f32.xlu0 %v1237
  %v1239 = vpop.xlane.xlu0 %1238
  %v1240 = vcvt.f32.s32 %v1239
  %v1241 = vcvt.f32.s32 %v1235
  %v1242 = vshll.u32 %v1241, 16
  %v1243 = vadd.s32 %v1242, %v1240
  %v1244 = vsel %vm451, %v1208, 2147483647
  %v1245 = vand.u32 %v1244, 65535
  %v1246 = vshra.s32 %v1244, 16
  %v1247 = vcvt.s32.f32 %v1245
  %v1248 = vcvt.s32.f32 %v1246
  %1249 = vmin.xlane.f32.xlu0 %v1248
  %v1250 = vpop.xlane.xlu0 %1249
  %vm1251 = vcmp.eq.f32.partialorder %v1248, %v1250
  %v1252 = vsel %vm1251, %v1247, inf
  %1253 = vmin.xlane.f32.xlu0 %v1252
  %v1254 = vpop.xlane.xlu0 %1253
  %v1255 = vcvt.f32.s32 %v1254
  %v1256 = vcvt.f32.s32 %v1250
  %v1257 = vshll.u32 %v1256, 16
  %v1258 = vadd.s32 %v1257, %v1255
  %v1259 = vsel %vm451, %v1209, 2147483647
  %v1260 = vand.u32 %v1259, 65535
  %v1261 = vshra.s32 %v1259, 16
  %v1262 = vcvt.s32.f32 %v1260
  %v1263 = vcvt.s32.f32 %v1261
  %1264 = vmin.xlane.f32.xlu0 %v1263
  %v1265 = vpop.xlane.xlu0 %1264
  %vm1266 = vcmp.eq.f32.partialorder %v1263, %v1265
  %v1267 = vsel %vm1266, %v1262, inf
  %1268 = vmin.xlane.f32.xlu0 %v1267
  %v1269 = vpop.xlane.xlu0 %1268
  %v1270 = vcvt.f32.s32 %v1269
  %v1271 = vcvt.f32.s32 %v1265
  %v1272 = vshll.u32 %v1271, 16
  %v1273 = vadd.s32 %v1272, %v1270
  %v1274 = vsel %vm451, %v1210, 2147483647
  %v1275 = vand.u32 %v1274, 65535
  %v1276 = vshra.s32 %v1274, 16
  %v1277 = vcvt.s32.f32 %v1275
  %v1278 = vcvt.s32.f32 %v1276
  %1279 = vmin.xlane.f32.xlu0 %v1278
  %v1280 = vpop.xlane.xlu0 %1279
  %vm1281 = vcmp.eq.f32.partialorder %v1278, %v1280
  %v1282 = vsel %vm1281, %v1277, inf
  %1283 = vmin.xlane.f32.xlu0 %v1282
  %v1284 = vpop.xlane.xlu0 %1283
  %v1285 = vcvt.f32.s32 %v1284
  %v1286 = vcvt.f32.s32 %v1280
  %v1287 = vshll.u32 %v1286, 16
  %v1288 = vadd.s32 %v1287, %v1285
  %v1289 = vsel %vm451, %v1211, 2147483647
  %v1290 = vand.u32 %v1289, 65535
  %v1291 = vshra.s32 %v1289, 16
  %v1292 = vcvt.s32.f32 %v1290
  %v1293 = vcvt.s32.f32 %v1291
  %1294 = vmin.xlane.f32.xlu0 %v1293
  %v1295 = vpop.xlane.xlu0 %1294
  %vm1296 = vcmp.eq.f32.partialorder %v1293, %v1295
  %v1297 = vsel %vm1296, %v1292, inf
  %1298 = vmin.xlane.f32.xlu0 %v1297
  %v1299 = vpop.xlane.xlu0 %1298
  %v1300 = vcvt.f32.s32 %v1299
  %v1301 = vcvt.f32.s32 %v1295
  %v1302 = vshll.u32 %v1301, 16
  %v1303 = vadd.s32 %v1302, %v1300
  %v1304 = vsel %vm451, %v1212, 2147483647
  %v1305 = vand.u32 %v1304, 65535
  %v1306 = vshra.s32 %v1304, 16
  %v1307 = vcvt.s32.f32 %v1305
  %v1308 = vcvt.s32.f32 %v1306
  %1309 = vmin.xlane.f32.xlu0 %v1308
  %v1310 = vpop.xlane.xlu0 %1309
  %vm1311 = vcmp.eq.f32.partialorder %v1308, %v1310
  %v1312 = vsel %vm1311, %v1307, inf
  %1313 = vmin.xlane.f32.xlu0 %v1312
  %v1314 = vpop.xlane.xlu0 %1313
  %v1315 = vcvt.f32.s32 %v1314
  %v1316 = vcvt.f32.s32 %v1310
  %v1317 = vshll.u32 %v1316, 16
  %v1318 = vadd.s32 %v1317, %v1315
  %v1319 = vsel %vm451, %v1213, 2147483647
  %v1320 = vand.u32 %v1319, 65535
  %v1321 = vshra.s32 %v1319, 16
  %v1322 = vcvt.s32.f32 %v1320
  %v1323 = vcvt.s32.f32 %v1321
  %1324 = vmin.xlane.f32.xlu0 %v1323
  %v1325 = vpop.xlane.xlu0 %1324
  %vm1326 = vcmp.eq.f32.partialorder %v1323, %v1325
  %v1327 = vsel %vm1326, %v1322, inf
  %1328 = vmin.xlane.f32.xlu0 %v1327
  %v1329 = vpop.xlane.xlu0 %1328
  %v1330 = vcvt.f32.s32 %v1329
  %v1331 = vcvt.f32.s32 %v1325
  %v1332 = vshll.u32 %v1331, 16
  %v1333 = vadd.s32 %v1332, %v1330
  %vm1334 = vcmp.eq.s32.totalorder %v145, %v1228
  %vm1335 = vcmp.eq.s32.totalorder %v145, %v1243
  %vm1336 = vcmp.eq.s32.totalorder %v145, %v1258
  %vm1337 = vcmp.eq.s32.totalorder %v145, %v1273
  %vm1338 = vcmp.eq.s32.totalorder %v145, %v1288
  %vm1339 = vcmp.eq.s32.totalorder %v145, %v1303
  %vm1340 = vcmp.eq.s32.totalorder %v145, %v1318
  %vm1341 = vcmp.eq.s32.totalorder %v145, %v1333
  %v1342 = vsel %vm1334, 1, 0
  %v1343 = vsel %vm1335, 1, 0
  %v1344 = vsel %vm1336, 1, 0
  %v1345 = vsel %vm1337, 1, 0
  %v1346 = vsel %vm1338, 1, 0
  %v1347 = vsel %vm1339, 1, 0
  %v1348 = vsel %vm1340, 1, 0
  %v1349 = vsel %vm1341, 1, 0
  %v1350 = vcvt.s32.f32 %v1342
  %v1351 = vcvt.s32.f32 %v1343
  %v1352 = vcvt.s32.f32 %v1344
  %v1353 = vcvt.s32.f32 %v1345
  %v1354 = vcvt.s32.f32 %v1346
  %v1355 = vcvt.s32.f32 %v1347
  %v1356 = vcvt.s32.f32 %v1348
  %v1357 = vcvt.s32.f32 %v1349
  %v1359 = vsel %vm451, %v1350, 0
  %v1362 = vsel %vm451, %v1351, 0
  %v1365 = vsel %vm451, %v1352, 0
  %v1368 = vsel %vm451, %v1353, 0
  %v1371 = vsel %vm451, %v1354, 0
  %v1374 = vsel %vm451, %v1355, 0
  %v1377 = vsel %vm451, %v1356, 0
  %v1380 = vsel %vm451, %v1357, 0
  %1382 = vmatprep.subr.mxu0 0.0
  %1383 = vmatpush1.msra.mxu0 %v421
  %1384 = vmatprep.subr.mxu0 0.0
  %1385 = vmatpush1.msra.mxu0 %v424
  %1386 = vmatprep.subr.mxu0 0.0
  %1387 = vmatpush1.msra.mxu0 %v429
  %1388 = vmatprep.subr.mxu0 0.0
  %1389 = vmatpush1.msra.mxu0 %v432
  %1390 = vmatprep.subr.mxu0 0.0
  %1391 = vmatpush1.msra.mxu0 %v437
  %1392 = vmatprep.subr.mxu0 0.0
  %1393 = vmatpush1.msra.mxu0 %v440
  %1394 = vmatprep.subr.mxu0 0.0
  %1395 = vmatpush1.msra.mxu0 %v445
  %1396 = vmatprep.subr.mxu0 0.0
  %1397 = vmatpush1.msra.mxu0 %v448
  %1398 = vmatprep.subr.mxu0 0.0
  %1399 = vmatpush1.msra.mxu0 0.0
  %1400 = vmatprep.subr.mxu0 0.0
  %1401 = vmatpush1.msra.mxu0 0.0
  %1402 = vmatprep.subr.mxu0 0.0
  %1403 = vmatpush1.msra.mxu0 0.0
  %1404 = vmatprep.subr.mxu0 0.0
  %1405 = vmatpush1.msra.mxu0 0.0
  %1406 = vmatprep.subr.mxu0 0.0
  %1407 = vmatpush1.msra.mxu0 0.0
  %1408 = vmatprep.subr.mxu0 0.0
  %1409 = vmatpush1.msra.mxu0 0.0
  %1410 = vmatprep.subr.mxu0 0.0
  %1411 = vmatpush1.msra.mxu0 0.0
  %1412 = vmatprep.subr.mxu0 0.0
  %1413 = vmatpush1.msra.mxu0 0.0
  %1414 = vmatprep.subr.mxu0 0.0
  %1415 = vmatpush1.msra.mxu0 0.0
  %1416 = vmatprep.subr.mxu0 0.0
  %1417 = vmatpush1.msra.mxu0 0.0
  %1418 = vmatprep.subr.mxu0 0.0
  %1419 = vmatpush1.msra.mxu0 0.0
  %1420 = vmatprep.subr.mxu0 0.0
  %1421 = vmatpush1.msra.mxu0 0.0
  %1422 = vmatprep.subr.mxu0 0.0
  %1423 = vmatpush1.msra.mxu0 0.0
  %1424 = vmatprep.subr.mxu0 0.0
  %1425 = vmatpush1.msra.mxu0 0.0
  %1426 = vmatprep.subr.mxu0 0.0
  %1427 = vmatpush1.msra.mxu0 0.0
  %1428 = vmatprep.subr.mxu0 0.0
  %1429 = vmatpush1.msra.mxu0 0.0
  %1430 = vmatprep.subr.mxu0 0.0
  %1431 = vmatpush1.msra.mxu0 0.0
  %1432 = vmatprep.subr.mxu0 0.0
  %1433 = vmatpush1.msra.mxu0 0.0
  %1434 = vmatprep.subr.mxu0 0.0
  %1435 = vmatpush1.msra.mxu0 0.0
  %1436 = vmatprep.subr.mxu0 0.0
  %1437 = vmatpush1.msra.mxu0 0.0
  %1438 = vmatprep.subr.mxu0 0.0
  %1439 = vmatpush1.msra.mxu0 0.0
  %1440 = vmatprep.subr.mxu0 0.0
  %1441 = vmatpush1.msra.mxu0 0.0
  %1442 = vmatprep.subr.mxu0 0.0
  %1443 = vmatpush1.msra.mxu0 0.0
  %1444 = vmatprep.subr.mxu0 0.0
  %1445 = vmatpush1.msra.mxu0 0.0
  %1446 = vmatprep.mubr.f32.mxu0 0.0
  %1447 = vmatmul.mubr.f32.gmra.mrb[0].mxu0 %v1359
  %v1448 = vpop.f32.mrb[0].mxu0
  %v1449 = vadd.f32 0.0, %v1448
  %v1450 = vpop.f32.mrb[0].mxu0
  %1451 = vmatprep.mubr.f32.mxu0 0.0
  %1452 = vmatmul.mubr.f32.gmra.mrb[0].mxu0 %v1362
  %v1453 = vpop.f32.mrb[0].mxu0
  %v1454 = vadd.f32 0.0, %v1453
  %v1455 = vpop.f32.mrb[0].mxu0
  %1456 = vmatprep.mubr.f32.mxu0 0.0
  %1457 = vmatmul.mubr.f32.gmra.mrb[0].mxu0 %v1365
  %v1458 = vpop.f32.mrb[0].mxu0
  %v1459 = vadd.f32 0.0, %v1458
  %v1460 = vpop.f32.mrb[0].mxu0
  %1461 = vmatprep.mubr.f32.mxu0 0.0
  %1462 = vmatmul.mubr.f32.gmra.mrb[0].mxu0 %v1368
  %v1463 = vpop.f32.mrb[0].mxu0
  %v1464 = vadd.f32 0.0, %v1463
  %v1465 = vpop.f32.mrb[0].mxu0
  %1466 = vmatprep.mubr.f32.mxu0 0.0
  %1467 = vmatmul.mubr.f32.gmra.mrb[0].mxu0 %v1371
  %v1468 = vpop.f32.mrb[0].mxu0
  %v1469 = vadd.f32 0.0, %v1468
  %v1470 = vpop.f32.mrb[0].mxu0
  %1471 = vmatprep.mubr.f32.mxu0 0.0
  %1472 = vmatmul.mubr.f32.gmra.mrb[0].mxu0 %v1374
  %v1473 = vpop.f32.mrb[0].mxu0
  %v1474 = vadd.f32 0.0, %v1473
  %v1475 = vpop.f32.mrb[0].mxu0
  %1476 = vmatprep.mubr.f32.mxu0 0.0
  %1477 = vmatmul.mubr.f32.gmra.mrb[0].mxu0 %v1377
  %v1478 = vpop.f32.mrb[0].mxu0
  %v1479 = vadd.f32 0.0, %v1478
  %v1480 = vpop.f32.mrb[0].mxu0
  %1481 = vmatprep.mubr.f32.mxu0 0.0
  %1482 = vmatmul.mubr.f32.gmra.mrb[0].mxu0 %v1380
  %v1483 = vpop.f32.mrb[0].mxu0
  %v1484 = vadd.f32 0.0, %v1483
  %v1485 = vpop.f32.mrb[0].mxu0
  %1486 = vdwg.mxu0
  %v1487 = vadd.f32 %v288, %v1449
  %v1488 = vadd.f32 %v291, %v1454
  %v1489 = vadd.f32 %v296, %v1459
  %v1490 = vadd.f32 %v299, %v1464
  %v1491 = vadd.f32 %v304, %v1469
  %v1492 = vadd.f32 %v307, %v1474
  %v1493 = vadd.f32 %v312, %v1479
  %v1494 = vadd.f32 %v315, %v1484
  %vm1495 = vcmp.ge.f32.partialorder %v1487, 0.0
  %vm1496 = vcmp.ge.f32.partialorder %v1488, 0.0
  %vm1497 = vcmp.ge.f32.partialorder %v1489, 0.0
  %vm1498 = vcmp.ge.f32.partialorder %v1490, 0.0
  %vm1499 = vcmp.ge.f32.partialorder %v1491, 0.0
  %vm1500 = vcmp.ge.f32.partialorder %v1492, 0.0
  %vm1501 = vcmp.ge.f32.partialorder %v1493, 0.0
  %vm1502 = vcmp.ge.f32.partialorder %v1494, 0.0
  %v1503 = vmul.f32 %v1487, 0.2
  %v1504 = vmul.f32 %v1488, 0.2
  %v1505 = vmul.f32 %v1489, 0.2
  %v1506 = vmul.f32 %v1490, 0.2
  %v1507 = vmul.f32 %v1491, 0.2
  %v1508 = vmul.f32 %v1492, 0.2
  %v1509 = vmul.f32 %v1493, 0.2
  %v1510 = vmul.f32 %v1494, 0.2
  %v1511 = vsel %vm1495, %v1487, %v1503
  %v1512 = vsel %vm1496, %v1488, %v1504
  %v1513 = vsel %vm1497, %v1489, %v1505
  %v1514 = vsel %vm1498, %v1490, %v1506
  %v1515 = vsel %vm1499, %v1491, %v1507
  %v1516 = vsel %vm1500, %v1492, %v1508
  %v1517 = vsel %vm1501, %v1493, %v1509
  %v1518 = vsel %vm1502, %v1494, %v1510
  %v1519 = vmax.f32 %v1158, %v1511
  %v1520 = vmax.f32 %v1159, %v1512
  %v1521 = vmax.f32 %v1160, %v1513
  %v1522 = vmax.f32 %v1161, %v1514
  %v1523 = vmax.f32 %v1162, %v1515
  %v1524 = vmax.f32 %v1163, %v1516
  %v1525 = vmax.f32 %v1164, %v1517
  %v1526 = vmax.f32 %v1165, %v1518
  %v1527 = vsel %vm1334, 1e+30, %v1166
  %v1528 = vsel %vm1335, 1e+30, %v1167
  %v1529 = vsel %vm1336, 1e+30, %v1168
  %v1530 = vsel %vm1337, 1e+30, %v1169
  %v1531 = vsel %vm1338, 1e+30, %v1170
  %v1532 = vsel %vm1339, 1e+30, %v1171
  %v1533 = vsel %vm1340, 1e+30, %v1172
  %v1534 = vsel %vm1341, 1e+30, %v1173
  %v1535 = vsel %vm451, %v1527, inf
  %1536 = vmin.xlane.f32.xlu0 %v1535
  %v1537 = vpop.xlane.xlu0 %1536
  %v1538 = vsel %vm451, %v1528, inf
  %1539 = vmin.xlane.f32.xlu0 %v1538
  %v1540 = vpop.xlane.xlu0 %1539
  %v1541 = vsel %vm451, %v1529, inf
  %1542 = vmin.xlane.f32.xlu0 %v1541
  %v1543 = vpop.xlane.xlu0 %1542
  %v1544 = vsel %vm451, %v1530, inf
  %1545 = vmin.xlane.f32.xlu0 %v1544
  %v1546 = vpop.xlane.xlu0 %1545
  %v1547 = vsel %vm451, %v1531, inf
  %1548 = vmin.xlane.f32.xlu0 %v1547
  %v1549 = vpop.xlane.xlu0 %1548
  %v1550 = vsel %vm451, %v1532, inf
  %1551 = vmin.xlane.f32.xlu0 %v1550
  %v1552 = vpop.xlane.xlu0 %1551
  %v1553 = vsel %vm451, %v1533, inf
  %1554 = vmin.xlane.f32.xlu0 %v1553
  %v1555 = vpop.xlane.xlu0 %1554
  %v1556 = vsel %vm451, %v1534, inf
  %1557 = vmin.xlane.f32.xlu0 %v1556
  %v1558 = vpop.xlane.xlu0 %1557
  %vm1559 = vcmp.le.f32.partialorder %v1527, %v1537
  %vm1560 = vcmp.le.f32.partialorder %v1528, %v1540
  %vm1561 = vcmp.le.f32.partialorder %v1529, %v1543
  %vm1562 = vcmp.le.f32.partialorder %v1530, %v1546
  %vm1563 = vcmp.le.f32.partialorder %v1531, %v1549
  %vm1564 = vcmp.le.f32.partialorder %v1532, %v1552
  %vm1565 = vcmp.le.f32.partialorder %v1533, %v1555
  %vm1566 = vcmp.le.f32.partialorder %v1534, %v1558
  %v1567 = vsel %vm1559, %v145, 64
  %v1568 = vsel %vm1560, %v145, 64
  %v1569 = vsel %vm1561, %v145, 64
  %v1570 = vsel %vm1562, %v145, 64
  %v1571 = vsel %vm1563, %v145, 64
  %v1572 = vsel %vm1564, %v145, 64
  %v1573 = vsel %vm1565, %v145, 64
  %v1574 = vsel %vm1566, %v145, 64
  %v1575 = vsel %vm451, %v1567, 2147483647
  %v1576 = vand.u32 %v1575, 65535
  %v1577 = vshra.s32 %v1575, 16
  %v1578 = vcvt.s32.f32 %v1576
  %v1579 = vcvt.s32.f32 %v1577
  %1580 = vmin.xlane.f32.xlu0 %v1579
  %v1581 = vpop.xlane.xlu0 %1580
  %vm1582 = vcmp.eq.f32.partialorder %v1579, %v1581
  %v1583 = vsel %vm1582, %v1578, inf
  %1584 = vmin.xlane.f32.xlu0 %v1583
  %v1585 = vpop.xlane.xlu0 %1584
  %v1586 = vcvt.f32.s32 %v1585
  %v1587 = vcvt.f32.s32 %v1581
  %v1588 = vshll.u32 %v1587, 16
  %v1589 = vadd.s32 %v1588, %v1586
  %v1590 = vsel %vm451, %v1568, 2147483647
  %v1591 = vand.u32 %v1590, 65535
  %v1592 = vshra.s32 %v1590, 16
  %v1593 = vcvt.s32.f32 %v1591
  %v1594 = vcvt.s32.f32 %v1592
  %1595 = vmin.xlane.f32.xlu0 %v1594
  %v1596 = vpop.xlane.xlu0 %1595
  %vm1597 = vcmp.eq.f32.partialorder %v1594, %v1596
  %v1598 = vsel %vm1597, %v1593, inf
  %1599 = vmin.xlane.f32.xlu0 %v1598
  %v1600 = vpop.xlane.xlu0 %1599
  %v1601 = vcvt.f32.s32 %v1600
  %v1602 = vcvt.f32.s32 %v1596
  %v1603 = vshll.u32 %v1602, 16
  %v1604 = vadd.s32 %v1603, %v1601
  %v1605 = vsel %vm451, %v1569, 2147483647
  %v1606 = vand.u32 %v1605, 65535
  %v1607 = vshra.s32 %v1605, 16
  %v1608 = vcvt.s32.f32 %v1606
  %v1609 = vcvt.s32.f32 %v1607
  %1610 = vmin.xlane.f32.xlu0 %v1609
  %v1611 = vpop.xlane.xlu0 %1610
  %vm1612 = vcmp.eq.f32.partialorder %v1609, %v1611
  %v1613 = vsel %vm1612, %v1608, inf
  %1614 = vmin.xlane.f32.xlu0 %v1613
  %v1615 = vpop.xlane.xlu0 %1614
  %v1616 = vcvt.f32.s32 %v1615
  %v1617 = vcvt.f32.s32 %v1611
  %v1618 = vshll.u32 %v1617, 16
  %v1619 = vadd.s32 %v1618, %v1616
  %v1620 = vsel %vm451, %v1570, 2147483647
  %v1621 = vand.u32 %v1620, 65535
  %v1622 = vshra.s32 %v1620, 16
  %v1623 = vcvt.s32.f32 %v1621
  %v1624 = vcvt.s32.f32 %v1622
  %1625 = vmin.xlane.f32.xlu0 %v1624
  %v1626 = vpop.xlane.xlu0 %1625
  %vm1627 = vcmp.eq.f32.partialorder %v1624, %v1626
  %v1628 = vsel %vm1627, %v1623, inf
  %1629 = vmin.xlane.f32.xlu0 %v1628
  %v1630 = vpop.xlane.xlu0 %1629
  %v1631 = vcvt.f32.s32 %v1630
  %v1632 = vcvt.f32.s32 %v1626
  %v1633 = vshll.u32 %v1632, 16
  %v1634 = vadd.s32 %v1633, %v1631
  %v1635 = vsel %vm451, %v1571, 2147483647
  %v1636 = vand.u32 %v1635, 65535
  %v1637 = vshra.s32 %v1635, 16
  %v1638 = vcvt.s32.f32 %v1636
  %v1639 = vcvt.s32.f32 %v1637
  %1640 = vmin.xlane.f32.xlu0 %v1639
  %v1641 = vpop.xlane.xlu0 %1640
  %vm1642 = vcmp.eq.f32.partialorder %v1639, %v1641
  %v1643 = vsel %vm1642, %v1638, inf
  %1644 = vmin.xlane.f32.xlu0 %v1643
  %v1645 = vpop.xlane.xlu0 %1644
  %v1646 = vcvt.f32.s32 %v1645
  %v1647 = vcvt.f32.s32 %v1641
  %v1648 = vshll.u32 %v1647, 16
  %v1649 = vadd.s32 %v1648, %v1646
  %v1650 = vsel %vm451, %v1572, 2147483647
  %v1651 = vand.u32 %v1650, 65535
  %v1652 = vshra.s32 %v1650, 16
  %v1653 = vcvt.s32.f32 %v1651
  %v1654 = vcvt.s32.f32 %v1652
  %1655 = vmin.xlane.f32.xlu0 %v1654
  %v1656 = vpop.xlane.xlu0 %1655
  %vm1657 = vcmp.eq.f32.partialorder %v1654, %v1656
  %v1658 = vsel %vm1657, %v1653, inf
  %1659 = vmin.xlane.f32.xlu0 %v1658
  %v1660 = vpop.xlane.xlu0 %1659
  %v1661 = vcvt.f32.s32 %v1660
  %v1662 = vcvt.f32.s32 %v1656
  %v1663 = vshll.u32 %v1662, 16
  %v1664 = vadd.s32 %v1663, %v1661
  %v1665 = vsel %vm451, %v1573, 2147483647
  %v1666 = vand.u32 %v1665, 65535
  %v1667 = vshra.s32 %v1665, 16
  %v1668 = vcvt.s32.f32 %v1666
  %v1669 = vcvt.s32.f32 %v1667
  %1670 = vmin.xlane.f32.xlu0 %v1669
  %v1671 = vpop.xlane.xlu0 %1670
  %vm1672 = vcmp.eq.f32.partialorder %v1669, %v1671
  %v1673 = vsel %vm1672, %v1668, inf
  %1674 = vmin.xlane.f32.xlu0 %v1673
  %v1675 = vpop.xlane.xlu0 %1674
  %v1676 = vcvt.f32.s32 %v1675
  %v1677 = vcvt.f32.s32 %v1671
  %v1678 = vshll.u32 %v1677, 16
  %v1679 = vadd.s32 %v1678, %v1676
  %v1680 = vsel %vm451, %v1574, 2147483647
  %v1681 = vand.u32 %v1680, 65535
  %v1682 = vshra.s32 %v1680, 16
  %v1683 = vcvt.s32.f32 %v1681
  %v1684 = vcvt.s32.f32 %v1682
  %1685 = vmin.xlane.f32.xlu0 %v1684
  %v1686 = vpop.xlane.xlu0 %1685
  %vm1687 = vcmp.eq.f32.partialorder %v1684, %v1686
  %v1688 = vsel %vm1687, %v1683, inf
  %1689 = vmin.xlane.f32.xlu0 %v1688
  %v1690 = vpop.xlane.xlu0 %1689
  %v1691 = vcvt.f32.s32 %v1690
  %v1692 = vcvt.f32.s32 %v1686
  %v1693 = vshll.u32 %v1692, 16
  %v1694 = vadd.s32 %v1693, %v1691
  %vm1695 = vcmp.eq.s32.totalorder %v145, %v1589
  %vm1696 = vcmp.eq.s32.totalorder %v145, %v1604
  %vm1697 = vcmp.eq.s32.totalorder %v145, %v1619
  %vm1698 = vcmp.eq.s32.totalorder %v145, %v1634
  %vm1699 = vcmp.eq.s32.totalorder %v145, %v1649
  %vm1700 = vcmp.eq.s32.totalorder %v145, %v1664
  %vm1701 = vcmp.eq.s32.totalorder %v145, %v1679
  %vm1702 = vcmp.eq.s32.totalorder %v145, %v1694
  %v1703 = vsel %vm1695, 1, 0
  %v1704 = vsel %vm1696, 1, 0
  %v1705 = vsel %vm1697, 1, 0
  %v1706 = vsel %vm1698, 1, 0
  %v1707 = vsel %vm1699, 1, 0
  %v1708 = vsel %vm1700, 1, 0
  %v1709 = vsel %vm1701, 1, 0
  %v1710 = vsel %vm1702, 1, 0
  %v1711 = vcvt.s32.f32 %v1703
  %v1712 = vcvt.s32.f32 %v1704
  %v1713 = vcvt.s32.f32 %v1705
  %v1714 = vcvt.s32.f32 %v1706
  %v1715 = vcvt.s32.f32 %v1707
  %v1716 = vcvt.s32.f32 %v1708
  %v1717 = vcvt.s32.f32 %v1709
  %v1718 = vcvt.s32.f32 %v1710
  %v1720 = vsel %vm451, %v1711, 0
  %v1723 = vsel %vm451, %v1712, 0
  %v1726 = vsel %vm451, %v1713, 0
  %v1729 = vsel %vm451, %v1714, 0
  %v1732 = vsel %vm451, %v1715, 0
  %v1735 = vsel %vm451, %v1716, 0
  %v1738 = vsel %vm451, %v1717, 0
  %v1741 = vsel %vm451, %v1718, 0
  %1743 = vmatprep.subr.mxu0 0.0
  %1744 = vmatpush1.msra.mxu0 %v421
  %1745 = vmatprep.subr.mxu0 0.0
  %1746 = vmatpush1.msra.mxu0 %v424
  %1747 = vmatprep.subr.mxu0 0.0
  %1748 = vmatpush1.msra.mxu0 %v429
  %1749 = vmatprep.subr.mxu0 0.0
  %1750 = vmatpush1.msra.mxu0 %v432
  %1751 = vmatprep.subr.mxu0 0.0
  %1752 = vmatpush1.msra.mxu0 %v437
  %1753 = vmatprep.subr.mxu0 0.0
  %1754 = vmatpush1.msra.mxu0 %v440
  %1755 = vmatprep.subr.mxu0 0.0
  %1756 = vmatpush1.msra.mxu0 %v445
  %1757 = vmatprep.subr.mxu0 0.0
  %1758 = vmatpush1.msra.mxu0 %v448
  %1759 = vmatprep.subr.mxu0 0.0
  %1760 = vmatpush1.msra.mxu0 0.0
  %1761 = vmatprep.subr.mxu0 0.0
  %1762 = vmatpush1.msra.mxu0 0.0
  %1763 = vmatprep.subr.mxu0 0.0
  %1764 = vmatpush1.msra.mxu0 0.0
  %1765 = vmatprep.subr.mxu0 0.0
  %1766 = vmatpush1.msra.mxu0 0.0
  %1767 = vmatprep.subr.mxu0 0.0
  %1768 = vmatpush1.msra.mxu0 0.0
  %1769 = vmatprep.subr.mxu0 0.0
  %1770 = vmatpush1.msra.mxu0 0.0
  %1771 = vmatprep.subr.mxu0 0.0
  %1772 = vmatpush1.msra.mxu0 0.0
  %1773 = vmatprep.subr.mxu0 0.0
  %1774 = vmatpush1.msra.mxu0 0.0
  %1775 = vmatprep.subr.mxu0 0.0
  %1776 = vmatpush1.msra.mxu0 0.0
  %1777 = vmatprep.subr.mxu0 0.0
  %1778 = vmatpush1.msra.mxu0 0.0
  %1779 = vmatprep.subr.mxu0 0.0
  %1780 = vmatpush1.msra.mxu0 0.0
  %1781 = vmatprep.subr.mxu0 0.0
  %1782 = vmatpush1.msra.mxu0 0.0
  %1783 = vmatprep.subr.mxu0 0.0
  %1784 = vmatpush1.msra.mxu0 0.0
  %1785 = vmatprep.subr.mxu0 0.0
  %1786 = vmatpush1.msra.mxu0 0.0
  %1787 = vmatprep.subr.mxu0 0.0
  %1788 = vmatpush1.msra.mxu0 0.0
  %1789 = vmatprep.subr.mxu0 0.0
  %1790 = vmatpush1.msra.mxu0 0.0
  %1791 = vmatprep.subr.mxu0 0.0
  %1792 = vmatpush1.msra.mxu0 0.0
  %1793 = vmatprep.subr.mxu0 0.0
  %1794 = vmatpush1.msra.mxu0 0.0
  %1795 = vmatprep.subr.mxu0 0.0
  %1796 = vmatpush1.msra.mxu0 0.0
  %1797 = vmatprep.subr.mxu0 0.0
  %1798 = vmatpush1.msra.mxu0 0.0
  %1799 = vmatprep.subr.mxu0 0.0
  %1800 = vmatpush1.msra.mxu0 0.0
  %1801 = vmatprep.subr.mxu0 0.0
  %1802 = vmatpush1.msra.mxu0 0.0
  %1803 = vmatprep.subr.mxu0 0.0
  %1804 = vmatpush1.msra.mxu0 0.0
  %1805 = vmatprep.subr.mxu0 0.0
  %1806 = vmatpush1.msra.mxu0 0.0
  %1807 = vmatprep.mubr.f32.mxu0 0.0
  %1808 = vmatmul.mubr.f32.gmra.mrb[0].mxu0 %v1720
  %v1809 = vpop.f32.mrb[0].mxu0
  %v1810 = vadd.f32 0.0, %v1809
  %v1811 = vpop.f32.mrb[0].mxu0
  %1812 = vmatprep.mubr.f32.mxu0 0.0
  %1813 = vmatmul.mubr.f32.gmra.mrb[0].mxu0 %v1723
  %v1814 = vpop.f32.mrb[0].mxu0
  %v1815 = vadd.f32 0.0, %v1814
  %v1816 = vpop.f32.mrb[0].mxu0
  %1817 = vmatprep.mubr.f32.mxu0 0.0
  %1818 = vmatmul.mubr.f32.gmra.mrb[0].mxu0 %v1726
  %v1819 = vpop.f32.mrb[0].mxu0
  %v1820 = vadd.f32 0.0, %v1819
  %v1821 = vpop.f32.mrb[0].mxu0
  %1822 = vmatprep.mubr.f32.mxu0 0.0
  %1823 = vmatmul.mubr.f32.gmra.mrb[0].mxu0 %v1729
  %v1824 = vpop.f32.mrb[0].mxu0
  %v1825 = vadd.f32 0.0, %v1824
  %v1826 = vpop.f32.mrb[0].mxu0
  %1827 = vmatprep.mubr.f32.mxu0 0.0
  %1828 = vmatmul.mubr.f32.gmra.mrb[0].mxu0 %v1732
  %v1829 = vpop.f32.mrb[0].mxu0
  %v1830 = vadd.f32 0.0, %v1829
  %v1831 = vpop.f32.mrb[0].mxu0
  %1832 = vmatprep.mubr.f32.mxu0 0.0
  %1833 = vmatmul.mubr.f32.gmra.mrb[0].mxu0 %v1735
  %v1834 = vpop.f32.mrb[0].mxu0
  %v1835 = vadd.f32 0.0, %v1834
  %v1836 = vpop.f32.mrb[0].mxu0
  %1837 = vmatprep.mubr.f32.mxu0 0.0
  %1838 = vmatmul.mubr.f32.gmra.mrb[0].mxu0 %v1738
  %v1839 = vpop.f32.mrb[0].mxu0
  %v1840 = vadd.f32 0.0, %v1839
  %v1841 = vpop.f32.mrb[0].mxu0
  %1842 = vmatprep.mubr.f32.mxu0 0.0
  %1843 = vmatmul.mubr.f32.gmra.mrb[0].mxu0 %v1741
  %v1844 = vpop.f32.mrb[0].mxu0
  %v1845 = vadd.f32 0.0, %v1844
  %v1846 = vpop.f32.mrb[0].mxu0
  %1847 = vdwg.mxu0
  %v1848 = vadd.f32 %v288, %v1810
  %v1849 = vadd.f32 %v291, %v1815
  %v1850 = vadd.f32 %v296, %v1820
  %v1851 = vadd.f32 %v299, %v1825
  %v1852 = vadd.f32 %v304, %v1830
  %v1853 = vadd.f32 %v307, %v1835
  %v1854 = vadd.f32 %v312, %v1840
  %v1855 = vadd.f32 %v315, %v1845
  %vm1856 = vcmp.ge.f32.partialorder %v1848, 0.0
  %vm1857 = vcmp.ge.f32.partialorder %v1849, 0.0
  %vm1858 = vcmp.ge.f32.partialorder %v1850, 0.0
  %vm1859 = vcmp.ge.f32.partialorder %v1851, 0.0
  %vm1860 = vcmp.ge.f32.partialorder %v1852, 0.0
  %vm1861 = vcmp.ge.f32.partialorder %v1853, 0.0
  %vm1862 = vcmp.ge.f32.partialorder %v1854, 0.0
  %vm1863 = vcmp.ge.f32.partialorder %v1855, 0.0
  %v1864 = vmul.f32 %v1848, 0.2
  %v1865 = vmul.f32 %v1849, 0.2
  %v1866 = vmul.f32 %v1850, 0.2
  %v1867 = vmul.f32 %v1851, 0.2
  %v1868 = vmul.f32 %v1852, 0.2
  %v1869 = vmul.f32 %v1853, 0.2
  %v1870 = vmul.f32 %v1854, 0.2
  %v1871 = vmul.f32 %v1855, 0.2
  %v1872 = vsel %vm1856, %v1848, %v1864
  %v1873 = vsel %vm1857, %v1849, %v1865
  %v1874 = vsel %vm1858, %v1850, %v1866
  %v1875 = vsel %vm1859, %v1851, %v1867
  %v1876 = vsel %vm1860, %v1852, %v1868
  %v1877 = vsel %vm1861, %v1853, %v1869
  %v1878 = vsel %vm1862, %v1854, %v1870
  %v1879 = vsel %vm1863, %v1855, %v1871
  %v1880 = vmax.f32 %v1519, %v1872
  %v1881 = vmax.f32 %v1520, %v1873
  %v1882 = vmax.f32 %v1521, %v1874
  %v1883 = vmax.f32 %v1522, %v1875
  %v1884 = vmax.f32 %v1523, %v1876
  %v1885 = vmax.f32 %v1524, %v1877
  %v1886 = vmax.f32 %v1525, %v1878
  %v1887 = vmax.f32 %v1526, %v1879
  %v1888 = vsel %vm1695, 1e+30, %v1527
  %v1889 = vsel %vm1696, 1e+30, %v1528
  %v1890 = vsel %vm1697, 1e+30, %v1529
  %v1891 = vsel %vm1698, 1e+30, %v1530
  %v1892 = vsel %vm1699, 1e+30, %v1531
  %v1893 = vsel %vm1700, 1e+30, %v1532
  %v1894 = vsel %vm1701, 1e+30, %v1533
  %v1895 = vsel %vm1702, 1e+30, %v1534
  %v1896 = vsel %vm451, %v1888, inf
  %1897 = vmin.xlane.f32.xlu0 %v1896
  %v1898 = vpop.xlane.xlu0 %1897
  %v1899 = vsel %vm451, %v1889, inf
  %1900 = vmin.xlane.f32.xlu0 %v1899
  %v1901 = vpop.xlane.xlu0 %1900
  %v1902 = vsel %vm451, %v1890, inf
  %1903 = vmin.xlane.f32.xlu0 %v1902
  %v1904 = vpop.xlane.xlu0 %1903
  %v1905 = vsel %vm451, %v1891, inf
  %1906 = vmin.xlane.f32.xlu0 %v1905
  %v1907 = vpop.xlane.xlu0 %1906
  %v1908 = vsel %vm451, %v1892, inf
  %1909 = vmin.xlane.f32.xlu0 %v1908
  %v1910 = vpop.xlane.xlu0 %1909
  %v1911 = vsel %vm451, %v1893, inf
  %1912 = vmin.xlane.f32.xlu0 %v1911
  %v1913 = vpop.xlane.xlu0 %1912
  %v1914 = vsel %vm451, %v1894, inf
  %1915 = vmin.xlane.f32.xlu0 %v1914
  %v1916 = vpop.xlane.xlu0 %1915
  %v1917 = vsel %vm451, %v1895, inf
  %1918 = vmin.xlane.f32.xlu0 %v1917
  %v1919 = vpop.xlane.xlu0 %1918
  %vm1920 = vcmp.le.f32.partialorder %v1888, %v1898
  %vm1921 = vcmp.le.f32.partialorder %v1889, %v1901
  %vm1922 = vcmp.le.f32.partialorder %v1890, %v1904
  %vm1923 = vcmp.le.f32.partialorder %v1891, %v1907
  %vm1924 = vcmp.le.f32.partialorder %v1892, %v1910
  %vm1925 = vcmp.le.f32.partialorder %v1893, %v1913
  %vm1926 = vcmp.le.f32.partialorder %v1894, %v1916
  %vm1927 = vcmp.le.f32.partialorder %v1895, %v1919
  %v1928 = vsel %vm1920, %v145, 64
  %v1929 = vsel %vm1921, %v145, 64
  %v1930 = vsel %vm1922, %v145, 64
  %v1931 = vsel %vm1923, %v145, 64
  %v1932 = vsel %vm1924, %v145, 64
  %v1933 = vsel %vm1925, %v145, 64
  %v1934 = vsel %vm1926, %v145, 64
  %v1935 = vsel %vm1927, %v145, 64
  %v1936 = vsel %vm451, %v1928, 2147483647
  %v1937 = vand.u32 %v1936, 65535
  %v1938 = vshra.s32 %v1936, 16
  %v1939 = vcvt.s32.f32 %v1937
  %v1940 = vcvt.s32.f32 %v1938
  %1941 = vmin.xlane.f32.xlu0 %v1940
  %v1942 = vpop.xlane.xlu0 %1941
  %vm1943 = vcmp.eq.f32.partialorder %v1940, %v1942
  %v1944 = vsel %vm1943, %v1939, inf
  %1945 = vmin.xlane.f32.xlu0 %v1944
  %v1946 = vpop.xlane.xlu0 %1945
  %v1947 = vcvt.f32.s32 %v1946
  %v1948 = vcvt.f32.s32 %v1942
  %v1949 = vshll.u32 %v1948, 16
  %v1950 = vadd.s32 %v1949, %v1947
  %v1951 = vsel %vm451, %v1929, 2147483647
  %v1952 = vand.u32 %v1951, 65535
  %v1953 = vshra.s32 %v1951, 16
  %v1954 = vcvt.s32.f32 %v1952
  %v1955 = vcvt.s32.f32 %v1953
  %1956 = vmin.xlane.f32.xlu0 %v1955
  %v1957 = vpop.xlane.xlu0 %1956
  %vm1958 = vcmp.eq.f32.partialorder %v1955, %v1957
  %v1959 = vsel %vm1958, %v1954, inf
  %1960 = vmin.xlane.f32.xlu0 %v1959
  %v1961 = vpop.xlane.xlu0 %1960
  %v1962 = vcvt.f32.s32 %v1961
  %v1963 = vcvt.f32.s32 %v1957
  %v1964 = vshll.u32 %v1963, 16
  %v1965 = vadd.s32 %v1964, %v1962
  %v1966 = vsel %vm451, %v1930, 2147483647
  %v1967 = vand.u32 %v1966, 65535
  %v1968 = vshra.s32 %v1966, 16
  %v1969 = vcvt.s32.f32 %v1967
  %v1970 = vcvt.s32.f32 %v1968
  %1971 = vmin.xlane.f32.xlu0 %v1970
  %v1972 = vpop.xlane.xlu0 %1971
  %vm1973 = vcmp.eq.f32.partialorder %v1970, %v1972
  %v1974 = vsel %vm1973, %v1969, inf
  %1975 = vmin.xlane.f32.xlu0 %v1974
  %v1976 = vpop.xlane.xlu0 %1975
  %v1977 = vcvt.f32.s32 %v1976
  %v1978 = vcvt.f32.s32 %v1972
  %v1979 = vshll.u32 %v1978, 16
  %v1980 = vadd.s32 %v1979, %v1977
  %v1981 = vsel %vm451, %v1931, 2147483647
  %v1982 = vand.u32 %v1981, 65535
  %v1983 = vshra.s32 %v1981, 16
  %v1984 = vcvt.s32.f32 %v1982
  %v1985 = vcvt.s32.f32 %v1983
  %1986 = vmin.xlane.f32.xlu0 %v1985
  %v1987 = vpop.xlane.xlu0 %1986
  %vm1988 = vcmp.eq.f32.partialorder %v1985, %v1987
  %v1989 = vsel %vm1988, %v1984, inf
  %1990 = vmin.xlane.f32.xlu0 %v1989
  %v1991 = vpop.xlane.xlu0 %1990
  %v1992 = vcvt.f32.s32 %v1991
  %v1993 = vcvt.f32.s32 %v1987
  %v1994 = vshll.u32 %v1993, 16
  %v1995 = vadd.s32 %v1994, %v1992
  %v1996 = vsel %vm451, %v1932, 2147483647
  %v1997 = vand.u32 %v1996, 65535
  %v1998 = vshra.s32 %v1996, 16
  %v1999 = vcvt.s32.f32 %v1997
  %v2000 = vcvt.s32.f32 %v1998
  %2001 = vmin.xlane.f32.xlu0 %v2000
  %v2002 = vpop.xlane.xlu0 %2001
  %vm2003 = vcmp.eq.f32.partialorder %v2000, %v2002
  %v2004 = vsel %vm2003, %v1999, inf
  %2005 = vmin.xlane.f32.xlu0 %v2004
  %v2006 = vpop.xlane.xlu0 %2005
  %v2007 = vcvt.f32.s32 %v2006
  %v2008 = vcvt.f32.s32 %v2002
  %v2009 = vshll.u32 %v2008, 16
  %v2010 = vadd.s32 %v2009, %v2007
  %v2011 = vsel %vm451, %v1933, 2147483647
  %v2012 = vand.u32 %v2011, 65535
  %v2013 = vshra.s32 %v2011, 16
  %v2014 = vcvt.s32.f32 %v2012
  %v2015 = vcvt.s32.f32 %v2013
  %2016 = vmin.xlane.f32.xlu0 %v2015
  %v2017 = vpop.xlane.xlu0 %2016
  %vm2018 = vcmp.eq.f32.partialorder %v2015, %v2017
  %v2019 = vsel %vm2018, %v2014, inf
  %2020 = vmin.xlane.f32.xlu0 %v2019
  %v2021 = vpop.xlane.xlu0 %2020
  %v2022 = vcvt.f32.s32 %v2021
  %v2023 = vcvt.f32.s32 %v2017
  %v2024 = vshll.u32 %v2023, 16
  %v2025 = vadd.s32 %v2024, %v2022
  %v2026 = vsel %vm451, %v1934, 2147483647
  %v2027 = vand.u32 %v2026, 65535
  %v2028 = vshra.s32 %v2026, 16
  %v2029 = vcvt.s32.f32 %v2027
  %v2030 = vcvt.s32.f32 %v2028
  %2031 = vmin.xlane.f32.xlu0 %v2030
  %v2032 = vpop.xlane.xlu0 %2031
  %vm2033 = vcmp.eq.f32.partialorder %v2030, %v2032
  %v2034 = vsel %vm2033, %v2029, inf
  %2035 = vmin.xlane.f32.xlu0 %v2034
  %v2036 = vpop.xlane.xlu0 %2035
  %v2037 = vcvt.f32.s32 %v2036
  %v2038 = vcvt.f32.s32 %v2032
  %v2039 = vshll.u32 %v2038, 16
  %v2040 = vadd.s32 %v2039, %v2037
  %v2041 = vsel %vm451, %v1935, 2147483647
  %v2042 = vand.u32 %v2041, 65535
  %v2043 = vshra.s32 %v2041, 16
  %v2044 = vcvt.s32.f32 %v2042
  %v2045 = vcvt.s32.f32 %v2043
  %2046 = vmin.xlane.f32.xlu0 %v2045
  %v2047 = vpop.xlane.xlu0 %2046
  %vm2048 = vcmp.eq.f32.partialorder %v2045, %v2047
  %v2049 = vsel %vm2048, %v2044, inf
  %2050 = vmin.xlane.f32.xlu0 %v2049
  %v2051 = vpop.xlane.xlu0 %2050
  %v2052 = vcvt.f32.s32 %v2051
  %v2053 = vcvt.f32.s32 %v2047
  %v2054 = vshll.u32 %v2053, 16
  %v2055 = vadd.s32 %v2054, %v2052
  %vm2056 = vcmp.eq.s32.totalorder %v145, %v1950
  %vm2057 = vcmp.eq.s32.totalorder %v145, %v1965
  %vm2058 = vcmp.eq.s32.totalorder %v145, %v1980
  %vm2059 = vcmp.eq.s32.totalorder %v145, %v1995
  %vm2060 = vcmp.eq.s32.totalorder %v145, %v2010
  %vm2061 = vcmp.eq.s32.totalorder %v145, %v2025
  %vm2062 = vcmp.eq.s32.totalorder %v145, %v2040
  %vm2063 = vcmp.eq.s32.totalorder %v145, %v2055
  %v2064 = vsel %vm2056, 1, 0
  %v2065 = vsel %vm2057, 1, 0
  %v2066 = vsel %vm2058, 1, 0
  %v2067 = vsel %vm2059, 1, 0
  %v2068 = vsel %vm2060, 1, 0
  %v2069 = vsel %vm2061, 1, 0
  %v2070 = vsel %vm2062, 1, 0
  %v2071 = vsel %vm2063, 1, 0
  %v2072 = vcvt.s32.f32 %v2064
  %v2073 = vcvt.s32.f32 %v2065
  %v2074 = vcvt.s32.f32 %v2066
  %v2075 = vcvt.s32.f32 %v2067
  %v2076 = vcvt.s32.f32 %v2068
  %v2077 = vcvt.s32.f32 %v2069
  %v2078 = vcvt.s32.f32 %v2070
  %v2079 = vcvt.s32.f32 %v2071
  %v2081 = vsel %vm451, %v2072, 0
  %v2084 = vsel %vm451, %v2073, 0
  %v2087 = vsel %vm451, %v2074, 0
  %v2090 = vsel %vm451, %v2075, 0
  %v2093 = vsel %vm451, %v2076, 0
  %v2096 = vsel %vm451, %v2077, 0
  %v2099 = vsel %vm451, %v2078, 0
  %v2102 = vsel %vm451, %v2079, 0
  %2104 = vmatprep.subr.mxu0 0.0
  %2105 = vmatpush1.msra.mxu0 %v421
  %2106 = vmatprep.subr.mxu0 0.0
  %2107 = vmatpush1.msra.mxu0 %v424
  %2108 = vmatprep.subr.mxu0 0.0
  %2109 = vmatpush1.msra.mxu0 %v429
  %2110 = vmatprep.subr.mxu0 0.0
  %2111 = vmatpush1.msra.mxu0 %v432
  %2112 = vmatprep.subr.mxu0 0.0
  %2113 = vmatpush1.msra.mxu0 %v437
  %2114 = vmatprep.subr.mxu0 0.0
  %2115 = vmatpush1.msra.mxu0 %v440
  %2116 = vmatprep.subr.mxu0 0.0
  %2117 = vmatpush1.msra.mxu0 %v445
  %2118 = vmatprep.subr.mxu0 0.0
  %2119 = vmatpush1.msra.mxu0 %v448
  %2120 = vmatprep.subr.mxu0 0.0
  %2121 = vmatpush1.msra.mxu0 0.0
  %2122 = vmatprep.subr.mxu0 0.0
  %2123 = vmatpush1.msra.mxu0 0.0
  %2124 = vmatprep.subr.mxu0 0.0
  %2125 = vmatpush1.msra.mxu0 0.0
  %2126 = vmatprep.subr.mxu0 0.0
  %2127 = vmatpush1.msra.mxu0 0.0
  %2128 = vmatprep.subr.mxu0 0.0
  %2129 = vmatpush1.msra.mxu0 0.0
  %2130 = vmatprep.subr.mxu0 0.0
  %2131 = vmatpush1.msra.mxu0 0.0
  %2132 = vmatprep.subr.mxu0 0.0
  %2133 = vmatpush1.msra.mxu0 0.0
  %2134 = vmatprep.subr.mxu0 0.0
  %2135 = vmatpush1.msra.mxu0 0.0
  %2136 = vmatprep.subr.mxu0 0.0
  %2137 = vmatpush1.msra.mxu0 0.0
  %2138 = vmatprep.subr.mxu0 0.0
  %2139 = vmatpush1.msra.mxu0 0.0
  %2140 = vmatprep.subr.mxu0 0.0
  %2141 = vmatpush1.msra.mxu0 0.0
  %2142 = vmatprep.subr.mxu0 0.0
  %2143 = vmatpush1.msra.mxu0 0.0
  %2144 = vmatprep.subr.mxu0 0.0
  %2145 = vmatpush1.msra.mxu0 0.0
  %2146 = vmatprep.subr.mxu0 0.0
  %2147 = vmatpush1.msra.mxu0 0.0
  %2148 = vmatprep.subr.mxu0 0.0
  %2149 = vmatpush1.msra.mxu0 0.0
  %2150 = vmatprep.subr.mxu0 0.0
  %2151 = vmatpush1.msra.mxu0 0.0
  %2152 = vmatprep.subr.mxu0 0.0
  %2153 = vmatpush1.msra.mxu0 0.0
  %2154 = vmatprep.subr.mxu0 0.0
  %2155 = vmatpush1.msra.mxu0 0.0
  %2156 = vmatprep.subr.mxu0 0.0
  %2157 = vmatpush1.msra.mxu0 0.0
  %2158 = vmatprep.subr.mxu0 0.0
  %2159 = vmatpush1.msra.mxu0 0.0
  %2160 = vmatprep.subr.mxu0 0.0
  %2161 = vmatpush1.msra.mxu0 0.0
  %2162 = vmatprep.subr.mxu0 0.0
  %2163 = vmatpush1.msra.mxu0 0.0
  %2164 = vmatprep.subr.mxu0 0.0
  %2165 = vmatpush1.msra.mxu0 0.0
  %2166 = vmatprep.subr.mxu0 0.0
  %2167 = vmatpush1.msra.mxu0 0.0
  %2168 = vmatprep.mubr.f32.mxu0 0.0
  %2169 = vmatmul.mubr.f32.gmra.mrb[0].mxu0 %v2081
  %v2170 = vpop.f32.mrb[0].mxu0
  %v2171 = vadd.f32 0.0, %v2170
  %v2172 = vpop.f32.mrb[0].mxu0
  %2173 = vmatprep.mubr.f32.mxu0 0.0
  %2174 = vmatmul.mubr.f32.gmra.mrb[0].mxu0 %v2084
  %v2175 = vpop.f32.mrb[0].mxu0
  %v2176 = vadd.f32 0.0, %v2175
  %v2177 = vpop.f32.mrb[0].mxu0
  %2178 = vmatprep.mubr.f32.mxu0 0.0
  %2179 = vmatmul.mubr.f32.gmra.mrb[0].mxu0 %v2087
  %v2180 = vpop.f32.mrb[0].mxu0
  %v2181 = vadd.f32 0.0, %v2180
  %v2182 = vpop.f32.mrb[0].mxu0
  %2183 = vmatprep.mubr.f32.mxu0 0.0
  %2184 = vmatmul.mubr.f32.gmra.mrb[0].mxu0 %v2090
  %v2185 = vpop.f32.mrb[0].mxu0
  %v2186 = vadd.f32 0.0, %v2185
  %v2187 = vpop.f32.mrb[0].mxu0
  %2188 = vmatprep.mubr.f32.mxu0 0.0
  %2189 = vmatmul.mubr.f32.gmra.mrb[0].mxu0 %v2093
  %v2190 = vpop.f32.mrb[0].mxu0
  %v2191 = vadd.f32 0.0, %v2190
  %v2192 = vpop.f32.mrb[0].mxu0
  %2193 = vmatprep.mubr.f32.mxu0 0.0
  %2194 = vmatmul.mubr.f32.gmra.mrb[0].mxu0 %v2096
  %v2195 = vpop.f32.mrb[0].mxu0
  %v2196 = vadd.f32 0.0, %v2195
  %v2197 = vpop.f32.mrb[0].mxu0
  %2198 = vmatprep.mubr.f32.mxu0 0.0
  %2199 = vmatmul.mubr.f32.gmra.mrb[0].mxu0 %v2099
  %v2200 = vpop.f32.mrb[0].mxu0
  %v2201 = vadd.f32 0.0, %v2200
  %v2202 = vpop.f32.mrb[0].mxu0
  %2203 = vmatprep.mubr.f32.mxu0 0.0
  %2204 = vmatmul.mubr.f32.gmra.mrb[0].mxu0 %v2102
  %v2205 = vpop.f32.mrb[0].mxu0
  %v2206 = vadd.f32 0.0, %v2205
  %v2207 = vpop.f32.mrb[0].mxu0
  %2208 = vdwg.mxu0
  %v2209 = vadd.f32 %v288, %v2171
  %v2210 = vadd.f32 %v291, %v2176
  %v2211 = vadd.f32 %v296, %v2181
  %v2212 = vadd.f32 %v299, %v2186
  %v2213 = vadd.f32 %v304, %v2191
  %v2214 = vadd.f32 %v307, %v2196
  %v2215 = vadd.f32 %v312, %v2201
  %v2216 = vadd.f32 %v315, %v2206
  %vm2217 = vcmp.ge.f32.partialorder %v2209, 0.0
  %vm2218 = vcmp.ge.f32.partialorder %v2210, 0.0
  %vm2219 = vcmp.ge.f32.partialorder %v2211, 0.0
  %vm2220 = vcmp.ge.f32.partialorder %v2212, 0.0
  %vm2221 = vcmp.ge.f32.partialorder %v2213, 0.0
  %vm2222 = vcmp.ge.f32.partialorder %v2214, 0.0
  %vm2223 = vcmp.ge.f32.partialorder %v2215, 0.0
  %vm2224 = vcmp.ge.f32.partialorder %v2216, 0.0
  %v2225 = vmul.f32 %v2209, 0.2
  %v2226 = vmul.f32 %v2210, 0.2
  %v2227 = vmul.f32 %v2211, 0.2
  %v2228 = vmul.f32 %v2212, 0.2
  %v2229 = vmul.f32 %v2213, 0.2
  %v2230 = vmul.f32 %v2214, 0.2
  %v2231 = vmul.f32 %v2215, 0.2
  %v2232 = vmul.f32 %v2216, 0.2
  %v2233 = vsel %vm2217, %v2209, %v2225
  %v2234 = vsel %vm2218, %v2210, %v2226
  %v2235 = vsel %vm2219, %v2211, %v2227
  %v2236 = vsel %vm2220, %v2212, %v2228
  %v2237 = vsel %vm2221, %v2213, %v2229
  %v2238 = vsel %vm2222, %v2214, %v2230
  %v2239 = vsel %vm2223, %v2215, %v2231
  %v2240 = vsel %vm2224, %v2216, %v2232
  %v2241 = vmax.f32 %v1880, %v2233
  %v2242 = vmax.f32 %v1881, %v2234
  %v2243 = vmax.f32 %v1882, %v2235
  %v2244 = vmax.f32 %v1883, %v2236
  %v2245 = vmax.f32 %v1884, %v2237
  %v2246 = vmax.f32 %v1885, %v2238
  %v2247 = vmax.f32 %v1886, %v2239
  %v2248 = vmax.f32 %v1887, %v2240
  %v2249 = vsel %vm2056, 1e+30, %v1888
  %v2250 = vsel %vm2057, 1e+30, %v1889
  %v2251 = vsel %vm2058, 1e+30, %v1890
  %v2252 = vsel %vm2059, 1e+30, %v1891
  %v2253 = vsel %vm2060, 1e+30, %v1892
  %v2254 = vsel %vm2061, 1e+30, %v1893
  %v2255 = vsel %vm2062, 1e+30, %v1894
  %v2256 = vsel %vm2063, 1e+30, %v1895
  %v2257 = vsel %vm451, %v2249, inf
  %2258 = vmin.xlane.f32.xlu0 %v2257
  %v2259 = vpop.xlane.xlu0 %2258
  %v2260 = vsel %vm451, %v2250, inf
  %2261 = vmin.xlane.f32.xlu0 %v2260
  %v2262 = vpop.xlane.xlu0 %2261
  %v2263 = vsel %vm451, %v2251, inf
  %2264 = vmin.xlane.f32.xlu0 %v2263
  %v2265 = vpop.xlane.xlu0 %2264
  %v2266 = vsel %vm451, %v2252, inf
  %2267 = vmin.xlane.f32.xlu0 %v2266
  %v2268 = vpop.xlane.xlu0 %2267
  %v2269 = vsel %vm451, %v2253, inf
  %2270 = vmin.xlane.f32.xlu0 %v2269
  %v2271 = vpop.xlane.xlu0 %2270
  %v2272 = vsel %vm451, %v2254, inf
  %2273 = vmin.xlane.f32.xlu0 %v2272
  %v2274 = vpop.xlane.xlu0 %2273
  %v2275 = vsel %vm451, %v2255, inf
  %2276 = vmin.xlane.f32.xlu0 %v2275
  %v2277 = vpop.xlane.xlu0 %2276
  %v2278 = vsel %vm451, %v2256, inf
  %2279 = vmin.xlane.f32.xlu0 %v2278
  %v2280 = vpop.xlane.xlu0 %2279
  %vm2281 = vcmp.le.f32.partialorder %v2249, %v2259
  %vm2282 = vcmp.le.f32.partialorder %v2250, %v2262
  %vm2283 = vcmp.le.f32.partialorder %v2251, %v2265
  %vm2284 = vcmp.le.f32.partialorder %v2252, %v2268
  %vm2285 = vcmp.le.f32.partialorder %v2253, %v2271
  %vm2286 = vcmp.le.f32.partialorder %v2254, %v2274
  %vm2287 = vcmp.le.f32.partialorder %v2255, %v2277
  %vm2288 = vcmp.le.f32.partialorder %v2256, %v2280
  %v2289 = vsel %vm2281, %v145, 64
  %v2290 = vsel %vm2282, %v145, 64
  %v2291 = vsel %vm2283, %v145, 64
  %v2292 = vsel %vm2284, %v145, 64
  %v2293 = vsel %vm2285, %v145, 64
  %v2294 = vsel %vm2286, %v145, 64
  %v2295 = vsel %vm2287, %v145, 64
  %v2296 = vsel %vm2288, %v145, 64
  %v2297 = vsel %vm451, %v2289, 2147483647
  %v2298 = vand.u32 %v2297, 65535
  %v2299 = vshra.s32 %v2297, 16
  %v2300 = vcvt.s32.f32 %v2298
  %v2301 = vcvt.s32.f32 %v2299
  %2302 = vmin.xlane.f32.xlu0 %v2301
  %v2303 = vpop.xlane.xlu0 %2302
  %vm2304 = vcmp.eq.f32.partialorder %v2301, %v2303
  %v2305 = vsel %vm2304, %v2300, inf
  %2306 = vmin.xlane.f32.xlu0 %v2305
  %v2307 = vpop.xlane.xlu0 %2306
  %v2308 = vcvt.f32.s32 %v2307
  %v2309 = vcvt.f32.s32 %v2303
  %v2310 = vshll.u32 %v2309, 16
  %v2311 = vadd.s32 %v2310, %v2308
  %v2312 = vsel %vm451, %v2290, 2147483647
  %v2313 = vand.u32 %v2312, 65535
  %v2314 = vshra.s32 %v2312, 16
  %v2315 = vcvt.s32.f32 %v2313
  %v2316 = vcvt.s32.f32 %v2314
  %2317 = vmin.xlane.f32.xlu0 %v2316
  %v2318 = vpop.xlane.xlu0 %2317
  %vm2319 = vcmp.eq.f32.partialorder %v2316, %v2318
  %v2320 = vsel %vm2319, %v2315, inf
  %2321 = vmin.xlane.f32.xlu0 %v2320
  %v2322 = vpop.xlane.xlu0 %2321
  %v2323 = vcvt.f32.s32 %v2322
  %v2324 = vcvt.f32.s32 %v2318
  %v2325 = vshll.u32 %v2324, 16
  %v2326 = vadd.s32 %v2325, %v2323
  %v2327 = vsel %vm451, %v2291, 2147483647
  %v2328 = vand.u32 %v2327, 65535
  %v2329 = vshra.s32 %v2327, 16
  %v2330 = vcvt.s32.f32 %v2328
  %v2331 = vcvt.s32.f32 %v2329
  %2332 = vmin.xlane.f32.xlu0 %v2331
  %v2333 = vpop.xlane.xlu0 %2332
  %vm2334 = vcmp.eq.f32.partialorder %v2331, %v2333
  %v2335 = vsel %vm2334, %v2330, inf
  %2336 = vmin.xlane.f32.xlu0 %v2335
  %v2337 = vpop.xlane.xlu0 %2336
  %v2338 = vcvt.f32.s32 %v2337
  %v2339 = vcvt.f32.s32 %v2333
  %v2340 = vshll.u32 %v2339, 16
  %v2341 = vadd.s32 %v2340, %v2338
  %v2342 = vsel %vm451, %v2292, 2147483647
  %v2343 = vand.u32 %v2342, 65535
  %v2344 = vshra.s32 %v2342, 16
  %v2345 = vcvt.s32.f32 %v2343
  %v2346 = vcvt.s32.f32 %v2344
  %2347 = vmin.xlane.f32.xlu0 %v2346
  %v2348 = vpop.xlane.xlu0 %2347
  %vm2349 = vcmp.eq.f32.partialorder %v2346, %v2348
  %v2350 = vsel %vm2349, %v2345, inf
  %2351 = vmin.xlane.f32.xlu0 %v2350
  %v2352 = vpop.xlane.xlu0 %2351
  %v2353 = vcvt.f32.s32 %v2352
  %v2354 = vcvt.f32.s32 %v2348
  %v2355 = vshll.u32 %v2354, 16
  %v2356 = vadd.s32 %v2355, %v2353
  %v2357 = vsel %vm451, %v2293, 2147483647
  %v2358 = vand.u32 %v2357, 65535
  %v2359 = vshra.s32 %v2357, 16
  %v2360 = vcvt.s32.f32 %v2358
  %v2361 = vcvt.s32.f32 %v2359
  %2362 = vmin.xlane.f32.xlu0 %v2361
  %v2363 = vpop.xlane.xlu0 %2362
  %vm2364 = vcmp.eq.f32.partialorder %v2361, %v2363
  %v2365 = vsel %vm2364, %v2360, inf
  %2366 = vmin.xlane.f32.xlu0 %v2365
  %v2367 = vpop.xlane.xlu0 %2366
  %v2368 = vcvt.f32.s32 %v2367
  %v2369 = vcvt.f32.s32 %v2363
  %v2370 = vshll.u32 %v2369, 16
  %v2371 = vadd.s32 %v2370, %v2368
  %v2372 = vsel %vm451, %v2294, 2147483647
  %v2373 = vand.u32 %v2372, 65535
  %v2374 = vshra.s32 %v2372, 16
  %v2375 = vcvt.s32.f32 %v2373
  %v2376 = vcvt.s32.f32 %v2374
  %2377 = vmin.xlane.f32.xlu0 %v2376
  %v2378 = vpop.xlane.xlu0 %2377
  %vm2379 = vcmp.eq.f32.partialorder %v2376, %v2378
  %v2380 = vsel %vm2379, %v2375, inf
  %2381 = vmin.xlane.f32.xlu0 %v2380
  %v2382 = vpop.xlane.xlu0 %2381
  %v2383 = vcvt.f32.s32 %v2382
  %v2384 = vcvt.f32.s32 %v2378
  %v2385 = vshll.u32 %v2384, 16
  %v2386 = vadd.s32 %v2385, %v2383
  %v2387 = vsel %vm451, %v2295, 2147483647
  %v2388 = vand.u32 %v2387, 65535
  %v2389 = vshra.s32 %v2387, 16
  %v2390 = vcvt.s32.f32 %v2388
  %v2391 = vcvt.s32.f32 %v2389
  %2392 = vmin.xlane.f32.xlu0 %v2391
  %v2393 = vpop.xlane.xlu0 %2392
  %vm2394 = vcmp.eq.f32.partialorder %v2391, %v2393
  %v2395 = vsel %vm2394, %v2390, inf
  %2396 = vmin.xlane.f32.xlu0 %v2395
  %v2397 = vpop.xlane.xlu0 %2396
  %v2398 = vcvt.f32.s32 %v2397
  %v2399 = vcvt.f32.s32 %v2393
  %v2400 = vshll.u32 %v2399, 16
  %v2401 = vadd.s32 %v2400, %v2398
  %v2402 = vsel %vm451, %v2296, 2147483647
  %v2403 = vand.u32 %v2402, 65535
  %v2404 = vshra.s32 %v2402, 16
  %v2405 = vcvt.s32.f32 %v2403
  %v2406 = vcvt.s32.f32 %v2404
  %2407 = vmin.xlane.f32.xlu0 %v2406
  %v2408 = vpop.xlane.xlu0 %2407
  %vm2409 = vcmp.eq.f32.partialorder %v2406, %v2408
  %v2410 = vsel %vm2409, %v2405, inf
  %2411 = vmin.xlane.f32.xlu0 %v2410
  %v2412 = vpop.xlane.xlu0 %2411
  %v2413 = vcvt.f32.s32 %v2412
  %v2414 = vcvt.f32.s32 %v2408
  %v2415 = vshll.u32 %v2414, 16
  %v2416 = vadd.s32 %v2415, %v2413
  %vm2417 = vcmp.eq.s32.totalorder %v145, %v2311
  %vm2418 = vcmp.eq.s32.totalorder %v145, %v2326
  %vm2419 = vcmp.eq.s32.totalorder %v145, %v2341
  %vm2420 = vcmp.eq.s32.totalorder %v145, %v2356
  %vm2421 = vcmp.eq.s32.totalorder %v145, %v2371
  %vm2422 = vcmp.eq.s32.totalorder %v145, %v2386
  %vm2423 = vcmp.eq.s32.totalorder %v145, %v2401
  %vm2424 = vcmp.eq.s32.totalorder %v145, %v2416
  %v2425 = vsel %vm2417, 1, 0
  %v2426 = vsel %vm2418, 1, 0
  %v2427 = vsel %vm2419, 1, 0
  %v2428 = vsel %vm2420, 1, 0
  %v2429 = vsel %vm2421, 1, 0
  %v2430 = vsel %vm2422, 1, 0
  %v2431 = vsel %vm2423, 1, 0
  %v2432 = vsel %vm2424, 1, 0
  %v2433 = vcvt.s32.f32 %v2425
  %v2434 = vcvt.s32.f32 %v2426
  %v2435 = vcvt.s32.f32 %v2427
  %v2436 = vcvt.s32.f32 %v2428
  %v2437 = vcvt.s32.f32 %v2429
  %v2438 = vcvt.s32.f32 %v2430
  %v2439 = vcvt.s32.f32 %v2431
  %v2440 = vcvt.s32.f32 %v2432
  %v2442 = vsel %vm451, %v2433, 0
  %v2445 = vsel %vm451, %v2434, 0
  %v2448 = vsel %vm451, %v2435, 0
  %v2451 = vsel %vm451, %v2436, 0
  %v2454 = vsel %vm451, %v2437, 0
  %v2457 = vsel %vm451, %v2438, 0
  %v2460 = vsel %vm451, %v2439, 0
  %v2463 = vsel %vm451, %v2440, 0
  %2465 = vmatprep.subr.mxu0 0.0
  %2466 = vmatpush1.msra.mxu0 %v421
  %2467 = vmatprep.subr.mxu0 0.0
  %2468 = vmatpush1.msra.mxu0 %v424
  %2469 = vmatprep.subr.mxu0 0.0
  %2470 = vmatpush1.msra.mxu0 %v429
  %2471 = vmatprep.subr.mxu0 0.0
  %2472 = vmatpush1.msra.mxu0 %v432
  %2473 = vmatprep.subr.mxu0 0.0
  %2474 = vmatpush1.msra.mxu0 %v437
  %2475 = vmatprep.subr.mxu0 0.0
  %2476 = vmatpush1.msra.mxu0 %v440
  %2477 = vmatprep.subr.mxu0 0.0
  %2478 = vmatpush1.msra.mxu0 %v445
  %2479 = vmatprep.subr.mxu0 0.0
  %2480 = vmatpush1.msra.mxu0 %v448
  %2481 = vmatprep.subr.mxu0 0.0
  %2482 = vmatpush1.msra.mxu0 0.0
  %2483 = vmatprep.subr.mxu0 0.0
  %2484 = vmatpush1.msra.mxu0 0.0
  %2485 = vmatprep.subr.mxu0 0.0
  %2486 = vmatpush1.msra.mxu0 0.0
  %2487 = vmatprep.subr.mxu0 0.0
  %2488 = vmatpush1.msra.mxu0 0.0
  %2489 = vmatprep.subr.mxu0 0.0
  %2490 = vmatpush1.msra.mxu0 0.0
  %2491 = vmatprep.subr.mxu0 0.0
  %2492 = vmatpush1.msra.mxu0 0.0
  %2493 = vmatprep.subr.mxu0 0.0
  %2494 = vmatpush1.msra.mxu0 0.0
  %2495 = vmatprep.subr.mxu0 0.0
  %2496 = vmatpush1.msra.mxu0 0.0
  %2497 = vmatprep.subr.mxu0 0.0
  %2498 = vmatpush1.msra.mxu0 0.0
  %2499 = vmatprep.subr.mxu0 0.0
  %2500 = vmatpush1.msra.mxu0 0.0
  %2501 = vmatprep.subr.mxu0 0.0
  %2502 = vmatpush1.msra.mxu0 0.0
  %2503 = vmatprep.subr.mxu0 0.0
  %2504 = vmatpush1.msra.mxu0 0.0
  %2505 = vmatprep.subr.mxu0 0.0
  %2506 = vmatpush1.msra.mxu0 0.0
  %2507 = vmatprep.subr.mxu0 0.0
  %2508 = vmatpush1.msra.mxu0 0.0
  %2509 = vmatprep.subr.mxu0 0.0
  %2510 = vmatpush1.msra.mxu0 0.0
  %2511 = vmatprep.subr.mxu0 0.0
  %2512 = vmatpush1.msra.mxu0 0.0
  %2513 = vmatprep.subr.mxu0 0.0
  %2514 = vmatpush1.msra.mxu0 0.0
  %2515 = vmatprep.subr.mxu0 0.0
  %2516 = vmatpush1.msra.mxu0 0.0
  %2517 = vmatprep.subr.mxu0 0.0
  %2518 = vmatpush1.msra.mxu0 0.0
  %2519 = vmatprep.subr.mxu0 0.0
  %2520 = vmatpush1.msra.mxu0 0.0
  %2521 = vmatprep.subr.mxu0 0.0
  %2522 = vmatpush1.msra.mxu0 0.0
  %2523 = vmatprep.subr.mxu0 0.0
  %2524 = vmatpush1.msra.mxu0 0.0
  %2525 = vmatprep.subr.mxu0 0.0
  %2526 = vmatpush1.msra.mxu0 0.0
  %2527 = vmatprep.subr.mxu0 0.0
  %2528 = vmatpush1.msra.mxu0 0.0
  %2529 = vmatprep.mubr.f32.mxu0 0.0
  %2530 = vmatmul.mubr.f32.gmra.mrb[0].mxu0 %v2442
  %v2531 = vpop.f32.mrb[0].mxu0
  %v2532 = vadd.f32 0.0, %v2531
  %v2533 = vpop.f32.mrb[0].mxu0
  %2534 = vmatprep.mubr.f32.mxu0 0.0
  %2535 = vmatmul.mubr.f32.gmra.mrb[0].mxu0 %v2445
  %v2536 = vpop.f32.mrb[0].mxu0
  %v2537 = vadd.f32 0.0, %v2536
  %v2538 = vpop.f32.mrb[0].mxu0
  %2539 = vmatprep.mubr.f32.mxu0 0.0
  %2540 = vmatmul.mubr.f32.gmra.mrb[0].mxu0 %v2448
  %v2541 = vpop.f32.mrb[0].mxu0
  %v2542 = vadd.f32 0.0, %v2541
  %v2543 = vpop.f32.mrb[0].mxu0
  %2544 = vmatprep.mubr.f32.mxu0 0.0
  %2545 = vmatmul.mubr.f32.gmra.mrb[0].mxu0 %v2451
  %v2546 = vpop.f32.mrb[0].mxu0
  %v2547 = vadd.f32 0.0, %v2546
  %v2548 = vpop.f32.mrb[0].mxu0
  %2549 = vmatprep.mubr.f32.mxu0 0.0
  %2550 = vmatmul.mubr.f32.gmra.mrb[0].mxu0 %v2454
  %v2551 = vpop.f32.mrb[0].mxu0
  %v2552 = vadd.f32 0.0, %v2551
  %v2553 = vpop.f32.mrb[0].mxu0
  %2554 = vmatprep.mubr.f32.mxu0 0.0
  %2555 = vmatmul.mubr.f32.gmra.mrb[0].mxu0 %v2457
  %v2556 = vpop.f32.mrb[0].mxu0
  %v2557 = vadd.f32 0.0, %v2556
  %v2558 = vpop.f32.mrb[0].mxu0
  %2559 = vmatprep.mubr.f32.mxu0 0.0
  %2560 = vmatmul.mubr.f32.gmra.mrb[0].mxu0 %v2460
  %v2561 = vpop.f32.mrb[0].mxu0
  %v2562 = vadd.f32 0.0, %v2561
  %v2563 = vpop.f32.mrb[0].mxu0
  %2564 = vmatprep.mubr.f32.mxu0 0.0
  %2565 = vmatmul.mubr.f32.gmra.mrb[0].mxu0 %v2463
  %v2566 = vpop.f32.mrb[0].mxu0
  %v2567 = vadd.f32 0.0, %v2566
  %v2568 = vpop.f32.mrb[0].mxu0
  %2569 = vdwg.mxu0
  %v2570 = vadd.f32 %v288, %v2532
  %v2571 = vadd.f32 %v291, %v2537
  %v2572 = vadd.f32 %v296, %v2542
  %v2573 = vadd.f32 %v299, %v2547
  %v2574 = vadd.f32 %v304, %v2552
  %v2575 = vadd.f32 %v307, %v2557
  %v2576 = vadd.f32 %v312, %v2562
  %v2577 = vadd.f32 %v315, %v2567
  %vm2578 = vcmp.ge.f32.partialorder %v2570, 0.0
  %vm2579 = vcmp.ge.f32.partialorder %v2571, 0.0
  %vm2580 = vcmp.ge.f32.partialorder %v2572, 0.0
  %vm2581 = vcmp.ge.f32.partialorder %v2573, 0.0
  %vm2582 = vcmp.ge.f32.partialorder %v2574, 0.0
  %vm2583 = vcmp.ge.f32.partialorder %v2575, 0.0
  %vm2584 = vcmp.ge.f32.partialorder %v2576, 0.0
  %vm2585 = vcmp.ge.f32.partialorder %v2577, 0.0
  %v2586 = vmul.f32 %v2570, 0.2
  %v2587 = vmul.f32 %v2571, 0.2
  %v2588 = vmul.f32 %v2572, 0.2
  %v2589 = vmul.f32 %v2573, 0.2
  %v2590 = vmul.f32 %v2574, 0.2
  %v2591 = vmul.f32 %v2575, 0.2
  %v2592 = vmul.f32 %v2576, 0.2
  %v2593 = vmul.f32 %v2577, 0.2
  %v2594 = vsel %vm2578, %v2570, %v2586
  %v2595 = vsel %vm2579, %v2571, %v2587
  %v2596 = vsel %vm2580, %v2572, %v2588
  %v2597 = vsel %vm2581, %v2573, %v2589
  %v2598 = vsel %vm2582, %v2574, %v2590
  %v2599 = vsel %vm2583, %v2575, %v2591
  %v2600 = vsel %vm2584, %v2576, %v2592
  %v2601 = vsel %vm2585, %v2577, %v2593
  %v2602 = vmax.f32 %v2241, %v2594
  %v2603 = vmax.f32 %v2242, %v2595
  %v2604 = vmax.f32 %v2243, %v2596
  %v2605 = vmax.f32 %v2244, %v2597
  %v2606 = vmax.f32 %v2245, %v2598
  %v2607 = vmax.f32 %v2246, %v2599
  %v2608 = vmax.f32 %v2247, %v2600
  %v2609 = vmax.f32 %v2248, %v2601
  %v2610 = vsel %vm2417, 1e+30, %v2249
  %v2611 = vsel %vm2418, 1e+30, %v2250
  %v2612 = vsel %vm2419, 1e+30, %v2251
  %v2613 = vsel %vm2420, 1e+30, %v2252
  %v2614 = vsel %vm2421, 1e+30, %v2253
  %v2615 = vsel %vm2422, 1e+30, %v2254
  %v2616 = vsel %vm2423, 1e+30, %v2255
  %v2617 = vsel %vm2424, 1e+30, %v2256
  %v2618 = vsel %vm451, %v2610, inf
  %2619 = vmin.xlane.f32.xlu0 %v2618
  %v2620 = vpop.xlane.xlu0 %2619
  %v2621 = vsel %vm451, %v2611, inf
  %2622 = vmin.xlane.f32.xlu0 %v2621
  %v2623 = vpop.xlane.xlu0 %2622
  %v2624 = vsel %vm451, %v2612, inf
  %2625 = vmin.xlane.f32.xlu0 %v2624
  %v2626 = vpop.xlane.xlu0 %2625
  %v2627 = vsel %vm451, %v2613, inf
  %2628 = vmin.xlane.f32.xlu0 %v2627
  %v2629 = vpop.xlane.xlu0 %2628
  %v2630 = vsel %vm451, %v2614, inf
  %2631 = vmin.xlane.f32.xlu0 %v2630
  %v2632 = vpop.xlane.xlu0 %2631
  %v2633 = vsel %vm451, %v2615, inf
  %2634 = vmin.xlane.f32.xlu0 %v2633
  %v2635 = vpop.xlane.xlu0 %2634
  %v2636 = vsel %vm451, %v2616, inf
  %2637 = vmin.xlane.f32.xlu0 %v2636
  %v2638 = vpop.xlane.xlu0 %2637
  %v2639 = vsel %vm451, %v2617, inf
  %2640 = vmin.xlane.f32.xlu0 %v2639
  %v2641 = vpop.xlane.xlu0 %2640
  %vm2642 = vcmp.le.f32.partialorder %v2610, %v2620
  %vm2643 = vcmp.le.f32.partialorder %v2611, %v2623
  %vm2644 = vcmp.le.f32.partialorder %v2612, %v2626
  %vm2645 = vcmp.le.f32.partialorder %v2613, %v2629
  %vm2646 = vcmp.le.f32.partialorder %v2614, %v2632
  %vm2647 = vcmp.le.f32.partialorder %v2615, %v2635
  %vm2648 = vcmp.le.f32.partialorder %v2616, %v2638
  %vm2649 = vcmp.le.f32.partialorder %v2617, %v2641
  %v2650 = vsel %vm2642, %v145, 64
  %v2651 = vsel %vm2643, %v145, 64
  %v2652 = vsel %vm2644, %v145, 64
  %v2653 = vsel %vm2645, %v145, 64
  %v2654 = vsel %vm2646, %v145, 64
  %v2655 = vsel %vm2647, %v145, 64
  %v2656 = vsel %vm2648, %v145, 64
  %v2657 = vsel %vm2649, %v145, 64
  %v2658 = vsel %vm451, %v2650, 2147483647
  %v2659 = vand.u32 %v2658, 65535
  %v2660 = vshra.s32 %v2658, 16
  %v2661 = vcvt.s32.f32 %v2659
  %v2662 = vcvt.s32.f32 %v2660
  %2663 = vmin.xlane.f32.xlu0 %v2662
  %v2664 = vpop.xlane.xlu0 %2663
  %vm2665 = vcmp.eq.f32.partialorder %v2662, %v2664
  %v2666 = vsel %vm2665, %v2661, inf
  %2667 = vmin.xlane.f32.xlu0 %v2666
  %v2668 = vpop.xlane.xlu0 %2667
  %v2669 = vcvt.f32.s32 %v2668
  %v2670 = vcvt.f32.s32 %v2664
  %v2671 = vshll.u32 %v2670, 16
  %v2672 = vadd.s32 %v2671, %v2669
  %v2673 = vsel %vm451, %v2651, 2147483647
  %v2674 = vand.u32 %v2673, 65535
  %v2675 = vshra.s32 %v2673, 16
  %v2676 = vcvt.s32.f32 %v2674
  %v2677 = vcvt.s32.f32 %v2675
  %2678 = vmin.xlane.f32.xlu0 %v2677
  %v2679 = vpop.xlane.xlu0 %2678
  %vm2680 = vcmp.eq.f32.partialorder %v2677, %v2679
  %v2681 = vsel %vm2680, %v2676, inf
  %2682 = vmin.xlane.f32.xlu0 %v2681
  %v2683 = vpop.xlane.xlu0 %2682
  %v2684 = vcvt.f32.s32 %v2683
  %v2685 = vcvt.f32.s32 %v2679
  %v2686 = vshll.u32 %v2685, 16
  %v2687 = vadd.s32 %v2686, %v2684
  %v2688 = vsel %vm451, %v2652, 2147483647
  %v2689 = vand.u32 %v2688, 65535
  %v2690 = vshra.s32 %v2688, 16
  %v2691 = vcvt.s32.f32 %v2689
  %v2692 = vcvt.s32.f32 %v2690
  %2693 = vmin.xlane.f32.xlu0 %v2692
  %v2694 = vpop.xlane.xlu0 %2693
  %vm2695 = vcmp.eq.f32.partialorder %v2692, %v2694
  %v2696 = vsel %vm2695, %v2691, inf
  %2697 = vmin.xlane.f32.xlu0 %v2696
  %v2698 = vpop.xlane.xlu0 %2697
  %v2699 = vcvt.f32.s32 %v2698
  %v2700 = vcvt.f32.s32 %v2694
  %v2701 = vshll.u32 %v2700, 16
  %v2702 = vadd.s32 %v2701, %v2699
  %v2703 = vsel %vm451, %v2653, 2147483647
  %v2704 = vand.u32 %v2703, 65535
  %v2705 = vshra.s32 %v2703, 16
  %v2706 = vcvt.s32.f32 %v2704
  %v2707 = vcvt.s32.f32 %v2705
  %2708 = vmin.xlane.f32.xlu0 %v2707
  %v2709 = vpop.xlane.xlu0 %2708
  %vm2710 = vcmp.eq.f32.partialorder %v2707, %v2709
  %v2711 = vsel %vm2710, %v2706, inf
  %2712 = vmin.xlane.f32.xlu0 %v2711
  %v2713 = vpop.xlane.xlu0 %2712
  %v2714 = vcvt.f32.s32 %v2713
  %v2715 = vcvt.f32.s32 %v2709
  %v2716 = vshll.u32 %v2715, 16
  %v2717 = vadd.s32 %v2716, %v2714
  %v2718 = vsel %vm451, %v2654, 2147483647
  %v2719 = vand.u32 %v2718, 65535
  %v2720 = vshra.s32 %v2718, 16
  %v2721 = vcvt.s32.f32 %v2719
  %v2722 = vcvt.s32.f32 %v2720
  %2723 = vmin.xlane.f32.xlu0 %v2722
  %v2724 = vpop.xlane.xlu0 %2723
  %vm2725 = vcmp.eq.f32.partialorder %v2722, %v2724
  %v2726 = vsel %vm2725, %v2721, inf
  %2727 = vmin.xlane.f32.xlu0 %v2726
  %v2728 = vpop.xlane.xlu0 %2727
  %v2729 = vcvt.f32.s32 %v2728
  %v2730 = vcvt.f32.s32 %v2724
  %v2731 = vshll.u32 %v2730, 16
  %v2732 = vadd.s32 %v2731, %v2729
  %v2733 = vsel %vm451, %v2655, 2147483647
  %v2734 = vand.u32 %v2733, 65535
  %v2735 = vshra.s32 %v2733, 16
  %v2736 = vcvt.s32.f32 %v2734
  %v2737 = vcvt.s32.f32 %v2735
  %2738 = vmin.xlane.f32.xlu0 %v2737
  %v2739 = vpop.xlane.xlu0 %2738
  %vm2740 = vcmp.eq.f32.partialorder %v2737, %v2739
  %v2741 = vsel %vm2740, %v2736, inf
  %2742 = vmin.xlane.f32.xlu0 %v2741
  %v2743 = vpop.xlane.xlu0 %2742
  %v2744 = vcvt.f32.s32 %v2743
  %v2745 = vcvt.f32.s32 %v2739
  %v2746 = vshll.u32 %v2745, 16
  %v2747 = vadd.s32 %v2746, %v2744
  %v2748 = vsel %vm451, %v2656, 2147483647
  %v2749 = vand.u32 %v2748, 65535
  %v2750 = vshra.s32 %v2748, 16
  %v2751 = vcvt.s32.f32 %v2749
  %v2752 = vcvt.s32.f32 %v2750
  %2753 = vmin.xlane.f32.xlu0 %v2752
  %v2754 = vpop.xlane.xlu0 %2753
  %vm2755 = vcmp.eq.f32.partialorder %v2752, %v2754
  %v2756 = vsel %vm2755, %v2751, inf
  %2757 = vmin.xlane.f32.xlu0 %v2756
  %v2758 = vpop.xlane.xlu0 %2757
  %v2759 = vcvt.f32.s32 %v2758
  %v2760 = vcvt.f32.s32 %v2754
  %v2761 = vshll.u32 %v2760, 16
  %v2762 = vadd.s32 %v2761, %v2759
  %v2763 = vsel %vm451, %v2657, 2147483647
  %v2764 = vand.u32 %v2763, 65535
  %v2765 = vshra.s32 %v2763, 16
  %v2766 = vcvt.s32.f32 %v2764
  %v2767 = vcvt.s32.f32 %v2765
  %2768 = vmin.xlane.f32.xlu0 %v2767
  %v2769 = vpop.xlane.xlu0 %2768
  %vm2770 = vcmp.eq.f32.partialorder %v2767, %v2769
  %v2771 = vsel %vm2770, %v2766, inf
  %2772 = vmin.xlane.f32.xlu0 %v2771
  %v2773 = vpop.xlane.xlu0 %2772
  %v2774 = vcvt.f32.s32 %v2773
  %v2775 = vcvt.f32.s32 %v2769
  %v2776 = vshll.u32 %v2775, 16
  %v2777 = vadd.s32 %v2776, %v2774
  %vm2778 = vcmp.eq.s32.totalorder %v145, %v2672
  %vm2779 = vcmp.eq.s32.totalorder %v145, %v2687
  %vm2780 = vcmp.eq.s32.totalorder %v145, %v2702
  %vm2781 = vcmp.eq.s32.totalorder %v145, %v2717
  %vm2782 = vcmp.eq.s32.totalorder %v145, %v2732
  %vm2783 = vcmp.eq.s32.totalorder %v145, %v2747
  %vm2784 = vcmp.eq.s32.totalorder %v145, %v2762
  %vm2785 = vcmp.eq.s32.totalorder %v145, %v2777
  %v2786 = vsel %vm2778, 1, 0
  %v2787 = vsel %vm2779, 1, 0
  %v2788 = vsel %vm2780, 1, 0
  %v2789 = vsel %vm2781, 1, 0
  %v2790 = vsel %vm2782, 1, 0
  %v2791 = vsel %vm2783, 1, 0
  %v2792 = vsel %vm2784, 1, 0
  %v2793 = vsel %vm2785, 1, 0
  %v2794 = vcvt.s32.f32 %v2786
  %v2795 = vcvt.s32.f32 %v2787
  %v2796 = vcvt.s32.f32 %v2788
  %v2797 = vcvt.s32.f32 %v2789
  %v2798 = vcvt.s32.f32 %v2790
  %v2799 = vcvt.s32.f32 %v2791
  %v2800 = vcvt.s32.f32 %v2792
  %v2801 = vcvt.s32.f32 %v2793
  %v2803 = vsel %vm451, %v2794, 0
  %v2806 = vsel %vm451, %v2795, 0
  %v2809 = vsel %vm451, %v2796, 0
  %v2812 = vsel %vm451, %v2797, 0
  %v2815 = vsel %vm451, %v2798, 0
  %v2818 = vsel %vm451, %v2799, 0
  %v2821 = vsel %vm451, %v2800, 0
  %v2824 = vsel %vm451, %v2801, 0
  %2826 = vmatprep.subr.mxu0 0.0
  %2827 = vmatpush1.msra.mxu0 %v421
  %2828 = vmatprep.subr.mxu0 0.0
  %2829 = vmatpush1.msra.mxu0 %v424
  %2830 = vmatprep.subr.mxu0 0.0
  %2831 = vmatpush1.msra.mxu0 %v429
  %2832 = vmatprep.subr.mxu0 0.0
  %2833 = vmatpush1.msra.mxu0 %v432
  %2834 = vmatprep.subr.mxu0 0.0
  %2835 = vmatpush1.msra.mxu0 %v437
  %2836 = vmatprep.subr.mxu0 0.0
  %2837 = vmatpush1.msra.mxu0 %v440
  %2838 = vmatprep.subr.mxu0 0.0
  %2839 = vmatpush1.msra.mxu0 %v445
  %2840 = vmatprep.subr.mxu0 0.0
  %2841 = vmatpush1.msra.mxu0 %v448
  %2842 = vmatprep.subr.mxu0 0.0
  %2843 = vmatpush1.msra.mxu0 0.0
  %2844 = vmatprep.subr.mxu0 0.0
  %2845 = vmatpush1.msra.mxu0 0.0
  %2846 = vmatprep.subr.mxu0 0.0
  %2847 = vmatpush1.msra.mxu0 0.0
  %2848 = vmatprep.subr.mxu0 0.0
  %2849 = vmatpush1.msra.mxu0 0.0
  %2850 = vmatprep.subr.mxu0 0.0
  %2851 = vmatpush1.msra.mxu0 0.0
  %2852 = vmatprep.subr.mxu0 0.0
  %2853 = vmatpush1.msra.mxu0 0.0
  %2854 = vmatprep.subr.mxu0 0.0
  %2855 = vmatpush1.msra.mxu0 0.0
  %2856 = vmatprep.subr.mxu0 0.0
  %2857 = vmatpush1.msra.mxu0 0.0
  %2858 = vmatprep.subr.mxu0 0.0
  %2859 = vmatpush1.msra.mxu0 0.0
  %2860 = vmatprep.subr.mxu0 0.0
  %2861 = vmatpush1.msra.mxu0 0.0
  %2862 = vmatprep.subr.mxu0 0.0
  %2863 = vmatpush1.msra.mxu0 0.0
  %2864 = vmatprep.subr.mxu0 0.0
  %2865 = vmatpush1.msra.mxu0 0.0
  %2866 = vmatprep.subr.mxu0 0.0
  %2867 = vmatpush1.msra.mxu0 0.0
  %2868 = vmatprep.subr.mxu0 0.0
  %2869 = vmatpush1.msra.mxu0 0.0
  %2870 = vmatprep.subr.mxu0 0.0
  %2871 = vmatpush1.msra.mxu0 0.0
  %2872 = vmatprep.subr.mxu0 0.0
  %2873 = vmatpush1.msra.mxu0 0.0
  %2874 = vmatprep.subr.mxu0 0.0
  %2875 = vmatpush1.msra.mxu0 0.0
  %2876 = vmatprep.subr.mxu0 0.0
  %2877 = vmatpush1.msra.mxu0 0.0
  %2878 = vmatprep.subr.mxu0 0.0
  %2879 = vmatpush1.msra.mxu0 0.0
  %2880 = vmatprep.subr.mxu0 0.0
  %2881 = vmatpush1.msra.mxu0 0.0
  %2882 = vmatprep.subr.mxu0 0.0
  %2883 = vmatpush1.msra.mxu0 0.0
  %2884 = vmatprep.subr.mxu0 0.0
  %2885 = vmatpush1.msra.mxu0 0.0
  %2886 = vmatprep.subr.mxu0 0.0
  %2887 = vmatpush1.msra.mxu0 0.0
  %2888 = vmatprep.subr.mxu0 0.0
  %2889 = vmatpush1.msra.mxu0 0.0
  %2890 = vmatprep.mubr.f32.mxu0 0.0
  %2891 = vmatmul.mubr.f32.gmra.mrb[0].mxu0 %v2803
  %v2892 = vpop.f32.mrb[0].mxu0
  %v2893 = vadd.f32 0.0, %v2892
  %v2894 = vpop.f32.mrb[0].mxu0
  %2895 = vmatprep.mubr.f32.mxu0 0.0
  %2896 = vmatmul.mubr.f32.gmra.mrb[0].mxu0 %v2806
  %v2897 = vpop.f32.mrb[0].mxu0
  %v2898 = vadd.f32 0.0, %v2897
  %v2899 = vpop.f32.mrb[0].mxu0
  %2900 = vmatprep.mubr.f32.mxu0 0.0
  %2901 = vmatmul.mubr.f32.gmra.mrb[0].mxu0 %v2809
  %v2902 = vpop.f32.mrb[0].mxu0
  %v2903 = vadd.f32 0.0, %v2902
  %v2904 = vpop.f32.mrb[0].mxu0
  %2905 = vmatprep.mubr.f32.mxu0 0.0
  %2906 = vmatmul.mubr.f32.gmra.mrb[0].mxu0 %v2812
  %v2907 = vpop.f32.mrb[0].mxu0
  %v2908 = vadd.f32 0.0, %v2907
  %v2909 = vpop.f32.mrb[0].mxu0
  %2910 = vmatprep.mubr.f32.mxu0 0.0
  %2911 = vmatmul.mubr.f32.gmra.mrb[0].mxu0 %v2815
  %v2912 = vpop.f32.mrb[0].mxu0
  %v2913 = vadd.f32 0.0, %v2912
  %v2914 = vpop.f32.mrb[0].mxu0
  %2915 = vmatprep.mubr.f32.mxu0 0.0
  %2916 = vmatmul.mubr.f32.gmra.mrb[0].mxu0 %v2818
  %v2917 = vpop.f32.mrb[0].mxu0
  %v2918 = vadd.f32 0.0, %v2917
  %v2919 = vpop.f32.mrb[0].mxu0
  %2920 = vmatprep.mubr.f32.mxu0 0.0
  %2921 = vmatmul.mubr.f32.gmra.mrb[0].mxu0 %v2821
  %v2922 = vpop.f32.mrb[0].mxu0
  %v2923 = vadd.f32 0.0, %v2922
  %v2924 = vpop.f32.mrb[0].mxu0
  %2925 = vmatprep.mubr.f32.mxu0 0.0
  %2926 = vmatmul.mubr.f32.gmra.mrb[0].mxu0 %v2824
  %v2927 = vpop.f32.mrb[0].mxu0
  %v2928 = vadd.f32 0.0, %v2927
  %v2929 = vpop.f32.mrb[0].mxu0
  %2930 = vdwg.mxu0
  %v2931 = vadd.f32 %v288, %v2893
  %v2932 = vadd.f32 %v291, %v2898
  %v2933 = vadd.f32 %v296, %v2903
  %v2934 = vadd.f32 %v299, %v2908
  %v2935 = vadd.f32 %v304, %v2913
  %v2936 = vadd.f32 %v307, %v2918
  %v2937 = vadd.f32 %v312, %v2923
  %v2938 = vadd.f32 %v315, %v2928
  %vm2939 = vcmp.ge.f32.partialorder %v2931, 0.0
  %vm2940 = vcmp.ge.f32.partialorder %v2932, 0.0
  %vm2941 = vcmp.ge.f32.partialorder %v2933, 0.0
  %vm2942 = vcmp.ge.f32.partialorder %v2934, 0.0
  %vm2943 = vcmp.ge.f32.partialorder %v2935, 0.0
  %vm2944 = vcmp.ge.f32.partialorder %v2936, 0.0
  %vm2945 = vcmp.ge.f32.partialorder %v2937, 0.0
  %vm2946 = vcmp.ge.f32.partialorder %v2938, 0.0
  %v2947 = vmul.f32 %v2931, 0.2
  %v2948 = vmul.f32 %v2932, 0.2
  %v2949 = vmul.f32 %v2933, 0.2
  %v2950 = vmul.f32 %v2934, 0.2
  %v2951 = vmul.f32 %v2935, 0.2
  %v2952 = vmul.f32 %v2936, 0.2
  %v2953 = vmul.f32 %v2937, 0.2
  %v2954 = vmul.f32 %v2938, 0.2
  %v2955 = vsel %vm2939, %v2931, %v2947
  %v2956 = vsel %vm2940, %v2932, %v2948
  %v2957 = vsel %vm2941, %v2933, %v2949
  %v2958 = vsel %vm2942, %v2934, %v2950
  %v2959 = vsel %vm2943, %v2935, %v2951
  %v2960 = vsel %vm2944, %v2936, %v2952
  %v2961 = vsel %vm2945, %v2937, %v2953
  %v2962 = vsel %vm2946, %v2938, %v2954
  %v2963 = vmax.f32 %v2602, %v2955
  %v2964 = vmax.f32 %v2603, %v2956
  %v2965 = vmax.f32 %v2604, %v2957
  %v2966 = vmax.f32 %v2605, %v2958
  %v2967 = vmax.f32 %v2606, %v2959
  %v2968 = vmax.f32 %v2607, %v2960
  %v2969 = vmax.f32 %v2608, %v2961
  %v2970 = vmax.f32 %v2609, %v2962
  %v2971 = vsel %vm2778, 1e+30, %v2610
  %v2972 = vsel %vm2779, 1e+30, %v2611
  %v2973 = vsel %vm2780, 1e+30, %v2612
  %v2974 = vsel %vm2781, 1e+30, %v2613
  %v2975 = vsel %vm2782, 1e+30, %v2614
  %v2976 = vsel %vm2783, 1e+30, %v2615
  %v2977 = vsel %vm2784, 1e+30, %v2616
  %v2978 = vsel %vm2785, 1e+30, %v2617
  %v2979 = vsel %vm451, %v2971, inf
  %2980 = vmin.xlane.f32.xlu0 %v2979
  %v2981 = vpop.xlane.xlu0 %2980
  %v2982 = vsel %vm451, %v2972, inf
  %2983 = vmin.xlane.f32.xlu0 %v2982
  %v2984 = vpop.xlane.xlu0 %2983
  %v2985 = vsel %vm451, %v2973, inf
  %2986 = vmin.xlane.f32.xlu0 %v2985
  %v2987 = vpop.xlane.xlu0 %2986
  %v2988 = vsel %vm451, %v2974, inf
  %2989 = vmin.xlane.f32.xlu0 %v2988
  %v2990 = vpop.xlane.xlu0 %2989
  %v2991 = vsel %vm451, %v2975, inf
  %2992 = vmin.xlane.f32.xlu0 %v2991
  %v2993 = vpop.xlane.xlu0 %2992
  %v2994 = vsel %vm451, %v2976, inf
  %2995 = vmin.xlane.f32.xlu0 %v2994
  %v2996 = vpop.xlane.xlu0 %2995
  %v2997 = vsel %vm451, %v2977, inf
  %2998 = vmin.xlane.f32.xlu0 %v2997
  %v2999 = vpop.xlane.xlu0 %2998
  %v3000 = vsel %vm451, %v2978, inf
  %3001 = vmin.xlane.f32.xlu0 %v3000
  %v3002 = vpop.xlane.xlu0 %3001
  %vm3003 = vcmp.le.f32.partialorder %v2971, %v2981
  %vm3004 = vcmp.le.f32.partialorder %v2972, %v2984
  %vm3005 = vcmp.le.f32.partialorder %v2973, %v2987
  %vm3006 = vcmp.le.f32.partialorder %v2974, %v2990
  %vm3007 = vcmp.le.f32.partialorder %v2975, %v2993
  %vm3008 = vcmp.le.f32.partialorder %v2976, %v2996
  %vm3009 = vcmp.le.f32.partialorder %v2977, %v2999
  %vm3010 = vcmp.le.f32.partialorder %v2978, %v3002
  %v3011 = vsel %vm3003, %v145, 64
  %v3012 = vsel %vm3004, %v145, 64
  %v3013 = vsel %vm3005, %v145, 64
  %v3014 = vsel %vm3006, %v145, 64
  %v3015 = vsel %vm3007, %v145, 64
  %v3016 = vsel %vm3008, %v145, 64
  %v3017 = vsel %vm3009, %v145, 64
  %v3018 = vsel %vm3010, %v145, 64
  %v3019 = vsel %vm451, %v3011, 2147483647
  %v3020 = vand.u32 %v3019, 65535
  %v3021 = vshra.s32 %v3019, 16
  %v3022 = vcvt.s32.f32 %v3020
  %v3023 = vcvt.s32.f32 %v3021
  %3024 = vmin.xlane.f32.xlu0 %v3023
  %v3025 = vpop.xlane.xlu0 %3024
  %vm3026 = vcmp.eq.f32.partialorder %v3023, %v3025
  %v3027 = vsel %vm3026, %v3022, inf
  %3028 = vmin.xlane.f32.xlu0 %v3027
  %v3029 = vpop.xlane.xlu0 %3028
  %v3030 = vcvt.f32.s32 %v3029
  %v3031 = vcvt.f32.s32 %v3025
  %v3032 = vshll.u32 %v3031, 16
  %v3033 = vadd.s32 %v3032, %v3030
  %v3034 = vsel %vm451, %v3012, 2147483647
  %v3035 = vand.u32 %v3034, 65535
  %v3036 = vshra.s32 %v3034, 16
  %v3037 = vcvt.s32.f32 %v3035
  %v3038 = vcvt.s32.f32 %v3036
  %3039 = vmin.xlane.f32.xlu0 %v3038
  %v3040 = vpop.xlane.xlu0 %3039
  %vm3041 = vcmp.eq.f32.partialorder %v3038, %v3040
  %v3042 = vsel %vm3041, %v3037, inf
  %3043 = vmin.xlane.f32.xlu0 %v3042
  %v3044 = vpop.xlane.xlu0 %3043
  %v3045 = vcvt.f32.s32 %v3044
  %v3046 = vcvt.f32.s32 %v3040
  %v3047 = vshll.u32 %v3046, 16
  %v3048 = vadd.s32 %v3047, %v3045
  %v3049 = vsel %vm451, %v3013, 2147483647
  %v3050 = vand.u32 %v3049, 65535
  %v3051 = vshra.s32 %v3049, 16
  %v3052 = vcvt.s32.f32 %v3050
  %v3053 = vcvt.s32.f32 %v3051
  %3054 = vmin.xlane.f32.xlu0 %v3053
  %v3055 = vpop.xlane.xlu0 %3054
  %vm3056 = vcmp.eq.f32.partialorder %v3053, %v3055
  %v3057 = vsel %vm3056, %v3052, inf
  %3058 = vmin.xlane.f32.xlu0 %v3057
  %v3059 = vpop.xlane.xlu0 %3058
  %v3060 = vcvt.f32.s32 %v3059
  %v3061 = vcvt.f32.s32 %v3055
  %v3062 = vshll.u32 %v3061, 16
  %v3063 = vadd.s32 %v3062, %v3060
  %v3064 = vsel %vm451, %v3014, 2147483647
  %v3065 = vand.u32 %v3064, 65535
  %v3066 = vshra.s32 %v3064, 16
  %v3067 = vcvt.s32.f32 %v3065
  %v3068 = vcvt.s32.f32 %v3066
  %3069 = vmin.xlane.f32.xlu0 %v3068
  %v3070 = vpop.xlane.xlu0 %3069
  %vm3071 = vcmp.eq.f32.partialorder %v3068, %v3070
  %v3072 = vsel %vm3071, %v3067, inf
  %3073 = vmin.xlane.f32.xlu0 %v3072
  %v3074 = vpop.xlane.xlu0 %3073
  %v3075 = vcvt.f32.s32 %v3074
  %v3076 = vcvt.f32.s32 %v3070
  %v3077 = vshll.u32 %v3076, 16
  %v3078 = vadd.s32 %v3077, %v3075
  %v3079 = vsel %vm451, %v3015, 2147483647
  %v3080 = vand.u32 %v3079, 65535
  %v3081 = vshra.s32 %v3079, 16
  %v3082 = vcvt.s32.f32 %v3080
  %v3083 = vcvt.s32.f32 %v3081
  %3084 = vmin.xlane.f32.xlu0 %v3083
  %v3085 = vpop.xlane.xlu0 %3084
  %vm3086 = vcmp.eq.f32.partialorder %v3083, %v3085
  %v3087 = vsel %vm3086, %v3082, inf
  %3088 = vmin.xlane.f32.xlu0 %v3087
  %v3089 = vpop.xlane.xlu0 %3088
  %v3090 = vcvt.f32.s32 %v3089
  %v3091 = vcvt.f32.s32 %v3085
  %v3092 = vshll.u32 %v3091, 16
  %v3093 = vadd.s32 %v3092, %v3090
  %v3094 = vsel %vm451, %v3016, 2147483647
  %v3095 = vand.u32 %v3094, 65535
  %v3096 = vshra.s32 %v3094, 16
  %v3097 = vcvt.s32.f32 %v3095
  %v3098 = vcvt.s32.f32 %v3096
  %3099 = vmin.xlane.f32.xlu0 %v3098
  %v3100 = vpop.xlane.xlu0 %3099
  %vm3101 = vcmp.eq.f32.partialorder %v3098, %v3100
  %v3102 = vsel %vm3101, %v3097, inf
  %3103 = vmin.xlane.f32.xlu0 %v3102
  %v3104 = vpop.xlane.xlu0 %3103
  %v3105 = vcvt.f32.s32 %v3104
  %v3106 = vcvt.f32.s32 %v3100
  %v3107 = vshll.u32 %v3106, 16
  %v3108 = vadd.s32 %v3107, %v3105
  %v3109 = vsel %vm451, %v3017, 2147483647
  %v3110 = vand.u32 %v3109, 65535
  %v3111 = vshra.s32 %v3109, 16
  %v3112 = vcvt.s32.f32 %v3110
  %v3113 = vcvt.s32.f32 %v3111
  %3114 = vmin.xlane.f32.xlu0 %v3113
  %v3115 = vpop.xlane.xlu0 %3114
  %vm3116 = vcmp.eq.f32.partialorder %v3113, %v3115
  %v3117 = vsel %vm3116, %v3112, inf
  %3118 = vmin.xlane.f32.xlu0 %v3117
  %v3119 = vpop.xlane.xlu0 %3118
  %v3120 = vcvt.f32.s32 %v3119
  %v3121 = vcvt.f32.s32 %v3115
  %v3122 = vshll.u32 %v3121, 16
  %v3123 = vadd.s32 %v3122, %v3120
  %v3124 = vsel %vm451, %v3018, 2147483647
  %v3125 = vand.u32 %v3124, 65535
  %v3126 = vshra.s32 %v3124, 16
  %v3127 = vcvt.s32.f32 %v3125
  %v3128 = vcvt.s32.f32 %v3126
  %3129 = vmin.xlane.f32.xlu0 %v3128
  %v3130 = vpop.xlane.xlu0 %3129
  %vm3131 = vcmp.eq.f32.partialorder %v3128, %v3130
  %v3132 = vsel %vm3131, %v3127, inf
  %3133 = vmin.xlane.f32.xlu0 %v3132
  %v3134 = vpop.xlane.xlu0 %3133
  %v3135 = vcvt.f32.s32 %v3134
  %v3136 = vcvt.f32.s32 %v3130
  %v3137 = vshll.u32 %v3136, 16
  %v3138 = vadd.s32 %v3137, %v3135
  %vm3139 = vcmp.eq.s32.totalorder %v145, %v3033
  %vm3140 = vcmp.eq.s32.totalorder %v145, %v3048
  %vm3141 = vcmp.eq.s32.totalorder %v145, %v3063
  %vm3142 = vcmp.eq.s32.totalorder %v145, %v3078
  %vm3143 = vcmp.eq.s32.totalorder %v145, %v3093
  %vm3144 = vcmp.eq.s32.totalorder %v145, %v3108
  %vm3145 = vcmp.eq.s32.totalorder %v145, %v3123
  %vm3146 = vcmp.eq.s32.totalorder %v145, %v3138
  %v3147 = vsel %vm3139, 1, 0
  %v3148 = vsel %vm3140, 1, 0
  %v3149 = vsel %vm3141, 1, 0
  %v3150 = vsel %vm3142, 1, 0
  %v3151 = vsel %vm3143, 1, 0
  %v3152 = vsel %vm3144, 1, 0
  %v3153 = vsel %vm3145, 1, 0
  %v3154 = vsel %vm3146, 1, 0
  %v3155 = vcvt.s32.f32 %v3147
  %v3156 = vcvt.s32.f32 %v3148
  %v3157 = vcvt.s32.f32 %v3149
  %v3158 = vcvt.s32.f32 %v3150
  %v3159 = vcvt.s32.f32 %v3151
  %v3160 = vcvt.s32.f32 %v3152
  %v3161 = vcvt.s32.f32 %v3153
  %v3162 = vcvt.s32.f32 %v3154
  %v3164 = vsel %vm451, %v3155, 0
  %v3167 = vsel %vm451, %v3156, 0
  %v3170 = vsel %vm451, %v3157, 0
  %v3173 = vsel %vm451, %v3158, 0
  %v3176 = vsel %vm451, %v3159, 0
  %v3179 = vsel %vm451, %v3160, 0
  %v3182 = vsel %vm451, %v3161, 0
  %v3185 = vsel %vm451, %v3162, 0
  %3187 = vmatprep.subr.mxu0 0.0
  %3188 = vmatpush1.msra.mxu0 %v421
  %3189 = vmatprep.subr.mxu0 0.0
  %3190 = vmatpush1.msra.mxu0 %v424
  %3191 = vmatprep.subr.mxu0 0.0
  %3192 = vmatpush1.msra.mxu0 %v429
  %3193 = vmatprep.subr.mxu0 0.0
  %3194 = vmatpush1.msra.mxu0 %v432
  %3195 = vmatprep.subr.mxu0 0.0
  %3196 = vmatpush1.msra.mxu0 %v437
  %3197 = vmatprep.subr.mxu0 0.0
  %3198 = vmatpush1.msra.mxu0 %v440
  %3199 = vmatprep.subr.mxu0 0.0
  %3200 = vmatpush1.msra.mxu0 %v445
  %3201 = vmatprep.subr.mxu0 0.0
  %3202 = vmatpush1.msra.mxu0 %v448
  %3203 = vmatprep.subr.mxu0 0.0
  %3204 = vmatpush1.msra.mxu0 0.0
  %3205 = vmatprep.subr.mxu0 0.0
  %3206 = vmatpush1.msra.mxu0 0.0
  %3207 = vmatprep.subr.mxu0 0.0
  %3208 = vmatpush1.msra.mxu0 0.0
  %3209 = vmatprep.subr.mxu0 0.0
  %3210 = vmatpush1.msra.mxu0 0.0
  %3211 = vmatprep.subr.mxu0 0.0
  %3212 = vmatpush1.msra.mxu0 0.0
  %3213 = vmatprep.subr.mxu0 0.0
  %3214 = vmatpush1.msra.mxu0 0.0
  %3215 = vmatprep.subr.mxu0 0.0
  %3216 = vmatpush1.msra.mxu0 0.0
  %3217 = vmatprep.subr.mxu0 0.0
  %3218 = vmatpush1.msra.mxu0 0.0
  %3219 = vmatprep.subr.mxu0 0.0
  %3220 = vmatpush1.msra.mxu0 0.0
  %3221 = vmatprep.subr.mxu0 0.0
  %3222 = vmatpush1.msra.mxu0 0.0
  %3223 = vmatprep.subr.mxu0 0.0
  %3224 = vmatpush1.msra.mxu0 0.0
  %3225 = vmatprep.subr.mxu0 0.0
  %3226 = vmatpush1.msra.mxu0 0.0
  %3227 = vmatprep.subr.mxu0 0.0
  %3228 = vmatpush1.msra.mxu0 0.0
  %3229 = vmatprep.subr.mxu0 0.0
  %3230 = vmatpush1.msra.mxu0 0.0
  %3231 = vmatprep.subr.mxu0 0.0
  %3232 = vmatpush1.msra.mxu0 0.0
  %3233 = vmatprep.subr.mxu0 0.0
  %3234 = vmatpush1.msra.mxu0 0.0
  %3235 = vmatprep.subr.mxu0 0.0
  %3236 = vmatpush1.msra.mxu0 0.0
  %3237 = vmatprep.subr.mxu0 0.0
  %3238 = vmatpush1.msra.mxu0 0.0
  %3239 = vmatprep.subr.mxu0 0.0
  %3240 = vmatpush1.msra.mxu0 0.0
  %3241 = vmatprep.subr.mxu0 0.0
  %3242 = vmatpush1.msra.mxu0 0.0
  %3243 = vmatprep.subr.mxu0 0.0
  %3244 = vmatpush1.msra.mxu0 0.0
  %3245 = vmatprep.subr.mxu0 0.0
  %3246 = vmatpush1.msra.mxu0 0.0
  %3247 = vmatprep.subr.mxu0 0.0
  %3248 = vmatpush1.msra.mxu0 0.0
  %3249 = vmatprep.subr.mxu0 0.0
  %3250 = vmatpush1.msra.mxu0 0.0
  %3251 = vmatprep.mubr.f32.mxu0 0.0
  %3252 = vmatmul.mubr.f32.gmra.mrb[0].mxu0 %v3164
  %v3253 = vpop.f32.mrb[0].mxu0
  %v3254 = vadd.f32 0.0, %v3253
  %v3255 = vpop.f32.mrb[0].mxu0
  %3256 = vmatprep.mubr.f32.mxu0 0.0
  %3257 = vmatmul.mubr.f32.gmra.mrb[0].mxu0 %v3167
  %v3258 = vpop.f32.mrb[0].mxu0
  %v3259 = vadd.f32 0.0, %v3258
  %v3260 = vpop.f32.mrb[0].mxu0
  %3261 = vmatprep.mubr.f32.mxu0 0.0
  %3262 = vmatmul.mubr.f32.gmra.mrb[0].mxu0 %v3170
  %v3263 = vpop.f32.mrb[0].mxu0
  %v3264 = vadd.f32 0.0, %v3263
  %v3265 = vpop.f32.mrb[0].mxu0
  %3266 = vmatprep.mubr.f32.mxu0 0.0
  %3267 = vmatmul.mubr.f32.gmra.mrb[0].mxu0 %v3173
  %v3268 = vpop.f32.mrb[0].mxu0
  %v3269 = vadd.f32 0.0, %v3268
  %v3270 = vpop.f32.mrb[0].mxu0
  %3271 = vmatprep.mubr.f32.mxu0 0.0
  %3272 = vmatmul.mubr.f32.gmra.mrb[0].mxu0 %v3176
  %v3273 = vpop.f32.mrb[0].mxu0
  %v3274 = vadd.f32 0.0, %v3273
  %v3275 = vpop.f32.mrb[0].mxu0
  %3276 = vmatprep.mubr.f32.mxu0 0.0
  %3277 = vmatmul.mubr.f32.gmra.mrb[0].mxu0 %v3179
  %v3278 = vpop.f32.mrb[0].mxu0
  %v3279 = vadd.f32 0.0, %v3278
  %v3280 = vpop.f32.mrb[0].mxu0
  %3281 = vmatprep.mubr.f32.mxu0 0.0
  %3282 = vmatmul.mubr.f32.gmra.mrb[0].mxu0 %v3182
  %v3283 = vpop.f32.mrb[0].mxu0
  %v3284 = vadd.f32 0.0, %v3283
  %v3285 = vpop.f32.mrb[0].mxu0
  %3286 = vmatprep.mubr.f32.mxu0 0.0
  %3287 = vmatmul.mubr.f32.gmra.mrb[0].mxu0 %v3185
  %v3288 = vpop.f32.mrb[0].mxu0
  %v3289 = vadd.f32 0.0, %v3288
  %v3290 = vpop.f32.mrb[0].mxu0
  %3291 = vdwg.mxu0
  %v3292 = vadd.f32 %v288, %v3254
  %v3293 = vadd.f32 %v291, %v3259
  %v3294 = vadd.f32 %v296, %v3264
  %v3295 = vadd.f32 %v299, %v3269
  %v3296 = vadd.f32 %v304, %v3274
  %v3297 = vadd.f32 %v307, %v3279
  %v3298 = vadd.f32 %v312, %v3284
  %v3299 = vadd.f32 %v315, %v3289
  %vm3300 = vcmp.ge.f32.partialorder %v3292, 0.0
  %vm3301 = vcmp.ge.f32.partialorder %v3293, 0.0
  %vm3302 = vcmp.ge.f32.partialorder %v3294, 0.0
  %vm3303 = vcmp.ge.f32.partialorder %v3295, 0.0
  %vm3304 = vcmp.ge.f32.partialorder %v3296, 0.0
  %vm3305 = vcmp.ge.f32.partialorder %v3297, 0.0
  %vm3306 = vcmp.ge.f32.partialorder %v3298, 0.0
  %vm3307 = vcmp.ge.f32.partialorder %v3299, 0.0
  %v3308 = vmul.f32 %v3292, 0.2
  %v3309 = vmul.f32 %v3293, 0.2
  %v3310 = vmul.f32 %v3294, 0.2
  %v3311 = vmul.f32 %v3295, 0.2
  %v3312 = vmul.f32 %v3296, 0.2
  %v3313 = vmul.f32 %v3297, 0.2
  %v3314 = vmul.f32 %v3298, 0.2
  %v3315 = vmul.f32 %v3299, 0.2
  %v3316 = vsel %vm3300, %v3292, %v3308
  %v3317 = vsel %vm3301, %v3293, %v3309
  %v3318 = vsel %vm3302, %v3294, %v3310
  %v3319 = vsel %vm3303, %v3295, %v3311
  %v3320 = vsel %vm3304, %v3296, %v3312
  %v3321 = vsel %vm3305, %v3297, %v3313
  %v3322 = vsel %vm3306, %v3298, %v3314
  %v3323 = vsel %vm3307, %v3299, %v3315
  %v3324 = vmax.f32 %v2963, %v3316
  %v3325 = vmax.f32 %v2964, %v3317
  %v3326 = vmax.f32 %v2965, %v3318
  %v3327 = vmax.f32 %v2966, %v3319
  %v3328 = vmax.f32 %v2967, %v3320
  %v3329 = vmax.f32 %v2968, %v3321
  %v3330 = vmax.f32 %v2969, %v3322
  %v3331 = vmax.f32 %v2970, %v3323
  %3332 = vst [vmem:[%s5] sm:$0xff] %v3324
  %3333 = vst [vmem:[%s5 + $0x8] sm:$0xff] %v3325
  %3334 = vst [vmem:[%s5 + $0x10] sm:$0xff] %v3326
  %3335 = vst [vmem:[%s5 + $0x18] sm:$0xff] %v3327
  %3336 = vst [vmem:[%s5 + $0x20] sm:$0xff] %v3328
  %3337 = vst [vmem:[%s5 + $0x28] sm:$0xff] %v3329
  %3338 = vst [vmem:[%s5 + $0x30] sm:$0xff] %v3330
  %3339 = vst [vmem:[%s5 + $0x38] sm:$0xff] %v3331
  // Predicated region
  $region22: #{_lambda_.5} parent=0 // pred_check
    _
  $region23: #{_lambda_.5} parent=0 // pred_check_branch
    %3341 = sbr.rel (0) target = $region25
  $region24: #{_lambda_.5} parent=0 // pred_region
    _
  $region25: #{_lambda_.5} parent=0 // pred_fallthru
    _
  // Predicated region
  $region26: #{_lambda_.5} parent=0 // pred_check
    _
  $region27: #{_lambda_.5} parent=0 // pred_check_branch
    %3343 = sbr.rel (0) target = $region29
  $region28: #{_lambda_.5} parent=0 // pred_region
    _
  $region29: #{_lambda_.5} parent=0 // pred_fallthru
    _

// kernel: _lambda_.4
$region0: #{_lambda_.4}
  #allocation0 [shape = 'u32[]', space=smem, size = 0x4, offset = 0x4, fixed_abs, tag = 'smem constant byte address 0x4 - core index']
  #allocation1 [shape = 'u32[144,128]{1,0:T(1,128)}', space=vmem, size = 0x12000, scoped, tag = 'internal scratch']
  %s0 = inlined_call_operand.vmem [shape: f32[64,8], index: 0, kind: input, shape index: {}]
  %s1 = inlined_call_operand.vmem [shape: f32[1,64], index: 1, kind: input, shape index: {}]
  %s2 = inlined_call_operand.vmem [shape: bf16[8,128], index: 2, kind: input, shape index: {}]
  %s3 = inlined_call_operand.vmem [shape: bf16[8,128], index: 3, kind: input, shape index: {}]
  %s4 = inlined_call_operand.vmem [shape: f32[1,128], index: 4, kind: input, shape index: {}]
  %s5 = inlined_call_operand.vmem [shape: f32[64,128], index: 5, kind: output, shape index: {}]
  %s6 = sld [smem:[#allocation0]]
  $region30: #{_lambda_.4} parent=0
    _
  %s8 = ssub.s32 1, %s6
  %s9 = scalar_select 0, %s8, %s6
  // Predicated region
  $region2: #{_lambda_.4} parent=0 // pred_check
    _
  $region3: #{_lambda_.4} parent=0 // pred_check_branch
    %11 = sbr.rel (0) target = $region5
  $region4: #{_lambda_.4} parent=0 // pred_region
    _
  $region5: #{_lambda_.4} parent=0 // pred_fallthru
    _
  // Predicated region
  $region6: #{_lambda_.4} parent=0 // pred_check
    _
  $region7: #{_lambda_.4} parent=0 // pred_check_branch
    %13 = sbr.rel (0) target = $region9
  $region8: #{_lambda_.4} parent=0 // pred_region
    _
  $region9: #{_lambda_.4} parent=0 // pred_fallthru
    _
  // Predicated region
  $region10: #{_lambda_.4} parent=0 // pred_check
    _
  $region11: #{_lambda_.4} parent=0 // pred_check_branch
    %15 = sbr.rel (0) target = $region13
  $region12: #{_lambda_.4} parent=0 // pred_region
    _
  $region13: #{_lambda_.4} parent=0 // pred_fallthru
    _
  // Predicated region
  $region14: #{_lambda_.4} parent=0 // pred_check
    _
  $region15: #{_lambda_.4} parent=0 // pred_check_branch
    %17 = sbr.rel (0) target = $region17
  $region16: #{_lambda_.4} parent=0 // pred_region
    _
  $region17: #{_lambda_.4} parent=0 // pred_fallthru
    _
  // Predicated region
  $region18: #{_lambda_.4} parent=0 // pred_check
    _
  $region19: #{_lambda_.4} parent=0 // pred_check_branch
    %19 = sbr.rel (0) target = $region21
  $region20: #{_lambda_.4} parent=0 // pred_region
    _
  $region21: #{_lambda_.4} parent=0 // pred_fallthru
    _
  %v21 = vld [vmem:[%s0] sm:$0xff]
  %v22 = vld [vmem:[%s0 + $0x8] sm:$0xff]
  %v23 = vld [vmem:[%s0 + $0x10] sm:$0xff]
  %v24 = vld [vmem:[%s0 + $0x18] sm:$0xff]
  %v25 = vld [vmem:[%s0 + $0x20] sm:$0xff]
  %v26 = vld [vmem:[%s0 + $0x28] sm:$0xff]
  %v27 = vld [vmem:[%s0 + $0x30] sm:$0xff]
  %v28 = vld [vmem:[%s0 + $0x38] sm:$0xff]
  %s29 = smul.u32 0, 64
  %s30 = scalar_lea.vmem %s0, %s29
  %v31 = vld [vmem:[%s30] sm:$0xff]
  %v32 = vld [vmem:[%s30 + $0x8] sm:$0xff]
  %v33 = vld [vmem:[%s30 + $0x10] sm:$0xff]
  %v34 = vld [vmem:[%s30 + $0x18] sm:$0xff]
  %v35 = vld [vmem:[%s30 + $0x20] sm:$0xff]
  %v36 = vld [vmem:[%s30 + $0x28] sm:$0xff]
  %v37 = vld [vmem:[%s30 + $0x30] sm:$0xff]
  %v38 = vld [vmem:[%s30 + $0x38] sm:$0xff]
  %vm39 = vcmask 64512
  %v41 = vsel %vm39, %v31, 0
  %v44 = vsel %vm39, %v32, 0
  %v47 = vsel %vm39, %v33, 0
  %v50 = vsel %vm39, %v34, 0
  %v53 = vsel %vm39, %v35, 0
  %v56 = vsel %vm39, %v36, 0
  %v59 = vsel %vm39, %v37, 0
  %v62 = vsel %vm39, %v38, 0
  %v65 = vsel %vm39, %v21, 0
  %v68 = vsel %vm39, %v22, 0
  %v71 = vsel %vm39, %v23, 0
  %v74 = vsel %vm39, %v24, 0
  %v77 = vsel %vm39, %v25, 0
  %v80 = vsel %vm39, %v26, 0
  %v83 = vsel %vm39, %v27, 0
  %v86 = vsel %vm39, %v28, 0
  %88 = vmatprep.subr.mxu0 0.0
  %89 = vmatpush1.xpose.msra.mxu0 %v65
  %90 = vmatprep.subr.mxu0 0.0
  %91 = vmatpush1.xpose.msra.mxu0 %v68
  %92 = vmatprep.subr.mxu0 0.0
  %93 = vmatpush1.xpose.msra.mxu0 %v71
  %94 = vmatprep.subr.mxu0 0.0
  %95 = vmatpush1.xpose.msra.mxu0 %v74
  %96 = vmatprep.subr.mxu0 0.0
  %97 = vmatpush1.xpose.msra.mxu0 %v77
  %98 = vmatprep.subr.mxu0 0.0
  %99 = vmatpush1.xpose.msra.mxu0 %v80
  %100 = vmatprep.subr.mxu0 0.0
  %101 = vmatpush1.xpose.msra.mxu0 %v83
  %102 = vmatprep.subr.mxu0 0.0
  %103 = vmatpush1.xpose.msra.mxu0 %v86
  %104 = vmatprep.subr.mxu0 0.0
  %105 = vmatpush1.xpose.msra.mxu0 0.0
  %106 = vmatprep.subr.mxu0 0.0
  %107 = vmatpush1.xpose.msra.mxu0 0.0
  %108 = vmatprep.subr.mxu0 0.0
  %109 = vmatpush1.xpose.msra.mxu0 0.0
  %110 = vmatprep.subr.mxu0 0.0
  %111 = vmatpush1.xpose.msra.mxu0 0.0
  %112 = vmatprep.subr.mxu0 0.0
  %113 = vmatpush1.xpose.msra.mxu0 0.0
  %114 = vmatprep.subr.mxu0 0.0
  %115 = vmatpush1.xpose.msra.mxu0 0.0
  %116 = vmatprep.subr.mxu0 0.0
  %117 = vmatpush1.xpose.msra.mxu0 0.0
  %118 = vmatprep.subr.mxu0 0.0
  %119 = vmatpush1.xpose.msra.mxu0 0.0
  %120 = vmatprep.subr.mxu0 0.0
  %121 = vmatpush1.xpose.msra.mxu0 0.0
  %122 = vmatprep.subr.mxu0 0.0
  %123 = vmatpush1.xpose.msra.mxu0 0.0
  %124 = vmatprep.subr.mxu0 0.0
  %125 = vmatpush1.xpose.msra.mxu0 0.0
  %126 = vmatprep.subr.mxu0 0.0
  %127 = vmatpush1.xpose.msra.mxu0 0.0
  %128 = vmatprep.subr.mxu0 0.0
  %129 = vmatpush1.xpose.msra.mxu0 0.0
  %130 = vmatprep.subr.mxu0 0.0
  %131 = vmatpush1.xpose.msra.mxu0 0.0
  %132 = vmatprep.subr.mxu0 0.0
  %133 = vmatpush1.xpose.msra.mxu0 0.0
  %134 = vmatprep.subr.mxu0 0.0
  %135 = vmatpush1.xpose.msra.mxu0 0.0
  %136 = vmatprep.subr.mxu0 0.0
  %137 = vmatpush1.xpose.msra.mxu0 0.0
  %138 = vmatprep.subr.mxu0 0.0
  %139 = vmatpush1.xpose.msra.mxu0 0.0
  %140 = vmatprep.subr.mxu0 0.0
  %141 = vmatpush1.xpose.msra.mxu0 0.0
  %142 = vmatprep.subr.mxu0 0.0
  %143 = vmatpush1.xpose.msra.mxu0 0.0
  %144 = vmatprep.subr.mxu0 0.0
  %145 = vmatpush1.xpose.msra.mxu0 0.0
  %146 = vmatprep.subr.mxu0 0.0
  %147 = vmatpush1.xpose.msra.mxu0 0.0
  %148 = vmatprep.subr.mxu0 0.0
  %149 = vmatpush1.xpose.msra.mxu0 0.0
  %150 = vmatprep.subr.mxu0 0.0
  %151 = vmatpush1.xpose.msra.mxu0 0.0
  %152 = vmatprep.mubr.f32.mxu0 0.0
  %153 = vmatmul.mubr.f32.gmra.mrb[0].mxu0 %v41
  %v154 = vpop.f32.mrb[0].mxu0
  %v155 = vadd.f32 0.0, %v154
  %v156 = vpop.f32.mrb[0].mxu0
  %157 = vmatprep.mubr.f32.mxu0 0.0
  %158 = vmatmul.mubr.f32.gmra.mrb[0].mxu0 %v44
  %v159 = vpop.f32.mrb[0].mxu0
  %v160 = vadd.f32 0.0, %v159
  %v161 = vpop.f32.mrb[0].mxu0
  %162 = vmatprep.mubr.f32.mxu0 0.0
  %163 = vmatmul.mubr.f32.gmra.mrb[0].mxu0 %v47
  %v164 = vpop.f32.mrb[0].mxu0
  %v165 = vadd.f32 0.0, %v164
  %v166 = vpop.f32.mrb[0].mxu0
  %167 = vmatprep.mubr.f32.mxu0 0.0
  %168 = vmatmul.mubr.f32.gmra.mrb[0].mxu0 %v50
  %v169 = vpop.f32.mrb[0].mxu0
  %v170 = vadd.f32 0.0, %v169
  %v171 = vpop.f32.mrb[0].mxu0
  %172 = vmatprep.mubr.f32.mxu0 0.0
  %173 = vmatmul.mubr.f32.gmra.mrb[0].mxu0 %v53
  %v174 = vpop.f32.mrb[0].mxu0
  %v175 = vadd.f32 0.0, %v174
  %v176 = vpop.f32.mrb[0].mxu0
  %177 = vmatprep.mubr.f32.mxu0 0.0
  %178 = vmatmul.mubr.f32.gmra.mrb[0].mxu0 %v56
  %v179 = vpop.f32.mrb[0].mxu0
  %v180 = vadd.f32 0.0, %v179
  %v181 = vpop.f32.mrb[0].mxu0
  %182 = vmatprep.mubr.f32.mxu0 0.0
  %183 = vmatmul.mubr.f32.gmra.mrb[0].mxu0 %v59
  %v184 = vpop.f32.mrb[0].mxu0
  %v185 = vadd.f32 0.0, %v184
  %v186 = vpop.f32.mrb[0].mxu0
  %187 = vmatprep.mubr.f32.mxu0 0.0
  %188 = vmatmul.mubr.f32.gmra.mrb[0].mxu0 %v62
  %v189 = vpop.f32.mrb[0].mxu0
  %v190 = vadd.f32 0.0, %v189
  %v191 = vpop.f32.mrb[0].mxu0
  %192 = vdwg.mxu0
  %v193 = vlaneseq
  %v194 = vand.u32 %v193, 127
  %v195 = vld [vmem:[%s1] sm:$0x1]
  %v196 = vmul.f32 %v155, 2.0
  %v197 = vmul.f32 %v160, 2.0
  %v198 = vmul.f32 %v165, 2.0
  %v199 = vmul.f32 %v170, 2.0
  %v200 = vmul.f32 %v175, 2.0
  %v201 = vmul.f32 %v180, 2.0
  %v202 = vmul.f32 %v185, 2.0
  %v203 = vmul.f32 %v190, 2.0
  %v205 = vlaneseq
  %v206 = vshrl.u32 %v205, 7
  %v207 = vsub.s32 0, %v206
  %v208 = vrot.slane %v195, %v207
  %v210 = vsub.f32 %v208, %v196
  %v211 = vsub.f32 %v208, %v197
  %v212 = vsub.f32 %v208, %v198
  %v213 = vsub.f32 %v208, %v199
  %v214 = vsub.f32 %v208, %v200
  %v215 = vsub.f32 %v208, %v201
  %v216 = vsub.f32 %v208, %v202
  %v217 = vsub.f32 %v208, %v203
  %vm218 = vcmp.lt.s32.totalorder %v194, 64
  %v219 = vsel %vm218, %v210, 1e+30
  %v220 = vsel %vm218, %v211, 1e+30
  %v221 = vsel %vm218, %v212, 1e+30
  %v222 = vsel %vm218, %v213, 1e+30
  %v223 = vsel %vm218, %v214, 1e+30
  %v224 = vsel %vm218, %v215, 1e+30
  %v225 = vsel %vm218, %v216, 1e+30
  %v226 = vsel %vm218, %v217, 1e+30
  %v227 = vpack.c.bf16 %v32, %v31
  %v228 = vpack.c.bf16 %v34, %v33
  %v229 = vpack.c.bf16 %v36, %v35
  %v230 = vpack.c.bf16 %v38, %v37
  %v231 = vld [vmem:[%s2] sm:$0xf]
  %v232 = vld [vmem:[%s4] sm:$0x1]
  %v234 = vlaneseq
  %v235 = vshrl.u32 %v234, 7
  %v236 = vsub.s32 0, %v235
  %v237 = vrot.slane %v232, %v236
  %v240 = vsel %vm39, %v227, 0
  %v243 = vsel %vm39, %v228, 0
  %v246 = vsel %vm39, %v229, 0
  %v249 = vsel %vm39, %v230, 0
  %vm251 = vcmask 1043456
  %v253 = vsel %vm251, %v231, 0
  %255 = vmatprep.subr.bf16.mxu0 0
  %256 = vmatpush1.bf16.msra.mxu0 %v253
  %257 = vmatprep.subr.bf16.mxu0 0
  %258 = vmatpush1.bf16.msra.mxu0 0
  %259 = vmatprep.subr.bf16.mxu0 0
  %260 = vmatpush1.bf16.msra.mxu0 0
  %261 = vmatprep.subr.bf16.mxu0 0
  %262 = vmatpush1.bf16.msra.mxu0 0
  %263 = vmatprep.subr.bf16.mxu0 0
  %264 = vmatpush1.bf16.msra.mxu0 0
  %265 = vmatprep.subr.bf16.mxu0 0
  %266 = vmatpush1.bf16.msra.mxu0 0
  %267 = vmatprep.subr.bf16.mxu0 0
  %268 = vmatpush1.bf16.msra.mxu0 0
  %269 = vmatprep.subr.bf16.mxu0 0
  %270 = vmatpush1.bf16.msra.mxu0 0
  %271 = vmatprep.subr.bf16.mxu0 0
  %272 = vmatpush1.bf16.msra.mxu0 0
  %273 = vmatprep.subr.bf16.mxu0 0
  %274 = vmatpush1.bf16.msra.mxu0 0
  %275 = vmatprep.subr.bf16.mxu0 0
  %276 = vmatpush1.bf16.msra.mxu0 0
  %277 = vmatprep.subr.bf16.mxu0 0
  %278 = vmatpush1.bf16.msra.mxu0 0
  %279 = vmatprep.subr.bf16.mxu0 0
  %280 = vmatpush1.bf16.msra.mxu0 0
  %281 = vmatprep.subr.bf16.mxu0 0
  %282 = vmatpush1.bf16.msra.mxu0 0
  %283 = vmatprep.subr.bf16.mxu0 0
  %284 = vmatpush1.bf16.msra.mxu0 0
  %285 = vmatprep.subr.bf16.mxu0 0
  %286 = vmatpush1.bf16.msra.mxu0 0
  %287 = vmatprep.mubr.bf16.mxu0 0
  %288 = vmatmul.mubr.bf16.gmra.mrb[0].mxu0 %v240
  %v289 = vpop.f32.mrb[0].mxu0
  %v290 = vadd.f32 %v237, %v289
  %v291 = vpop.f32.mrb[0].mxu0
  %v292 = vpop.f32.mrb[0].mxu0
  %v293 = vadd.f32 %v237, %v292
  %v294 = vpop.f32.mrb[0].mxu0
  %295 = vmatprep.mubr.bf16.mxu0 0
  %296 = vmatmul.mubr.bf16.gmra.mrb[0].mxu0 %v243
  %v297 = vpop.f32.mrb[0].mxu0
  %v298 = vadd.f32 %v237, %v297
  %v299 = vpop.f32.mrb[0].mxu0
  %v300 = vpop.f32.mrb[0].mxu0
  %v301 = vadd.f32 %v237, %v300
  %v302 = vpop.f32.mrb[0].mxu0
  %303 = vmatprep.mubr.bf16.mxu0 0
  %304 = vmatmul.mubr.bf16.gmra.mrb[0].mxu0 %v246
  %v305 = vpop.f32.mrb[0].mxu0
  %v306 = vadd.f32 %v237, %v305
  %v307 = vpop.f32.mrb[0].mxu0
  %v308 = vpop.f32.mrb[0].mxu0
  %v309 = vadd.f32 %v237, %v308
  %v310 = vpop.f32.mrb[0].mxu0
  %311 = vmatprep.mubr.bf16.mxu0 0
  %312 = vmatmul.mubr.bf16.gmra.mrb[0].mxu0 %v249
  %v313 = vpop.f32.mrb[0].mxu0
  %v314 = vadd.f32 %v237, %v313
  %v315 = vpop.f32.mrb[0].mxu0
  %v316 = vpop.f32.mrb[0].mxu0
  %v317 = vadd.f32 %v237, %v316
  %v318 = vpop.f32.mrb[0].mxu0
  %319 = vdwg.mxu0
  %v320 = vpack.c.bf16 %v22, %v21
  %v321 = vpack.c.bf16 %v24, %v23
  %v322 = vpack.c.bf16 %v26, %v25
  %v323 = vpack.c.bf16 %v28, %v27
  %v324 = vld [vmem:[%s3] sm:$0xf]
  %v326 = vsel %vm39, %v320, 0
  %v329 = vsel %vm39, %v321, 0
  %v332 = vsel %vm39, %v322, 0
  %v335 = vsel %vm39, %v323, 0
  %v338 = vsel %vm251, %v324, 0
  %340 = vmatprep.subr.bf16.mxu0 0
  %341 = vmatpush1.bf16.msra.mxu0 %v338
  %342 = vmatprep.subr.bf16.mxu0 0
  %343 = vmatpush1.bf16.msra.mxu0 0
  %344 = vmatprep.subr.bf16.mxu0 0
  %345 = vmatpush1.bf16.msra.mxu0 0
  %346 = vmatprep.subr.bf16.mxu0 0
  %347 = vmatpush1.bf16.msra.mxu0 0
  %348 = vmatprep.subr.bf16.mxu0 0
  %349 = vmatpush1.bf16.msra.mxu0 0
  %350 = vmatprep.subr.bf16.mxu0 0
  %351 = vmatpush1.bf16.msra.mxu0 0
  %352 = vmatprep.subr.bf16.mxu0 0
  %353 = vmatpush1.bf16.msra.mxu0 0
  %354 = vmatprep.subr.bf16.mxu0 0
  %355 = vmatpush1.bf16.msra.mxu0 0
  %356 = vmatprep.subr.bf16.mxu0 0
  %357 = vmatpush1.bf16.msra.mxu0 0
  %358 = vmatprep.subr.bf16.mxu0 0
  %359 = vmatpush1.bf16.msra.mxu0 0
  %360 = vmatprep.subr.bf16.mxu0 0
  %361 = vmatpush1.bf16.msra.mxu0 0
  %362 = vmatprep.subr.bf16.mxu0 0
  %363 = vmatpush1.bf16.msra.mxu0 0
  %364 = vmatprep.subr.bf16.mxu0 0
  %365 = vmatpush1.bf16.msra.mxu0 0
  %366 = vmatprep.subr.bf16.mxu0 0
  %367 = vmatpush1.bf16.msra.mxu0 0
  %368 = vmatprep.subr.bf16.mxu0 0
  %369 = vmatpush1.bf16.msra.mxu0 0
  %370 = vmatprep.subr.bf16.mxu0 0
  %371 = vmatpush1.bf16.msra.mxu0 0
  %372 = vmatprep.mubr.bf16.mxu0 0
  %373 = vmatmul.mubr.bf16.gmra.mrb[0].mxu0 %v326
  %v374 = vpop.f32.mrb[0].mxu0
  %v375 = vadd.f32 0.0, %v374
  %v376 = vpop.f32.mrb[0].mxu0
  %v377 = vpop.f32.mrb[0].mxu0
  %v378 = vadd.f32 0.0, %v377
  %v379 = vpop.f32.mrb[0].mxu0
  %380 = vmatprep.mubr.bf16.mxu0 0
  %381 = vmatmul.mubr.bf16.gmra.mrb[0].mxu0 %v329
  %v382 = vpop.f32.mrb[0].mxu0
  %v383 = vadd.f32 0.0, %v382
  %v384 = vpop.f32.mrb[0].mxu0
  %v385 = vpop.f32.mrb[0].mxu0
  %v386 = vadd.f32 0.0, %v385
  %v387 = vpop.f32.mrb[0].mxu0
  %388 = vmatprep.mubr.bf16.mxu0 0
  %389 = vmatmul.mubr.bf16.gmra.mrb[0].mxu0 %v332
  %v390 = vpop.f32.mrb[0].mxu0
  %v391 = vadd.f32 0.0, %v390
  %v392 = vpop.f32.mrb[0].mxu0
  %v393 = vpop.f32.mrb[0].mxu0
  %v394 = vadd.f32 0.0, %v393
  %v395 = vpop.f32.mrb[0].mxu0
  %396 = vmatprep.mubr.bf16.mxu0 0
  %397 = vmatmul.mubr.bf16.gmra.mrb[0].mxu0 %v335
  %v398 = vpop.f32.mrb[0].mxu0
  %v399 = vadd.f32 0.0, %v398
  %v400 = vpop.f32.mrb[0].mxu0
  %v401 = vpop.f32.mrb[0].mxu0
  %v402 = vadd.f32 0.0, %v401
  %v403 = vpop.f32.mrb[0].mxu0
  %404 = vdwg.mxu0
  %vm405 = vcmask 523264
  %v406 = vsel %vm405, %v219, inf
  %407 = vmin.xlane.f32.xlu0 %v406
  %v408 = vpop.xlane.xlu0 %407
  %v409 = vsel %vm405, %v220, inf
  %410 = vmin.xlane.f32.xlu0 %v409
  %v411 = vpop.xlane.xlu0 %410
  %v412 = vsel %vm405, %v221, inf
  %413 = vmin.xlane.f32.xlu0 %v412
  %v414 = vpop.xlane.xlu0 %413
  %v415 = vsel %vm405, %v222, inf
  %416 = vmin.xlane.f32.xlu0 %v415
  %v417 = vpop.xlane.xlu0 %416
  %v418 = vsel %vm405, %v223, inf
  %419 = vmin.xlane.f32.xlu0 %v418
  %v420 = vpop.xlane.xlu0 %419
  %v421 = vsel %vm405, %v224, inf
  %422 = vmin.xlane.f32.xlu0 %v421
  %v423 = vpop.xlane.xlu0 %422
  %v424 = vsel %vm405, %v225, inf
  %425 = vmin.xlane.f32.xlu0 %v424
  %v426 = vpop.xlane.xlu0 %425
  %v427 = vsel %vm405, %v226, inf
  %428 = vmin.xlane.f32.xlu0 %v427
  %v429 = vpop.xlane.xlu0 %428
  %vm430 = vcmp.le.f32.partialorder %v219, %v408
  %vm431 = vcmp.le.f32.partialorder %v220, %v411
  %vm432 = vcmp.le.f32.partialorder %v221, %v414
  %vm433 = vcmp.le.f32.partialorder %v222, %v417
  %vm434 = vcmp.le.f32.partialorder %v223, %v420
  %vm435 = vcmp.le.f32.partialorder %v224, %v423
  %vm436 = vcmp.le.f32.partialorder %v225, %v426
  %vm437 = vcmp.le.f32.partialorder %v226, %v429
  %v438 = vsel %vm430, %v194, 64
  %v439 = vsel %vm431, %v194, 64
  %v440 = vsel %vm432, %v194, 64
  %v441 = vsel %vm433, %v194, 64
  %v442 = vsel %vm434, %v194, 64
  %v443 = vsel %vm435, %v194, 64
  %v444 = vsel %vm436, %v194, 64
  %v445 = vsel %vm437, %v194, 64
  %v446 = vsel %vm405, %v438, 2147483647
  %v447 = vand.u32 %v446, 65535
  %v448 = vshra.s32 %v446, 16
  %v449 = vcvt.s32.f32 %v447
  %v450 = vcvt.s32.f32 %v448
  %451 = vmin.xlane.f32.xlu0 %v450
  %v452 = vpop.xlane.xlu0 %451
  %vm453 = vcmp.eq.f32.partialorder %v450, %v452
  %v454 = vsel %vm453, %v449, inf
  %455 = vmin.xlane.f32.xlu0 %v454
  %v456 = vpop.xlane.xlu0 %455
  %v457 = vcvt.f32.s32 %v456
  %v458 = vcvt.f32.s32 %v452
  %v459 = vshll.u32 %v458, 16
  %v460 = vadd.s32 %v459, %v457
  %v461 = vsel %vm405, %v439, 2147483647
  %v462 = vand.u32 %v461, 65535
  %v463 = vshra.s32 %v461, 16
  %v464 = vcvt.s32.f32 %v462
  %v465 = vcvt.s32.f32 %v463
  %466 = vmin.xlane.f32.xlu0 %v465
  %v467 = vpop.xlane.xlu0 %466
  %vm468 = vcmp.eq.f32.partialorder %v465, %v467
  %v469 = vsel %vm468, %v464, inf
  %470 = vmin.xlane.f32.xlu0 %v469
  %v471 = vpop.xlane.xlu0 %470
  %v472 = vcvt.f32.s32 %v471
  %v473 = vcvt.f32.s32 %v467
  %v474 = vshll.u32 %v473, 16
  %v475 = vadd.s32 %v474, %v472
  %v476 = vsel %vm405, %v440, 2147483647
  %v477 = vand.u32 %v476, 65535
  %v478 = vshra.s32 %v476, 16
  %v479 = vcvt.s32.f32 %v477
  %v480 = vcvt.s32.f32 %v478
  %481 = vmin.xlane.f32.xlu0 %v480
  %v482 = vpop.xlane.xlu0 %481
  %vm483 = vcmp.eq.f32.partialorder %v480, %v482
  %v484 = vsel %vm483, %v479, inf
  %485 = vmin.xlane.f32.xlu0 %v484
  %v486 = vpop.xlane.xlu0 %485
  %v487 = vcvt.f32.s32 %v486
  %v488 = vcvt.f32.s32 %v482
  %v489 = vshll.u32 %v488, 16
  %v490 = vadd.s32 %v489, %v487
  %v491 = vsel %vm405, %v441, 2147483647
  %v492 = vand.u32 %v491, 65535
  %v493 = vshra.s32 %v491, 16
  %v494 = vcvt.s32.f32 %v492
  %v495 = vcvt.s32.f32 %v493
  %496 = vmin.xlane.f32.xlu0 %v495
  %v497 = vpop.xlane.xlu0 %496
  %vm498 = vcmp.eq.f32.partialorder %v495, %v497
  %v499 = vsel %vm498, %v494, inf
  %500 = vmin.xlane.f32.xlu0 %v499
  %v501 = vpop.xlane.xlu0 %500
  %v502 = vcvt.f32.s32 %v501
  %v503 = vcvt.f32.s32 %v497
  %v504 = vshll.u32 %v503, 16
  %v505 = vadd.s32 %v504, %v502
  %v506 = vsel %vm405, %v442, 2147483647
  %v507 = vand.u32 %v506, 65535
  %v508 = vshra.s32 %v506, 16
  %v509 = vcvt.s32.f32 %v507
  %v510 = vcvt.s32.f32 %v508
  %511 = vmin.xlane.f32.xlu0 %v510
  %v512 = vpop.xlane.xlu0 %511
  %vm513 = vcmp.eq.f32.partialorder %v510, %v512
  %v514 = vsel %vm513, %v509, inf
  %515 = vmin.xlane.f32.xlu0 %v514
  %v516 = vpop.xlane.xlu0 %515
  %v517 = vcvt.f32.s32 %v516
  %v518 = vcvt.f32.s32 %v512
  %v519 = vshll.u32 %v518, 16
  %v520 = vadd.s32 %v519, %v517
  %v521 = vsel %vm405, %v443, 2147483647
  %v522 = vand.u32 %v521, 65535
  %v523 = vshra.s32 %v521, 16
  %v524 = vcvt.s32.f32 %v522
  %v525 = vcvt.s32.f32 %v523
  %526 = vmin.xlane.f32.xlu0 %v525
  %v527 = vpop.xlane.xlu0 %526
  %vm528 = vcmp.eq.f32.partialorder %v525, %v527
  %v529 = vsel %vm528, %v524, inf
  %530 = vmin.xlane.f32.xlu0 %v529
  %v531 = vpop.xlane.xlu0 %530
  %v532 = vcvt.f32.s32 %v531
  %v533 = vcvt.f32.s32 %v527
  %v534 = vshll.u32 %v533, 16
  %v535 = vadd.s32 %v534, %v532
  %v536 = vsel %vm405, %v444, 2147483647
  %v537 = vand.u32 %v536, 65535
  %v538 = vshra.s32 %v536, 16
  %v539 = vcvt.s32.f32 %v537
  %v540 = vcvt.s32.f32 %v538
  %541 = vmin.xlane.f32.xlu0 %v540
  %v542 = vpop.xlane.xlu0 %541
  %vm543 = vcmp.eq.f32.partialorder %v540, %v542
  %v544 = vsel %vm543, %v539, inf
  %545 = vmin.xlane.f32.xlu0 %v544
  %v546 = vpop.xlane.xlu0 %545
  %v547 = vcvt.f32.s32 %v546
  %v548 = vcvt.f32.s32 %v542
  %v549 = vshll.u32 %v548, 16
  %v550 = vadd.s32 %v549, %v547
  %v551 = vsel %vm405, %v445, 2147483647
  %v552 = vand.u32 %v551, 65535
  %v553 = vshra.s32 %v551, 16
  %v554 = vcvt.s32.f32 %v552
  %v555 = vcvt.s32.f32 %v553
  %556 = vmin.xlane.f32.xlu0 %v555
  %v557 = vpop.xlane.xlu0 %556
  %vm558 = vcmp.eq.f32.partialorder %v555, %v557
  %v559 = vsel %vm558, %v554, inf
  %560 = vmin.xlane.f32.xlu0 %v559
  %v561 = vpop.xlane.xlu0 %560
  %v562 = vcvt.f32.s32 %v561
  %v563 = vcvt.f32.s32 %v557
  %v564 = vshll.u32 %v563, 16
  %v565 = vadd.s32 %v564, %v562
  %vm566 = vcmp.eq.s32.totalorder %v194, %v460
  %vm567 = vcmp.eq.s32.totalorder %v194, %v475
  %vm568 = vcmp.eq.s32.totalorder %v194, %v490
  %vm569 = vcmp.eq.s32.totalorder %v194, %v505
  %vm570 = vcmp.eq.s32.totalorder %v194, %v520
  %vm571 = vcmp.eq.s32.totalorder %v194, %v535
  %vm572 = vcmp.eq.s32.totalorder %v194, %v550
  %vm573 = vcmp.eq.s32.totalorder %v194, %v565
  %v574 = vsel %vm566, 1, 0
  %v575 = vsel %vm567, 1, 0
  %v576 = vsel %vm568, 1, 0
  %v577 = vsel %vm569, 1, 0
  %v578 = vsel %vm570, 1, 0
  %v579 = vsel %vm571, 1, 0
  %v580 = vsel %vm572, 1, 0
  %v581 = vsel %vm573, 1, 0
  %v582 = vcvt.s32.f32 %v574
  %v583 = vcvt.s32.f32 %v575
  %v584 = vcvt.s32.f32 %v576
  %v585 = vcvt.s32.f32 %v577
  %v586 = vcvt.s32.f32 %v578
  %v587 = vcvt.s32.f32 %v579
  %v588 = vcvt.s32.f32 %v580
  %v589 = vcvt.s32.f32 %v581
  %v591 = vsel %vm405, %v582, 0
  %v594 = vsel %vm405, %v583, 0
  %v597 = vsel %vm405, %v584, 0
  %v600 = vsel %vm405, %v585, 0
  %v603 = vsel %vm405, %v586, 0
  %v606 = vsel %vm405, %v587, 0
  %v609 = vsel %vm405, %v588, 0
  %v612 = vsel %vm405, %v589, 0
  %614 = vmatprep.subr.mxu0 0.0
  %615 = vmatpush1.msra.mxu0 %v375
  %616 = vmatprep.subr.mxu0 0.0
  %617 = vmatpush1.msra.mxu0 %v378
  %618 = vmatprep.subr.mxu0 0.0
  %619 = vmatpush1.msra.mxu0 %v383
  %620 = vmatprep.subr.mxu0 0.0
  %621 = vmatpush1.msra.mxu0 %v386
  %622 = vmatprep.subr.mxu0 0.0
  %623 = vmatpush1.msra.mxu0 %v391
  %624 = vmatprep.subr.mxu0 0.0
  %625 = vmatpush1.msra.mxu0 %v394
  %626 = vmatprep.subr.mxu0 0.0
  %627 = vmatpush1.msra.mxu0 %v399
  %628 = vmatprep.subr.mxu0 0.0
  %629 = vmatpush1.msra.mxu0 %v402
  %630 = vmatprep.subr.mxu0 0.0
  %631 = vmatpush1.msra.mxu0 0.0
  %632 = vmatprep.subr.mxu0 0.0
  %633 = vmatpush1.msra.mxu0 0.0
  %634 = vmatprep.subr.mxu0 0.0
  %635 = vmatpush1.msra.mxu0 0.0
  %636 = vmatprep.subr.mxu0 0.0
  %637 = vmatpush1.msra.mxu0 0.0
  %638 = vmatprep.subr.mxu0 0.0
  %639 = vmatpush1.msra.mxu0 0.0
  %640 = vmatprep.subr.mxu0 0.0
  %641 = vmatpush1.msra.mxu0 0.0
  %642 = vmatprep.subr.mxu0 0.0
  %643 = vmatpush1.msra.mxu0 0.0
  %644 = vmatprep.subr.mxu0 0.0
  %645 = vmatpush1.msra.mxu0 0.0
  %646 = vmatprep.subr.mxu0 0.0
  %647 = vmatpush1.msra.mxu0 0.0
  %648 = vmatprep.subr.mxu0 0.0
  %649 = vmatpush1.msra.mxu0 0.0
  %650 = vmatprep.subr.mxu0 0.0
  %651 = vmatpush1.msra.mxu0 0.0
  %652 = vmatprep.subr.mxu0 0.0
  %653 = vmatpush1.msra.mxu0 0.0
  %654 = vmatprep.subr.mxu0 0.0
  %655 = vmatpush1.msra.mxu0 0.0
  %656 = vmatprep.subr.mxu0 0.0
  %657 = vmatpush1.msra.mxu0 0.0
  %658 = vmatprep.subr.mxu0 0.0
  %659 = vmatpush1.msra.mxu0 0.0
  %660 = vmatprep.subr.mxu0 0.0
  %661 = vmatpush1.msra.mxu0 0.0
  %662 = vmatprep.subr.mxu0 0.0
  %663 = vmatpush1.msra.mxu0 0.0
  %664 = vmatprep.subr.mxu0 0.0
  %665 = vmatpush1.msra.mxu0 0.0
  %666 = vmatprep.subr.mxu0 0.0
  %667 = vmatpush1.msra.mxu0 0.0
  %668 = vmatprep.subr.mxu0 0.0
  %669 = vmatpush1.msra.mxu0 0.0
  %670 = vmatprep.subr.mxu0 0.0
  %671 = vmatpush1.msra.mxu0 0.0
  %672 = vmatprep.subr.mxu0 0.0
  %673 = vmatpush1.msra.mxu0 0.0
  %674 = vmatprep.subr.mxu0 0.0
  %675 = vmatpush1.msra.mxu0 0.0
  %676 = vmatprep.subr.mxu0 0.0
  %677 = vmatpush1.msra.mxu0 0.0
  %678 = vmatprep.mubr.f32.mxu0 0.0
  %679 = vmatmul.mubr.f32.gmra.mrb[0].mxu0 %v591
  %v680 = vpop.f32.mrb[0].mxu0
  %v681 = vadd.f32 0.0, %v680
  %v682 = vpop.f32.mrb[0].mxu0
  %683 = vmatprep.mubr.f32.mxu0 0.0
  %684 = vmatmul.mubr.f32.gmra.mrb[0].mxu0 %v594
  %v685 = vpop.f32.mrb[0].mxu0
  %v686 = vadd.f32 0.0, %v685
  %v687 = vpop.f32.mrb[0].mxu0
  %688 = vmatprep.mubr.f32.mxu0 0.0
  %689 = vmatmul.mubr.f32.gmra.mrb[0].mxu0 %v597
  %v690 = vpop.f32.mrb[0].mxu0
  %v691 = vadd.f32 0.0, %v690
  %v692 = vpop.f32.mrb[0].mxu0
  %693 = vmatprep.mubr.f32.mxu0 0.0
  %694 = vmatmul.mubr.f32.gmra.mrb[0].mxu0 %v600
  %v695 = vpop.f32.mrb[0].mxu0
  %v696 = vadd.f32 0.0, %v695
  %v697 = vpop.f32.mrb[0].mxu0
  %698 = vmatprep.mubr.f32.mxu0 0.0
  %699 = vmatmul.mubr.f32.gmra.mrb[0].mxu0 %v603
  %v700 = vpop.f32.mrb[0].mxu0
  %v701 = vadd.f32 0.0, %v700
  %v702 = vpop.f32.mrb[0].mxu0
  %703 = vmatprep.mubr.f32.mxu0 0.0
  %704 = vmatmul.mubr.f32.gmra.mrb[0].mxu0 %v606
  %v705 = vpop.f32.mrb[0].mxu0
  %v706 = vadd.f32 0.0, %v705
  %v707 = vpop.f32.mrb[0].mxu0
  %708 = vmatprep.mubr.f32.mxu0 0.0
  %709 = vmatmul.mubr.f32.gmra.mrb[0].mxu0 %v609
  %v710 = vpop.f32.mrb[0].mxu0
  %v711 = vadd.f32 0.0, %v710
  %v712 = vpop.f32.mrb[0].mxu0
  %713 = vmatprep.mubr.f32.mxu0 0.0
  %714 = vmatmul.mubr.f32.gmra.mrb[0].mxu0 %v612
  %v715 = vpop.f32.mrb[0].mxu0
  %v716 = vadd.f32 0.0, %v715
  %v717 = vpop.f32.mrb[0].mxu0
  %718 = vdwg.mxu0
  %v719 = vadd.f32 %v290, %v681
  %v720 = vadd.f32 %v293, %v686
  %v721 = vadd.f32 %v298, %v691
  %v722 = vadd.f32 %v301, %v696
  %v723 = vadd.f32 %v306, %v701
  %v724 = vadd.f32 %v309, %v706
  %v725 = vadd.f32 %v314, %v711
  %v726 = vadd.f32 %v317, %v716
  %vm727 = vcmp.ge.f32.partialorder %v719, 0.0
  %vm728 = vcmp.ge.f32.partialorder %v720, 0.0
  %vm729 = vcmp.ge.f32.partialorder %v721, 0.0
  %vm730 = vcmp.ge.f32.partialorder %v722, 0.0
  %vm731 = vcmp.ge.f32.partialorder %v723, 0.0
  %vm732 = vcmp.ge.f32.partialorder %v724, 0.0
  %vm733 = vcmp.ge.f32.partialorder %v725, 0.0
  %vm734 = vcmp.ge.f32.partialorder %v726, 0.0
  %v735 = vmul.f32 %v719, 0.2
  %v736 = vmul.f32 %v720, 0.2
  %v737 = vmul.f32 %v721, 0.2
  %v738 = vmul.f32 %v722, 0.2
  %v739 = vmul.f32 %v723, 0.2
  %v740 = vmul.f32 %v724, 0.2
  %v741 = vmul.f32 %v725, 0.2
  %v742 = vmul.f32 %v726, 0.2
  %v743 = vsel %vm727, %v719, %v735
  %v744 = vsel %vm728, %v720, %v736
  %v745 = vsel %vm729, %v721, %v737
  %v746 = vsel %vm730, %v722, %v738
  %v747 = vsel %vm731, %v723, %v739
  %v748 = vsel %vm732, %v724, %v740
  %v749 = vsel %vm733, %v725, %v741
  %v750 = vsel %vm734, %v726, %v742
  %v751 = vmax.f32 %v743, -1e+30
  %v752 = vmax.f32 %v744, -1e+30
  %v753 = vmax.f32 %v745, -1e+30
  %v754 = vmax.f32 %v746, -1e+30
  %v755 = vmax.f32 %v747, -1e+30
  %v756 = vmax.f32 %v748, -1e+30
  %v757 = vmax.f32 %v749, -1e+30
  %v758 = vmax.f32 %v750, -1e+30
  %v759 = vsel %vm566, 1e+30, %v219
  %v760 = vsel %vm567, 1e+30, %v220
  %v761 = vsel %vm568, 1e+30, %v221
  %v762 = vsel %vm569, 1e+30, %v222
  %v763 = vsel %vm570, 1e+30, %v223
  %v764 = vsel %vm571, 1e+30, %v224
  %v765 = vsel %vm572, 1e+30, %v225
  %v766 = vsel %vm573, 1e+30, %v226
  %v767 = vsel %vm405, %v759, inf
  %768 = vmin.xlane.f32.xlu0 %v767
  %v769 = vpop.xlane.xlu0 %768
  %v770 = vsel %vm405, %v760, inf
  %771 = vmin.xlane.f32.xlu0 %v770
  %v772 = vpop.xlane.xlu0 %771
  %v773 = vsel %vm405, %v761, inf
  %774 = vmin.xlane.f32.xlu0 %v773
  %v775 = vpop.xlane.xlu0 %774
  %v776 = vsel %vm405, %v762, inf
  %777 = vmin.xlane.f32.xlu0 %v776
  %v778 = vpop.xlane.xlu0 %777
  %v779 = vsel %vm405, %v763, inf
  %780 = vmin.xlane.f32.xlu0 %v779
  %v781 = vpop.xlane.xlu0 %780
  %v782 = vsel %vm405, %v764, inf
  %783 = vmin.xlane.f32.xlu0 %v782
  %v784 = vpop.xlane.xlu0 %783
  %v785 = vsel %vm405, %v765, inf
  %786 = vmin.xlane.f32.xlu0 %v785
  %v787 = vpop.xlane.xlu0 %786
  %v788 = vsel %vm405, %v766, inf
  %789 = vmin.xlane.f32.xlu0 %v788
  %v790 = vpop.xlane.xlu0 %789
  %vm791 = vcmp.le.f32.partialorder %v759, %v769
  %vm792 = vcmp.le.f32.partialorder %v760, %v772
  %vm793 = vcmp.le.f32.partialorder %v761, %v775
  %vm794 = vcmp.le.f32.partialorder %v762, %v778
  %vm795 = vcmp.le.f32.partialorder %v763, %v781
  %vm796 = vcmp.le.f32.partialorder %v764, %v784
  %vm797 = vcmp.le.f32.partialorder %v765, %v787
  %vm798 = vcmp.le.f32.partialorder %v766, %v790
  %v799 = vsel %vm791, %v194, 64
  %v800 = vsel %vm792, %v194, 64
  %v801 = vsel %vm793, %v194, 64
  %v802 = vsel %vm794, %v194, 64
  %v803 = vsel %vm795, %v194, 64
  %v804 = vsel %vm796, %v194, 64
  %v805 = vsel %vm797, %v194, 64
  %v806 = vsel %vm798, %v194, 64
  %v807 = vsel %vm405, %v799, 2147483647
  %v808 = vand.u32 %v807, 65535
  %v809 = vshra.s32 %v807, 16
  %v810 = vcvt.s32.f32 %v808
  %v811 = vcvt.s32.f32 %v809
  %812 = vmin.xlane.f32.xlu0 %v811
  %v813 = vpop.xlane.xlu0 %812
  %vm814 = vcmp.eq.f32.partialorder %v811, %v813
  %v815 = vsel %vm814, %v810, inf
  %816 = vmin.xlane.f32.xlu0 %v815
  %v817 = vpop.xlane.xlu0 %816
  %v818 = vcvt.f32.s32 %v817
  %v819 = vcvt.f32.s32 %v813
  %v820 = vshll.u32 %v819, 16
  %v821 = vadd.s32 %v820, %v818
  %v822 = vsel %vm405, %v800, 2147483647
  %v823 = vand.u32 %v822, 65535
  %v824 = vshra.s32 %v822, 16
  %v825 = vcvt.s32.f32 %v823
  %v826 = vcvt.s32.f32 %v824
  %827 = vmin.xlane.f32.xlu0 %v826
  %v828 = vpop.xlane.xlu0 %827
  %vm829 = vcmp.eq.f32.partialorder %v826, %v828
  %v830 = vsel %vm829, %v825, inf
  %831 = vmin.xlane.f32.xlu0 %v830
  %v832 = vpop.xlane.xlu0 %831
  %v833 = vcvt.f32.s32 %v832
  %v834 = vcvt.f32.s32 %v828
  %v835 = vshll.u32 %v834, 16
  %v836 = vadd.s32 %v835, %v833
  %v837 = vsel %vm405, %v801, 2147483647
  %v838 = vand.u32 %v837, 65535
  %v839 = vshra.s32 %v837, 16
  %v840 = vcvt.s32.f32 %v838
  %v841 = vcvt.s32.f32 %v839
  %842 = vmin.xlane.f32.xlu0 %v841
  %v843 = vpop.xlane.xlu0 %842
  %vm844 = vcmp.eq.f32.partialorder %v841, %v843
  %v845 = vsel %vm844, %v840, inf
  %846 = vmin.xlane.f32.xlu0 %v845
  %v847 = vpop.xlane.xlu0 %846
  %v848 = vcvt.f32.s32 %v847
  %v849 = vcvt.f32.s32 %v843
  %v850 = vshll.u32 %v849, 16
  %v851 = vadd.s32 %v850, %v848
  %v852 = vsel %vm405, %v802, 2147483647
  %v853 = vand.u32 %v852, 65535
  %v854 = vshra.s32 %v852, 16
  %v855 = vcvt.s32.f32 %v853
  %v856 = vcvt.s32.f32 %v854
  %857 = vmin.xlane.f32.xlu0 %v856
  %v858 = vpop.xlane.xlu0 %857
  %vm859 = vcmp.eq.f32.partialorder %v856, %v858
  %v860 = vsel %vm859, %v855, inf
  %861 = vmin.xlane.f32.xlu0 %v860
  %v862 = vpop.xlane.xlu0 %861
  %v863 = vcvt.f32.s32 %v862
  %v864 = vcvt.f32.s32 %v858
  %v865 = vshll.u32 %v864, 16
  %v866 = vadd.s32 %v865, %v863
  %v867 = vsel %vm405, %v803, 2147483647
  %v868 = vand.u32 %v867, 65535
  %v869 = vshra.s32 %v867, 16
  %v870 = vcvt.s32.f32 %v868
  %v871 = vcvt.s32.f32 %v869
  %872 = vmin.xlane.f32.xlu0 %v871
  %v873 = vpop.xlane.xlu0 %872
  %vm874 = vcmp.eq.f32.partialorder %v871, %v873
  %v875 = vsel %vm874, %v870, inf
  %876 = vmin.xlane.f32.xlu0 %v875
  %v877 = vpop.xlane.xlu0 %876
  %v878 = vcvt.f32.s32 %v877
  %v879 = vcvt.f32.s32 %v873
  %v880 = vshll.u32 %v879, 16
  %v881 = vadd.s32 %v880, %v878
  %v882 = vsel %vm405, %v804, 2147483647
  %v883 = vand.u32 %v882, 65535
  %v884 = vshra.s32 %v882, 16
  %v885 = vcvt.s32.f32 %v883
  %v886 = vcvt.s32.f32 %v884
  %887 = vmin.xlane.f32.xlu0 %v886
  %v888 = vpop.xlane.xlu0 %887
  %vm889 = vcmp.eq.f32.partialorder %v886, %v888
  %v890 = vsel %vm889, %v885, inf
  %891 = vmin.xlane.f32.xlu0 %v890
  %v892 = vpop.xlane.xlu0 %891
  %v893 = vcvt.f32.s32 %v892
  %v894 = vcvt.f32.s32 %v888
  %v895 = vshll.u32 %v894, 16
  %v896 = vadd.s32 %v895, %v893
  %v897 = vsel %vm405, %v805, 2147483647
  %v898 = vand.u32 %v897, 65535
  %v899 = vshra.s32 %v897, 16
  %v900 = vcvt.s32.f32 %v898
  %v901 = vcvt.s32.f32 %v899
  %902 = vmin.xlane.f32.xlu0 %v901
  %v903 = vpop.xlane.xlu0 %902
  %vm904 = vcmp.eq.f32.partialorder %v901, %v903
  %v905 = vsel %vm904, %v900, inf
  %906 = vmin.xlane.f32.xlu0 %v905
  %v907 = vpop.xlane.xlu0 %906
  %v908 = vcvt.f32.s32 %v907
  %v909 = vcvt.f32.s32 %v903
  %v910 = vshll.u32 %v909, 16
  %v911 = vadd.s32 %v910, %v908
  %v912 = vsel %vm405, %v806, 2147483647
  %v913 = vand.u32 %v912, 65535
  %v914 = vshra.s32 %v912, 16
  %v915 = vcvt.s32.f32 %v913
  %v916 = vcvt.s32.f32 %v914
  %917 = vmin.xlane.f32.xlu0 %v916
  %v918 = vpop.xlane.xlu0 %917
  %vm919 = vcmp.eq.f32.partialorder %v916, %v918
  %v920 = vsel %vm919, %v915, inf
  %921 = vmin.xlane.f32.xlu0 %v920
  %v922 = vpop.xlane.xlu0 %921
  %v923 = vcvt.f32.s32 %v922
  %v924 = vcvt.f32.s32 %v918
  %v925 = vshll.u32 %v924, 16
  %v926 = vadd.s32 %v925, %v923
  %vm927 = vcmp.eq.s32.totalorder %v194, %v821
  %vm928 = vcmp.eq.s32.totalorder %v194, %v836
  %vm929 = vcmp.eq.s32.totalorder %v194, %v851
  %vm930 = vcmp.eq.s32.totalorder %v194, %v866
  %vm931 = vcmp.eq.s32.totalorder %v194, %v881
  %vm932 = vcmp.eq.s32.totalorder %v194, %v896
  %vm933 = vcmp.eq.s32.totalorder %v194, %v911
  %vm934 = vcmp.eq.s32.totalorder %v194, %v926
  %v935 = vsel %vm927, 1, 0
  %v936 = vsel %vm928, 1, 0
  %v937 = vsel %vm929, 1, 0
  %v938 = vsel %vm930, 1, 0
  %v939 = vsel %vm931, 1, 0
  %v940 = vsel %vm932, 1, 0
  %v941 = vsel %vm933, 1, 0
  %v942 = vsel %vm934, 1, 0
  %v943 = vcvt.s32.f32 %v935
  %v944 = vcvt.s32.f32 %v936
  %v945 = vcvt.s32.f32 %v937
  %v946 = vcvt.s32.f32 %v938
  %v947 = vcvt.s32.f32 %v939
  %v948 = vcvt.s32.f32 %v940
  %v949 = vcvt.s32.f32 %v941
  %v950 = vcvt.s32.f32 %v942
  %v952 = vsel %vm405, %v943, 0
  %v955 = vsel %vm405, %v944, 0
  %v958 = vsel %vm405, %v945, 0
  %v961 = vsel %vm405, %v946, 0
  %v964 = vsel %vm405, %v947, 0
  %v967 = vsel %vm405, %v948, 0
  %v970 = vsel %vm405, %v949, 0
  %v973 = vsel %vm405, %v950, 0
  %975 = vmatprep.subr.mxu0 0.0
  %976 = vmatpush1.msra.mxu0 %v375
  %977 = vmatprep.subr.mxu0 0.0
  %978 = vmatpush1.msra.mxu0 %v378
  %979 = vmatprep.subr.mxu0 0.0
  %980 = vmatpush1.msra.mxu0 %v383
  %981 = vmatprep.subr.mxu0 0.0
  %982 = vmatpush1.msra.mxu0 %v386
  %983 = vmatprep.subr.mxu0 0.0
  %984 = vmatpush1.msra.mxu0 %v391
  %985 = vmatprep.subr.mxu0 0.0
  %986 = vmatpush1.msra.mxu0 %v394
  %987 = vmatprep.subr.mxu0 0.0
  %988 = vmatpush1.msra.mxu0 %v399
  %989 = vmatprep.subr.mxu0 0.0
  %990 = vmatpush1.msra.mxu0 %v402
  %991 = vmatprep.subr.mxu0 0.0
  %992 = vmatpush1.msra.mxu0 0.0
  %993 = vmatprep.subr.mxu0 0.0
  %994 = vmatpush1.msra.mxu0 0.0
  %995 = vmatprep.subr.mxu0 0.0
  %996 = vmatpush1.msra.mxu0 0.0
  %997 = vmatprep.subr.mxu0 0.0
  %998 = vmatpush1.msra.mxu0 0.0
  %999 = vmatprep.subr.mxu0 0.0
  %1000 = vmatpush1.msra.mxu0 0.0
  %1001 = vmatprep.subr.mxu0 0.0
  %1002 = vmatpush1.msra.mxu0 0.0
  %1003 = vmatprep.subr.mxu0 0.0
  %1004 = vmatpush1.msra.mxu0 0.0
  %1005 = vmatprep.subr.mxu0 0.0
  %1006 = vmatpush1.msra.mxu0 0.0
  %1007 = vmatprep.subr.mxu0 0.0
  %1008 = vmatpush1.msra.mxu0 0.0
  %1009 = vmatprep.subr.mxu0 0.0
  %1010 = vmatpush1.msra.mxu0 0.0
  %1011 = vmatprep.subr.mxu0 0.0
  %1012 = vmatpush1.msra.mxu0 0.0
  %1013 = vmatprep.subr.mxu0 0.0
  %1014 = vmatpush1.msra.mxu0 0.0
  %1015 = vmatprep.subr.mxu0 0.0
  %1016 = vmatpush1.msra.mxu0 0.0
  %1017 = vmatprep.subr.mxu0 0.0
  %1018 = vmatpush1.msra.mxu0 0.0
  %1019 = vmatprep.subr.mxu0 0.0
  %1020 = vmatpush1.msra.mxu0 0.0
  %1021 = vmatprep.subr.mxu0 0.0
  %1022 = vmatpush1.msra.mxu0 0.0
  %1023 = vmatprep.subr.mxu0 0.0
  %1024 = vmatpush1.msra.mxu0 0.0
  %1025 = vmatprep.subr.mxu0 0.0
  %1026 = vmatpush1.msra.mxu0 0.0
  %1027 = vmatprep.subr.mxu0 0.0
  %1028 = vmatpush1.msra.mxu0 0.0
  %1029 = vmatprep.subr.mxu0 0.0
  %1030 = vmatpush1.msra.mxu0 0.0
  %1031 = vmatprep.subr.mxu0 0.0
  %1032 = vmatpush1.msra.mxu0 0.0
  %1033 = vmatprep.subr.mxu0 0.0
  %1034 = vmatpush1.msra.mxu0 0.0
  %1035 = vmatprep.subr.mxu0 0.0
  %1036 = vmatpush1.msra.mxu0 0.0
  %1037 = vmatprep.subr.mxu0 0.0
  %1038 = vmatpush1.msra.mxu0 0.0
  %1039 = vmatprep.mubr.f32.mxu0 0.0
  %1040 = vmatmul.mubr.f32.gmra.mrb[0].mxu0 %v952
  %v1041 = vpop.f32.mrb[0].mxu0
  %v1042 = vadd.f32 0.0, %v1041
  %v1043 = vpop.f32.mrb[0].mxu0
  %1044 = vmatprep.mubr.f32.mxu0 0.0
  %1045 = vmatmul.mubr.f32.gmra.mrb[0].mxu0 %v955
  %v1046 = vpop.f32.mrb[0].mxu0
  %v1047 = vadd.f32 0.0, %v1046
  %v1048 = vpop.f32.mrb[0].mxu0
  %1049 = vmatprep.mubr.f32.mxu0 0.0
  %1050 = vmatmul.mubr.f32.gmra.mrb[0].mxu0 %v958
  %v1051 = vpop.f32.mrb[0].mxu0
  %v1052 = vadd.f32 0.0, %v1051
  %v1053 = vpop.f32.mrb[0].mxu0
  %1054 = vmatprep.mubr.f32.mxu0 0.0
  %1055 = vmatmul.mubr.f32.gmra.mrb[0].mxu0 %v961
  %v1056 = vpop.f32.mrb[0].mxu0
  %v1057 = vadd.f32 0.0, %v1056
  %v1058 = vpop.f32.mrb[0].mxu0
  %1059 = vmatprep.mubr.f32.mxu0 0.0
  %1060 = vmatmul.mubr.f32.gmra.mrb[0].mxu0 %v964
  %v1061 = vpop.f32.mrb[0].mxu0
  %v1062 = vadd.f32 0.0, %v1061
  %v1063 = vpop.f32.mrb[0].mxu0
  %1064 = vmatprep.mubr.f32.mxu0 0.0
  %1065 = vmatmul.mubr.f32.gmra.mrb[0].mxu0 %v967
  %v1066 = vpop.f32.mrb[0].mxu0
  %v1067 = vadd.f32 0.0, %v1066
  %v1068 = vpop.f32.mrb[0].mxu0
  %1069 = vmatprep.mubr.f32.mxu0 0.0
  %1070 = vmatmul.mubr.f32.gmra.mrb[0].mxu0 %v970
  %v1071 = vpop.f32.mrb[0].mxu0
  %v1072 = vadd.f32 0.0, %v1071
  %v1073 = vpop.f32.mrb[0].mxu0
  %1074 = vmatprep.mubr.f32.mxu0 0.0
  %1075 = vmatmul.mubr.f32.gmra.mrb[0].mxu0 %v973
  %v1076 = vpop.f32.mrb[0].mxu0
  %v1077 = vadd.f32 0.0, %v1076
  %v1078 = vpop.f32.mrb[0].mxu0
  %1079 = vdwg.mxu0
  %v1080 = vadd.f32 %v290, %v1042
  %v1081 = vadd.f32 %v293, %v1047
  %v1082 = vadd.f32 %v298, %v1052
  %v1083 = vadd.f32 %v301, %v1057
  %v1084 = vadd.f32 %v306, %v1062
  %v1085 = vadd.f32 %v309, %v1067
  %v1086 = vadd.f32 %v314, %v1072
  %v1087 = vadd.f32 %v317, %v1077
  %vm1088 = vcmp.ge.f32.partialorder %v1080, 0.0
  %vm1089 = vcmp.ge.f32.partialorder %v1081, 0.0
  %vm1090 = vcmp.ge.f32.partialorder %v1082, 0.0
  %vm1091 = vcmp.ge.f32.partialorder %v1083, 0.0
  %vm1092 = vcmp.ge.f32.partialorder %v1084, 0.0
  %vm1093 = vcmp.ge.f32.partialorder %v1085, 0.0
  %vm1094 = vcmp.ge.f32.partialorder %v1086, 0.0
  %vm1095 = vcmp.ge.f32.partialorder %v1087, 0.0
  %v1096 = vmul.f32 %v1080, 0.2
  %v1097 = vmul.f32 %v1081, 0.2
  %v1098 = vmul.f32 %v1082, 0.2
  %v1099 = vmul.f32 %v1083, 0.2
  %v1100 = vmul.f32 %v1084, 0.2
  %v1101 = vmul.f32 %v1085, 0.2
  %v1102 = vmul.f32 %v1086, 0.2
  %v1103 = vmul.f32 %v1087, 0.2
  %v1104 = vsel %vm1088, %v1080, %v1096
  %v1105 = vsel %vm1089, %v1081, %v1097
  %v1106 = vsel %vm1090, %v1082, %v1098
  %v1107 = vsel %vm1091, %v1083, %v1099
  %v1108 = vsel %vm1092, %v1084, %v1100
  %v1109 = vsel %vm1093, %v1085, %v1101
  %v1110 = vsel %vm1094, %v1086, %v1102
  %v1111 = vsel %vm1095, %v1087, %v1103
  %v1112 = vmax.f32 %v751, %v1104
  %v1113 = vmax.f32 %v752, %v1105
  %v1114 = vmax.f32 %v753, %v1106
  %v1115 = vmax.f32 %v754, %v1107
  %v1116 = vmax.f32 %v755, %v1108
  %v1117 = vmax.f32 %v756, %v1109
  %v1118 = vmax.f32 %v757, %v1110
  %v1119 = vmax.f32 %v758, %v1111
  %v1120 = vsel %vm927, 1e+30, %v759
  %v1121 = vsel %vm928, 1e+30, %v760
  %v1122 = vsel %vm929, 1e+30, %v761
  %v1123 = vsel %vm930, 1e+30, %v762
  %v1124 = vsel %vm931, 1e+30, %v763
  %v1125 = vsel %vm932, 1e+30, %v764
  %v1126 = vsel %vm933, 1e+30, %v765
  %v1127 = vsel %vm934, 1e+30, %v766
  %v1128 = vsel %vm405, %v1120, inf
  %1129 = vmin.xlane.f32.xlu0 %v1128
  %v1130 = vpop.xlane.xlu0 %1129
  %v1131 = vsel %vm405, %v1121, inf
  %1132 = vmin.xlane.f32.xlu0 %v1131
  %v1133 = vpop.xlane.xlu0 %1132
  %v1134 = vsel %vm405, %v1122, inf
  %1135 = vmin.xlane.f32.xlu0 %v1134
  %v1136 = vpop.xlane.xlu0 %1135
  %v1137 = vsel %vm405, %v1123, inf
  %1138 = vmin.xlane.f32.xlu0 %v1137
  %v1139 = vpop.xlane.xlu0 %1138
  %v1140 = vsel %vm405, %v1124, inf
  %1141 = vmin.xlane.f32.xlu0 %v1140
  %v1142 = vpop.xlane.xlu0 %1141
  %v1143 = vsel %vm405, %v1125, inf
  %1144 = vmin.xlane.f32.xlu0 %v1143
  %v1145 = vpop.xlane.xlu0 %1144
  %v1146 = vsel %vm405, %v1126, inf
  %1147 = vmin.xlane.f32.xlu0 %v1146
  %v1148 = vpop.xlane.xlu0 %1147
  %v1149 = vsel %vm405, %v1127, inf
  %1150 = vmin.xlane.f32.xlu0 %v1149
  %v1151 = vpop.xlane.xlu0 %1150
  %vm1152 = vcmp.le.f32.partialorder %v1120, %v1130
  %vm1153 = vcmp.le.f32.partialorder %v1121, %v1133
  %vm1154 = vcmp.le.f32.partialorder %v1122, %v1136
  %vm1155 = vcmp.le.f32.partialorder %v1123, %v1139
  %vm1156 = vcmp.le.f32.partialorder %v1124, %v1142
  %vm1157 = vcmp.le.f32.partialorder %v1125, %v1145
  %vm1158 = vcmp.le.f32.partialorder %v1126, %v1148
  %vm1159 = vcmp.le.f32.partialorder %v1127, %v1151
  %v1160 = vsel %vm1152, %v194, 64
  %v1161 = vsel %vm1153, %v194, 64
  %v1162 = vsel %vm1154, %v194, 64
  %v1163 = vsel %vm1155, %v194, 64
  %v1164 = vsel %vm1156, %v194, 64
  %v1165 = vsel %vm1157, %v194, 64
  %v1166 = vsel %vm1158, %v194, 64
  %v1167 = vsel %vm1159, %v194, 64
  %v1168 = vsel %vm405, %v1160, 2147483647
  %v1169 = vand.u32 %v1168, 65535
  %v1170 = vshra.s32 %v1168, 16
  %v1171 = vcvt.s32.f32 %v1169
  %v1172 = vcvt.s32.f32 %v1170
  %1173 = vmin.xlane.f32.xlu0 %v1172
  %v1174 = vpop.xlane.xlu0 %1173
  %vm1175 = vcmp.eq.f32.partialorder %v1172, %v1174
  %v1176 = vsel %vm1175, %v1171, inf
  %1177 = vmin.xlane.f32.xlu0 %v1176
  %v1178 = vpop.xlane.xlu0 %1177
  %v1179 = vcvt.f32.s32 %v1178
  %v1180 = vcvt.f32.s32 %v1174
  %v1181 = vshll.u32 %v1180, 16
  %v1182 = vadd.s32 %v1181, %v1179
  %v1183 = vsel %vm405, %v1161, 2147483647
  %v1184 = vand.u32 %v1183, 65535
  %v1185 = vshra.s32 %v1183, 16
  %v1186 = vcvt.s32.f32 %v1184
  %v1187 = vcvt.s32.f32 %v1185
  %1188 = vmin.xlane.f32.xlu0 %v1187
  %v1189 = vpop.xlane.xlu0 %1188
  %vm1190 = vcmp.eq.f32.partialorder %v1187, %v1189
  %v1191 = vsel %vm1190, %v1186, inf
  %1192 = vmin.xlane.f32.xlu0 %v1191
  %v1193 = vpop.xlane.xlu0 %1192
  %v1194 = vcvt.f32.s32 %v1193
  %v1195 = vcvt.f32.s32 %v1189
  %v1196 = vshll.u32 %v1195, 16
  %v1197 = vadd.s32 %v1196, %v1194
  %v1198 = vsel %vm405, %v1162, 2147483647
  %v1199 = vand.u32 %v1198, 65535
  %v1200 = vshra.s32 %v1198, 16
  %v1201 = vcvt.s32.f32 %v1199
  %v1202 = vcvt.s32.f32 %v1200
  %1203 = vmin.xlane.f32.xlu0 %v1202
  %v1204 = vpop.xlane.xlu0 %1203
  %vm1205 = vcmp.eq.f32.partialorder %v1202, %v1204
  %v1206 = vsel %vm1205, %v1201, inf
  %1207 = vmin.xlane.f32.xlu0 %v1206
  %v1208 = vpop.xlane.xlu0 %1207
  %v1209 = vcvt.f32.s32 %v1208
  %v1210 = vcvt.f32.s32 %v1204
  %v1211 = vshll.u32 %v1210, 16
  %v1212 = vadd.s32 %v1211, %v1209
  %v1213 = vsel %vm405, %v1163, 2147483647
  %v1214 = vand.u32 %v1213, 65535
  %v1215 = vshra.s32 %v1213, 16
  %v1216 = vcvt.s32.f32 %v1214
  %v1217 = vcvt.s32.f32 %v1215
  %1218 = vmin.xlane.f32.xlu0 %v1217
  %v1219 = vpop.xlane.xlu0 %1218
  %vm1220 = vcmp.eq.f32.partialorder %v1217, %v1219
  %v1221 = vsel %vm1220, %v1216, inf
  %1222 = vmin.xlane.f32.xlu0 %v1221
  %v1223 = vpop.xlane.xlu0 %1222
  %v1224 = vcvt.f32.s32 %v1223
  %v1225 = vcvt.f32.s32 %v1219
  %v1226 = vshll.u32 %v1225, 16
  %v1227 = vadd.s32 %v1226, %v1224
  %v1228 = vsel %vm405, %v1164, 2147483647
  %v1229 = vand.u32 %v1228, 65535
  %v1230 = vshra.s32 %v1228, 16
  %v1231 = vcvt.s32.f32 %v1229
  %v1232 = vcvt.s32.f32 %v1230
  %1233 = vmin.xlane.f32.xlu0 %v1232
  %v1234 = vpop.xlane.xlu0 %1233
  %vm1235 = vcmp.eq.f32.partialorder %v1232, %v1234
  %v1236 = vsel %vm1235, %v1231, inf
  %1237 = vmin.xlane.f32.xlu0 %v1236
  %v1238 = vpop.xlane.xlu0 %1237
  %v1239 = vcvt.f32.s32 %v1238
  %v1240 = vcvt.f32.s32 %v1234
  %v1241 = vshll.u32 %v1240, 16
  %v1242 = vadd.s32 %v1241, %v1239
  %v1243 = vsel %vm405, %v1165, 2147483647
  %v1244 = vand.u32 %v1243, 65535
  %v1245 = vshra.s32 %v1243, 16
  %v1246 = vcvt.s32.f32 %v1244
  %v1247 = vcvt.s32.f32 %v1245
  %1248 = vmin.xlane.f32.xlu0 %v1247
  %v1249 = vpop.xlane.xlu0 %1248
  %vm1250 = vcmp.eq.f32.partialorder %v1247, %v1249
  %v1251 = vsel %vm1250, %v1246, inf
  %1252 = vmin.xlane.f32.xlu0 %v1251
  %v1253 = vpop.xlane.xlu0 %1252
  %v1254 = vcvt.f32.s32 %v1253
  %v1255 = vcvt.f32.s32 %v1249
  %v1256 = vshll.u32 %v1255, 16
  %v1257 = vadd.s32 %v1256, %v1254
  %v1258 = vsel %vm405, %v1166, 2147483647
  %v1259 = vand.u32 %v1258, 65535
  %v1260 = vshra.s32 %v1258, 16
  %v1261 = vcvt.s32.f32 %v1259
  %v1262 = vcvt.s32.f32 %v1260
  %1263 = vmin.xlane.f32.xlu0 %v1262
  %v1264 = vpop.xlane.xlu0 %1263
  %vm1265 = vcmp.eq.f32.partialorder %v1262, %v1264
  %v1266 = vsel %vm1265, %v1261, inf
  %1267 = vmin.xlane.f32.xlu0 %v1266
  %v1268 = vpop.xlane.xlu0 %1267
  %v1269 = vcvt.f32.s32 %v1268
  %v1270 = vcvt.f32.s32 %v1264
  %v1271 = vshll.u32 %v1270, 16
  %v1272 = vadd.s32 %v1271, %v1269
  %v1273 = vsel %vm405, %v1167, 2147483647
  %v1274 = vand.u32 %v1273, 65535
  %v1275 = vshra.s32 %v1273, 16
  %v1276 = vcvt.s32.f32 %v1274
  %v1277 = vcvt.s32.f32 %v1275
  %1278 = vmin.xlane.f32.xlu0 %v1277
  %v1279 = vpop.xlane.xlu0 %1278
  %vm1280 = vcmp.eq.f32.partialorder %v1277, %v1279
  %v1281 = vsel %vm1280, %v1276, inf
  %1282 = vmin.xlane.f32.xlu0 %v1281
  %v1283 = vpop.xlane.xlu0 %1282
  %v1284 = vcvt.f32.s32 %v1283
  %v1285 = vcvt.f32.s32 %v1279
  %v1286 = vshll.u32 %v1285, 16
  %v1287 = vadd.s32 %v1286, %v1284
  %vm1288 = vcmp.eq.s32.totalorder %v194, %v1182
  %vm1289 = vcmp.eq.s32.totalorder %v194, %v1197
  %vm1290 = vcmp.eq.s32.totalorder %v194, %v1212
  %vm1291 = vcmp.eq.s32.totalorder %v194, %v1227
  %vm1292 = vcmp.eq.s32.totalorder %v194, %v1242
  %vm1293 = vcmp.eq.s32.totalorder %v194, %v1257
  %vm1294 = vcmp.eq.s32.totalorder %v194, %v1272
  %vm1295 = vcmp.eq.s32.totalorder %v194, %v1287
  %v1296 = vsel %vm1288, 1, 0
  %v1297 = vsel %vm1289, 1, 0
  %v1298 = vsel %vm1290, 1, 0
  %v1299 = vsel %vm1291, 1, 0
  %v1300 = vsel %vm1292, 1, 0
  %v1301 = vsel %vm1293, 1, 0
  %v1302 = vsel %vm1294, 1, 0
  %v1303 = vsel %vm1295, 1, 0
  %v1304 = vcvt.s32.f32 %v1296
  %v1305 = vcvt.s32.f32 %v1297
  %v1306 = vcvt.s32.f32 %v1298
  %v1307 = vcvt.s32.f32 %v1299
  %v1308 = vcvt.s32.f32 %v1300
  %v1309 = vcvt.s32.f32 %v1301
  %v1310 = vcvt.s32.f32 %v1302
  %v1311 = vcvt.s32.f32 %v1303
  %v1313 = vsel %vm405, %v1304, 0
  %v1316 = vsel %vm405, %v1305, 0
  %v1319 = vsel %vm405, %v1306, 0
  %v1322 = vsel %vm405, %v1307, 0
  %v1325 = vsel %vm405, %v1308, 0
  %v1328 = vsel %vm405, %v1309, 0
  %v1331 = vsel %vm405, %v1310, 0
  %v1334 = vsel %vm405, %v1311, 0
  %1336 = vmatprep.subr.mxu0 0.0
  %1337 = vmatpush1.msra.mxu0 %v375
  %1338 = vmatprep.subr.mxu0 0.0
  %1339 = vmatpush1.msra.mxu0 %v378
  %1340 = vmatprep.subr.mxu0 0.0
  %1341 = vmatpush1.msra.mxu0 %v383
  %1342 = vmatprep.subr.mxu0 0.0
  %1343 = vmatpush1.msra.mxu0 %v386
  %1344 = vmatprep.subr.mxu0 0.0
  %1345 = vmatpush1.msra.mxu0 %v391
  %1346 = vmatprep.subr.mxu0 0.0
  %1347 = vmatpush1.msra.mxu0 %v394
  %1348 = vmatprep.subr.mxu0 0.0
  %1349 = vmatpush1.msra.mxu0 %v399
  %1350 = vmatprep.subr.mxu0 0.0
  %1351 = vmatpush1.msra.mxu0 %v402
  %1352 = vmatprep.subr.mxu0 0.0
  %1353 = vmatpush1.msra.mxu0 0.0
  %1354 = vmatprep.subr.mxu0 0.0
  %1355 = vmatpush1.msra.mxu0 0.0
  %1356 = vmatprep.subr.mxu0 0.0
  %1357 = vmatpush1.msra.mxu0 0.0
  %1358 = vmatprep.subr.mxu0 0.0
  %1359 = vmatpush1.msra.mxu0 0.0
  %1360 = vmatprep.subr.mxu0 0.0
  %1361 = vmatpush1.msra.mxu0 0.0
  %1362 = vmatprep.subr.mxu0 0.0
  %1363 = vmatpush1.msra.mxu0 0.0
  %1364 = vmatprep.subr.mxu0 0.0
  %1365 = vmatpush1.msra.mxu0 0.0
  %1366 = vmatprep.subr.mxu0 0.0
  %1367 = vmatpush1.msra.mxu0 0.0
  %1368 = vmatprep.subr.mxu0 0.0
  %1369 = vmatpush1.msra.mxu0 0.0
  %1370 = vmatprep.subr.mxu0 0.0
  %1371 = vmatpush1.msra.mxu0 0.0
  %1372 = vmatprep.subr.mxu0 0.0
  %1373 = vmatpush1.msra.mxu0 0.0
  %1374 = vmatprep.subr.mxu0 0.0
  %1375 = vmatpush1.msra.mxu0 0.0
  %1376 = vmatprep.subr.mxu0 0.0
  %1377 = vmatpush1.msra.mxu0 0.0
  %1378 = vmatprep.subr.mxu0 0.0
  %1379 = vmatpush1.msra.mxu0 0.0
  %1380 = vmatprep.subr.mxu0 0.0
  %1381 = vmatpush1.msra.mxu0 0.0
  %1382 = vmatprep.subr.mxu0 0.0
  %1383 = vmatpush1.msra.mxu0 0.0
  %1384 = vmatprep.subr.mxu0 0.0
  %1385 = vmatpush1.msra.mxu0 0.0
  %1386 = vmatprep.subr.mxu0 0.0
  %1387 = vmatpush1.msra.mxu0 0.0
  %1388 = vmatprep.subr.mxu0 0.0
  %1389 = vmatpush1.msra.mxu0 0.0
  %1390 = vmatprep.subr.mxu0 0.0
  %1391 = vmatpush1.msra.mxu0 0.0
  %1392 = vmatprep.subr.mxu0 0.0
  %1393 = vmatpush1.msra.mxu0 0.0
  %1394 = vmatprep.subr.mxu0 0.0
  %1395 = vmatpush1.msra.mxu0 0.0
  %1396 = vmatprep.subr.mxu0 0.0
  %1397 = vmatpush1.msra.mxu0 0.0
  %1398 = vmatprep.subr.mxu0 0.0
  %1399 = vmatpush1.msra.mxu0 0.0
  %1400 = vmatprep.mubr.f32.mxu0 0.0
  %1401 = vmatmul.mubr.f32.gmra.mrb[0].mxu0 %v1313
  %v1402 = vpop.f32.mrb[0].mxu0
  %v1403 = vadd.f32 0.0, %v1402
  %v1404 = vpop.f32.mrb[0].mxu0
  %1405 = vmatprep.mubr.f32.mxu0 0.0
  %1406 = vmatmul.mubr.f32.gmra.mrb[0].mxu0 %v1316
  %v1407 = vpop.f32.mrb[0].mxu0
  %v1408 = vadd.f32 0.0, %v1407
  %v1409 = vpop.f32.mrb[0].mxu0
  %1410 = vmatprep.mubr.f32.mxu0 0.0
  %1411 = vmatmul.mubr.f32.gmra.mrb[0].mxu0 %v1319
  %v1412 = vpop.f32.mrb[0].mxu0
  %v1413 = vadd.f32 0.0, %v1412
  %v1414 = vpop.f32.mrb[0].mxu0
  %1415 = vmatprep.mubr.f32.mxu0 0.0
  %1416 = vmatmul.mubr.f32.gmra.mrb[0].mxu0 %v1322
  %v1417 = vpop.f32.mrb[0].mxu0
  %v1418 = vadd.f32 0.0, %v1417
  %v1419 = vpop.f32.mrb[0].mxu0
  %1420 = vmatprep.mubr.f32.mxu0 0.0
  %1421 = vmatmul.mubr.f32.gmra.mrb[0].mxu0 %v1325
  %v1422 = vpop.f32.mrb[0].mxu0
  %v1423 = vadd.f32 0.0, %v1422
  %v1424 = vpop.f32.mrb[0].mxu0
  %1425 = vmatprep.mubr.f32.mxu0 0.0
  %1426 = vmatmul.mubr.f32.gmra.mrb[0].mxu0 %v1328
  %v1427 = vpop.f32.mrb[0].mxu0
  %v1428 = vadd.f32 0.0, %v1427
  %v1429 = vpop.f32.mrb[0].mxu0
  %1430 = vmatprep.mubr.f32.mxu0 0.0
  %1431 = vmatmul.mubr.f32.gmra.mrb[0].mxu0 %v1331
  %v1432 = vpop.f32.mrb[0].mxu0
  %v1433 = vadd.f32 0.0, %v1432
  %v1434 = vpop.f32.mrb[0].mxu0
  %1435 = vmatprep.mubr.f32.mxu0 0.0
  %1436 = vmatmul.mubr.f32.gmra.mrb[0].mxu0 %v1334
  %v1437 = vpop.f32.mrb[0].mxu0
  %v1438 = vadd.f32 0.0, %v1437
  %v1439 = vpop.f32.mrb[0].mxu0
  %1440 = vdwg.mxu0
  %v1441 = vadd.f32 %v290, %v1403
  %v1442 = vadd.f32 %v293, %v1408
  %v1443 = vadd.f32 %v298, %v1413
  %v1444 = vadd.f32 %v301, %v1418
  %v1445 = vadd.f32 %v306, %v1423
  %v1446 = vadd.f32 %v309, %v1428
  %v1447 = vadd.f32 %v314, %v1433
  %v1448 = vadd.f32 %v317, %v1438
  %vm1449 = vcmp.ge.f32.partialorder %v1441, 0.0
  %vm1450 = vcmp.ge.f32.partialorder %v1442, 0.0
  %vm1451 = vcmp.ge.f32.partialorder %v1443, 0.0
  %vm1452 = vcmp.ge.f32.partialorder %v1444, 0.0
  %vm1453 = vcmp.ge.f32.partialorder %v1445, 0.0
  %vm1454 = vcmp.ge.f32.partialorder %v1446, 0.0
  %vm1455 = vcmp.ge.f32.partialorder %v1447, 0.0
  %vm1456 = vcmp.ge.f32.partialorder %v1448, 0.0
  %v1457 = vmul.f32 %v1441, 0.2
  %v1458 = vmul.f32 %v1442, 0.2
  %v1459 = vmul.f32 %v1443, 0.2
  %v1460 = vmul.f32 %v1444, 0.2
  %v1461 = vmul.f32 %v1445, 0.2
  %v1462 = vmul.f32 %v1446, 0.2
  %v1463 = vmul.f32 %v1447, 0.2
  %v1464 = vmul.f32 %v1448, 0.2
  %v1465 = vsel %vm1449, %v1441, %v1457
  %v1466 = vsel %vm1450, %v1442, %v1458
  %v1467 = vsel %vm1451, %v1443, %v1459
  %v1468 = vsel %vm1452, %v1444, %v1460
  %v1469 = vsel %vm1453, %v1445, %v1461
  %v1470 = vsel %vm1454, %v1446, %v1462
  %v1471 = vsel %vm1455, %v1447, %v1463
  %v1472 = vsel %vm1456, %v1448, %v1464
  %v1473 = vmax.f32 %v1112, %v1465
  %v1474 = vmax.f32 %v1113, %v1466
  %v1475 = vmax.f32 %v1114, %v1467
  %v1476 = vmax.f32 %v1115, %v1468
  %v1477 = vmax.f32 %v1116, %v1469
  %v1478 = vmax.f32 %v1117, %v1470
  %v1479 = vmax.f32 %v1118, %v1471
  %v1480 = vmax.f32 %v1119, %v1472
  %v1481 = vsel %vm1288, 1e+30, %v1120
  %v1482 = vsel %vm1289, 1e+30, %v1121
  %v1483 = vsel %vm1290, 1e+30, %v1122
  %v1484 = vsel %vm1291, 1e+30, %v1123
  %v1485 = vsel %vm1292, 1e+30, %v1124
  %v1486 = vsel %vm1293, 1e+30, %v1125
  %v1487 = vsel %vm1294, 1e+30, %v1126
  %v1488 = vsel %vm1295, 1e+30, %v1127
  %v1489 = vsel %vm405, %v1481, inf
  %1490 = vmin.xlane.f32.xlu0 %v1489
  %v1491 = vpop.xlane.xlu0 %1490
  %v1492 = vsel %vm405, %v1482, inf
  %1493 = vmin.xlane.f32.xlu0 %v1492
  %v1494 = vpop.xlane.xlu0 %1493
  %v1495 = vsel %vm405, %v1483, inf
  %1496 = vmin.xlane.f32.xlu0 %v1495
  %v1497 = vpop.xlane.xlu0 %1496
  %v1498 = vsel %vm405, %v1484, inf
  %1499 = vmin.xlane.f32.xlu0 %v1498
  %v1500 = vpop.xlane.xlu0 %1499
  %v1501 = vsel %vm405, %v1485, inf
  %1502 = vmin.xlane.f32.xlu0 %v1501
  %v1503 = vpop.xlane.xlu0 %1502
  %v1504 = vsel %vm405, %v1486, inf
  %1505 = vmin.xlane.f32.xlu0 %v1504
  %v1506 = vpop.xlane.xlu0 %1505
  %v1507 = vsel %vm405, %v1487, inf
  %1508 = vmin.xlane.f32.xlu0 %v1507
  %v1509 = vpop.xlane.xlu0 %1508
  %v1510 = vsel %vm405, %v1488, inf
  %1511 = vmin.xlane.f32.xlu0 %v1510
  %v1512 = vpop.xlane.xlu0 %1511
  %vm1513 = vcmp.le.f32.partialorder %v1481, %v1491
  %vm1514 = vcmp.le.f32.partialorder %v1482, %v1494
  %vm1515 = vcmp.le.f32.partialorder %v1483, %v1497
  %vm1516 = vcmp.le.f32.partialorder %v1484, %v1500
  %vm1517 = vcmp.le.f32.partialorder %v1485, %v1503
  %vm1518 = vcmp.le.f32.partialorder %v1486, %v1506
  %vm1519 = vcmp.le.f32.partialorder %v1487, %v1509
  %vm1520 = vcmp.le.f32.partialorder %v1488, %v1512
  %v1521 = vsel %vm1513, %v194, 64
  %v1522 = vsel %vm1514, %v194, 64
  %v1523 = vsel %vm1515, %v194, 64
  %v1524 = vsel %vm1516, %v194, 64
  %v1525 = vsel %vm1517, %v194, 64
  %v1526 = vsel %vm1518, %v194, 64
  %v1527 = vsel %vm1519, %v194, 64
  %v1528 = vsel %vm1520, %v194, 64
  %v1529 = vsel %vm405, %v1521, 2147483647
  %v1530 = vand.u32 %v1529, 65535
  %v1531 = vshra.s32 %v1529, 16
  %v1532 = vcvt.s32.f32 %v1530
  %v1533 = vcvt.s32.f32 %v1531
  %1534 = vmin.xlane.f32.xlu0 %v1533
  %v1535 = vpop.xlane.xlu0 %1534
  %vm1536 = vcmp.eq.f32.partialorder %v1533, %v1535
  %v1537 = vsel %vm1536, %v1532, inf
  %1538 = vmin.xlane.f32.xlu0 %v1537
  %v1539 = vpop.xlane.xlu0 %1538
  %v1540 = vcvt.f32.s32 %v1539
  %v1541 = vcvt.f32.s32 %v1535
  %v1542 = vshll.u32 %v1541, 16
  %v1543 = vadd.s32 %v1542, %v1540
  %v1544 = vsel %vm405, %v1522, 2147483647
  %v1545 = vand.u32 %v1544, 65535
  %v1546 = vshra.s32 %v1544, 16
  %v1547 = vcvt.s32.f32 %v1545
  %v1548 = vcvt.s32.f32 %v1546
  %1549 = vmin.xlane.f32.xlu0 %v1548
  %v1550 = vpop.xlane.xlu0 %1549
  %vm1551 = vcmp.eq.f32.partialorder %v1548, %v1550
  %v1552 = vsel %vm1551, %v1547, inf
  %1553 = vmin.xlane.f32.xlu0 %v1552
  %v1554 = vpop.xlane.xlu0 %1553
  %v1555 = vcvt.f32.s32 %v1554
  %v1556 = vcvt.f32.s32 %v1550
  %v1557 = vshll.u32 %v1556, 16
  %v1558 = vadd.s32 %v1557, %v1555
  %v1559 = vsel %vm405, %v1523, 2147483647
  %v1560 = vand.u32 %v1559, 65535
  %v1561 = vshra.s32 %v1559, 16
  %v1562 = vcvt.s32.f32 %v1560
  %v1563 = vcvt.s32.f32 %v1561
  %1564 = vmin.xlane.f32.xlu0 %v1563
  %v1565 = vpop.xlane.xlu0 %1564
  %vm1566 = vcmp.eq.f32.partialorder %v1563, %v1565
  %v1567 = vsel %vm1566, %v1562, inf
  %1568 = vmin.xlane.f32.xlu0 %v1567
  %v1569 = vpop.xlane.xlu0 %1568
  %v1570 = vcvt.f32.s32 %v1569
  %v1571 = vcvt.f32.s32 %v1565
  %v1572 = vshll.u32 %v1571, 16
  %v1573 = vadd.s32 %v1572, %v1570
  %v1574 = vsel %vm405, %v1524, 2147483647
  %v1575 = vand.u32 %v1574, 65535
  %v1576 = vshra.s32 %v1574, 16
  %v1577 = vcvt.s32.f32 %v1575
  %v1578 = vcvt.s32.f32 %v1576
  %1579 = vmin.xlane.f32.xlu0 %v1578
  %v1580 = vpop.xlane.xlu0 %1579
  %vm1581 = vcmp.eq.f32.partialorder %v1578, %v1580
  %v1582 = vsel %vm1581, %v1577, inf
  %1583 = vmin.xlane.f32.xlu0 %v1582
  %v1584 = vpop.xlane.xlu0 %1583
  %v1585 = vcvt.f32.s32 %v1584
  %v1586 = vcvt.f32.s32 %v1580
  %v1587 = vshll.u32 %v1586, 16
  %v1588 = vadd.s32 %v1587, %v1585
  %v1589 = vsel %vm405, %v1525, 2147483647
  %v1590 = vand.u32 %v1589, 65535
  %v1591 = vshra.s32 %v1589, 16
  %v1592 = vcvt.s32.f32 %v1590
  %v1593 = vcvt.s32.f32 %v1591
  %1594 = vmin.xlane.f32.xlu0 %v1593
  %v1595 = vpop.xlane.xlu0 %1594
  %vm1596 = vcmp.eq.f32.partialorder %v1593, %v1595
  %v1597 = vsel %vm1596, %v1592, inf
  %1598 = vmin.xlane.f32.xlu0 %v1597
  %v1599 = vpop.xlane.xlu0 %1598
  %v1600 = vcvt.f32.s32 %v1599
  %v1601 = vcvt.f32.s32 %v1595
  %v1602 = vshll.u32 %v1601, 16
  %v1603 = vadd.s32 %v1602, %v1600
  %v1604 = vsel %vm405, %v1526, 2147483647
  %v1605 = vand.u32 %v1604, 65535
  %v1606 = vshra.s32 %v1604, 16
  %v1607 = vcvt.s32.f32 %v1605
  %v1608 = vcvt.s32.f32 %v1606
  %1609 = vmin.xlane.f32.xlu0 %v1608
  %v1610 = vpop.xlane.xlu0 %1609
  %vm1611 = vcmp.eq.f32.partialorder %v1608, %v1610
  %v1612 = vsel %vm1611, %v1607, inf
  %1613 = vmin.xlane.f32.xlu0 %v1612
  %v1614 = vpop.xlane.xlu0 %1613
  %v1615 = vcvt.f32.s32 %v1614
  %v1616 = vcvt.f32.s32 %v1610
  %v1617 = vshll.u32 %v1616, 16
  %v1618 = vadd.s32 %v1617, %v1615
  %v1619 = vsel %vm405, %v1527, 2147483647
  %v1620 = vand.u32 %v1619, 65535
  %v1621 = vshra.s32 %v1619, 16
  %v1622 = vcvt.s32.f32 %v1620
  %v1623 = vcvt.s32.f32 %v1621
  %1624 = vmin.xlane.f32.xlu0 %v1623
  %v1625 = vpop.xlane.xlu0 %1624
  %vm1626 = vcmp.eq.f32.partialorder %v1623, %v1625
  %v1627 = vsel %vm1626, %v1622, inf
  %1628 = vmin.xlane.f32.xlu0 %v1627
  %v1629 = vpop.xlane.xlu0 %1628
  %v1630 = vcvt.f32.s32 %v1629
  %v1631 = vcvt.f32.s32 %v1625
  %v1632 = vshll.u32 %v1631, 16
  %v1633 = vadd.s32 %v1632, %v1630
  %v1634 = vsel %vm405, %v1528, 2147483647
  %v1635 = vand.u32 %v1634, 65535
  %v1636 = vshra.s32 %v1634, 16
  %v1637 = vcvt.s32.f32 %v1635
  %v1638 = vcvt.s32.f32 %v1636
  %1639 = vmin.xlane.f32.xlu0 %v1638
  %v1640 = vpop.xlane.xlu0 %1639
  %vm1641 = vcmp.eq.f32.partialorder %v1638, %v1640
  %v1642 = vsel %vm1641, %v1637, inf
  %1643 = vmin.xlane.f32.xlu0 %v1642
  %v1644 = vpop.xlane.xlu0 %1643
  %v1645 = vcvt.f32.s32 %v1644
  %v1646 = vcvt.f32.s32 %v1640
  %v1647 = vshll.u32 %v1646, 16
  %v1648 = vadd.s32 %v1647, %v1645
  %vm1649 = vcmp.eq.s32.totalorder %v194, %v1543
  %vm1650 = vcmp.eq.s32.totalorder %v194, %v1558
  %vm1651 = vcmp.eq.s32.totalorder %v194, %v1573
  %vm1652 = vcmp.eq.s32.totalorder %v194, %v1588
  %vm1653 = vcmp.eq.s32.totalorder %v194, %v1603
  %vm1654 = vcmp.eq.s32.totalorder %v194, %v1618
  %vm1655 = vcmp.eq.s32.totalorder %v194, %v1633
  %vm1656 = vcmp.eq.s32.totalorder %v194, %v1648
  %v1657 = vsel %vm1649, 1, 0
  %v1658 = vsel %vm1650, 1, 0
  %v1659 = vsel %vm1651, 1, 0
  %v1660 = vsel %vm1652, 1, 0
  %v1661 = vsel %vm1653, 1, 0
  %v1662 = vsel %vm1654, 1, 0
  %v1663 = vsel %vm1655, 1, 0
  %v1664 = vsel %vm1656, 1, 0
  %v1665 = vcvt.s32.f32 %v1657
  %v1666 = vcvt.s32.f32 %v1658
  %v1667 = vcvt.s32.f32 %v1659
  %v1668 = vcvt.s32.f32 %v1660
  %v1669 = vcvt.s32.f32 %v1661
  %v1670 = vcvt.s32.f32 %v1662
  %v1671 = vcvt.s32.f32 %v1663
  %v1672 = vcvt.s32.f32 %v1664
  %v1674 = vsel %vm405, %v1665, 0
  %v1677 = vsel %vm405, %v1666, 0
  %v1680 = vsel %vm405, %v1667, 0
  %v1683 = vsel %vm405, %v1668, 0
  %v1686 = vsel %vm405, %v1669, 0
  %v1689 = vsel %vm405, %v1670, 0
  %v1692 = vsel %vm405, %v1671, 0
  %v1695 = vsel %vm405, %v1672, 0
  %1697 = vmatprep.subr.mxu0 0.0
  %1698 = vmatpush1.msra.mxu0 %v375
  %1699 = vmatprep.subr.mxu0 0.0
  %1700 = vmatpush1.msra.mxu0 %v378
  %1701 = vmatprep.subr.mxu0 0.0
  %1702 = vmatpush1.msra.mxu0 %v383
  %1703 = vmatprep.subr.mxu0 0.0
  %1704 = vmatpush1.msra.mxu0 %v386
  %1705 = vmatprep.subr.mxu0 0.0
  %1706 = vmatpush1.msra.mxu0 %v391
  %1707 = vmatprep.subr.mxu0 0.0
  %1708 = vmatpush1.msra.mxu0 %v394
  %1709 = vmatprep.subr.mxu0 0.0
  %1710 = vmatpush1.msra.mxu0 %v399
  %1711 = vmatprep.subr.mxu0 0.0
  %1712 = vmatpush1.msra.mxu0 %v402
  %1713 = vmatprep.subr.mxu0 0.0
  %1714 = vmatpush1.msra.mxu0 0.0
  %1715 = vmatprep.subr.mxu0 0.0
  %1716 = vmatpush1.msra.mxu0 0.0
  %1717 = vmatprep.subr.mxu0 0.0
  %1718 = vmatpush1.msra.mxu0 0.0
  %1719 = vmatprep.subr.mxu0 0.0
  %1720 = vmatpush1.msra.mxu0 0.0
  %1721 = vmatprep.subr.mxu0 0.0
  %1722 = vmatpush1.msra.mxu0 0.0
  %1723 = vmatprep.subr.mxu0 0.0
  %1724 = vmatpush1.msra.mxu0 0.0
  %1725 = vmatprep.subr.mxu0 0.0
  %1726 = vmatpush1.msra.mxu0 0.0
  %1727 = vmatprep.subr.mxu0 0.0
  %1728 = vmatpush1.msra.mxu0 0.0
  %1729 = vmatprep.subr.mxu0 0.0
  %1730 = vmatpush1.msra.mxu0 0.0
  %1731 = vmatprep.subr.mxu0 0.0
  %1732 = vmatpush1.msra.mxu0 0.0
  %1733 = vmatprep.subr.mxu0 0.0
  %1734 = vmatpush1.msra.mxu0 0.0
  %1735 = vmatprep.subr.mxu0 0.0
  %1736 = vmatpush1.msra.mxu0 0.0
  %1737 = vmatprep.subr.mxu0 0.0
  %1738 = vmatpush1.msra.mxu0 0.0
  %1739 = vmatprep.subr.mxu0 0.0
  %1740 = vmatpush1.msra.mxu0 0.0
  %1741 = vmatprep.subr.mxu0 0.0
  %1742 = vmatpush1.msra.mxu0 0.0
  %1743 = vmatprep.subr.mxu0 0.0
  %1744 = vmatpush1.msra.mxu0 0.0
  %1745 = vmatprep.subr.mxu0 0.0
  %1746 = vmatpush1.msra.mxu0 0.0
  %1747 = vmatprep.subr.mxu0 0.0
  %1748 = vmatpush1.msra.mxu0 0.0
  %1749 = vmatprep.subr.mxu0 0.0
  %1750 = vmatpush1.msra.mxu0 0.0
  %1751 = vmatprep.subr.mxu0 0.0
  %1752 = vmatpush1.msra.mxu0 0.0
  %1753 = vmatprep.subr.mxu0 0.0
  %1754 = vmatpush1.msra.mxu0 0.0
  %1755 = vmatprep.subr.mxu0 0.0
  %1756 = vmatpush1.msra.mxu0 0.0
  %1757 = vmatprep.subr.mxu0 0.0
  %1758 = vmatpush1.msra.mxu0 0.0
  %1759 = vmatprep.subr.mxu0 0.0
  %1760 = vmatpush1.msra.mxu0 0.0
  %1761 = vmatprep.mubr.f32.mxu0 0.0
  %1762 = vmatmul.mubr.f32.gmra.mrb[0].mxu0 %v1674
  %v1763 = vpop.f32.mrb[0].mxu0
  %v1764 = vadd.f32 0.0, %v1763
  %v1765 = vpop.f32.mrb[0].mxu0
  %1766 = vmatprep.mubr.f32.mxu0 0.0
  %1767 = vmatmul.mubr.f32.gmra.mrb[0].mxu0 %v1677
  %v1768 = vpop.f32.mrb[0].mxu0
  %v1769 = vadd.f32 0.0, %v1768
  %v1770 = vpop.f32.mrb[0].mxu0
  %1771 = vmatprep.mubr.f32.mxu0 0.0
  %1772 = vmatmul.mubr.f32.gmra.mrb[0].mxu0 %v1680
  %v1773 = vpop.f32.mrb[0].mxu0
  %v1774 = vadd.f32 0.0, %v1773
  %v1775 = vpop.f32.mrb[0].mxu0
  %1776 = vmatprep.mubr.f32.mxu0 0.0
  %1777 = vmatmul.mubr.f32.gmra.mrb[0].mxu0 %v1683
  %v1778 = vpop.f32.mrb[0].mxu0
  %v1779 = vadd.f32 0.0, %v1778
  %v1780 = vpop.f32.mrb[0].mxu0
  %1781 = vmatprep.mubr.f32.mxu0 0.0
  %1782 = vmatmul.mubr.f32.gmra.mrb[0].mxu0 %v1686
  %v1783 = vpop.f32.mrb[0].mxu0
  %v1784 = vadd.f32 0.0, %v1783
  %v1785 = vpop.f32.mrb[0].mxu0
  %1786 = vmatprep.mubr.f32.mxu0 0.0
  %1787 = vmatmul.mubr.f32.gmra.mrb[0].mxu0 %v1689
  %v1788 = vpop.f32.mrb[0].mxu0
  %v1789 = vadd.f32 0.0, %v1788
  %v1790 = vpop.f32.mrb[0].mxu0
  %1791 = vmatprep.mubr.f32.mxu0 0.0
  %1792 = vmatmul.mubr.f32.gmra.mrb[0].mxu0 %v1692
  %v1793 = vpop.f32.mrb[0].mxu0
  %v1794 = vadd.f32 0.0, %v1793
  %v1795 = vpop.f32.mrb[0].mxu0
  %1796 = vmatprep.mubr.f32.mxu0 0.0
  %1797 = vmatmul.mubr.f32.gmra.mrb[0].mxu0 %v1695
  %v1798 = vpop.f32.mrb[0].mxu0
  %v1799 = vadd.f32 0.0, %v1798
  %v1800 = vpop.f32.mrb[0].mxu0
  %1801 = vdwg.mxu0
  %v1802 = vadd.f32 %v290, %v1764
  %v1803 = vadd.f32 %v293, %v1769
  %v1804 = vadd.f32 %v298, %v1774
  %v1805 = vadd.f32 %v301, %v1779
  %v1806 = vadd.f32 %v306, %v1784
  %v1807 = vadd.f32 %v309, %v1789
  %v1808 = vadd.f32 %v314, %v1794
  %v1809 = vadd.f32 %v317, %v1799
  %vm1810 = vcmp.ge.f32.partialorder %v1802, 0.0
  %vm1811 = vcmp.ge.f32.partialorder %v1803, 0.0
  %vm1812 = vcmp.ge.f32.partialorder %v1804, 0.0
  %vm1813 = vcmp.ge.f32.partialorder %v1805, 0.0
  %vm1814 = vcmp.ge.f32.partialorder %v1806, 0.0
  %vm1815 = vcmp.ge.f32.partialorder %v1807, 0.0
  %vm1816 = vcmp.ge.f32.partialorder %v1808, 0.0
  %vm1817 = vcmp.ge.f32.partialorder %v1809, 0.0
  %v1818 = vmul.f32 %v1802, 0.2
  %v1819 = vmul.f32 %v1803, 0.2
  %v1820 = vmul.f32 %v1804, 0.2
  %v1821 = vmul.f32 %v1805, 0.2
  %v1822 = vmul.f32 %v1806, 0.2
  %v1823 = vmul.f32 %v1807, 0.2
  %v1824 = vmul.f32 %v1808, 0.2
  %v1825 = vmul.f32 %v1809, 0.2
  %v1826 = vsel %vm1810, %v1802, %v1818
  %v1827 = vsel %vm1811, %v1803, %v1819
  %v1828 = vsel %vm1812, %v1804, %v1820
  %v1829 = vsel %vm1813, %v1805, %v1821
  %v1830 = vsel %vm1814, %v1806, %v1822
  %v1831 = vsel %vm1815, %v1807, %v1823
  %v1832 = vsel %vm1816, %v1808, %v1824
  %v1833 = vsel %vm1817, %v1809, %v1825
  %v1834 = vmax.f32 %v1473, %v1826
  %v1835 = vmax.f32 %v1474, %v1827
  %v1836 = vmax.f32 %v1475, %v1828
  %v1837 = vmax.f32 %v1476, %v1829
  %v1838 = vmax.f32 %v1477, %v1830
  %v1839 = vmax.f32 %v1478, %v1831
  %v1840 = vmax.f32 %v1479, %v1832
  %v1841 = vmax.f32 %v1480, %v1833
  %v1842 = vsel %vm1649, 1e+30, %v1481
  %v1843 = vsel %vm1650, 1e+30, %v1482
  %v1844 = vsel %vm1651, 1e+30, %v1483
  %v1845 = vsel %vm1652, 1e+30, %v1484
  %v1846 = vsel %vm1653, 1e+30, %v1485
  %v1847 = vsel %vm1654, 1e+30, %v1486
  %v1848 = vsel %vm1655, 1e+30, %v1487
  %v1849 = vsel %vm1656, 1e+30, %v1488
  %v1850 = vsel %vm405, %v1842, inf
  %1851 = vmin.xlane.f32.xlu0 %v1850
  %v1852 = vpop.xlane.xlu0 %1851
  %v1853 = vsel %vm405, %v1843, inf
  %1854 = vmin.xlane.f32.xlu0 %v1853
  %v1855 = vpop.xlane.xlu0 %1854
  %v1856 = vsel %vm405, %v1844, inf
  %1857 = vmin.xlane.f32.xlu0 %v1856
  %v1858 = vpop.xlane.xlu0 %1857
  %v1859 = vsel %vm405, %v1845, inf
  %1860 = vmin.xlane.f32.xlu0 %v1859
  %v1861 = vpop.xlane.xlu0 %1860
  %v1862 = vsel %vm405, %v1846, inf
  %1863 = vmin.xlane.f32.xlu0 %v1862
  %v1864 = vpop.xlane.xlu0 %1863
  %v1865 = vsel %vm405, %v1847, inf
  %1866 = vmin.xlane.f32.xlu0 %v1865
  %v1867 = vpop.xlane.xlu0 %1866
  %v1868 = vsel %vm405, %v1848, inf
  %1869 = vmin.xlane.f32.xlu0 %v1868
  %v1870 = vpop.xlane.xlu0 %1869
  %v1871 = vsel %vm405, %v1849, inf
  %1872 = vmin.xlane.f32.xlu0 %v1871
  %v1873 = vpop.xlane.xlu0 %1872
  %vm1874 = vcmp.le.f32.partialorder %v1842, %v1852
  %vm1875 = vcmp.le.f32.partialorder %v1843, %v1855
  %vm1876 = vcmp.le.f32.partialorder %v1844, %v1858
  %vm1877 = vcmp.le.f32.partialorder %v1845, %v1861
  %vm1878 = vcmp.le.f32.partialorder %v1846, %v1864
  %vm1879 = vcmp.le.f32.partialorder %v1847, %v1867
  %vm1880 = vcmp.le.f32.partialorder %v1848, %v1870
  %vm1881 = vcmp.le.f32.partialorder %v1849, %v1873
  %v1882 = vsel %vm1874, %v194, 64
  %v1883 = vsel %vm1875, %v194, 64
  %v1884 = vsel %vm1876, %v194, 64
  %v1885 = vsel %vm1877, %v194, 64
  %v1886 = vsel %vm1878, %v194, 64
  %v1887 = vsel %vm1879, %v194, 64
  %v1888 = vsel %vm1880, %v194, 64
  %v1889 = vsel %vm1881, %v194, 64
  %v1890 = vsel %vm405, %v1882, 2147483647
  %v1891 = vand.u32 %v1890, 65535
  %v1892 = vshra.s32 %v1890, 16
  %v1893 = vcvt.s32.f32 %v1891
  %v1894 = vcvt.s32.f32 %v1892
  %1895 = vmin.xlane.f32.xlu0 %v1894
  %v1896 = vpop.xlane.xlu0 %1895
  %vm1897 = vcmp.eq.f32.partialorder %v1894, %v1896
  %v1898 = vsel %vm1897, %v1893, inf
  %1899 = vmin.xlane.f32.xlu0 %v1898
  %v1900 = vpop.xlane.xlu0 %1899
  %v1901 = vcvt.f32.s32 %v1900
  %v1902 = vcvt.f32.s32 %v1896
  %v1903 = vshll.u32 %v1902, 16
  %v1904 = vadd.s32 %v1903, %v1901
  %v1905 = vsel %vm405, %v1883, 2147483647
  %v1906 = vand.u32 %v1905, 65535
  %v1907 = vshra.s32 %v1905, 16
  %v1908 = vcvt.s32.f32 %v1906
  %v1909 = vcvt.s32.f32 %v1907
  %1910 = vmin.xlane.f32.xlu0 %v1909
  %v1911 = vpop.xlane.xlu0 %1910
  %vm1912 = vcmp.eq.f32.partialorder %v1909, %v1911
  %v1913 = vsel %vm1912, %v1908, inf
  %1914 = vmin.xlane.f32.xlu0 %v1913
  %v1915 = vpop.xlane.xlu0 %1914
  %v1916 = vcvt.f32.s32 %v1915
  %v1917 = vcvt.f32.s32 %v1911
  %v1918 = vshll.u32 %v1917, 16
  %v1919 = vadd.s32 %v1918, %v1916
  %v1920 = vsel %vm405, %v1884, 2147483647
  %v1921 = vand.u32 %v1920, 65535
  %v1922 = vshra.s32 %v1920, 16
  %v1923 = vcvt.s32.f32 %v1921
  %v1924 = vcvt.s32.f32 %v1922
  %1925 = vmin.xlane.f32.xlu0 %v1924
  %v1926 = vpop.xlane.xlu0 %1925
  %vm1927 = vcmp.eq.f32.partialorder %v1924, %v1926
  %v1928 = vsel %vm1927, %v1923, inf
  %1929 = vmin.xlane.f32.xlu0 %v1928
  %v1930 = vpop.xlane.xlu0 %1929
  %v1931 = vcvt.f32.s32 %v1930
  %v1932 = vcvt.f32.s32 %v1926
  %v1933 = vshll.u32 %v1932, 16
  %v1934 = vadd.s32 %v1933, %v1931
  %v1935 = vsel %vm405, %v1885, 2147483647
  %v1936 = vand.u32 %v1935, 65535
  %v1937 = vshra.s32 %v1935, 16
  %v1938 = vcvt.s32.f32 %v1936
  %v1939 = vcvt.s32.f32 %v1937
  %1940 = vmin.xlane.f32.xlu0 %v1939
  %v1941 = vpop.xlane.xlu0 %1940
  %vm1942 = vcmp.eq.f32.partialorder %v1939, %v1941
  %v1943 = vsel %vm1942, %v1938, inf
  %1944 = vmin.xlane.f32.xlu0 %v1943
  %v1945 = vpop.xlane.xlu0 %1944
  %v1946 = vcvt.f32.s32 %v1945
  %v1947 = vcvt.f32.s32 %v1941
  %v1948 = vshll.u32 %v1947, 16
  %v1949 = vadd.s32 %v1948, %v1946
  %v1950 = vsel %vm405, %v1886, 2147483647
  %v1951 = vand.u32 %v1950, 65535
  %v1952 = vshra.s32 %v1950, 16
  %v1953 = vcvt.s32.f32 %v1951
  %v1954 = vcvt.s32.f32 %v1952
  %1955 = vmin.xlane.f32.xlu0 %v1954
  %v1956 = vpop.xlane.xlu0 %1955
  %vm1957 = vcmp.eq.f32.partialorder %v1954, %v1956
  %v1958 = vsel %vm1957, %v1953, inf
  %1959 = vmin.xlane.f32.xlu0 %v1958
  %v1960 = vpop.xlane.xlu0 %1959
  %v1961 = vcvt.f32.s32 %v1960
  %v1962 = vcvt.f32.s32 %v1956
  %v1963 = vshll.u32 %v1962, 16
  %v1964 = vadd.s32 %v1963, %v1961
  %v1965 = vsel %vm405, %v1887, 2147483647
  %v1966 = vand.u32 %v1965, 65535
  %v1967 = vshra.s32 %v1965, 16
  %v1968 = vcvt.s32.f32 %v1966
  %v1969 = vcvt.s32.f32 %v1967
  %1970 = vmin.xlane.f32.xlu0 %v1969
  %v1971 = vpop.xlane.xlu0 %1970
  %vm1972 = vcmp.eq.f32.partialorder %v1969, %v1971
  %v1973 = vsel %vm1972, %v1968, inf
  %1974 = vmin.xlane.f32.xlu0 %v1973
  %v1975 = vpop.xlane.xlu0 %1974
  %v1976 = vcvt.f32.s32 %v1975
  %v1977 = vcvt.f32.s32 %v1971
  %v1978 = vshll.u32 %v1977, 16
  %v1979 = vadd.s32 %v1978, %v1976
  %v1980 = vsel %vm405, %v1888, 2147483647
  %v1981 = vand.u32 %v1980, 65535
  %v1982 = vshra.s32 %v1980, 16
  %v1983 = vcvt.s32.f32 %v1981
  %v1984 = vcvt.s32.f32 %v1982
  %1985 = vmin.xlane.f32.xlu0 %v1984
  %v1986 = vpop.xlane.xlu0 %1985
  %vm1987 = vcmp.eq.f32.partialorder %v1984, %v1986
  %v1988 = vsel %vm1987, %v1983, inf
  %1989 = vmin.xlane.f32.xlu0 %v1988
  %v1990 = vpop.xlane.xlu0 %1989
  %v1991 = vcvt.f32.s32 %v1990
  %v1992 = vcvt.f32.s32 %v1986
  %v1993 = vshll.u32 %v1992, 16
  %v1994 = vadd.s32 %v1993, %v1991
  %v1995 = vsel %vm405, %v1889, 2147483647
  %v1996 = vand.u32 %v1995, 65535
  %v1997 = vshra.s32 %v1995, 16
  %v1998 = vcvt.s32.f32 %v1996
  %v1999 = vcvt.s32.f32 %v1997
  %2000 = vmin.xlane.f32.xlu0 %v1999
  %v2001 = vpop.xlane.xlu0 %2000
  %vm2002 = vcmp.eq.f32.partialorder %v1999, %v2001
  %v2003 = vsel %vm2002, %v1998, inf
  %2004 = vmin.xlane.f32.xlu0 %v2003
  %v2005 = vpop.xlane.xlu0 %2004
  %v2006 = vcvt.f32.s32 %v2005
  %v2007 = vcvt.f32.s32 %v2001
  %v2008 = vshll.u32 %v2007, 16
  %v2009 = vadd.s32 %v2008, %v2006
  %vm2010 = vcmp.eq.s32.totalorder %v194, %v1904
  %vm2011 = vcmp.eq.s32.totalorder %v194, %v1919
  %vm2012 = vcmp.eq.s32.totalorder %v194, %v1934
  %vm2013 = vcmp.eq.s32.totalorder %v194, %v1949
  %vm2014 = vcmp.eq.s32.totalorder %v194, %v1964
  %vm2015 = vcmp.eq.s32.totalorder %v194, %v1979
  %vm2016 = vcmp.eq.s32.totalorder %v194, %v1994
  %vm2017 = vcmp.eq.s32.totalorder %v194, %v2009
  %v2018 = vsel %vm2010, 1, 0
  %v2019 = vsel %vm2011, 1, 0
  %v2020 = vsel %vm2012, 1, 0
  %v2021 = vsel %vm2013, 1, 0
  %v2022 = vsel %vm2014, 1, 0
  %v2023 = vsel %vm2015, 1, 0
  %v2024 = vsel %vm2016, 1, 0
  %v2025 = vsel %vm2017, 1, 0
  %v2026 = vcvt.s32.f32 %v2018
  %v2027 = vcvt.s32.f32 %v2019
  %v2028 = vcvt.s32.f32 %v2020
  %v2029 = vcvt.s32.f32 %v2021
  %v2030 = vcvt.s32.f32 %v2022
  %v2031 = vcvt.s32.f32 %v2023
  %v2032 = vcvt.s32.f32 %v2024
  %v2033 = vcvt.s32.f32 %v2025
  %v2035 = vsel %vm405, %v2026, 0
  %v2038 = vsel %vm405, %v2027, 0
  %v2041 = vsel %vm405, %v2028, 0
  %v2044 = vsel %vm405, %v2029, 0
  %v2047 = vsel %vm405, %v2030, 0
  %v2050 = vsel %vm405, %v2031, 0
  %v2053 = vsel %vm405, %v2032, 0
  %v2056 = vsel %vm405, %v2033, 0
  %2058 = vmatprep.subr.mxu0 0.0
  %2059 = vmatpush1.msra.mxu0 %v375
  %2060 = vmatprep.subr.mxu0 0.0
  %2061 = vmatpush1.msra.mxu0 %v378
  %2062 = vmatprep.subr.mxu0 0.0
  %2063 = vmatpush1.msra.mxu0 %v383
  %2064 = vmatprep.subr.mxu0 0.0
  %2065 = vmatpush1.msra.mxu0 %v386
  %2066 = vmatprep.subr.mxu0 0.0
  %2067 = vmatpush1.msra.mxu0 %v391
  %2068 = vmatprep.subr.mxu0 0.0
  %2069 = vmatpush1.msra.mxu0 %v394
  %2070 = vmatprep.subr.mxu0 0.0
  %2071 = vmatpush1.msra.mxu0 %v399
  %2072 = vmatprep.subr.mxu0 0.0
  %2073 = vmatpush1.msra.mxu0 %v402
  %2074 = vmatprep.subr.mxu0 0.0
  %2075 = vmatpush1.msra.mxu0 0.0
  %2076 = vmatprep.subr.mxu0 0.0
  %2077 = vmatpush1.msra.mxu0 0.0
  %2078 = vmatprep.subr.mxu0 0.0
  %2079 = vmatpush1.msra.mxu0 0.0
  %2080 = vmatprep.subr.mxu0 0.0
  %2081 = vmatpush1.msra.mxu0 0.0
  %2082 = vmatprep.subr.mxu0 0.0
  %2083 = vmatpush1.msra.mxu0 0.0
  %2084 = vmatprep.subr.mxu0 0.0
  %2085 = vmatpush1.msra.mxu0 0.0
  %2086 = vmatprep.subr.mxu0 0.0
  %2087 = vmatpush1.msra.mxu0 0.0
  %2088 = vmatprep.subr.mxu0 0.0
  %2089 = vmatpush1.msra.mxu0 0.0
  %2090 = vmatprep.subr.mxu0 0.0
  %2091 = vmatpush1.msra.mxu0 0.0
  %2092 = vmatprep.subr.mxu0 0.0
  %2093 = vmatpush1.msra.mxu0 0.0
  %2094 = vmatprep.subr.mxu0 0.0
  %2095 = vmatpush1.msra.mxu0 0.0
  %2096 = vmatprep.subr.mxu0 0.0
  %2097 = vmatpush1.msra.mxu0 0.0
  %2098 = vmatprep.subr.mxu0 0.0
  %2099 = vmatpush1.msra.mxu0 0.0
  %2100 = vmatprep.subr.mxu0 0.0
  %2101 = vmatpush1.msra.mxu0 0.0
  %2102 = vmatprep.subr.mxu0 0.0
  %2103 = vmatpush1.msra.mxu0 0.0
  %2104 = vmatprep.subr.mxu0 0.0
  %2105 = vmatpush1.msra.mxu0 0.0
  %2106 = vmatprep.subr.mxu0 0.0
  %2107 = vmatpush1.msra.mxu0 0.0
  %2108 = vmatprep.subr.mxu0 0.0
  %2109 = vmatpush1.msra.mxu0 0.0
  %2110 = vmatprep.subr.mxu0 0.0
  %2111 = vmatpush1.msra.mxu0 0.0
  %2112 = vmatprep.subr.mxu0 0.0
  %2113 = vmatpush1.msra.mxu0 0.0
  %2114 = vmatprep.subr.mxu0 0.0
  %2115 = vmatpush1.msra.mxu0 0.0
  %2116 = vmatprep.subr.mxu0 0.0
  %2117 = vmatpush1.msra.mxu0 0.0
  %2118 = vmatprep.subr.mxu0 0.0
  %2119 = vmatpush1.msra.mxu0 0.0
  %2120 = vmatprep.subr.mxu0 0.0
  %2121 = vmatpush1.msra.mxu0 0.0
  %2122 = vmatprep.mubr.f32.mxu0 0.0
  %2123 = vmatmul.mubr.f32.gmra.mrb[0].mxu0 %v2035
  %v2124 = vpop.f32.mrb[0].mxu0
  %v2125 = vadd.f32 0.0, %v2124
  %v2126 = vpop.f32.mrb[0].mxu0
  %2127 = vmatprep.mubr.f32.mxu0 0.0
  %2128 = vmatmul.mubr.f32.gmra.mrb[0].mxu0 %v2038
  %v2129 = vpop.f32.mrb[0].mxu0
  %v2130 = vadd.f32 0.0, %v2129
  %v2131 = vpop.f32.mrb[0].mxu0
  %2132 = vmatprep.mubr.f32.mxu0 0.0
  %2133 = vmatmul.mubr.f32.gmra.mrb[0].mxu0 %v2041
  %v2134 = vpop.f32.mrb[0].mxu0
  %v2135 = vadd.f32 0.0, %v2134
  %v2136 = vpop.f32.mrb[0].mxu0
  %2137 = vmatprep.mubr.f32.mxu0 0.0
  %2138 = vmatmul.mubr.f32.gmra.mrb[0].mxu0 %v2044
  %v2139 = vpop.f32.mrb[0].mxu0
  %v2140 = vadd.f32 0.0, %v2139
  %v2141 = vpop.f32.mrb[0].mxu0
  %2142 = vmatprep.mubr.f32.mxu0 0.0
  %2143 = vmatmul.mubr.f32.gmra.mrb[0].mxu0 %v2047
  %v2144 = vpop.f32.mrb[0].mxu0
  %v2145 = vadd.f32 0.0, %v2144
  %v2146 = vpop.f32.mrb[0].mxu0
  %2147 = vmatprep.mubr.f32.mxu0 0.0
  %2148 = vmatmul.mubr.f32.gmra.mrb[0].mxu0 %v2050
  %v2149 = vpop.f32.mrb[0].mxu0
  %v2150 = vadd.f32 0.0, %v2149
  %v2151 = vpop.f32.mrb[0].mxu0
  %2152 = vmatprep.mubr.f32.mxu0 0.0
  %2153 = vmatmul.mubr.f32.gmra.mrb[0].mxu0 %v2053
  %v2154 = vpop.f32.mrb[0].mxu0
  %v2155 = vadd.f32 0.0, %v2154
  %v2156 = vpop.f32.mrb[0].mxu0
  %2157 = vmatprep.mubr.f32.mxu0 0.0
  %2158 = vmatmul.mubr.f32.gmra.mrb[0].mxu0 %v2056
  %v2159 = vpop.f32.mrb[0].mxu0
  %v2160 = vadd.f32 0.0, %v2159
  %v2161 = vpop.f32.mrb[0].mxu0
  %2162 = vdwg.mxu0
  %v2163 = vadd.f32 %v290, %v2125
  %v2164 = vadd.f32 %v293, %v2130
  %v2165 = vadd.f32 %v298, %v2135
  %v2166 = vadd.f32 %v301, %v2140
  %v2167 = vadd.f32 %v306, %v2145
  %v2168 = vadd.f32 %v309, %v2150
  %v2169 = vadd.f32 %v314, %v2155
  %v2170 = vadd.f32 %v317, %v2160
  %vm2171 = vcmp.ge.f32.partialorder %v2163, 0.0
  %vm2172 = vcmp.ge.f32.partialorder %v2164, 0.0
  %vm2173 = vcmp.ge.f32.partialorder %v2165, 0.0
  %vm2174 = vcmp.ge.f32.partialorder %v2166, 0.0
  %vm2175 = vcmp.ge.f32.partialorder %v2167, 0.0
  %vm2176 = vcmp.ge.f32.partialorder %v2168, 0.0
  %vm2177 = vcmp.ge.f32.partialorder %v2169, 0.0
  %vm2178 = vcmp.ge.f32.partialorder %v2170, 0.0
  %v2179 = vmul.f32 %v2163, 0.2
  %v2180 = vmul.f32 %v2164, 0.2
  %v2181 = vmul.f32 %v2165, 0.2
  %v2182 = vmul.f32 %v2166, 0.2
  %v2183 = vmul.f32 %v2167, 0.2
  %v2184 = vmul.f32 %v2168, 0.2
  %v2185 = vmul.f32 %v2169, 0.2
  %v2186 = vmul.f32 %v2170, 0.2
  %v2187 = vsel %vm2171, %v2163, %v2179
  %v2188 = vsel %vm2172, %v2164, %v2180
  %v2189 = vsel %vm2173, %v2165, %v2181
  %v2190 = vsel %vm2174, %v2166, %v2182
  %v2191 = vsel %vm2175, %v2167, %v2183
  %v2192 = vsel %vm2176, %v2168, %v2184
  %v2193 = vsel %vm2177, %v2169, %v2185
  %v2194 = vsel %vm2178, %v2170, %v2186
  %v2195 = vmax.f32 %v1834, %v2187
  %v2196 = vmax.f32 %v1835, %v2188
  %v2197 = vmax.f32 %v1836, %v2189
  %v2198 = vmax.f32 %v1837, %v2190
  %v2199 = vmax.f32 %v1838, %v2191
  %v2200 = vmax.f32 %v1839, %v2192
  %v2201 = vmax.f32 %v1840, %v2193
  %v2202 = vmax.f32 %v1841, %v2194
  %v2203 = vsel %vm2010, 1e+30, %v1842
  %v2204 = vsel %vm2011, 1e+30, %v1843
  %v2205 = vsel %vm2012, 1e+30, %v1844
  %v2206 = vsel %vm2013, 1e+30, %v1845
  %v2207 = vsel %vm2014, 1e+30, %v1846
  %v2208 = vsel %vm2015, 1e+30, %v1847
  %v2209 = vsel %vm2016, 1e+30, %v1848
  %v2210 = vsel %vm2017, 1e+30, %v1849
  %v2211 = vsel %vm405, %v2203, inf
  %2212 = vmin.xlane.f32.xlu0 %v2211
  %v2213 = vpop.xlane.xlu0 %2212
  %v2214 = vsel %vm405, %v2204, inf
  %2215 = vmin.xlane.f32.xlu0 %v2214
  %v2216 = vpop.xlane.xlu0 %2215
  %v2217 = vsel %vm405, %v2205, inf
  %2218 = vmin.xlane.f32.xlu0 %v2217
  %v2219 = vpop.xlane.xlu0 %2218
  %v2220 = vsel %vm405, %v2206, inf
  %2221 = vmin.xlane.f32.xlu0 %v2220
  %v2222 = vpop.xlane.xlu0 %2221
  %v2223 = vsel %vm405, %v2207, inf
  %2224 = vmin.xlane.f32.xlu0 %v2223
  %v2225 = vpop.xlane.xlu0 %2224
  %v2226 = vsel %vm405, %v2208, inf
  %2227 = vmin.xlane.f32.xlu0 %v2226
  %v2228 = vpop.xlane.xlu0 %2227
  %v2229 = vsel %vm405, %v2209, inf
  %2230 = vmin.xlane.f32.xlu0 %v2229
  %v2231 = vpop.xlane.xlu0 %2230
  %v2232 = vsel %vm405, %v2210, inf
  %2233 = vmin.xlane.f32.xlu0 %v2232
  %v2234 = vpop.xlane.xlu0 %2233
  %vm2235 = vcmp.le.f32.partialorder %v2203, %v2213
  %vm2236 = vcmp.le.f32.partialorder %v2204, %v2216
  %vm2237 = vcmp.le.f32.partialorder %v2205, %v2219
  %vm2238 = vcmp.le.f32.partialorder %v2206, %v2222
  %vm2239 = vcmp.le.f32.partialorder %v2207, %v2225
  %vm2240 = vcmp.le.f32.partialorder %v2208, %v2228
  %vm2241 = vcmp.le.f32.partialorder %v2209, %v2231
  %vm2242 = vcmp.le.f32.partialorder %v2210, %v2234
  %v2243 = vsel %vm2235, %v194, 64
  %v2244 = vsel %vm2236, %v194, 64
  %v2245 = vsel %vm2237, %v194, 64
  %v2246 = vsel %vm2238, %v194, 64
  %v2247 = vsel %vm2239, %v194, 64
  %v2248 = vsel %vm2240, %v194, 64
  %v2249 = vsel %vm2241, %v194, 64
  %v2250 = vsel %vm2242, %v194, 64
  %v2251 = vsel %vm405, %v2243, 2147483647
  %v2252 = vand.u32 %v2251, 65535
  %v2253 = vshra.s32 %v2251, 16
  %v2254 = vcvt.s32.f32 %v2252
  %v2255 = vcvt.s32.f32 %v2253
  %2256 = vmin.xlane.f32.xlu0 %v2255
  %v2257 = vpop.xlane.xlu0 %2256
  %vm2258 = vcmp.eq.f32.partialorder %v2255, %v2257
  %v2259 = vsel %vm2258, %v2254, inf
  %2260 = vmin.xlane.f32.xlu0 %v2259
  %v2261 = vpop.xlane.xlu0 %2260
  %v2262 = vcvt.f32.s32 %v2261
  %v2263 = vcvt.f32.s32 %v2257
  %v2264 = vshll.u32 %v2263, 16
  %v2265 = vadd.s32 %v2264, %v2262
  %v2266 = vsel %vm405, %v2244, 2147483647
  %v2267 = vand.u32 %v2266, 65535
  %v2268 = vshra.s32 %v2266, 16
  %v2269 = vcvt.s32.f32 %v2267
  %v2270 = vcvt.s32.f32 %v2268
  %2271 = vmin.xlane.f32.xlu0 %v2270
  %v2272 = vpop.xlane.xlu0 %2271
  %vm2273 = vcmp.eq.f32.partialorder %v2270, %v2272
  %v2274 = vsel %vm2273, %v2269, inf
  %2275 = vmin.xlane.f32.xlu0 %v2274
  %v2276 = vpop.xlane.xlu0 %2275
  %v2277 = vcvt.f32.s32 %v2276
  %v2278 = vcvt.f32.s32 %v2272
  %v2279 = vshll.u32 %v2278, 16
  %v2280 = vadd.s32 %v2279, %v2277
  %v2281 = vsel %vm405, %v2245, 2147483647
  %v2282 = vand.u32 %v2281, 65535
  %v2283 = vshra.s32 %v2281, 16
  %v2284 = vcvt.s32.f32 %v2282
  %v2285 = vcvt.s32.f32 %v2283
  %2286 = vmin.xlane.f32.xlu0 %v2285
  %v2287 = vpop.xlane.xlu0 %2286
  %vm2288 = vcmp.eq.f32.partialorder %v2285, %v2287
  %v2289 = vsel %vm2288, %v2284, inf
  %2290 = vmin.xlane.f32.xlu0 %v2289
  %v2291 = vpop.xlane.xlu0 %2290
  %v2292 = vcvt.f32.s32 %v2291
  %v2293 = vcvt.f32.s32 %v2287
  %v2294 = vshll.u32 %v2293, 16
  %v2295 = vadd.s32 %v2294, %v2292
  %v2296 = vsel %vm405, %v2246, 2147483647
  %v2297 = vand.u32 %v2296, 65535
  %v2298 = vshra.s32 %v2296, 16
  %v2299 = vcvt.s32.f32 %v2297
  %v2300 = vcvt.s32.f32 %v2298
  %2301 = vmin.xlane.f32.xlu0 %v2300
  %v2302 = vpop.xlane.xlu0 %2301
  %vm2303 = vcmp.eq.f32.partialorder %v2300, %v2302
  %v2304 = vsel %vm2303, %v2299, inf
  %2305 = vmin.xlane.f32.xlu0 %v2304
  %v2306 = vpop.xlane.xlu0 %2305
  %v2307 = vcvt.f32.s32 %v2306
  %v2308 = vcvt.f32.s32 %v2302
  %v2309 = vshll.u32 %v2308, 16
  %v2310 = vadd.s32 %v2309, %v2307
  %v2311 = vsel %vm405, %v2247, 2147483647
  %v2312 = vand.u32 %v2311, 65535
  %v2313 = vshra.s32 %v2311, 16
  %v2314 = vcvt.s32.f32 %v2312
  %v2315 = vcvt.s32.f32 %v2313
  %2316 = vmin.xlane.f32.xlu0 %v2315
  %v2317 = vpop.xlane.xlu0 %2316
  %vm2318 = vcmp.eq.f32.partialorder %v2315, %v2317
  %v2319 = vsel %vm2318, %v2314, inf
  %2320 = vmin.xlane.f32.xlu0 %v2319
  %v2321 = vpop.xlane.xlu0 %2320
  %v2322 = vcvt.f32.s32 %v2321
  %v2323 = vcvt.f32.s32 %v2317
  %v2324 = vshll.u32 %v2323, 16
  %v2325 = vadd.s32 %v2324, %v2322
  %v2326 = vsel %vm405, %v2248, 2147483647
  %v2327 = vand.u32 %v2326, 65535
  %v2328 = vshra.s32 %v2326, 16
  %v2329 = vcvt.s32.f32 %v2327
  %v2330 = vcvt.s32.f32 %v2328
  %2331 = vmin.xlane.f32.xlu0 %v2330
  %v2332 = vpop.xlane.xlu0 %2331
  %vm2333 = vcmp.eq.f32.partialorder %v2330, %v2332
  %v2334 = vsel %vm2333, %v2329, inf
  %2335 = vmin.xlane.f32.xlu0 %v2334
  %v2336 = vpop.xlane.xlu0 %2335
  %v2337 = vcvt.f32.s32 %v2336
  %v2338 = vcvt.f32.s32 %v2332
  %v2339 = vshll.u32 %v2338, 16
  %v2340 = vadd.s32 %v2339, %v2337
  %v2341 = vsel %vm405, %v2249, 2147483647
  %v2342 = vand.u32 %v2341, 65535
  %v2343 = vshra.s32 %v2341, 16
  %v2344 = vcvt.s32.f32 %v2342
  %v2345 = vcvt.s32.f32 %v2343
  %2346 = vmin.xlane.f32.xlu0 %v2345
  %v2347 = vpop.xlane.xlu0 %2346
  %vm2348 = vcmp.eq.f32.partialorder %v2345, %v2347
  %v2349 = vsel %vm2348, %v2344, inf
  %2350 = vmin.xlane.f32.xlu0 %v2349
  %v2351 = vpop.xlane.xlu0 %2350
  %v2352 = vcvt.f32.s32 %v2351
  %v2353 = vcvt.f32.s32 %v2347
  %v2354 = vshll.u32 %v2353, 16
  %v2355 = vadd.s32 %v2354, %v2352
  %v2356 = vsel %vm405, %v2250, 2147483647
  %v2357 = vand.u32 %v2356, 65535
  %v2358 = vshra.s32 %v2356, 16
  %v2359 = vcvt.s32.f32 %v2357
  %v2360 = vcvt.s32.f32 %v2358
  %2361 = vmin.xlane.f32.xlu0 %v2360
  %v2362 = vpop.xlane.xlu0 %2361
  %vm2363 = vcmp.eq.f32.partialorder %v2360, %v2362
  %v2364 = vsel %vm2363, %v2359, inf
  %2365 = vmin.xlane.f32.xlu0 %v2364
  %v2366 = vpop.xlane.xlu0 %2365
  %v2367 = vcvt.f32.s32 %v2366
  %v2368 = vcvt.f32.s32 %v2362
  %v2369 = vshll.u32 %v2368, 16
  %v2370 = vadd.s32 %v2369, %v2367
  %vm2371 = vcmp.eq.s32.totalorder %v194, %v2265
  %vm2372 = vcmp.eq.s32.totalorder %v194, %v2280
  %vm2373 = vcmp.eq.s32.totalorder %v194, %v2295
  %vm2374 = vcmp.eq.s32.totalorder %v194, %v2310
  %vm2375 = vcmp.eq.s32.totalorder %v194, %v2325
  %vm2376 = vcmp.eq.s32.totalorder %v194, %v2340
  %vm2377 = vcmp.eq.s32.totalorder %v194, %v2355
  %vm2378 = vcmp.eq.s32.totalorder %v194, %v2370
  %v2379 = vsel %vm2371, 1, 0
  %v2380 = vsel %vm2372, 1, 0
  %v2381 = vsel %vm2373, 1, 0
  %v2382 = vsel %vm2374, 1, 0
  %v2383 = vsel %vm2375, 1, 0
  %v2384 = vsel %vm2376, 1, 0
  %v2385 = vsel %vm2377, 1, 0
  %v2386 = vsel %vm2378, 1, 0
  %v2387 = vcvt.s32.f32 %v2379
  %v2388 = vcvt.s32.f32 %v2380
  %v2389 = vcvt.s32.f32 %v2381
  %v2390 = vcvt.s32.f32 %v2382
  %v2391 = vcvt.s32.f32 %v2383
  %v2392 = vcvt.s32.f32 %v2384
  %v2393 = vcvt.s32.f32 %v2385
  %v2394 = vcvt.s32.f32 %v2386
  %v2396 = vsel %vm405, %v2387, 0
  %v2399 = vsel %vm405, %v2388, 0
  %v2402 = vsel %vm405, %v2389, 0
  %v2405 = vsel %vm405, %v2390, 0
  %v2408 = vsel %vm405, %v2391, 0
  %v2411 = vsel %vm405, %v2392, 0
  %v2414 = vsel %vm405, %v2393, 0
  %v2417 = vsel %vm405, %v2394, 0
  %2419 = vmatprep.subr.mxu0 0.0
  %2420 = vmatpush1.msra.mxu0 %v375
  %2421 = vmatprep.subr.mxu0 0.0
  %2422 = vmatpush1.msra.mxu0 %v378
  %2423 = vmatprep.subr.mxu0 0.0
  %2424 = vmatpush1.msra.mxu0 %v383
  %2425 = vmatprep.subr.mxu0 0.0
  %2426 = vmatpush1.msra.mxu0 %v386
  %2427 = vmatprep.subr.mxu0 0.0
  %2428 = vmatpush1.msra.mxu0 %v391
  %2429 = vmatprep.subr.mxu0 0.0
  %2430 = vmatpush1.msra.mxu0 %v394
  %2431 = vmatprep.subr.mxu0 0.0
  %2432 = vmatpush1.msra.mxu0 %v399
  %2433 = vmatprep.subr.mxu0 0.0
  %2434 = vmatpush1.msra.mxu0 %v402
  %2435 = vmatprep.subr.mxu0 0.0
  %2436 = vmatpush1.msra.mxu0 0.0
  %2437 = vmatprep.subr.mxu0 0.0
  %2438 = vmatpush1.msra.mxu0 0.0
  %2439 = vmatprep.subr.mxu0 0.0
  %2440 = vmatpush1.msra.mxu0 0.0
  %2441 = vmatprep.subr.mxu0 0.0
  %2442 = vmatpush1.msra.mxu0 0.0
  %2443 = vmatprep.subr.mxu0 0.0
  %2444 = vmatpush1.msra.mxu0 0.0
  %2445 = vmatprep.subr.mxu0 0.0
  %2446 = vmatpush1.msra.mxu0 0.0
  %2447 = vmatprep.subr.mxu0 0.0
  %2448 = vmatpush1.msra.mxu0 0.0
  %2449 = vmatprep.subr.mxu0 0.0
  %2450 = vmatpush1.msra.mxu0 0.0
  %2451 = vmatprep.subr.mxu0 0.0
  %2452 = vmatpush1.msra.mxu0 0.0
  %2453 = vmatprep.subr.mxu0 0.0
  %2454 = vmatpush1.msra.mxu0 0.0
  %2455 = vmatprep.subr.mxu0 0.0
  %2456 = vmatpush1.msra.mxu0 0.0
  %2457 = vmatprep.subr.mxu0 0.0
  %2458 = vmatpush1.msra.mxu0 0.0
  %2459 = vmatprep.subr.mxu0 0.0
  %2460 = vmatpush1.msra.mxu0 0.0
  %2461 = vmatprep.subr.mxu0 0.0
  %2462 = vmatpush1.msra.mxu0 0.0
  %2463 = vmatprep.subr.mxu0 0.0
  %2464 = vmatpush1.msra.mxu0 0.0
  %2465 = vmatprep.subr.mxu0 0.0
  %2466 = vmatpush1.msra.mxu0 0.0
  %2467 = vmatprep.subr.mxu0 0.0
  %2468 = vmatpush1.msra.mxu0 0.0
  %2469 = vmatprep.subr.mxu0 0.0
  %2470 = vmatpush1.msra.mxu0 0.0
  %2471 = vmatprep.subr.mxu0 0.0
  %2472 = vmatpush1.msra.mxu0 0.0
  %2473 = vmatprep.subr.mxu0 0.0
  %2474 = vmatpush1.msra.mxu0 0.0
  %2475 = vmatprep.subr.mxu0 0.0
  %2476 = vmatpush1.msra.mxu0 0.0
  %2477 = vmatprep.subr.mxu0 0.0
  %2478 = vmatpush1.msra.mxu0 0.0
  %2479 = vmatprep.subr.mxu0 0.0
  %2480 = vmatpush1.msra.mxu0 0.0
  %2481 = vmatprep.subr.mxu0 0.0
  %2482 = vmatpush1.msra.mxu0 0.0
  %2483 = vmatprep.mubr.f32.mxu0 0.0
  %2484 = vmatmul.mubr.f32.gmra.mrb[0].mxu0 %v2396
  %v2485 = vpop.f32.mrb[0].mxu0
  %v2486 = vadd.f32 0.0, %v2485
  %v2487 = vpop.f32.mrb[0].mxu0
  %2488 = vmatprep.mubr.f32.mxu0 0.0
  %2489 = vmatmul.mubr.f32.gmra.mrb[0].mxu0 %v2399
  %v2490 = vpop.f32.mrb[0].mxu0
  %v2491 = vadd.f32 0.0, %v2490
  %v2492 = vpop.f32.mrb[0].mxu0
  %2493 = vmatprep.mubr.f32.mxu0 0.0
  %2494 = vmatmul.mubr.f32.gmra.mrb[0].mxu0 %v2402
  %v2495 = vpop.f32.mrb[0].mxu0
  %v2496 = vadd.f32 0.0, %v2495
  %v2497 = vpop.f32.mrb[0].mxu0
  %2498 = vmatprep.mubr.f32.mxu0 0.0
  %2499 = vmatmul.mubr.f32.gmra.mrb[0].mxu0 %v2405
  %v2500 = vpop.f32.mrb[0].mxu0
  %v2501 = vadd.f32 0.0, %v2500
  %v2502 = vpop.f32.mrb[0].mxu0
  %2503 = vmatprep.mubr.f32.mxu0 0.0
  %2504 = vmatmul.mubr.f32.gmra.mrb[0].mxu0 %v2408
  %v2505 = vpop.f32.mrb[0].mxu0
  %v2506 = vadd.f32 0.0, %v2505
  %v2507 = vpop.f32.mrb[0].mxu0
  %2508 = vmatprep.mubr.f32.mxu0 0.0
  %2509 = vmatmul.mubr.f32.gmra.mrb[0].mxu0 %v2411
  %v2510 = vpop.f32.mrb[0].mxu0
  %v2511 = vadd.f32 0.0, %v2510
  %v2512 = vpop.f32.mrb[0].mxu0
  %2513 = vmatprep.mubr.f32.mxu0 0.0
  %2514 = vmatmul.mubr.f32.gmra.mrb[0].mxu0 %v2414
  %v2515 = vpop.f32.mrb[0].mxu0
  %v2516 = vadd.f32 0.0, %v2515
  %v2517 = vpop.f32.mrb[0].mxu0
  %2518 = vmatprep.mubr.f32.mxu0 0.0
  %2519 = vmatmul.mubr.f32.gmra.mrb[0].mxu0 %v2417
  %v2520 = vpop.f32.mrb[0].mxu0
  %v2521 = vadd.f32 0.0, %v2520
  %v2522 = vpop.f32.mrb[0].mxu0
  %2523 = vdwg.mxu0
  %v2524 = vadd.f32 %v290, %v2486
  %v2525 = vadd.f32 %v293, %v2491
  %v2526 = vadd.f32 %v298, %v2496
  %v2527 = vadd.f32 %v301, %v2501
  %v2528 = vadd.f32 %v306, %v2506
  %v2529 = vadd.f32 %v309, %v2511
  %v2530 = vadd.f32 %v314, %v2516
  %v2531 = vadd.f32 %v317, %v2521
  %vm2532 = vcmp.ge.f32.partialorder %v2524, 0.0
  %vm2533 = vcmp.ge.f32.partialorder %v2525, 0.0
  %vm2534 = vcmp.ge.f32.partialorder %v2526, 0.0
  %vm2535 = vcmp.ge.f32.partialorder %v2527, 0.0
  %vm2536 = vcmp.ge.f32.partialorder %v2528, 0.0
  %vm2537 = vcmp.ge.f32.partialorder %v2529, 0.0
  %vm2538 = vcmp.ge.f32.partialorder %v2530, 0.0
  %vm2539 = vcmp.ge.f32.partialorder %v2531, 0.0
  %v2540 = vmul.f32 %v2524, 0.2
  %v2541 = vmul.f32 %v2525, 0.2
  %v2542 = vmul.f32 %v2526, 0.2
  %v2543 = vmul.f32 %v2527, 0.2
  %v2544 = vmul.f32 %v2528, 0.2
  %v2545 = vmul.f32 %v2529, 0.2
  %v2546 = vmul.f32 %v2530, 0.2
  %v2547 = vmul.f32 %v2531, 0.2
  %v2548 = vsel %vm2532, %v2524, %v2540
  %v2549 = vsel %vm2533, %v2525, %v2541
  %v2550 = vsel %vm2534, %v2526, %v2542
  %v2551 = vsel %vm2535, %v2527, %v2543
  %v2552 = vsel %vm2536, %v2528, %v2544
  %v2553 = vsel %vm2537, %v2529, %v2545
  %v2554 = vsel %vm2538, %v2530, %v2546
  %v2555 = vsel %vm2539, %v2531, %v2547
  %v2556 = vmax.f32 %v2195, %v2548
  %v2557 = vmax.f32 %v2196, %v2549
  %v2558 = vmax.f32 %v2197, %v2550
  %v2559 = vmax.f32 %v2198, %v2551
  %v2560 = vmax.f32 %v2199, %v2552
  %v2561 = vmax.f32 %v2200, %v2553
  %v2562 = vmax.f32 %v2201, %v2554
  %v2563 = vmax.f32 %v2202, %v2555
  %v2564 = vsel %vm2371, 1e+30, %v2203
  %v2565 = vsel %vm2372, 1e+30, %v2204
  %v2566 = vsel %vm2373, 1e+30, %v2205
  %v2567 = vsel %vm2374, 1e+30, %v2206
  %v2568 = vsel %vm2375, 1e+30, %v2207
  %v2569 = vsel %vm2376, 1e+30, %v2208
  %v2570 = vsel %vm2377, 1e+30, %v2209
  %v2571 = vsel %vm2378, 1e+30, %v2210
  %v2572 = vsel %vm405, %v2564, inf
  %2573 = vmin.xlane.f32.xlu0 %v2572
  %v2574 = vpop.xlane.xlu0 %2573
  %v2575 = vsel %vm405, %v2565, inf
  %2576 = vmin.xlane.f32.xlu0 %v2575
  %v2577 = vpop.xlane.xlu0 %2576
  %v2578 = vsel %vm405, %v2566, inf
  %2579 = vmin.xlane.f32.xlu0 %v2578
  %v2580 = vpop.xlane.xlu0 %2579
  %v2581 = vsel %vm405, %v2567, inf
  %2582 = vmin.xlane.f32.xlu0 %v2581
  %v2583 = vpop.xlane.xlu0 %2582
  %v2584 = vsel %vm405, %v2568, inf
  %2585 = vmin.xlane.f32.xlu0 %v2584
  %v2586 = vpop.xlane.xlu0 %2585
  %v2587 = vsel %vm405, %v2569, inf
  %2588 = vmin.xlane.f32.xlu0 %v2587
  %v2589 = vpop.xlane.xlu0 %2588
  %v2590 = vsel %vm405, %v2570, inf
  %2591 = vmin.xlane.f32.xlu0 %v2590
  %v2592 = vpop.xlane.xlu0 %2591
  %v2593 = vsel %vm405, %v2571, inf
  %2594 = vmin.xlane.f32.xlu0 %v2593
  %v2595 = vpop.xlane.xlu0 %2594
  %vm2596 = vcmp.le.f32.partialorder %v2564, %v2574
  %vm2597 = vcmp.le.f32.partialorder %v2565, %v2577
  %vm2598 = vcmp.le.f32.partialorder %v2566, %v2580
  %vm2599 = vcmp.le.f32.partialorder %v2567, %v2583
  %vm2600 = vcmp.le.f32.partialorder %v2568, %v2586
  %vm2601 = vcmp.le.f32.partialorder %v2569, %v2589
  %vm2602 = vcmp.le.f32.partialorder %v2570, %v2592
  %vm2603 = vcmp.le.f32.partialorder %v2571, %v2595
  %v2604 = vsel %vm2596, %v194, 64
  %v2605 = vsel %vm2597, %v194, 64
  %v2606 = vsel %vm2598, %v194, 64
  %v2607 = vsel %vm2599, %v194, 64
  %v2608 = vsel %vm2600, %v194, 64
  %v2609 = vsel %vm2601, %v194, 64
  %v2610 = vsel %vm2602, %v194, 64
  %v2611 = vsel %vm2603, %v194, 64
  %v2612 = vsel %vm405, %v2604, 2147483647
  %v2613 = vand.u32 %v2612, 65535
  %v2614 = vshra.s32 %v2612, 16
  %v2615 = vcvt.s32.f32 %v2613
  %v2616 = vcvt.s32.f32 %v2614
  %2617 = vmin.xlane.f32.xlu0 %v2616
  %v2618 = vpop.xlane.xlu0 %2617
  %vm2619 = vcmp.eq.f32.partialorder %v2616, %v2618
  %v2620 = vsel %vm2619, %v2615, inf
  %2621 = vmin.xlane.f32.xlu0 %v2620
  %v2622 = vpop.xlane.xlu0 %2621
  %v2623 = vcvt.f32.s32 %v2622
  %v2624 = vcvt.f32.s32 %v2618
  %v2625 = vshll.u32 %v2624, 16
  %v2626 = vadd.s32 %v2625, %v2623
  %v2627 = vsel %vm405, %v2605, 2147483647
  %v2628 = vand.u32 %v2627, 65535
  %v2629 = vshra.s32 %v2627, 16
  %v2630 = vcvt.s32.f32 %v2628
  %v2631 = vcvt.s32.f32 %v2629
  %2632 = vmin.xlane.f32.xlu0 %v2631
  %v2633 = vpop.xlane.xlu0 %2632
  %vm2634 = vcmp.eq.f32.partialorder %v2631, %v2633
  %v2635 = vsel %vm2634, %v2630, inf
  %2636 = vmin.xlane.f32.xlu0 %v2635
  %v2637 = vpop.xlane.xlu0 %2636
  %v2638 = vcvt.f32.s32 %v2637
  %v2639 = vcvt.f32.s32 %v2633
  %v2640 = vshll.u32 %v2639, 16
  %v2641 = vadd.s32 %v2640, %v2638
  %v2642 = vsel %vm405, %v2606, 2147483647
  %v2643 = vand.u32 %v2642, 65535
  %v2644 = vshra.s32 %v2642, 16
  %v2645 = vcvt.s32.f32 %v2643
  %v2646 = vcvt.s32.f32 %v2644
  %2647 = vmin.xlane.f32.xlu0 %v2646
  %v2648 = vpop.xlane.xlu0 %2647
  %vm2649 = vcmp.eq.f32.partialorder %v2646, %v2648
  %v2650 = vsel %vm2649, %v2645, inf
  %2651 = vmin.xlane.f32.xlu0 %v2650
  %v2652 = vpop.xlane.xlu0 %2651
  %v2653 = vcvt.f32.s32 %v2652
  %v2654 = vcvt.f32.s32 %v2648
  %v2655 = vshll.u32 %v2654, 16
  %v2656 = vadd.s32 %v2655, %v2653
  %v2657 = vsel %vm405, %v2607, 2147483647
  %v2658 = vand.u32 %v2657, 65535
  %v2659 = vshra.s32 %v2657, 16
  %v2660 = vcvt.s32.f32 %v2658
  %v2661 = vcvt.s32.f32 %v2659
  %2662 = vmin.xlane.f32.xlu0 %v2661
  %v2663 = vpop.xlane.xlu0 %2662
  %vm2664 = vcmp.eq.f32.partialorder %v2661, %v2663
  %v2665 = vsel %vm2664, %v2660, inf
  %2666 = vmin.xlane.f32.xlu0 %v2665
  %v2667 = vpop.xlane.xlu0 %2666
  %v2668 = vcvt.f32.s32 %v2667
  %v2669 = vcvt.f32.s32 %v2663
  %v2670 = vshll.u32 %v2669, 16
  %v2671 = vadd.s32 %v2670, %v2668
  %v2672 = vsel %vm405, %v2608, 2147483647
  %v2673 = vand.u32 %v2672, 65535
  %v2674 = vshra.s32 %v2672, 16
  %v2675 = vcvt.s32.f32 %v2673
  %v2676 = vcvt.s32.f32 %v2674
  %2677 = vmin.xlane.f32.xlu0 %v2676
  %v2678 = vpop.xlane.xlu0 %2677
  %vm2679 = vcmp.eq.f32.partialorder %v2676, %v2678
  %v2680 = vsel %vm2679, %v2675, inf
  %2681 = vmin.xlane.f32.xlu0 %v2680
  %v2682 = vpop.xlane.xlu0 %2681
  %v2683 = vcvt.f32.s32 %v2682
  %v2684 = vcvt.f32.s32 %v2678
  %v2685 = vshll.u32 %v2684, 16
  %v2686 = vadd.s32 %v2685, %v2683
  %v2687 = vsel %vm405, %v2609, 2147483647
  %v2688 = vand.u32 %v2687, 65535
  %v2689 = vshra.s32 %v2687, 16
  %v2690 = vcvt.s32.f32 %v2688
  %v2691 = vcvt.s32.f32 %v2689
  %2692 = vmin.xlane.f32.xlu0 %v2691
  %v2693 = vpop.xlane.xlu0 %2692
  %vm2694 = vcmp.eq.f32.partialorder %v2691, %v2693
  %v2695 = vsel %vm2694, %v2690, inf
  %2696 = vmin.xlane.f32.xlu0 %v2695
  %v2697 = vpop.xlane.xlu0 %2696
  %v2698 = vcvt.f32.s32 %v2697
  %v2699 = vcvt.f32.s32 %v2693
  %v2700 = vshll.u32 %v2699, 16
  %v2701 = vadd.s32 %v2700, %v2698
  %v2702 = vsel %vm405, %v2610, 2147483647
  %v2703 = vand.u32 %v2702, 65535
  %v2704 = vshra.s32 %v2702, 16
  %v2705 = vcvt.s32.f32 %v2703
  %v2706 = vcvt.s32.f32 %v2704
  %2707 = vmin.xlane.f32.xlu0 %v2706
  %v2708 = vpop.xlane.xlu0 %2707
  %vm2709 = vcmp.eq.f32.partialorder %v2706, %v2708
  %v2710 = vsel %vm2709, %v2705, inf
  %2711 = vmin.xlane.f32.xlu0 %v2710
  %v2712 = vpop.xlane.xlu0 %2711
  %v2713 = vcvt.f32.s32 %v2712
  %v2714 = vcvt.f32.s32 %v2708
  %v2715 = vshll.u32 %v2714, 16
  %v2716 = vadd.s32 %v2715, %v2713
  %v2717 = vsel %vm405, %v2611, 2147483647
  %v2718 = vand.u32 %v2717, 65535
  %v2719 = vshra.s32 %v2717, 16
  %v2720 = vcvt.s32.f32 %v2718
  %v2721 = vcvt.s32.f32 %v2719
  %2722 = vmin.xlane.f32.xlu0 %v2721
  %v2723 = vpop.xlane.xlu0 %2722
  %vm2724 = vcmp.eq.f32.partialorder %v2721, %v2723
  %v2725 = vsel %vm2724, %v2720, inf
  %2726 = vmin.xlane.f32.xlu0 %v2725
  %v2727 = vpop.xlane.xlu0 %2726
  %v2728 = vcvt.f32.s32 %v2727
  %v2729 = vcvt.f32.s32 %v2723
  %v2730 = vshll.u32 %v2729, 16
  %v2731 = vadd.s32 %v2730, %v2728
  %vm2732 = vcmp.eq.s32.totalorder %v194, %v2626
  %vm2733 = vcmp.eq.s32.totalorder %v194, %v2641
  %vm2734 = vcmp.eq.s32.totalorder %v194, %v2656
  %vm2735 = vcmp.eq.s32.totalorder %v194, %v2671
  %vm2736 = vcmp.eq.s32.totalorder %v194, %v2686
  %vm2737 = vcmp.eq.s32.totalorder %v194, %v2701
  %vm2738 = vcmp.eq.s32.totalorder %v194, %v2716
  %vm2739 = vcmp.eq.s32.totalorder %v194, %v2731
  %v2740 = vsel %vm2732, 1, 0
  %v2741 = vsel %vm2733, 1, 0
  %v2742 = vsel %vm2734, 1, 0
  %v2743 = vsel %vm2735, 1, 0
  %v2744 = vsel %vm2736, 1, 0
  %v2745 = vsel %vm2737, 1, 0
  %v2746 = vsel %vm2738, 1, 0
  %v2747 = vsel %vm2739, 1, 0
  %v2748 = vcvt.s32.f32 %v2740
  %v2749 = vcvt.s32.f32 %v2741
  %v2750 = vcvt.s32.f32 %v2742
  %v2751 = vcvt.s32.f32 %v2743
  %v2752 = vcvt.s32.f32 %v2744
  %v2753 = vcvt.s32.f32 %v2745
  %v2754 = vcvt.s32.f32 %v2746
  %v2755 = vcvt.s32.f32 %v2747
  %v2757 = vsel %vm405, %v2748, 0
  %v2760 = vsel %vm405, %v2749, 0
  %v2763 = vsel %vm405, %v2750, 0
  %v2766 = vsel %vm405, %v2751, 0
  %v2769 = vsel %vm405, %v2752, 0
  %v2772 = vsel %vm405, %v2753, 0
  %v2775 = vsel %vm405, %v2754, 0
  %v2778 = vsel %vm405, %v2755, 0
  %2780 = vmatprep.subr.mxu0 0.0
  %2781 = vmatpush1.msra.mxu0 %v375
  %2782 = vmatprep.subr.mxu0 0.0
  %2783 = vmatpush1.msra.mxu0 %v378
  %2784 = vmatprep.subr.mxu0 0.0
  %2785 = vmatpush1.msra.mxu0 %v383
  %2786 = vmatprep.subr.mxu0 0.0
  %2787 = vmatpush1.msra.mxu0 %v386
  %2788 = vmatprep.subr.mxu0 0.0
  %2789 = vmatpush1.msra.mxu0 %v391
  %2790 = vmatprep.subr.mxu0 0.0
  %2791 = vmatpush1.msra.mxu0 %v394
  %2792 = vmatprep.subr.mxu0 0.0
  %2793 = vmatpush1.msra.mxu0 %v399
  %2794 = vmatprep.subr.mxu0 0.0
  %2795 = vmatpush1.msra.mxu0 %v402
  %2796 = vmatprep.subr.mxu0 0.0
  %2797 = vmatpush1.msra.mxu0 0.0
  %2798 = vmatprep.subr.mxu0 0.0
  %2799 = vmatpush1.msra.mxu0 0.0
  %2800 = vmatprep.subr.mxu0 0.0
  %2801 = vmatpush1.msra.mxu0 0.0
  %2802 = vmatprep.subr.mxu0 0.0
  %2803 = vmatpush1.msra.mxu0 0.0
  %2804 = vmatprep.subr.mxu0 0.0
  %2805 = vmatpush1.msra.mxu0 0.0
  %2806 = vmatprep.subr.mxu0 0.0
  %2807 = vmatpush1.msra.mxu0 0.0
  %2808 = vmatprep.subr.mxu0 0.0
  %2809 = vmatpush1.msra.mxu0 0.0
  %2810 = vmatprep.subr.mxu0 0.0
  %2811 = vmatpush1.msra.mxu0 0.0
  %2812 = vmatprep.subr.mxu0 0.0
  %2813 = vmatpush1.msra.mxu0 0.0
  %2814 = vmatprep.subr.mxu0 0.0
  %2815 = vmatpush1.msra.mxu0 0.0
  %2816 = vmatprep.subr.mxu0 0.0
  %2817 = vmatpush1.msra.mxu0 0.0
  %2818 = vmatprep.subr.mxu0 0.0
  %2819 = vmatpush1.msra.mxu0 0.0
  %2820 = vmatprep.subr.mxu0 0.0
  %2821 = vmatpush1.msra.mxu0 0.0
  %2822 = vmatprep.subr.mxu0 0.0
  %2823 = vmatpush1.msra.mxu0 0.0
  %2824 = vmatprep.subr.mxu0 0.0
  %2825 = vmatpush1.msra.mxu0 0.0
  %2826 = vmatprep.subr.mxu0 0.0
  %2827 = vmatpush1.msra.mxu0 0.0
  %2828 = vmatprep.subr.mxu0 0.0
  %2829 = vmatpush1.msra.mxu0 0.0
  %2830 = vmatprep.subr.mxu0 0.0
  %2831 = vmatpush1.msra.mxu0 0.0
  %2832 = vmatprep.subr.mxu0 0.0
  %2833 = vmatpush1.msra.mxu0 0.0
  %2834 = vmatprep.subr.mxu0 0.0
  %2835 = vmatpush1.msra.mxu0 0.0
  %2836 = vmatprep.subr.mxu0 0.0
  %2837 = vmatpush1.msra.mxu0 0.0
  %2838 = vmatprep.subr.mxu0 0.0
  %2839 = vmatpush1.msra.mxu0 0.0
  %2840 = vmatprep.subr.mxu0 0.0
  %2841 = vmatpush1.msra.mxu0 0.0
  %2842 = vmatprep.subr.mxu0 0.0
  %2843 = vmatpush1.msra.mxu0 0.0
  %2844 = vmatprep.mubr.f32.mxu0 0.0
  %2845 = vmatmul.mubr.f32.gmra.mrb[0].mxu0 %v2757
  %v2846 = vpop.f32.mrb[0].mxu0
  %v2847 = vadd.f32 0.0, %v2846
  %v2848 = vpop.f32.mrb[0].mxu0
  %2849 = vmatprep.mubr.f32.mxu0 0.0
  %2850 = vmatmul.mubr.f32.gmra.mrb[0].mxu0 %v2760
  %v2851 = vpop.f32.mrb[0].mxu0
  %v2852 = vadd.f32 0.0, %v2851
  %v2853 = vpop.f32.mrb[0].mxu0
  %2854 = vmatprep.mubr.f32.mxu0 0.0
  %2855 = vmatmul.mubr.f32.gmra.mrb[0].mxu0 %v2763
  %v2856 = vpop.f32.mrb[0].mxu0
  %v2857 = vadd.f32 0.0, %v2856
  %v2858 = vpop.f32.mrb[0].mxu0
  %2859 = vmatprep.mubr.f32.mxu0 0.0
  %2860 = vmatmul.mubr.f32.gmra.mrb[0].mxu0 %v2766
  %v2861 = vpop.f32.mrb[0].mxu0
  %v2862 = vadd.f32 0.0, %v2861
  %v2863 = vpop.f32.mrb[0].mxu0
  %2864 = vmatprep.mubr.f32.mxu0 0.0
  %2865 = vmatmul.mubr.f32.gmra.mrb[0].mxu0 %v2769
  %v2866 = vpop.f32.mrb[0].mxu0
  %v2867 = vadd.f32 0.0, %v2866
  %v2868 = vpop.f32.mrb[0].mxu0
  %2869 = vmatprep.mubr.f32.mxu0 0.0
  %2870 = vmatmul.mubr.f32.gmra.mrb[0].mxu0 %v2772
  %v2871 = vpop.f32.mrb[0].mxu0
  %v2872 = vadd.f32 0.0, %v2871
  %v2873 = vpop.f32.mrb[0].mxu0
  %2874 = vmatprep.mubr.f32.mxu0 0.0
  %2875 = vmatmul.mubr.f32.gmra.mrb[0].mxu0 %v2775
  %v2876 = vpop.f32.mrb[0].mxu0
  %v2877 = vadd.f32 0.0, %v2876
  %v2878 = vpop.f32.mrb[0].mxu0
  %2879 = vmatprep.mubr.f32.mxu0 0.0
  %2880 = vmatmul.mubr.f32.gmra.mrb[0].mxu0 %v2778
  %v2881 = vpop.f32.mrb[0].mxu0
  %v2882 = vadd.f32 0.0, %v2881
  %v2883 = vpop.f32.mrb[0].mxu0
  %2884 = vdwg.mxu0
  %v2885 = vadd.f32 %v290, %v2847
  %v2886 = vadd.f32 %v293, %v2852
  %v2887 = vadd.f32 %v298, %v2857
  %v2888 = vadd.f32 %v301, %v2862
  %v2889 = vadd.f32 %v306, %v2867
  %v2890 = vadd.f32 %v309, %v2872
  %v2891 = vadd.f32 %v314, %v2877
  %v2892 = vadd.f32 %v317, %v2882
  %vm2893 = vcmp.ge.f32.partialorder %v2885, 0.0
  %vm2894 = vcmp.ge.f32.partialorder %v2886, 0.0
  %vm2895 = vcmp.ge.f32.partialorder %v2887, 0.0
  %vm2896 = vcmp.ge.f32.partialorder %v2888, 0.0
  %vm2897 = vcmp.ge.f32.partialorder %v2889, 0.0
  %vm2898 = vcmp.ge.f32.partialorder %v2890, 0.0
  %vm2899 = vcmp.ge.f32.partialorder %v2891, 0.0
  %vm2900 = vcmp.ge.f32.partialorder %v2892, 0.0
  %v2901 = vmul.f32 %v2885, 0.2
  %v2902 = vmul.f32 %v2886, 0.2
  %v2903 = vmul.f32 %v2887, 0.2
  %v2904 = vmul.f32 %v2888, 0.2
  %v2905 = vmul.f32 %v2889, 0.2
  %v2906 = vmul.f32 %v2890, 0.2
  %v2907 = vmul.f32 %v2891, 0.2
  %v2908 = vmul.f32 %v2892, 0.2
  %v2909 = vsel %vm2893, %v2885, %v2901
  %v2910 = vsel %vm2894, %v2886, %v2902
  %v2911 = vsel %vm2895, %v2887, %v2903
  %v2912 = vsel %vm2896, %v2888, %v2904
  %v2913 = vsel %vm2897, %v2889, %v2905
  %v2914 = vsel %vm2898, %v2890, %v2906
  %v2915 = vsel %vm2899, %v2891, %v2907
  %v2916 = vsel %vm2900, %v2892, %v2908
  %v2917 = vmax.f32 %v2556, %v2909
  %v2918 = vmax.f32 %v2557, %v2910
  %v2919 = vmax.f32 %v2558, %v2911
  %v2920 = vmax.f32 %v2559, %v2912
  %v2921 = vmax.f32 %v2560, %v2913
  %v2922 = vmax.f32 %v2561, %v2914
  %v2923 = vmax.f32 %v2562, %v2915
  %v2924 = vmax.f32 %v2563, %v2916
  %v2925 = vsel %vm2732, 1e+30, %v2564
  %v2926 = vsel %vm2733, 1e+30, %v2565
  %v2927 = vsel %vm2734, 1e+30, %v2566
  %v2928 = vsel %vm2735, 1e+30, %v2567
  %v2929 = vsel %vm2736, 1e+30, %v2568
  %v2930 = vsel %vm2737, 1e+30, %v2569
  %v2931 = vsel %vm2738, 1e+30, %v2570
  %v2932 = vsel %vm2739, 1e+30, %v2571
  %v2933 = vsel %vm405, %v2925, inf
  %2934 = vmin.xlane.f32.xlu0 %v2933
  %v2935 = vpop.xlane.xlu0 %2934
  %v2936 = vsel %vm405, %v2926, inf
  %2937 = vmin.xlane.f32.xlu0 %v2936
  %v2938 = vpop.xlane.xlu0 %2937
  %v2939 = vsel %vm405, %v2927, inf
  %2940 = vmin.xlane.f32.xlu0 %v2939
  %v2941 = vpop.xlane.xlu0 %2940
  %v2942 = vsel %vm405, %v2928, inf
  %2943 = vmin.xlane.f32.xlu0 %v2942
  %v2944 = vpop.xlane.xlu0 %2943
  %v2945 = vsel %vm405, %v2929, inf
  %2946 = vmin.xlane.f32.xlu0 %v2945
  %v2947 = vpop.xlane.xlu0 %2946
  %v2948 = vsel %vm405, %v2930, inf
  %2949 = vmin.xlane.f32.xlu0 %v2948
  %v2950 = vpop.xlane.xlu0 %2949
  %v2951 = vsel %vm405, %v2931, inf
  %2952 = vmin.xlane.f32.xlu0 %v2951
  %v2953 = vpop.xlane.xlu0 %2952
  %v2954 = vsel %vm405, %v2932, inf
  %2955 = vmin.xlane.f32.xlu0 %v2954
  %v2956 = vpop.xlane.xlu0 %2955
  %vm2957 = vcmp.le.f32.partialorder %v2925, %v2935
  %vm2958 = vcmp.le.f32.partialorder %v2926, %v2938
  %vm2959 = vcmp.le.f32.partialorder %v2927, %v2941
  %vm2960 = vcmp.le.f32.partialorder %v2928, %v2944
  %vm2961 = vcmp.le.f32.partialorder %v2929, %v2947
  %vm2962 = vcmp.le.f32.partialorder %v2930, %v2950
  %vm2963 = vcmp.le.f32.partialorder %v2931, %v2953
  %vm2964 = vcmp.le.f32.partialorder %v2932, %v2956
  %v2965 = vsel %vm2957, %v194, 64
  %v2966 = vsel %vm2958, %v194, 64
  %v2967 = vsel %vm2959, %v194, 64
  %v2968 = vsel %vm2960, %v194, 64
  %v2969 = vsel %vm2961, %v194, 64
  %v2970 = vsel %vm2962, %v194, 64
  %v2971 = vsel %vm2963, %v194, 64
  %v2972 = vsel %vm2964, %v194, 64
  %v2973 = vsel %vm405, %v2965, 2147483647
  %v2974 = vand.u32 %v2973, 65535
  %v2975 = vshra.s32 %v2973, 16
  %v2976 = vcvt.s32.f32 %v2974
  %v2977 = vcvt.s32.f32 %v2975
  %2978 = vmin.xlane.f32.xlu0 %v2977
  %v2979 = vpop.xlane.xlu0 %2978
  %vm2980 = vcmp.eq.f32.partialorder %v2977, %v2979
  %v2981 = vsel %vm2980, %v2976, inf
  %2982 = vmin.xlane.f32.xlu0 %v2981
  %v2983 = vpop.xlane.xlu0 %2982
  %v2984 = vcvt.f32.s32 %v2983
  %v2985 = vcvt.f32.s32 %v2979
  %v2986 = vshll.u32 %v2985, 16
  %v2987 = vadd.s32 %v2986, %v2984
  %v2988 = vsel %vm405, %v2966, 2147483647
  %v2989 = vand.u32 %v2988, 65535
  %v2990 = vshra.s32 %v2988, 16
  %v2991 = vcvt.s32.f32 %v2989
  %v2992 = vcvt.s32.f32 %v2990
  %2993 = vmin.xlane.f32.xlu0 %v2992
  %v2994 = vpop.xlane.xlu0 %2993
  %vm2995 = vcmp.eq.f32.partialorder %v2992, %v2994
  %v2996 = vsel %vm2995, %v2991, inf
  %2997 = vmin.xlane.f32.xlu0 %v2996
  %v2998 = vpop.xlane.xlu0 %2997
  %v2999 = vcvt.f32.s32 %v2998
  %v3000 = vcvt.f32.s32 %v2994
  %v3001 = vshll.u32 %v3000, 16
  %v3002 = vadd.s32 %v3001, %v2999
  %v3003 = vsel %vm405, %v2967, 2147483647
  %v3004 = vand.u32 %v3003, 65535
  %v3005 = vshra.s32 %v3003, 16
  %v3006 = vcvt.s32.f32 %v3004
  %v3007 = vcvt.s32.f32 %v3005
  %3008 = vmin.xlane.f32.xlu0 %v3007
  %v3009 = vpop.xlane.xlu0 %3008
  %vm3010 = vcmp.eq.f32.partialorder %v3007, %v3009
  %v3011 = vsel %vm3010, %v3006, inf
  %3012 = vmin.xlane.f32.xlu0 %v3011
  %v3013 = vpop.xlane.xlu0 %3012
  %v3014 = vcvt.f32.s32 %v3013
  %v3015 = vcvt.f32.s32 %v3009
  %v3016 = vshll.u32 %v3015, 16
  %v3017 = vadd.s32 %v3016, %v3014
  %v3018 = vsel %vm405, %v2968, 2147483647
  %v3019 = vand.u32 %v3018, 65535
  %v3020 = vshra.s32 %v3018, 16
  %v3021 = vcvt.s32.f32 %v3019
  %v3022 = vcvt.s32.f32 %v3020
  %3023 = vmin.xlane.f32.xlu0 %v3022
  %v3024 = vpop.xlane.xlu0 %3023
  %vm3025 = vcmp.eq.f32.partialorder %v3022, %v3024
  %v3026 = vsel %vm3025, %v3021, inf
  %3027 = vmin.xlane.f32.xlu0 %v3026
  %v3028 = vpop.xlane.xlu0 %3027
  %v3029 = vcvt.f32.s32 %v3028
  %v3030 = vcvt.f32.s32 %v3024
  %v3031 = vshll.u32 %v3030, 16
  %v3032 = vadd.s32 %v3031, %v3029
  %v3033 = vsel %vm405, %v2969, 2147483647
  %v3034 = vand.u32 %v3033, 65535
  %v3035 = vshra.s32 %v3033, 16
  %v3036 = vcvt.s32.f32 %v3034
  %v3037 = vcvt.s32.f32 %v3035
  %3038 = vmin.xlane.f32.xlu0 %v3037
  %v3039 = vpop.xlane.xlu0 %3038
  %vm3040 = vcmp.eq.f32.partialorder %v3037, %v3039
  %v3041 = vsel %vm3040, %v3036, inf
  %3042 = vmin.xlane.f32.xlu0 %v3041
  %v3043 = vpop.xlane.xlu0 %3042
  %v3044 = vcvt.f32.s32 %v3043
  %v3045 = vcvt.f32.s32 %v3039
  %v3046 = vshll.u32 %v3045, 16
  %v3047 = vadd.s32 %v3046, %v3044
  %v3048 = vsel %vm405, %v2970, 2147483647
  %v3049 = vand.u32 %v3048, 65535
  %v3050 = vshra.s32 %v3048, 16
  %v3051 = vcvt.s32.f32 %v3049
  %v3052 = vcvt.s32.f32 %v3050
  %3053 = vmin.xlane.f32.xlu0 %v3052
  %v3054 = vpop.xlane.xlu0 %3053
  %vm3055 = vcmp.eq.f32.partialorder %v3052, %v3054
  %v3056 = vsel %vm3055, %v3051, inf
  %3057 = vmin.xlane.f32.xlu0 %v3056
  %v3058 = vpop.xlane.xlu0 %3057
  %v3059 = vcvt.f32.s32 %v3058
  %v3060 = vcvt.f32.s32 %v3054
  %v3061 = vshll.u32 %v3060, 16
  %v3062 = vadd.s32 %v3061, %v3059
  %v3063 = vsel %vm405, %v2971, 2147483647
  %v3064 = vand.u32 %v3063, 65535
  %v3065 = vshra.s32 %v3063, 16
  %v3066 = vcvt.s32.f32 %v3064
  %v3067 = vcvt.s32.f32 %v3065
  %3068 = vmin.xlane.f32.xlu0 %v3067
  %v3069 = vpop.xlane.xlu0 %3068
  %vm3070 = vcmp.eq.f32.partialorder %v3067, %v3069
  %v3071 = vsel %vm3070, %v3066, inf
  %3072 = vmin.xlane.f32.xlu0 %v3071
  %v3073 = vpop.xlane.xlu0 %3072
  %v3074 = vcvt.f32.s32 %v3073
  %v3075 = vcvt.f32.s32 %v3069
  %v3076 = vshll.u32 %v3075, 16
  %v3077 = vadd.s32 %v3076, %v3074
  %v3078 = vsel %vm405, %v2972, 2147483647
  %v3079 = vand.u32 %v3078, 65535
  %v3080 = vshra.s32 %v3078, 16
  %v3081 = vcvt.s32.f32 %v3079
  %v3082 = vcvt.s32.f32 %v3080
  %3083 = vmin.xlane.f32.xlu0 %v3082
  %v3084 = vpop.xlane.xlu0 %3083
  %vm3085 = vcmp.eq.f32.partialorder %v3082, %v3084
  %v3086 = vsel %vm3085, %v3081, inf
  %3087 = vmin.xlane.f32.xlu0 %v3086
  %v3088 = vpop.xlane.xlu0 %3087
  %v3089 = vcvt.f32.s32 %v3088
  %v3090 = vcvt.f32.s32 %v3084
  %v3091 = vshll.u32 %v3090, 16
  %v3092 = vadd.s32 %v3091, %v3089
  %vm3093 = vcmp.eq.s32.totalorder %v194, %v2987
  %vm3094 = vcmp.eq.s32.totalorder %v194, %v3002
  %vm3095 = vcmp.eq.s32.totalorder %v194, %v3017
  %vm3096 = vcmp.eq.s32.totalorder %v194, %v3032
  %vm3097 = vcmp.eq.s32.totalorder %v194, %v3047
  %vm3098 = vcmp.eq.s32.totalorder %v194, %v3062
  %vm3099 = vcmp.eq.s32.totalorder %v194, %v3077
  %vm3100 = vcmp.eq.s32.totalorder %v194, %v3092
  %v3101 = vsel %vm3093, 1, 0
  %v3102 = vsel %vm3094, 1, 0
  %v3103 = vsel %vm3095, 1, 0
  %v3104 = vsel %vm3096, 1, 0
  %v3105 = vsel %vm3097, 1, 0
  %v3106 = vsel %vm3098, 1, 0
  %v3107 = vsel %vm3099, 1, 0
  %v3108 = vsel %vm3100, 1, 0
  %v3109 = vcvt.s32.f32 %v3101
  %v3110 = vcvt.s32.f32 %v3102
  %v3111 = vcvt.s32.f32 %v3103
  %v3112 = vcvt.s32.f32 %v3104
  %v3113 = vcvt.s32.f32 %v3105
  %v3114 = vcvt.s32.f32 %v3106
  %v3115 = vcvt.s32.f32 %v3107
  %v3116 = vcvt.s32.f32 %v3108
  %v3118 = vsel %vm405, %v3109, 0
  %v3121 = vsel %vm405, %v3110, 0
  %v3124 = vsel %vm405, %v3111, 0
  %v3127 = vsel %vm405, %v3112, 0
  %v3130 = vsel %vm405, %v3113, 0
  %v3133 = vsel %vm405, %v3114, 0
  %v3136 = vsel %vm405, %v3115, 0
  %v3139 = vsel %vm405, %v3116, 0
  %3141 = vmatprep.subr.mxu0 0.0
  %3142 = vmatpush1.msra.mxu0 %v375
  %3143 = vmatprep.subr.mxu0 0.0
  %3144 = vmatpush1.msra.mxu0 %v378
  %3145 = vmatprep.subr.mxu0 0.0
  %3146 = vmatpush1.msra.mxu0 %v383
  %3147 = vmatprep.subr.mxu0 0.0
  %3148 = vmatpush1.msra.mxu0 %v386
  %3149 = vmatprep.subr.mxu0 0.0
  %3150 = vmatpush1.msra.mxu0 %v391
  %3151 = vmatprep.subr.mxu0 0.0
  %3152 = vmatpush1.msra.mxu0 %v394
  %3153 = vmatprep.subr.mxu0 0.0
  %3154 = vmatpush1.msra.mxu0 %v399
  %3155 = vmatprep.subr.mxu0 0.0
  %3156 = vmatpush1.msra.mxu0 %v402
  %3157 = vmatprep.subr.mxu0 0.0
  %3158 = vmatpush1.msra.mxu0 0.0
  %3159 = vmatprep.subr.mxu0 0.0
  %3160 = vmatpush1.msra.mxu0 0.0
  %3161 = vmatprep.subr.mxu0 0.0
  %3162 = vmatpush1.msra.mxu0 0.0
  %3163 = vmatprep.subr.mxu0 0.0
  %3164 = vmatpush1.msra.mxu0 0.0
  %3165 = vmatprep.subr.mxu0 0.0
  %3166 = vmatpush1.msra.mxu0 0.0
  %3167 = vmatprep.subr.mxu0 0.0
  %3168 = vmatpush1.msra.mxu0 0.0
  %3169 = vmatprep.subr.mxu0 0.0
  %3170 = vmatpush1.msra.mxu0 0.0
  %3171 = vmatprep.subr.mxu0 0.0
  %3172 = vmatpush1.msra.mxu0 0.0
  %3173 = vmatprep.subr.mxu0 0.0
  %3174 = vmatpush1.msra.mxu0 0.0
  %3175 = vmatprep.subr.mxu0 0.0
  %3176 = vmatpush1.msra.mxu0 0.0
  %3177 = vmatprep.subr.mxu0 0.0
  %3178 = vmatpush1.msra.mxu0 0.0
  %3179 = vmatprep.subr.mxu0 0.0
  %3180 = vmatpush1.msra.mxu0 0.0
  %3181 = vmatprep.subr.mxu0 0.0
  %3182 = vmatpush1.msra.mxu0 0.0
  %3183 = vmatprep.subr.mxu0 0.0
  %3184 = vmatpush1.msra.mxu0 0.0
  %3185 = vmatprep.subr.mxu0 0.0
  %3186 = vmatpush1.msra.mxu0 0.0
  %3187 = vmatprep.subr.mxu0 0.0
  %3188 = vmatpush1.msra.mxu0 0.0
  %3189 = vmatprep.subr.mxu0 0.0
  %3190 = vmatpush1.msra.mxu0 0.0
  %3191 = vmatprep.subr.mxu0 0.0
  %3192 = vmatpush1.msra.mxu0 0.0
  %3193 = vmatprep.subr.mxu0 0.0
  %3194 = vmatpush1.msra.mxu0 0.0
  %3195 = vmatprep.subr.mxu0 0.0
  %3196 = vmatpush1.msra.mxu0 0.0
  %3197 = vmatprep.subr.mxu0 0.0
  %3198 = vmatpush1.msra.mxu0 0.0
  %3199 = vmatprep.subr.mxu0 0.0
  %3200 = vmatpush1.msra.mxu0 0.0
  %3201 = vmatprep.subr.mxu0 0.0
  %3202 = vmatpush1.msra.mxu0 0.0
  %3203 = vmatprep.subr.mxu0 0.0
  %3204 = vmatpush1.msra.mxu0 0.0
  %3205 = vmatprep.mubr.f32.mxu0 0.0
  %3206 = vmatmul.mubr.f32.gmra.mrb[0].mxu0 %v3118
  %v3207 = vpop.f32.mrb[0].mxu0
  %v3208 = vadd.f32 0.0, %v3207
  %v3209 = vpop.f32.mrb[0].mxu0
  %3210 = vmatprep.mubr.f32.mxu0 0.0
  %3211 = vmatmul.mubr.f32.gmra.mrb[0].mxu0 %v3121
  %v3212 = vpop.f32.mrb[0].mxu0
  %v3213 = vadd.f32 0.0, %v3212
  %v3214 = vpop.f32.mrb[0].mxu0
  %3215 = vmatprep.mubr.f32.mxu0 0.0
  %3216 = vmatmul.mubr.f32.gmra.mrb[0].mxu0 %v3124
  %v3217 = vpop.f32.mrb[0].mxu0
  %v3218 = vadd.f32 0.0, %v3217
  %v3219 = vpop.f32.mrb[0].mxu0
  %3220 = vmatprep.mubr.f32.mxu0 0.0
  %3221 = vmatmul.mubr.f32.gmra.mrb[0].mxu0 %v3127
  %v3222 = vpop.f32.mrb[0].mxu0
  %v3223 = vadd.f32 0.0, %v3222
  %v3224 = vpop.f32.mrb[0].mxu0
  %3225 = vmatprep.mubr.f32.mxu0 0.0
  %3226 = vmatmul.mubr.f32.gmra.mrb[0].mxu0 %v3130
  %v3227 = vpop.f32.mrb[0].mxu0
  %v3228 = vadd.f32 0.0, %v3227
  %v3229 = vpop.f32.mrb[0].mxu0
  %3230 = vmatprep.mubr.f32.mxu0 0.0
  %3231 = vmatmul.mubr.f32.gmra.mrb[0].mxu0 %v3133
  %v3232 = vpop.f32.mrb[0].mxu0
  %v3233 = vadd.f32 0.0, %v3232
  %v3234 = vpop.f32.mrb[0].mxu0
  %3235 = vmatprep.mubr.f32.mxu0 0.0
  %3236 = vmatmul.mubr.f32.gmra.mrb[0].mxu0 %v3136
  %v3237 = vpop.f32.mrb[0].mxu0
  %v3238 = vadd.f32 0.0, %v3237
  %v3239 = vpop.f32.mrb[0].mxu0
  %3240 = vmatprep.mubr.f32.mxu0 0.0
  %3241 = vmatmul.mubr.f32.gmra.mrb[0].mxu0 %v3139
  %v3242 = vpop.f32.mrb[0].mxu0
  %v3243 = vadd.f32 0.0, %v3242
  %v3244 = vpop.f32.mrb[0].mxu0
  %3245 = vdwg.mxu0
  %v3246 = vadd.f32 %v290, %v3208
  %v3247 = vadd.f32 %v293, %v3213
  %v3248 = vadd.f32 %v298, %v3218
  %v3249 = vadd.f32 %v301, %v3223
  %v3250 = vadd.f32 %v306, %v3228
  %v3251 = vadd.f32 %v309, %v3233
  %v3252 = vadd.f32 %v314, %v3238
  %v3253 = vadd.f32 %v317, %v3243
  %vm3254 = vcmp.ge.f32.partialorder %v3246, 0.0
  %vm3255 = vcmp.ge.f32.partialorder %v3247, 0.0
  %vm3256 = vcmp.ge.f32.partialorder %v3248, 0.0
  %vm3257 = vcmp.ge.f32.partialorder %v3249, 0.0
  %vm3258 = vcmp.ge.f32.partialorder %v3250, 0.0
  %vm3259 = vcmp.ge.f32.partialorder %v3251, 0.0
  %vm3260 = vcmp.ge.f32.partialorder %v3252, 0.0
  %vm3261 = vcmp.ge.f32.partialorder %v3253, 0.0
  %v3262 = vmul.f32 %v3246, 0.2
  %v3263 = vmul.f32 %v3247, 0.2
  %v3264 = vmul.f32 %v3248, 0.2
  %v3265 = vmul.f32 %v3249, 0.2
  %v3266 = vmul.f32 %v3250, 0.2
  %v3267 = vmul.f32 %v3251, 0.2
  %v3268 = vmul.f32 %v3252, 0.2
  %v3269 = vmul.f32 %v3253, 0.2
  %v3270 = vsel %vm3254, %v3246, %v3262
  %v3271 = vsel %vm3255, %v3247, %v3263
  %v3272 = vsel %vm3256, %v3248, %v3264
  %v3273 = vsel %vm3257, %v3249, %v3265
  %v3274 = vsel %vm3258, %v3250, %v3266
  %v3275 = vsel %vm3259, %v3251, %v3267
  %v3276 = vsel %vm3260, %v3252, %v3268
  %v3277 = vsel %vm3261, %v3253, %v3269
  %v3278 = vmax.f32 %v2917, %v3270
  %v3279 = vmax.f32 %v2918, %v3271
  %v3280 = vmax.f32 %v2919, %v3272
  %v3281 = vmax.f32 %v2920, %v3273
  %v3282 = vmax.f32 %v2921, %v3274
  %v3283 = vmax.f32 %v2922, %v3275
  %v3284 = vmax.f32 %v2923, %v3276
  %v3285 = vmax.f32 %v2924, %v3277
  %3286 = vst [vmem:[%s5] sm:$0xff] %v3278
  %3287 = vst [vmem:[%s5 + $0x8] sm:$0xff] %v3279
  %3288 = vst [vmem:[%s5 + $0x10] sm:$0xff] %v3280
  %3289 = vst [vmem:[%s5 + $0x18] sm:$0xff] %v3281
  %3290 = vst [vmem:[%s5 + $0x20] sm:$0xff] %v3282
  %3291 = vst [vmem:[%s5 + $0x28] sm:$0xff] %v3283
  %3292 = vst [vmem:[%s5 + $0x30] sm:$0xff] %v3284
  %3293 = vst [vmem:[%s5 + $0x38] sm:$0xff] %v3285
  // Predicated region
  $region22: #{_lambda_.4} parent=0 // pred_check
    _
  $region23: #{_lambda_.4} parent=0 // pred_check_branch
    %3295 = sbr.rel (0) target = $region25
  $region24: #{_lambda_.4} parent=0 // pred_region
    _
  $region25: #{_lambda_.4} parent=0 // pred_fallthru
    _
  // Predicated region
  $region26: #{_lambda_.4} parent=0 // pred_check
    _
  $region27: #{_lambda_.4} parent=0 // pred_check_branch
    %3297 = sbr.rel (0) target = $region29
  $region28: #{_lambda_.4} parent=0 // pred_region
    _
  $region29: #{_lambda_.4} parent=0 // pred_fallthru
    _

// kernel: _lambda_.7
$region0: #{_lambda_.7}
  #allocation0 [shape = 'u32[]', space=smem, size = 0x4, offset = 0x4, fixed_abs, tag = 'smem constant byte address 0x4 - core index']
  #allocation1 [shape = 'u32[144,128]{1,0:T(1,128)}', space=vmem, size = 0x12000, scoped, tag = 'internal scratch']
  %s0 = inlined_call_operand.vmem [shape: f32[64,128], index: 0, kind: input, shape index: {}]
  %s1 = inlined_call_operand.vmem [shape: f32[64,128], index: 1, kind: input, shape index: {}]
  %s2 = inlined_call_operand.vmem [shape: f32[64,128], index: 2, kind: input, shape index: {}]
  %s3 = inlined_call_operand.vmem [shape: bf16[128,1024], index: 3, kind: input, shape index: {}]
  %s4 = inlined_call_operand.vmem [shape: bf16[128,1024], index: 4, kind: input, shape index: {}]
  %s5 = inlined_call_operand.vmem [shape: bf16[128,1024], index: 5, kind: input, shape index: {}]
  %s6 = inlined_call_operand.vmem [shape: f32[1,1024], index: 6, kind: input, shape index: {}]
  %s7 = inlined_call_operand.vmem [shape: bf16[1024,256], index: 7, kind: input, shape index: {}]
  %s8 = inlined_call_operand.vmem [shape: f32[1,256], index: 8, kind: input, shape index: {}]
  %s9 = inlined_call_operand.vmem [shape: bf16[256,128], index: 9, kind: input, shape index: {}]
  %s10 = inlined_call_operand.vmem [shape: f32[1,128], index: 10, kind: input, shape index: {}]
  %s11 = inlined_call_operand.vmem [shape: bf16[128,128], index: 11, kind: input, shape index: {}]
  %s12 = inlined_call_operand.vmem [shape: f32[1,128], index: 12, kind: input, shape index: {}]
  %s13 = inlined_call_operand.vmem [shape: f32[64,128], index: 13, kind: output, shape index: {}]
  %s14 = sld [smem:[#allocation0]]
  $region62: #{_lambda_.7} parent=0
    _
  %s16 = ssub.s32 1, %s14
  %s17 = scalar_select 0, %s16, %s14
  // Predicated region
  $region2: #{_lambda_.7} parent=0 // pred_check
    _
  $region3: #{_lambda_.7} parent=0 // pred_check_branch
    %19 = sbr.rel (0) target = $region5
  $region4: #{_lambda_.7} parent=0 // pred_region
    _
  $region5: #{_lambda_.7} parent=0 // pred_fallthru
    _
  // Predicated region
  $region6: #{_lambda_.7} parent=0 // pred_check
    _
  $region7: #{_lambda_.7} parent=0 // pred_check_branch
    %21 = sbr.rel (0) target = $region9
  $region8: #{_lambda_.7} parent=0 // pred_region
    _
  $region9: #{_lambda_.7} parent=0 // pred_fallthru
    _
  // Predicated region
  $region10: #{_lambda_.7} parent=0 // pred_check
    _
  $region11: #{_lambda_.7} parent=0 // pred_check_branch
    %23 = sbr.rel (0) target = $region13
  $region12: #{_lambda_.7} parent=0 // pred_region
    _
  $region13: #{_lambda_.7} parent=0 // pred_fallthru
    _
  // Predicated region
  $region14: #{_lambda_.7} parent=0 // pred_check
    _
  $region15: #{_lambda_.7} parent=0 // pred_check_branch
    %25 = sbr.rel (0) target = $region17
  $region16: #{_lambda_.7} parent=0 // pred_region
    _
  $region17: #{_lambda_.7} parent=0 // pred_fallthru
    _
  // Predicated region
  $region18: #{_lambda_.7} parent=0 // pred_check
    _
  $region19: #{_lambda_.7} parent=0 // pred_check_branch
    %27 = sbr.rel (0) target = $region21
  $region20: #{_lambda_.7} parent=0 // pred_region
    _
  $region21: #{_lambda_.7} parent=0 // pred_fallthru
    _
  // Predicated region
  $region22: #{_lambda_.7} parent=0 // pred_check
    _
  $region23: #{_lambda_.7} parent=0 // pred_check_branch
    %29 = sbr.rel (0) target = $region25
  $region24: #{_lambda_.7} parent=0 // pred_region
    _
  $region25: #{_lambda_.7} parent=0 // pred_fallthru
    _
  // Predicated region
  $region26: #{_lambda_.7} parent=0 // pred_check
    _
  $region27: #{_lambda_.7} parent=0 // pred_check_branch
    %31 = sbr.rel (0) target = $region29
  $region28: #{_lambda_.7} parent=0 // pred_region
    _
  $region29: #{_lambda_.7} parent=0 // pred_fallthru
    _
  // Predicated region
  $region30: #{_lambda_.7} parent=0 // pred_check
    _
  $region31: #{_lambda_.7} parent=0 // pred_check_branch
    %33 = sbr.rel (0) target = $region33
  $region32: #{_lambda_.7} parent=0 // pred_region
    _
  $region33: #{_lambda_.7} parent=0 // pred_fallthru
    _
  // Predicated region
  $region34: #{_lambda_.7} parent=0 // pred_check
    _
  $region35: #{_lambda_.7} parent=0 // pred_check_branch
    %35 = sbr.rel (0) target = $region37
  $region36: #{_lambda_.7} parent=0 // pred_region
    _
  $region37: #{_lambda_.7} parent=0 // pred_fallthru
    _
  // Predicated region
  $region38: #{_lambda_.7} parent=0 // pred_check
    _
  $region39: #{_lambda_.7} parent=0 // pred_check_branch
    %37 = sbr.rel (0) target = $region41
  $region40: #{_lambda_.7} parent=0 // pred_region
    _
  $region41: #{_lambda_.7} parent=0 // pred_fallthru
    _
  // Predicated region
  $region42: #{_lambda_.7} parent=0 // pred_check
    _
  $region43: #{_lambda_.7} parent=0 // pred_check_branch
    %39 = sbr.rel (0) target = $region45
  $region44: #{_lambda_.7} parent=0 // pred_region
    _
  $region45: #{_lambda_.7} parent=0 // pred_fallthru
    _
  // Predicated region
  $region46: #{_lambda_.7} parent=0 // pred_check
    _
  $region47: #{_lambda_.7} parent=0 // pred_check_branch
    %41 = sbr.rel (0) target = $region49
  $region48: #{_lambda_.7} parent=0 // pred_region
    _
  $region49: #{_lambda_.7} parent=0 // pred_fallthru
    _
  // Predicated region
  $region50: #{_lambda_.7} parent=0 // pred_check
    _
  $region51: #{_lambda_.7} parent=0 // pred_check_branch
    %43 = sbr.rel (0) target = $region53
  $region52: #{_lambda_.7} parent=0 // pred_region
    _
  $region53: #{_lambda_.7} parent=0 // pred_fallthru
    _
  %v45 = vld [vmem:[%s0] sm:$0xff]
  %v46 = vld [vmem:[%s0 + $0x8] sm:$0xff]
  %v47 = vld [vmem:[%s0 + $0x10] sm:$0xff]
  %v48 = vld [vmem:[%s0 + $0x18] sm:$0xff]
  %v49 = vld [vmem:[%s0 + $0x20] sm:$0xff]
  %v50 = vld [vmem:[%s0 + $0x28] sm:$0xff]
  %v51 = vld [vmem:[%s0 + $0x30] sm:$0xff]
  %v52 = vld [vmem:[%s0 + $0x38] sm:$0xff]
  %v53 = vpack.c.bf16 %v46, %v45
  %v54 = vpack.c.bf16 %v48, %v47
  %v55 = vpack.c.bf16 %v50, %v49
  %v56 = vpack.c.bf16 %v52, %v51
  %v57 = vld [vmem:[%s3] sm:$0xff]
  %v58 = vld [vmem:[%s3 + $0x8] sm:$0xff]
  %v59 = vld [vmem:[%s3 + $0x10] sm:$0xff]
  %v60 = vld [vmem:[%s3 + $0x18] sm:$0xff]
  %v61 = vld [vmem:[%s3 + $0x20] sm:$0xff]
  %v62 = vld [vmem:[%s3 + $0x28] sm:$0xff]
  %v63 = vld [vmem:[%s3 + $0x30] sm:$0xff]
  %v64 = vld [vmem:[%s3 + $0x38] sm:$0xff]
  %v65 = vld [vmem:[%s3 + $0x40] sm:$0xff]
  %v66 = vld [vmem:[%s3 + $0x48] sm:$0xff]
  %v67 = vld [vmem:[%s3 + $0x50] sm:$0xff]
  %v68 = vld [vmem:[%s3 + $0x58] sm:$0xff]
  %v69 = vld [vmem:[%s3 + $0x60] sm:$0xff]
  %v70 = vld [vmem:[%s3 + $0x68] sm:$0xff]
  %v71 = vld [vmem:[%s3 + $0x70] sm:$0xff]
  %v72 = vld [vmem:[%s3 + $0x78] sm:$0xff]
  %v73 = vld [vmem:[%s3 + $0x80] sm:$0xff]
  %v74 = vld [vmem:[%s3 + $0x88] sm:$0xff]
  %v75 = vld [vmem:[%s3 + $0x90] sm:$0xff]
  %v76 = vld [vmem:[%s3 + $0x98] sm:$0xff]
  %v77 = vld [vmem:[%s3 + $0xa0] sm:$0xff]
  %v78 = vld [vmem:[%s3 + $0xa8] sm:$0xff]
  %v79 = vld [vmem:[%s3 + $0xb0] sm:$0xff]
  %v80 = vld [vmem:[%s3 + $0xb8] sm:$0xff]
  %v81 = vld [vmem:[%s3 + $0xc0] sm:$0xff]
  %v82 = vld [vmem:[%s3 + $0xc8] sm:$0xff]
  %v83 = vld [vmem:[%s3 + $0xd0] sm:$0xff]
  %v84 = vld [vmem:[%s3 + $0xd8] sm:$0xff]
  %v85 = vld [vmem:[%s3 + $0xe0] sm:$0xff]
  %v86 = vld [vmem:[%s3 + $0xe8] sm:$0xff]
  %v87 = vld [vmem:[%s3 + $0xf0] sm:$0xff]
  %v88 = vld [vmem:[%s3 + $0xf8] sm:$0xff]
  %v89 = vld [vmem:[%s3 + $0x100] sm:$0xff]
  %v90 = vld [vmem:[%s3 + $0x108] sm:$0xff]
  %v91 = vld [vmem:[%s3 + $0x110] sm:$0xff]
  %v92 = vld [vmem:[%s3 + $0x118] sm:$0xff]
  %v93 = vld [vmem:[%s3 + $0x120] sm:$0xff]
  %v94 = vld [vmem:[%s3 + $0x128] sm:$0xff]
  %v95 = vld [vmem:[%s3 + $0x130] sm:$0xff]
  %v96 = vld [vmem:[%s3 + $0x138] sm:$0xff]
  %v97 = vld [vmem:[%s3 + $0x140] sm:$0xff]
  %v98 = vld [vmem:[%s3 + $0x148] sm:$0xff]
  %v99 = vld [vmem:[%s3 + $0x150] sm:$0xff]
  %v100 = vld [vmem:[%s3 + $0x158] sm:$0xff]
  %v101 = vld [vmem:[%s3 + $0x160] sm:$0xff]
  %v102 = vld [vmem:[%s3 + $0x168] sm:$0xff]
  %v103 = vld [vmem:[%s3 + $0x170] sm:$0xff]
  %v104 = vld [vmem:[%s3 + $0x178] sm:$0xff]
  %v105 = vld [vmem:[%s3 + $0x180] sm:$0xff]
  %v106 = vld [vmem:[%s3 + $0x188] sm:$0xff]
  %v107 = vld [vmem:[%s3 + $0x190] sm:$0xff]
  %v108 = vld [vmem:[%s3 + $0x198] sm:$0xff]
  %v109 = vld [vmem:[%s3 + $0x1a0] sm:$0xff]
  %v110 = vld [vmem:[%s3 + $0x1a8] sm:$0xff]
  %v111 = vld [vmem:[%s3 + $0x1b0] sm:$0xff]
  %v112 = vld [vmem:[%s3 + $0x1b8] sm:$0xff]
  %v113 = vld [vmem:[%s3 + $0x1c0] sm:$0xff]
  %v114 = vld [vmem:[%s3 + $0x1c8] sm:$0xff]
  %v115 = vld [vmem:[%s3 + $0x1d0] sm:$0xff]
  %v116 = vld [vmem:[%s3 + $0x1d8] sm:$0xff]
  %v117 = vld [vmem:[%s3 + $0x1e0] sm:$0xff]
  %v118 = vld [vmem:[%s3 + $0x1e8] sm:$0xff]
  %v119 = vld [vmem:[%s3 + $0x1f0] sm:$0xff]
  %v120 = vld [vmem:[%s3 + $0x1f8] sm:$0xff]
  %v121 = vld [vmem:[%s1] sm:$0xff]
  %v122 = vld [vmem:[%s1 + $0x8] sm:$0xff]
  %v123 = vld [vmem:[%s1 + $0x10] sm:$0xff]
  %v124 = vld [vmem:[%s1 + $0x18] sm:$0xff]
  %v125 = vld [vmem:[%s1 + $0x20] sm:$0xff]
  %v126 = vld [vmem:[%s1 + $0x28] sm:$0xff]
  %v127 = vld [vmem:[%s1 + $0x30] sm:$0xff]
  %v128 = vld [vmem:[%s1 + $0x38] sm:$0xff]
  %v129 = vpack.c.bf16 %v122, %v121
  %v130 = vpack.c.bf16 %v124, %v123
  %v131 = vpack.c.bf16 %v126, %v125
  %v132 = vpack.c.bf16 %v128, %v127
  %v133 = vld [vmem:[%s4] sm:$0xff]
  %v134 = vld [vmem:[%s4 + $0x8] sm:$0xff]
  %v135 = vld [vmem:[%s4 + $0x10] sm:$0xff]
  %v136 = vld [vmem:[%s4 + $0x18] sm:$0xff]
  %v137 = vld [vmem:[%s4 + $0x20] sm:$0xff]
  %v138 = vld [vmem:[%s4 + $0x28] sm:$0xff]
  %v139 = vld [vmem:[%s4 + $0x30] sm:$0xff]
  %v140 = vld [vmem:[%s4 + $0x38] sm:$0xff]
  %v141 = vld [vmem:[%s4 + $0x40] sm:$0xff]
  %v142 = vld [vmem:[%s4 + $0x48] sm:$0xff]
  %v143 = vld [vmem:[%s4 + $0x50] sm:$0xff]
  %v144 = vld [vmem:[%s4 + $0x58] sm:$0xff]
  %v145 = vld [vmem:[%s4 + $0x60] sm:$0xff]
  %v146 = vld [vmem:[%s4 + $0x68] sm:$0xff]
  %v147 = vld [vmem:[%s4 + $0x70] sm:$0xff]
  %v148 = vld [vmem:[%s4 + $0x78] sm:$0xff]
  %v149 = vld [vmem:[%s4 + $0x80] sm:$0xff]
  %v150 = vld [vmem:[%s4 + $0x88] sm:$0xff]
  %v151 = vld [vmem:[%s4 + $0x90] sm:$0xff]
  %v152 = vld [vmem:[%s4 + $0x98] sm:$0xff]
  %v153 = vld [vmem:[%s4 + $0xa0] sm:$0xff]
  %v154 = vld [vmem:[%s4 + $0xa8] sm:$0xff]
  %v155 = vld [vmem:[%s4 + $0xb0] sm:$0xff]
  %v156 = vld [vmem:[%s4 + $0xb8] sm:$0xff]
  %v157 = vld [vmem:[%s4 + $0xc0] sm:$0xff]
  %v158 = vld [vmem:[%s4 + $0xc8] sm:$0xff]
  %v159 = vld [vmem:[%s4 + $0xd0] sm:$0xff]
  %v160 = vld [vmem:[%s4 + $0xd8] sm:$0xff]
  %v161 = vld [vmem:[%s4 + $0xe0] sm:$0xff]
  %v162 = vld [vmem:[%s4 + $0xe8] sm:$0xff]
  %v163 = vld [vmem:[%s4 + $0xf0] sm:$0xff]
  %v164 = vld [vmem:[%s4 + $0xf8] sm:$0xff]
  %v165 = vld [vmem:[%s4 + $0x100] sm:$0xff]
  %v166 = vld [vmem:[%s4 + $0x108] sm:$0xff]
  %v167 = vld [vmem:[%s4 + $0x110] sm:$0xff]
  %v168 = vld [vmem:[%s4 + $0x118] sm:$0xff]
  %v169 = vld [vmem:[%s4 + $0x120] sm:$0xff]
  %v170 = vld [vmem:[%s4 + $0x128] sm:$0xff]
  %v171 = vld [vmem:[%s4 + $0x130] sm:$0xff]
  %v172 = vld [vmem:[%s4 + $0x138] sm:$0xff]
  %v173 = vld [vmem:[%s4 + $0x140] sm:$0xff]
  %v174 = vld [vmem:[%s4 + $0x148] sm:$0xff]
  %v175 = vld [vmem:[%s4 + $0x150] sm:$0xff]
  %v176 = vld [vmem:[%s4 + $0x158] sm:$0xff]
  %v177 = vld [vmem:[%s4 + $0x160] sm:$0xff]
  %v178 = vld [vmem:[%s4 + $0x168] sm:$0xff]
  %v179 = vld [vmem:[%s4 + $0x170] sm:$0xff]
  %v180 = vld [vmem:[%s4 + $0x178] sm:$0xff]
  %v181 = vld [vmem:[%s4 + $0x180] sm:$0xff]
  %v182 = vld [vmem:[%s4 + $0x188] sm:$0xff]
  %v183 = vld [vmem:[%s4 + $0x190] sm:$0xff]
  %v184 = vld [vmem:[%s4 + $0x198] sm:$0xff]
  %v185 = vld [vmem:[%s4 + $0x1a0] sm:$0xff]
  %v186 = vld [vmem:[%s4 + $0x1a8] sm:$0xff]
  %v187 = vld [vmem:[%s4 + $0x1b0] sm:$0xff]
  %v188 = vld [vmem:[%s4 + $0x1b8] sm:$0xff]
  %v189 = vld [vmem:[%s4 + $0x1c0] sm:$0xff]
  %v190 = vld [vmem:[%s4 + $0x1c8] sm:$0xff]
  %v191 = vld [vmem:[%s4 + $0x1d0] sm:$0xff]
  %v192 = vld [vmem:[%s4 + $0x1d8] sm:$0xff]
  %v193 = vld [vmem:[%s4 + $0x1e0] sm:$0xff]
  %v194 = vld [vmem:[%s4 + $0x1e8] sm:$0xff]
  %v195 = vld [vmem:[%s4 + $0x1f0] sm:$0xff]
  %v196 = vld [vmem:[%s4 + $0x1f8] sm:$0xff]
  %v261 = vunpack.c.l.b16 %v133
  %v262 = vunpack.c.h.b16 %v133
  %v263 = vunpack.c.l.b16 %v134
  %v264 = vunpack.c.h.b16 %v134
  %v265 = vunpack.c.l.b16 %v135
  %v266 = vunpack.c.h.b16 %v135
  %v267 = vunpack.c.l.b16 %v136
  %v268 = vunpack.c.h.b16 %v136
  %v269 = vunpack.c.l.b16 %v137
  %v270 = vunpack.c.h.b16 %v137
  %v271 = vunpack.c.l.b16 %v138
  %v272 = vunpack.c.h.b16 %v138
  %v273 = vunpack.c.l.b16 %v139
  %v274 = vunpack.c.h.b16 %v139
  %v275 = vunpack.c.l.b16 %v140
  %v276 = vunpack.c.h.b16 %v140
  %v277 = vunpack.c.l.b16 %v141
  %v278 = vunpack.c.h.b16 %v141
  %v279 = vunpack.c.l.b16 %v142
  %v280 = vunpack.c.h.b16 %v142
  %v281 = vunpack.c.l.b16 %v143
  %v282 = vunpack.c.h.b16 %v143
  %v283 = vunpack.c.l.b16 %v144
  %v284 = vunpack.c.h.b16 %v144
  %v285 = vunpack.c.l.b16 %v145
  %v286 = vunpack.c.h.b16 %v145
  %v287 = vunpack.c.l.b16 %v146
  %v288 = vunpack.c.h.b16 %v146
  %v289 = vunpack.c.l.b16 %v147
  %v290 = vunpack.c.h.b16 %v147
  %v291 = vunpack.c.l.b16 %v148
  %v292 = vunpack.c.h.b16 %v148
  %v293 = vunpack.c.l.b16 %v149
  %v294 = vunpack.c.h.b16 %v149
  %v295 = vunpack.c.l.b16 %v150
  %v296 = vunpack.c.h.b16 %v150
  %v297 = vunpack.c.l.b16 %v151
  %v298 = vunpack.c.h.b16 %v151
  %v299 = vunpack.c.l.b16 %v152
  %v300 = vunpack.c.h.b16 %v152
  %v301 = vunpack.c.l.b16 %v153
  %v302 = vunpack.c.h.b16 %v153
  %v303 = vunpack.c.l.b16 %v154
  %v304 = vunpack.c.h.b16 %v154
  %v305 = vunpack.c.l.b16 %v155
  %v306 = vunpack.c.h.b16 %v155
  %v307 = vunpack.c.l.b16 %v156
  %v308 = vunpack.c.h.b16 %v156
  %v309 = vunpack.c.l.b16 %v157
  %v310 = vunpack.c.h.b16 %v157
  %v311 = vunpack.c.l.b16 %v158
  %v312 = vunpack.c.h.b16 %v158
  %v313 = vunpack.c.l.b16 %v159
  %v314 = vunpack.c.h.b16 %v159
  %v315 = vunpack.c.l.b16 %v160
  %v316 = vunpack.c.h.b16 %v160
  %v317 = vunpack.c.l.b16 %v161
  %v318 = vunpack.c.h.b16 %v161
  %v319 = vunpack.c.l.b16 %v162
  %v320 = vunpack.c.h.b16 %v162
  %v321 = vunpack.c.l.b16 %v163
  %v322 = vunpack.c.h.b16 %v163
  %v323 = vunpack.c.l.b16 %v164
  %v324 = vunpack.c.h.b16 %v164
  %v325 = vunpack.c.l.b16 %v165
  %v326 = vunpack.c.h.b16 %v165
  %v327 = vunpack.c.l.b16 %v166
  %v328 = vunpack.c.h.b16 %v166
  %v329 = vunpack.c.l.b16 %v167
  %v330 = vunpack.c.h.b16 %v167
  %v331 = vunpack.c.l.b16 %v168
  %v332 = vunpack.c.h.b16 %v168
  %v333 = vunpack.c.l.b16 %v169
  %v334 = vunpack.c.h.b16 %v169
  %v335 = vunpack.c.l.b16 %v170
  %v336 = vunpack.c.h.b16 %v170
  %v337 = vunpack.c.l.b16 %v171
  %v338 = vunpack.c.h.b16 %v171
  %v339 = vunpack.c.l.b16 %v172
  %v340 = vunpack.c.h.b16 %v172
  %v341 = vunpack.c.l.b16 %v173
  %v342 = vunpack.c.h.b16 %v173
  %v343 = vunpack.c.l.b16 %v174
  %v344 = vunpack.c.h.b16 %v174
  %v345 = vunpack.c.l.b16 %v175
  %v346 = vunpack.c.h.b16 %v175
  %v347 = vunpack.c.l.b16 %v176
  %v348 = vunpack.c.h.b16 %v176
  %v349 = vunpack.c.l.b16 %v177
  %v350 = vunpack.c.h.b16 %v177
  %v351 = vunpack.c.l.b16 %v178
  %v352 = vunpack.c.h.b16 %v178
  %v353 = vunpack.c.l.b16 %v179
  %v354 = vunpack.c.h.b16 %v179
  %v355 = vunpack.c.l.b16 %v180
  %v356 = vunpack.c.h.b16 %v180
  %v357 = vunpack.c.l.b16 %v181
  %v358 = vunpack.c.h.b16 %v181
  %v359 = vunpack.c.l.b16 %v182
  %v360 = vunpack.c.h.b16 %v182
  %v361 = vunpack.c.l.b16 %v183
  %v362 = vunpack.c.h.b16 %v183
  %v363 = vunpack.c.l.b16 %v184
  %v364 = vunpack.c.h.b16 %v184
  %v365 = vunpack.c.l.b16 %v185
  %v366 = vunpack.c.h.b16 %v185
  %v367 = vunpack.c.l.b16 %v186
  %v368 = vunpack.c.h.b16 %v186
  %v369 = vunpack.c.l.b16 %v187
  %v370 = vunpack.c.h.b16 %v187
  %v371 = vunpack.c.l.b16 %v188
  %v372 = vunpack.c.h.b16 %v188
  %v373 = vunpack.c.l.b16 %v189
  %v374 = vunpack.c.h.b16 %v189
  %v375 = vunpack.c.l.b16 %v190
  %v376 = vunpack.c.h.b16 %v190
  %v377 = vunpack.c.l.b16 %v191
  %v378 = vunpack.c.h.b16 %v191
  %v379 = vunpack.c.l.b16 %v192
  %v380 = vunpack.c.h.b16 %v192
  %v381 = vunpack.c.l.b16 %v193
  %v382 = vunpack.c.h.b16 %v193
  %v383 = vunpack.c.l.b16 %v194
  %v384 = vunpack.c.h.b16 %v194
  %v385 = vunpack.c.l.b16 %v195
  %v386 = vunpack.c.h.b16 %v195
  %v387 = vunpack.c.l.b16 %v196
  %v388 = vunpack.c.h.b16 %v196
  %v389 = vpack.c.b16 %v269, %v261
  %v390 = vpack.c.b16 %v270, %v262
  %v391 = vpack.c.b16 %v271, %v263
  %v392 = vpack.c.b16 %v272, %v264
  %v393 = vpack.c.b16 %v273, %v265
  %v394 = vpack.c.b16 %v274, %v266
  %v395 = vpack.c.b16 %v275, %v267
  %v396 = vpack.c.b16 %v276, %v268
  %v397 = vpack.c.b16 %v285, %v277
  %v398 = vpack.c.b16 %v286, %v278
  %v399 = vpack.c.b16 %v287, %v279
  %v400 = vpack.c.b16 %v288, %v280
  %v401 = vpack.c.b16 %v289, %v281
  %v402 = vpack.c.b16 %v290, %v282
  %v403 = vpack.c.b16 %v291, %v283
  %v404 = vpack.c.b16 %v292, %v284
  %v405 = vpack.c.b16 %v301, %v293
  %v406 = vpack.c.b16 %v302, %v294
  %v407 = vpack.c.b16 %v303, %v295
  %v408 = vpack.c.b16 %v304, %v296
  %v409 = vpack.c.b16 %v305, %v297
  %v410 = vpack.c.b16 %v306, %v298
  %v411 = vpack.c.b16 %v307, %v299
  %v412 = vpack.c.b16 %v308, %v300
  %v413 = vpack.c.b16 %v317, %v309
  %v414 = vpack.c.b16 %v318, %v310
  %v415 = vpack.c.b16 %v319, %v311
  %v416 = vpack.c.b16 %v320, %v312
  %v417 = vpack.c.b16 %v321, %v313
  %v418 = vpack.c.b16 %v322, %v314
  %v419 = vpack.c.b16 %v323, %v315
  %v420 = vpack.c.b16 %v324, %v316
  %v421 = vpack.c.b16 %v333, %v325
  %v422 = vpack.c.b16 %v334, %v326
  %v423 = vpack.c.b16 %v335, %v327
  %v424 = vpack.c.b16 %v336, %v328
  %v425 = vpack.c.b16 %v337, %v329
  %v426 = vpack.c.b16 %v338, %v330
  %v427 = vpack.c.b16 %v339, %v331
  %v428 = vpack.c.b16 %v340, %v332
  %v429 = vpack.c.b16 %v349, %v341
  %v430 = vpack.c.b16 %v350, %v342
  %v431 = vpack.c.b16 %v351, %v343
  %v432 = vpack.c.b16 %v352, %v344
  %v433 = vpack.c.b16 %v353, %v345
  %v434 = vpack.c.b16 %v354, %v346
  %v435 = vpack.c.b16 %v355, %v347
  %v436 = vpack.c.b16 %v356, %v348
  %v437 = vpack.c.b16 %v365, %v357
  %v438 = vpack.c.b16 %v366, %v358
  %v439 = vpack.c.b16 %v367, %v359
  %v440 = vpack.c.b16 %v368, %v360
  %v441 = vpack.c.b16 %v369, %v361
  %v442 = vpack.c.b16 %v370, %v362
  %v443 = vpack.c.b16 %v371, %v363
  %v444 = vpack.c.b16 %v372, %v364
  %v445 = vpack.c.b16 %v381, %v373
  %v446 = vpack.c.b16 %v382, %v374
  %v447 = vpack.c.b16 %v383, %v375
  %v448 = vpack.c.b16 %v384, %v376
  %v449 = vpack.c.b16 %v385, %v377
  %v450 = vpack.c.b16 %v386, %v378
  %v451 = vpack.c.b16 %v387, %v379
  %v452 = vpack.c.b16 %v388, %v380
  %517 = vmatprep.subr.bf16.mxu0 %v390
  %518 = vmatpush1.bf16.msra.mxu0 %v389
  %519 = vmatprep.subr.bf16.mxu0 %v398
  %520 = vmatpush1.bf16.msra.mxu0 %v397
  %521 = vmatprep.subr.bf16.mxu0 %v406
  %522 = vmatpush1.bf16.msra.mxu0 %v405
  %523 = vmatprep.subr.bf16.mxu0 %v414
  %524 = vmatpush1.bf16.msra.mxu0 %v413
  %525 = vmatprep.subr.bf16.mxu0 %v422
  %526 = vmatpush1.bf16.msra.mxu0 %v421
  %527 = vmatprep.subr.bf16.mxu0 %v430
  %528 = vmatpush1.bf16.msra.mxu0 %v429
  %529 = vmatprep.subr.bf16.mxu0 %v438
  %530 = vmatpush1.bf16.msra.mxu0 %v437
  %531 = vmatprep.subr.bf16.mxu0 %v446
  %532 = vmatpush1.bf16.msra.mxu0 %v445
  %533 = vmatprep.subr.bf16.mxu0 0
  %534 = vmatpush1.bf16.msra.mxu0 0
  %535 = vmatprep.subr.bf16.mxu0 0
  %536 = vmatpush1.bf16.msra.mxu0 0
  %537 = vmatprep.subr.bf16.mxu0 0
  %538 = vmatpush1.bf16.msra.mxu0 0
  %539 = vmatprep.subr.bf16.mxu0 0
  %540 = vmatpush1.bf16.msra.mxu0 0
  %541 = vmatprep.subr.bf16.mxu0 0
  %542 = vmatpush1.bf16.msra.mxu0 0
  %543 = vmatprep.subr.bf16.mxu0 0
  %544 = vmatpush1.bf16.msra.mxu0 0
  %545 = vmatprep.subr.bf16.mxu0 0
  %546 = vmatpush1.bf16.msra.mxu0 0
  %547 = vmatprep.subr.bf16.mxu0 0
  %548 = vmatpush1.bf16.msra.mxu0 0
  %549 = vmatprep.mubr.bf16.mxu0 0
  %550 = vmatmul.mubr.bf16.gmra.mrb[0].mxu0 %v129
  %v551 = vpop.f32.mrb[0].mxu0
  %v552 = vadd.f32 0.0, %v551
  %v553 = vpop.f32.mrb[0].mxu0
  %v554 = vadd.f32 0.0, %v553
  %v555 = vpop.f32.mrb[0].mxu0
  %v556 = vadd.f32 0.0, %v555
  %v557 = vpop.f32.mrb[0].mxu0
  %v558 = vadd.f32 0.0, %v557
  %559 = vmatprep.mubr.bf16.mxu0 0
  %560 = vmatmul.mubr.bf16.gmra.mrb[0].mxu0 %v130
  %v561 = vpop.f32.mrb[0].mxu0
  %v562 = vadd.f32 0.0, %v561
  %v563 = vpop.f32.mrb[0].mxu0
  %v564 = vadd.f32 0.0, %v563
  %v565 = vpop.f32.mrb[0].mxu0
  %v566 = vadd.f32 0.0, %v565
  %v567 = vpop.f32.mrb[0].mxu0
  %v568 = vadd.f32 0.0, %v567
  %569 = vmatprep.mubr.bf16.mxu0 0
  %570 = vmatmul.mubr.bf16.gmra.mrb[0].mxu0 %v131
  %v571 = vpop.f32.mrb[0].mxu0
  %v572 = vadd.f32 0.0, %v571
  %v573 = vpop.f32.mrb[0].mxu0
  %v574 = vadd.f32 0.0, %v573
  %v575 = vpop.f32.mrb[0].mxu0
  %v576 = vadd.f32 0.0, %v575
  %v577 = vpop.f32.mrb[0].mxu0
  %v578 = vadd.f32 0.0, %v577
  %579 = vmatprep.mubr.bf16.mxu0 0
  %580 = vmatmul.mubr.bf16.gmra.mrb[0].mxu0 %v132
  %v581 = vpop.f32.mrb[0].mxu0
  %v582 = vadd.f32 0.0, %v581
  %v583 = vpop.f32.mrb[0].mxu0
  %v584 = vadd.f32 0.0, %v583
  %v585 = vpop.f32.mrb[0].mxu0
  %v586 = vadd.f32 0.0, %v585
  %v587 = vpop.f32.mrb[0].mxu0
  %v588 = vadd.f32 0.0, %v587
  %589 = vdwg.mxu0
  %590 = vmatprep.subr.bf16.mxu0 %v392
  %591 = vmatpush1.bf16.msra.mxu0 %v391
  %592 = vmatprep.subr.bf16.mxu0 %v400
  %593 = vmatpush1.bf16.msra.mxu0 %v399
  %594 = vmatprep.subr.bf16.mxu0 %v408
  %595 = vmatpush1.bf16.msra.mxu0 %v407
  %596 = vmatprep.subr.bf16.mxu0 %v416
  %597 = vmatpush1.bf16.msra.mxu0 %v415
  %598 = vmatprep.subr.bf16.mxu0 %v424
  %599 = vmatpush1.bf16.msra.mxu0 %v423
  %600 = vmatprep.subr.bf16.mxu0 %v432
  %601 = vmatpush1.bf16.msra.mxu0 %v431
  %602 = vmatprep.subr.bf16.mxu0 %v440
  %603 = vmatpush1.bf16.msra.mxu0 %v439
  %604 = vmatprep.subr.bf16.mxu0 %v448
  %605 = vmatpush1.bf16.msra.mxu0 %v447
  %606 = vmatprep.subr.bf16.mxu0 0
  %607 = vmatpush1.bf16.msra.mxu0 0
  %608 = vmatprep.subr.bf16.mxu0 0
  %609 = vmatpush1.bf16.msra.mxu0 0
  %610 = vmatprep.subr.bf16.mxu0 0
  %611 = vmatpush1.bf16.msra.mxu0 0
  %612 = vmatprep.subr.bf16.mxu0 0
  %613 = vmatpush1.bf16.msra.mxu0 0
  %614 = vmatprep.subr.bf16.mxu0 0
  %615 = vmatpush1.bf16.msra.mxu0 0
  %616 = vmatprep.subr.bf16.mxu0 0
  %617 = vmatpush1.bf16.msra.mxu0 0
  %618 = vmatprep.subr.bf16.mxu0 0
  %619 = vmatpush1.bf16.msra.mxu0 0
  %620 = vmatprep.subr.bf16.mxu0 0
  %621 = vmatpush1.bf16.msra.mxu0 0
  %622 = vmatprep.mubr.bf16.mxu0 0
  %623 = vmatmul.mubr.bf16.gmra.mrb[0].mxu0 %v129
  %v624 = vpop.f32.mrb[0].mxu0
  %v625 = vadd.f32 0.0, %v624
  %v626 = vpop.f32.mrb[0].mxu0
  %v627 = vadd.f32 0.0, %v626
  %v628 = vpop.f32.mrb[0].mxu0
  %v629 = vadd.f32 0.0, %v628
  %v630 = vpop.f32.mrb[0].mxu0
  %v631 = vadd.f32 0.0, %v630
  %632 = vmatprep.mubr.bf16.mxu0 0
  %633 = vmatmul.mubr.bf16.gmra.mrb[0].mxu0 %v130
  %v634 = vpop.f32.mrb[0].mxu0
  %v635 = vadd.f32 0.0, %v634
  %v636 = vpop.f32.mrb[0].mxu0
  %v637 = vadd.f32 0.0, %v636
  %v638 = vpop.f32.mrb[0].mxu0
  %v639 = vadd.f32 0.0, %v638
  %v640 = vpop.f32.mrb[0].mxu0
  %v641 = vadd.f32 0.0, %v640
  %642 = vmatprep.mubr.bf16.mxu0 0
  %643 = vmatmul.mubr.bf16.gmra.mrb[0].mxu0 %v131
  %v644 = vpop.f32.mrb[0].mxu0
  %v645 = vadd.f32 0.0, %v644
  %v646 = vpop.f32.mrb[0].mxu0
  %v647 = vadd.f32 0.0, %v646
  %v648 = vpop.f32.mrb[0].mxu0
  %v649 = vadd.f32 0.0, %v648
  %v650 = vpop.f32.mrb[0].mxu0
  %v651 = vadd.f32 0.0, %v650
  %652 = vmatprep.mubr.bf16.mxu0 0
  %653 = vmatmul.mubr.bf16.gmra.mrb[0].mxu0 %v132
  %v654 = vpop.f32.mrb[0].mxu0
  %v655 = vadd.f32 0.0, %v654
  %v656 = vpop.f32.mrb[0].mxu0
  %v657 = vadd.f32 0.0, %v656
  %v658 = vpop.f32.mrb[0].mxu0
  %v659 = vadd.f32 0.0, %v658
  %v660 = vpop.f32.mrb[0].mxu0
  %v661 = vadd.f32 0.0, %v660
  %662 = vdwg.mxu0
  %663 = vmatprep.subr.bf16.mxu0 %v394
  %664 = vmatpush1.bf16.msra.mxu0 %v393
  %665 = vmatprep.subr.bf16.mxu0 %v402
  %666 = vmatpush1.bf16.msra.mxu0 %v401
  %667 = vmatprep.subr.bf16.mxu0 %v410
  %668 = vmatpush1.bf16.msra.mxu0 %v409
  %669 = vmatprep.subr.bf16.mxu0 %v418
  %670 = vmatpush1.bf16.msra.mxu0 %v417
  %671 = vmatprep.subr.bf16.mxu0 %v426
  %672 = vmatpush1.bf16.msra.mxu0 %v425
  %673 = vmatprep.subr.bf16.mxu0 %v434
  %674 = vmatpush1.bf16.msra.mxu0 %v433
  %675 = vmatprep.subr.bf16.mxu0 %v442
  %676 = vmatpush1.bf16.msra.mxu0 %v441
  %677 = vmatprep.subr.bf16.mxu0 %v450
  %678 = vmatpush1.bf16.msra.mxu0 %v449
  %679 = vmatprep.subr.bf16.mxu0 0
  %680 = vmatpush1.bf16.msra.mxu0 0
  %681 = vmatprep.subr.bf16.mxu0 0
  %682 = vmatpush1.bf16.msra.mxu0 0
  %683 = vmatprep.subr.bf16.mxu0 0
  %684 = vmatpush1.bf16.msra.mxu0 0
  %685 = vmatprep.subr.bf16.mxu0 0
  %686 = vmatpush1.bf16.msra.mxu0 0
  %687 = vmatprep.subr.bf16.mxu0 0
  %688 = vmatpush1.bf16.msra.mxu0 0
  %689 = vmatprep.subr.bf16.mxu0 0
  %690 = vmatpush1.bf16.msra.mxu0 0
  %691 = vmatprep.subr.bf16.mxu0 0
  %692 = vmatpush1.bf16.msra.mxu0 0
  %693 = vmatprep.subr.bf16.mxu0 0
  %694 = vmatpush1.bf16.msra.mxu0 0
  %695 = vmatprep.mubr.bf16.mxu0 0
  %696 = vmatmul.mubr.bf16.gmra.mrb[0].mxu0 %v129
  %v697 = vpop.f32.mrb[0].mxu0
  %v698 = vadd.f32 0.0, %v697
  %v699 = vpop.f32.mrb[0].mxu0
  %v700 = vadd.f32 0.0, %v699
  %v701 = vpop.f32.mrb[0].mxu0
  %v702 = vadd.f32 0.0, %v701
  %v703 = vpop.f32.mrb[0].mxu0
  %v704 = vadd.f32 0.0, %v703
  %705 = vmatprep.mubr.bf16.mxu0 0
  %706 = vmatmul.mubr.bf16.gmra.mrb[0].mxu0 %v130
  %v707 = vpop.f32.mrb[0].mxu0
  %v708 = vadd.f32 0.0, %v707
  %v709 = vpop.f32.mrb[0].mxu0
  %v710 = vadd.f32 0.0, %v709
  %v711 = vpop.f32.mrb[0].mxu0
  %v712 = vadd.f32 0.0, %v711
  %v713 = vpop.f32.mrb[0].mxu0
  %v714 = vadd.f32 0.0, %v713
  %715 = vmatprep.mubr.bf16.mxu0 0
  %716 = vmatmul.mubr.bf16.gmra.mrb[0].mxu0 %v131
  %v717 = vpop.f32.mrb[0].mxu0
  %v718 = vadd.f32 0.0, %v717
  %v719 = vpop.f32.mrb[0].mxu0
  %v720 = vadd.f32 0.0, %v719
  %v721 = vpop.f32.mrb[0].mxu0
  %v722 = vadd.f32 0.0, %v721
  %v723 = vpop.f32.mrb[0].mxu0
  %v724 = vadd.f32 0.0, %v723
  %725 = vmatprep.mubr.bf16.mxu0 0
  %726 = vmatmul.mubr.bf16.gmra.mrb[0].mxu0 %v132
  %v727 = vpop.f32.mrb[0].mxu0
  %v728 = vadd.f32 0.0, %v727
  %v729 = vpop.f32.mrb[0].mxu0
  %v730 = vadd.f32 0.0, %v729
  %v731 = vpop.f32.mrb[0].mxu0
  %v732 = vadd.f32 0.0, %v731
  %v733 = vpop.f32.mrb[0].mxu0
  %v734 = vadd.f32 0.0, %v733
  %735 = vdwg.mxu0
  %736 = vmatprep.subr.bf16.mxu0 %v396
  %737 = vmatpush1.bf16.msra.mxu0 %v395
  %738 = vmatprep.subr.bf16.mxu0 %v404
  %739 = vmatpush1.bf16.msra.mxu0 %v403
  %740 = vmatprep.subr.bf16.mxu0 %v412
  %741 = vmatpush1.bf16.msra.mxu0 %v411
  %742 = vmatprep.subr.bf16.mxu0 %v420
  %743 = vmatpush1.bf16.msra.mxu0 %v419
  %744 = vmatprep.subr.bf16.mxu0 %v428
  %745 = vmatpush1.bf16.msra.mxu0 %v427
  %746 = vmatprep.subr.bf16.mxu0 %v436
  %747 = vmatpush1.bf16.msra.mxu0 %v435
  %748 = vmatprep.subr.bf16.mxu0 %v444
  %749 = vmatpush1.bf16.msra.mxu0 %v443
  %750 = vmatprep.subr.bf16.mxu0 %v452
  %751 = vmatpush1.bf16.msra.mxu0 %v451
  %752 = vmatprep.subr.bf16.mxu0 0
  %753 = vmatpush1.bf16.msra.mxu0 0
  %754 = vmatprep.subr.bf16.mxu0 0
  %755 = vmatpush1.bf16.msra.mxu0 0
  %756 = vmatprep.subr.bf16.mxu0 0
  %757 = vmatpush1.bf16.msra.mxu0 0
  %758 = vmatprep.subr.bf16.mxu0 0
  %759 = vmatpush1.bf16.msra.mxu0 0
  %760 = vmatprep.subr.bf16.mxu0 0
  %761 = vmatpush1.bf16.msra.mxu0 0
  %762 = vmatprep.subr.bf16.mxu0 0
  %763 = vmatpush1.bf16.msra.mxu0 0
  %764 = vmatprep.subr.bf16.mxu0 0
  %765 = vmatpush1.bf16.msra.mxu0 0
  %766 = vmatprep.subr.bf16.mxu0 0
  %767 = vmatpush1.bf16.msra.mxu0 0
  %768 = vmatprep.mubr.bf16.mxu0 0
  %769 = vmatmul.mubr.bf16.gmra.mrb[0].mxu0 %v129
  %v770 = vpop.f32.mrb[0].mxu0
  %v771 = vadd.f32 0.0, %v770
  %v772 = vpop.f32.mrb[0].mxu0
  %v773 = vadd.f32 0.0, %v772
  %v774 = vpop.f32.mrb[0].mxu0
  %v775 = vadd.f32 0.0, %v774
  %v776 = vpop.f32.mrb[0].mxu0
  %v777 = vadd.f32 0.0, %v776
  %778 = vmatprep.mubr.bf16.mxu0 0
  %779 = vmatmul.mubr.bf16.gmra.mrb[0].mxu0 %v130
  %v780 = vpop.f32.mrb[0].mxu0
  %v781 = vadd.f32 0.0, %v780
  %v782 = vpop.f32.mrb[0].mxu0
  %v783 = vadd.f32 0.0, %v782
  %v784 = vpop.f32.mrb[0].mxu0
  %v785 = vadd.f32 0.0, %v784
  %v786 = vpop.f32.mrb[0].mxu0
  %v787 = vadd.f32 0.0, %v786
  %788 = vmatprep.mubr.bf16.mxu0 0
  %789 = vmatmul.mubr.bf16.gmra.mrb[0].mxu0 %v131
  %v790 = vpop.f32.mrb[0].mxu0
  %v791 = vadd.f32 0.0, %v790
  %v792 = vpop.f32.mrb[0].mxu0
  %v793 = vadd.f32 0.0, %v792
  %v794 = vpop.f32.mrb[0].mxu0
  %v795 = vadd.f32 0.0, %v794
  %v796 = vpop.f32.mrb[0].mxu0
  %v797 = vadd.f32 0.0, %v796
  %798 = vmatprep.mubr.bf16.mxu0 0
  %799 = vmatmul.mubr.bf16.gmra.mrb[0].mxu0 %v132
  %v800 = vpop.f32.mrb[0].mxu0
  %v801 = vadd.f32 0.0, %v800
  %v802 = vpop.f32.mrb[0].mxu0
  %v803 = vadd.f32 0.0, %v802
  %v804 = vpop.f32.mrb[0].mxu0
  %v805 = vadd.f32 0.0, %v804
  %v806 = vpop.f32.mrb[0].mxu0
  %v807 = vadd.f32 0.0, %v806
  %808 = vdwg.mxu0
  %v873 = vunpack.c.l.b16 %v57
  %v874 = vunpack.c.h.b16 %v57
  %v875 = vunpack.c.l.b16 %v58
  %v876 = vunpack.c.h.b16 %v58
  %v877 = vunpack.c.l.b16 %v59
  %v878 = vunpack.c.h.b16 %v59
  %v879 = vunpack.c.l.b16 %v60
  %v880 = vunpack.c.h.b16 %v60
  %v881 = vunpack.c.l.b16 %v61
  %v882 = vunpack.c.h.b16 %v61
  %v883 = vunpack.c.l.b16 %v62
  %v884 = vunpack.c.h.b16 %v62
  %v885 = vunpack.c.l.b16 %v63
  %v886 = vunpack.c.h.b16 %v63
  %v887 = vunpack.c.l.b16 %v64
  %v888 = vunpack.c.h.b16 %v64
  %v889 = vunpack.c.l.b16 %v65
  %v890 = vunpack.c.h.b16 %v65
  %v891 = vunpack.c.l.b16 %v66
  %v892 = vunpack.c.h.b16 %v66
  %v893 = vunpack.c.l.b16 %v67
  %v894 = vunpack.c.h.b16 %v67
  %v895 = vunpack.c.l.b16 %v68
  %v896 = vunpack.c.h.b16 %v68
  %v897 = vunpack.c.l.b16 %v69
  %v898 = vunpack.c.h.b16 %v69
  %v899 = vunpack.c.l.b16 %v70
  %v900 = vunpack.c.h.b16 %v70
  %v901 = vunpack.c.l.b16 %v71
  %v902 = vunpack.c.h.b16 %v71
  %v903 = vunpack.c.l.b16 %v72
  %v904 = vunpack.c.h.b16 %v72
  %v905 = vunpack.c.l.b16 %v73
  %v906 = vunpack.c.h.b16 %v73
  %v907 = vunpack.c.l.b16 %v74
  %v908 = vunpack.c.h.b16 %v74
  %v909 = vunpack.c.l.b16 %v75
  %v910 = vunpack.c.h.b16 %v75
  %v911 = vunpack.c.l.b16 %v76
  %v912 = vunpack.c.h.b16 %v76
  %v913 = vunpack.c.l.b16 %v77
  %v914 = vunpack.c.h.b16 %v77
  %v915 = vunpack.c.l.b16 %v78
  %v916 = vunpack.c.h.b16 %v78
  %v917 = vunpack.c.l.b16 %v79
  %v918 = vunpack.c.h.b16 %v79
  %v919 = vunpack.c.l.b16 %v80
  %v920 = vunpack.c.h.b16 %v80
  %v921 = vunpack.c.l.b16 %v81
  %v922 = vunpack.c.h.b16 %v81
  %v923 = vunpack.c.l.b16 %v82
  %v924 = vunpack.c.h.b16 %v82
  %v925 = vunpack.c.l.b16 %v83
  %v926 = vunpack.c.h.b16 %v83
  %v927 = vunpack.c.l.b16 %v84
  %v928 = vunpack.c.h.b16 %v84
  %v929 = vunpack.c.l.b16 %v85
  %v930 = vunpack.c.h.b16 %v85
  %v931 = vunpack.c.l.b16 %v86
  %v932 = vunpack.c.h.b16 %v86
  %v933 = vunpack.c.l.b16 %v87
  %v934 = vunpack.c.h.b16 %v87
  %v935 = vunpack.c.l.b16 %v88
  %v936 = vunpack.c.h.b16 %v88
  %v937 = vunpack.c.l.b16 %v89
  %v938 = vunpack.c.h.b16 %v89
  %v939 = vunpack.c.l.b16 %v90
  %v940 = vunpack.c.h.b16 %v90
  %v941 = vunpack.c.l.b16 %v91
  %v942 = vunpack.c.h.b16 %v91
  %v943 = vunpack.c.l.b16 %v92
  %v944 = vunpack.c.h.b16 %v92
  %v945 = vunpack.c.l.b16 %v93
  %v946 = vunpack.c.h.b16 %v93
  %v947 = vunpack.c.l.b16 %v94
  %v948 = vunpack.c.h.b16 %v94
  %v949 = vunpack.c.l.b16 %v95
  %v950 = vunpack.c.h.b16 %v95
  %v951 = vunpack.c.l.b16 %v96
  %v952 = vunpack.c.h.b16 %v96
  %v953 = vunpack.c.l.b16 %v97
  %v954 = vunpack.c.h.b16 %v97
  %v955 = vunpack.c.l.b16 %v98
  %v956 = vunpack.c.h.b16 %v98
  %v957 = vunpack.c.l.b16 %v99
  %v958 = vunpack.c.h.b16 %v99
  %v959 = vunpack.c.l.b16 %v100
  %v960 = vunpack.c.h.b16 %v100
  %v961 = vunpack.c.l.b16 %v101
  %v962 = vunpack.c.h.b16 %v101
  %v963 = vunpack.c.l.b16 %v102
  %v964 = vunpack.c.h.b16 %v102
  %v965 = vunpack.c.l.b16 %v103
  %v966 = vunpack.c.h.b16 %v103
  %v967 = vunpack.c.l.b16 %v104
  %v968 = vunpack.c.h.b16 %v104
  %v969 = vunpack.c.l.b16 %v105
  %v970 = vunpack.c.h.b16 %v105
  %v971 = vunpack.c.l.b16 %v106
  %v972 = vunpack.c.h.b16 %v106
  %v973 = vunpack.c.l.b16 %v107
  %v974 = vunpack.c.h.b16 %v107
  %v975 = vunpack.c.l.b16 %v108
  %v976 = vunpack.c.h.b16 %v108
  %v977 = vunpack.c.l.b16 %v109
  %v978 = vunpack.c.h.b16 %v109
  %v979 = vunpack.c.l.b16 %v110
  %v980 = vunpack.c.h.b16 %v110
  %v981 = vunpack.c.l.b16 %v111
  %v982 = vunpack.c.h.b16 %v111
  %v983 = vunpack.c.l.b16 %v112
  %v984 = vunpack.c.h.b16 %v112
  %v985 = vunpack.c.l.b16 %v113
  %v986 = vunpack.c.h.b16 %v113
  %v987 = vunpack.c.l.b16 %v114
  %v988 = vunpack.c.h.b16 %v114
  %v989 = vunpack.c.l.b16 %v115
  %v990 = vunpack.c.h.b16 %v115
  %v991 = vunpack.c.l.b16 %v116
  %v992 = vunpack.c.h.b16 %v116
  %v993 = vunpack.c.l.b16 %v117
  %v994 = vunpack.c.h.b16 %v117
  %v995 = vunpack.c.l.b16 %v118
  %v996 = vunpack.c.h.b16 %v118
  %v997 = vunpack.c.l.b16 %v119
  %v998 = vunpack.c.h.b16 %v119
  %v999 = vunpack.c.l.b16 %v120
  %v1000 = vunpack.c.h.b16 %v120
  %v1001 = vpack.c.b16 %v881, %v873
  %v1002 = vpack.c.b16 %v882, %v874
  %v1003 = vpack.c.b16 %v883, %v875
  %v1004 = vpack.c.b16 %v884, %v876
  %v1005 = vpack.c.b16 %v885, %v877
  %v1006 = vpack.c.b16 %v886, %v878
  %v1007 = vpack.c.b16 %v887, %v879
  %v1008 = vpack.c.b16 %v888, %v880
  %v1009 = vpack.c.b16 %v897, %v889
  %v1010 = vpack.c.b16 %v898, %v890
  %v1011 = vpack.c.b16 %v899, %v891
  %v1012 = vpack.c.b16 %v900, %v892
  %v1013 = vpack.c.b16 %v901, %v893
  %v1014 = vpack.c.b16 %v902, %v894
  %v1015 = vpack.c.b16 %v903, %v895
  %v1016 = vpack.c.b16 %v904, %v896
  %v1017 = vpack.c.b16 %v913, %v905
  %v1018 = vpack.c.b16 %v914, %v906
  %v1019 = vpack.c.b16 %v915, %v907
  %v1020 = vpack.c.b16 %v916, %v908
  %v1021 = vpack.c.b16 %v917, %v909
  %v1022 = vpack.c.b16 %v918, %v910
  %v1023 = vpack.c.b16 %v919, %v911
  %v1024 = vpack.c.b16 %v920, %v912
  %v1025 = vpack.c.b16 %v929, %v921
  %v1026 = vpack.c.b16 %v930, %v922
  %v1027 = vpack.c.b16 %v931, %v923
  %v1028 = vpack.c.b16 %v932, %v924
  %v1029 = vpack.c.b16 %v933, %v925
  %v1030 = vpack.c.b16 %v934, %v926
  %v1031 = vpack.c.b16 %v935, %v927
  %v1032 = vpack.c.b16 %v936, %v928
  %v1033 = vpack.c.b16 %v945, %v937
  %v1034 = vpack.c.b16 %v946, %v938
  %v1035 = vpack.c.b16 %v947, %v939
  %v1036 = vpack.c.b16 %v948, %v940
  %v1037 = vpack.c.b16 %v949, %v941
  %v1038 = vpack.c.b16 %v950, %v942
  %v1039 = vpack.c.b16 %v951, %v943
  %v1040 = vpack.c.b16 %v952, %v944
  %v1041 = vpack.c.b16 %v961, %v953
  %v1042 = vpack.c.b16 %v962, %v954
  %v1043 = vpack.c.b16 %v963, %v955
  %v1044 = vpack.c.b16 %v964, %v956
  %v1045 = vpack.c.b16 %v965, %v957
  %v1046 = vpack.c.b16 %v966, %v958
  %v1047 = vpack.c.b16 %v967, %v959
  %v1048 = vpack.c.b16 %v968, %v960
  %v1049 = vpack.c.b16 %v977, %v969
  %v1050 = vpack.c.b16 %v978, %v970
  %v1051 = vpack.c.b16 %v979, %v971
  %v1052 = vpack.c.b16 %v980, %v972
  %v1053 = vpack.c.b16 %v981, %v973
  %v1054 = vpack.c.b16 %v982, %v974
  %v1055 = vpack.c.b16 %v983, %v975
  %v1056 = vpack.c.b16 %v984, %v976
  %v1057 = vpack.c.b16 %v993, %v985
  %v1058 = vpack.c.b16 %v994, %v986
  %v1059 = vpack.c.b16 %v995, %v987
  %v1060 = vpack.c.b16 %v996, %v988
  %v1061 = vpack.c.b16 %v997, %v989
  %v1062 = vpack.c.b16 %v998, %v990
  %v1063 = vpack.c.b16 %v999, %v991
  %v1064 = vpack.c.b16 %v1000, %v992
  %1129 = vmatprep.subr.bf16.mxu0 %v1002
  %1130 = vmatpush1.bf16.msra.mxu0 %v1001
  %1131 = vmatprep.subr.bf16.mxu0 %v1010
  %1132 = vmatpush1.bf16.msra.mxu0 %v1009
  %1133 = vmatprep.subr.bf16.mxu0 %v1018
  %1134 = vmatpush1.bf16.msra.mxu0 %v1017
  %1135 = vmatprep.subr.bf16.mxu0 %v1026
  %1136 = vmatpush1.bf16.msra.mxu0 %v1025
  %1137 = vmatprep.subr.bf16.mxu0 %v1034
  %1138 = vmatpush1.bf16.msra.mxu0 %v1033
  %1139 = vmatprep.subr.bf16.mxu0 %v1042
  %1140 = vmatpush1.bf16.msra.mxu0 %v1041
  %1141 = vmatprep.subr.bf16.mxu0 %v1050
  %1142 = vmatpush1.bf16.msra.mxu0 %v1049
  %1143 = vmatprep.subr.bf16.mxu0 %v1058
  %1144 = vmatpush1.bf16.msra.mxu0 %v1057
  %1145 = vmatprep.subr.bf16.mxu0 0
  %1146 = vmatpush1.bf16.msra.mxu0 0
  %1147 = vmatprep.subr.bf16.mxu0 0
  %1148 = vmatpush1.bf16.msra.mxu0 0
  %1149 = vmatprep.subr.bf16.mxu0 0
  %1150 = vmatpush1.bf16.msra.mxu0 0
  %1151 = vmatprep.subr.bf16.mxu0 0
  %1152 = vmatpush1.bf16.msra.mxu0 0
  %1153 = vmatprep.subr.bf16.mxu0 0
  %1154 = vmatpush1.bf16.msra.mxu0 0
  %1155 = vmatprep.subr.bf16.mxu0 0
  %1156 = vmatpush1.bf16.msra.mxu0 0
  %1157 = vmatprep.subr.bf16.mxu0 0
  %1158 = vmatpush1.bf16.msra.mxu0 0
  %1159 = vmatprep.subr.bf16.mxu0 0
  %1160 = vmatpush1.bf16.msra.mxu0 0
  %1161 = vmatprep.mubr.bf16.mxu0 0
  %1162 = vmatmul.mubr.bf16.gmra.mrb[0].mxu0 %v53
  %v1163 = vpop.f32.mrb[0].mxu0
  %v1164 = vadd.f32 %v552, %v1163
  %v1165 = vpop.f32.mrb[0].mxu0
  %v1166 = vadd.f32 %v554, %v1165
  %v1167 = vpop.f32.mrb[0].mxu0
  %v1168 = vadd.f32 %v556, %v1167
  %v1169 = vpop.f32.mrb[0].mxu0
  %v1170 = vadd.f32 %v558, %v1169
  %1171 = vmatprep.mubr.bf16.mxu0 0
  %1172 = vmatmul.mubr.bf16.gmra.mrb[0].mxu0 %v54
  %v1173 = vpop.f32.mrb[0].mxu0
  %v1174 = vadd.f32 %v562, %v1173
  %v1175 = vpop.f32.mrb[0].mxu0
  %v1176 = vadd.f32 %v564, %v1175
  %v1177 = vpop.f32.mrb[0].mxu0
  %v1178 = vadd.f32 %v566, %v1177
  %v1179 = vpop.f32.mrb[0].mxu0
  %v1180 = vadd.f32 %v568, %v1179
  %1181 = vmatprep.mubr.bf16.mxu0 0
  %1182 = vmatmul.mubr.bf16.gmra.mrb[0].mxu0 %v55
  %v1183 = vpop.f32.mrb[0].mxu0
  %v1184 = vadd.f32 %v572, %v1183
  %v1185 = vpop.f32.mrb[0].mxu0
  %v1186 = vadd.f32 %v574, %v1185
  %v1187 = vpop.f32.mrb[0].mxu0
  %v1188 = vadd.f32 %v576, %v1187
  %v1189 = vpop.f32.mrb[0].mxu0
  %v1190 = vadd.f32 %v578, %v1189
  %1191 = vmatprep.mubr.bf16.mxu0 0
  %1192 = vmatmul.mubr.bf16.gmra.mrb[0].mxu0 %v56
  %v1193 = vpop.f32.mrb[0].mxu0
  %v1194 = vadd.f32 %v582, %v1193
  %v1195 = vpop.f32.mrb[0].mxu0
  %v1196 = vadd.f32 %v584, %v1195
  %v1197 = vpop.f32.mrb[0].mxu0
  %v1198 = vadd.f32 %v586, %v1197
  %v1199 = vpop.f32.mrb[0].mxu0
  %v1200 = vadd.f32 %v588, %v1199
  %1201 = vdwg.mxu0
  %1202 = vmatprep.subr.bf16.mxu0 %v1004
  %1203 = vmatpush1.bf16.msra.mxu0 %v1003
  %1204 = vmatprep.subr.bf16.mxu0 %v1012
  %1205 = vmatpush1.bf16.msra.mxu0 %v1011
  %1206 = vmatprep.subr.bf16.mxu0 %v1020
  %1207 = vmatpush1.bf16.msra.mxu0 %v1019
  %1208 = vmatprep.subr.bf16.mxu0 %v1028
  %1209 = vmatpush1.bf16.msra.mxu0 %v1027
  %1210 = vmatprep.subr.bf16.mxu0 %v1036
  %1211 = vmatpush1.bf16.msra.mxu0 %v1035
  %1212 = vmatprep.subr.bf16.mxu0 %v1044
  %1213 = vmatpush1.bf16.msra.mxu0 %v1043
  %1214 = vmatprep.subr.bf16.mxu0 %v1052
  %1215 = vmatpush1.bf16.msra.mxu0 %v1051
  %1216 = vmatprep.subr.bf16.mxu0 %v1060
  %1217 = vmatpush1.bf16.msra.mxu0 %v1059
  %1218 = vmatprep.subr.bf16.mxu0 0
  %1219 = vmatpush1.bf16.msra.mxu0 0
  %1220 = vmatprep.subr.bf16.mxu0 0
  %1221 = vmatpush1.bf16.msra.mxu0 0
  %1222 = vmatprep.subr.bf16.mxu0 0
  %1223 = vmatpush1.bf16.msra.mxu0 0
  %1224 = vmatprep.subr.bf16.mxu0 0
  %1225 = vmatpush1.bf16.msra.mxu0 0
  %1226 = vmatprep.subr.bf16.mxu0 0
  %1227 = vmatpush1.bf16.msra.mxu0 0
  %1228 = vmatprep.subr.bf16.mxu0 0
  %1229 = vmatpush1.bf16.msra.mxu0 0
  %1230 = vmatprep.subr.bf16.mxu0 0
  %1231 = vmatpush1.bf16.msra.mxu0 0
  %1232 = vmatprep.subr.bf16.mxu0 0
  %1233 = vmatpush1.bf16.msra.mxu0 0
  %1234 = vmatprep.mubr.bf16.mxu0 0
  %1235 = vmatmul.mubr.bf16.gmra.mrb[0].mxu0 %v53
  %v1236 = vpop.f32.mrb[0].mxu0
  %v1237 = vadd.f32 %v625, %v1236
  %v1238 = vpop.f32.mrb[0].mxu0
  %v1239 = vadd.f32 %v627, %v1238
  %v1240 = vpop.f32.mrb[0].mxu0
  %v1241 = vadd.f32 %v629, %v1240
  %v1242 = vpop.f32.mrb[0].mxu0
  %v1243 = vadd.f32 %v631, %v1242
  %1244 = vmatprep.mubr.bf16.mxu0 0
  %1245 = vmatmul.mubr.bf16.gmra.mrb[0].mxu0 %v54
  %v1246 = vpop.f32.mrb[0].mxu0
  %v1247 = vadd.f32 %v635, %v1246
  %v1248 = vpop.f32.mrb[0].mxu0
  %v1249 = vadd.f32 %v637, %v1248
  %v1250 = vpop.f32.mrb[0].mxu0
  %v1251 = vadd.f32 %v639, %v1250
  %v1252 = vpop.f32.mrb[0].mxu0
  %v1253 = vadd.f32 %v641, %v1252
  %1254 = vmatprep.mubr.bf16.mxu0 0
  %1255 = vmatmul.mubr.bf16.gmra.mrb[0].mxu0 %v55
  %v1256 = vpop.f32.mrb[0].mxu0
  %v1257 = vadd.f32 %v645, %v1256
  %v1258 = vpop.f32.mrb[0].mxu0
  %v1259 = vadd.f32 %v647, %v1258
  %v1260 = vpop.f32.mrb[0].mxu0
  %v1261 = vadd.f32 %v649, %v1260
  %v1262 = vpop.f32.mrb[0].mxu0
  %v1263 = vadd.f32 %v651, %v1262
  %1264 = vmatprep.mubr.bf16.mxu0 0
  %1265 = vmatmul.mubr.bf16.gmra.mrb[0].mxu0 %v56
  %v1266 = vpop.f32.mrb[0].mxu0
  %v1267 = vadd.f32 %v655, %v1266
  %v1268 = vpop.f32.mrb[0].mxu0
  %v1269 = vadd.f32 %v657, %v1268
  %v1270 = vpop.f32.mrb[0].mxu0
  %v1271 = vadd.f32 %v659, %v1270
  %v1272 = vpop.f32.mrb[0].mxu0
  %v1273 = vadd.f32 %v661, %v1272
  %1274 = vdwg.mxu0
  %1275 = vmatprep.subr.bf16.mxu0 %v1006
  %1276 = vmatpush1.bf16.msra.mxu0 %v1005
  %1277 = vmatprep.subr.bf16.mxu0 %v1014
  %1278 = vmatpush1.bf16.msra.mxu0 %v1013
  %1279 = vmatprep.subr.bf16.mxu0 %v1022
  %1280 = vmatpush1.bf16.msra.mxu0 %v1021
  %1281 = vmatprep.subr.bf16.mxu0 %v1030
  %1282 = vmatpush1.bf16.msra.mxu0 %v1029
  %1283 = vmatprep.subr.bf16.mxu0 %v1038
  %1284 = vmatpush1.bf16.msra.mxu0 %v1037
  %1285 = vmatprep.subr.bf16.mxu0 %v1046
  %1286 = vmatpush1.bf16.msra.mxu0 %v1045
  %1287 = vmatprep.subr.bf16.mxu0 %v1054
  %1288 = vmatpush1.bf16.msra.mxu0 %v1053
  %1289 = vmatprep.subr.bf16.mxu0 %v1062
  %1290 = vmatpush1.bf16.msra.mxu0 %v1061
  %1291 = vmatprep.subr.bf16.mxu0 0
  %1292 = vmatpush1.bf16.msra.mxu0 0
  %1293 = vmatprep.subr.bf16.mxu0 0
  %1294 = vmatpush1.bf16.msra.mxu0 0
  %1295 = vmatprep.subr.bf16.mxu0 0
  %1296 = vmatpush1.bf16.msra.mxu0 0
  %1297 = vmatprep.subr.bf16.mxu0 0
  %1298 = vmatpush1.bf16.msra.mxu0 0
  %1299 = vmatprep.subr.bf16.mxu0 0
  %1300 = vmatpush1.bf16.msra.mxu0 0
  %1301 = vmatprep.subr.bf16.mxu0 0
  %1302 = vmatpush1.bf16.msra.mxu0 0
  %1303 = vmatprep.subr.bf16.mxu0 0
  %1304 = vmatpush1.bf16.msra.mxu0 0
  %1305 = vmatprep.subr.bf16.mxu0 0
  %1306 = vmatpush1.bf16.msra.mxu0 0
  %1307 = vmatprep.mubr.bf16.mxu0 0
  %1308 = vmatmul.mubr.bf16.gmra.mrb[0].mxu0 %v53
  %v1309 = vpop.f32.mrb[0].mxu0
  %v1310 = vadd.f32 %v698, %v1309
  %v1311 = vpop.f32.mrb[0].mxu0
  %v1312 = vadd.f32 %v700, %v1311
  %v1313 = vpop.f32.mrb[0].mxu0
  %v1314 = vadd.f32 %v702, %v1313
  %v1315 = vpop.f32.mrb[0].mxu0
  %v1316 = vadd.f32 %v704, %v1315
  %1317 = vmatprep.mubr.bf16.mxu0 0
  %1318 = vmatmul.mubr.bf16.gmra.mrb[0].mxu0 %v54
  %v1319 = vpop.f32.mrb[0].mxu0
  %v1320 = vadd.f32 %v708, %v1319
  %v1321 = vpop.f32.mrb[0].mxu0
  %v1322 = vadd.f32 %v710, %v1321
  %v1323 = vpop.f32.mrb[0].mxu0
  %v1324 = vadd.f32 %v712, %v1323
  %v1325 = vpop.f32.mrb[0].mxu0
  %v1326 = vadd.f32 %v714, %v1325
  %1327 = vmatprep.mubr.bf16.mxu0 0
  %1328 = vmatmul.mubr.bf16.gmra.mrb[0].mxu0 %v55
  %v1329 = vpop.f32.mrb[0].mxu0
  %v1330 = vadd.f32 %v718, %v1329
  %v1331 = vpop.f32.mrb[0].mxu0
  %v1332 = vadd.f32 %v720, %v1331
  %v1333 = vpop.f32.mrb[0].mxu0
  %v1334 = vadd.f32 %v722, %v1333
  %v1335 = vpop.f32.mrb[0].mxu0
  %v1336 = vadd.f32 %v724, %v1335
  %1337 = vmatprep.mubr.bf16.mxu0 0
  %1338 = vmatmul.mubr.bf16.gmra.mrb[0].mxu0 %v56
  %v1339 = vpop.f32.mrb[0].mxu0
  %v1340 = vadd.f32 %v728, %v1339
  %v1341 = vpop.f32.mrb[0].mxu0
  %v1342 = vadd.f32 %v730, %v1341
  %v1343 = vpop.f32.mrb[0].mxu0
  %v1344 = vadd.f32 %v732, %v1343
  %v1345 = vpop.f32.mrb[0].mxu0
  %v1346 = vadd.f32 %v734, %v1345
  %1347 = vdwg.mxu0
  %1348 = vmatprep.subr.bf16.mxu0 %v1008
  %1349 = vmatpush1.bf16.msra.mxu0 %v1007
  %1350 = vmatprep.subr.bf16.mxu0 %v1016
  %1351 = vmatpush1.bf16.msra.mxu0 %v1015
  %1352 = vmatprep.subr.bf16.mxu0 %v1024
  %1353 = vmatpush1.bf16.msra.mxu0 %v1023
  %1354 = vmatprep.subr.bf16.mxu0 %v1032
  %1355 = vmatpush1.bf16.msra.mxu0 %v1031
  %1356 = vmatprep.subr.bf16.mxu0 %v1040
  %1357 = vmatpush1.bf16.msra.mxu0 %v1039
  %1358 = vmatprep.subr.bf16.mxu0 %v1048
  %1359 = vmatpush1.bf16.msra.mxu0 %v1047
  %1360 = vmatprep.subr.bf16.mxu0 %v1056
  %1361 = vmatpush1.bf16.msra.mxu0 %v1055
  %1362 = vmatprep.subr.bf16.mxu0 %v1064
  %1363 = vmatpush1.bf16.msra.mxu0 %v1063
  %1364 = vmatprep.subr.bf16.mxu0 0
  %1365 = vmatpush1.bf16.msra.mxu0 0
  %1366 = vmatprep.subr.bf16.mxu0 0
  %1367 = vmatpush1.bf16.msra.mxu0 0
  %1368 = vmatprep.subr.bf16.mxu0 0
  %1369 = vmatpush1.bf16.msra.mxu0 0
  %1370 = vmatprep.subr.bf16.mxu0 0
  %1371 = vmatpush1.bf16.msra.mxu0 0
  %1372 = vmatprep.subr.bf16.mxu0 0
  %1373 = vmatpush1.bf16.msra.mxu0 0
  %1374 = vmatprep.subr.bf16.mxu0 0
  %1375 = vmatpush1.bf16.msra.mxu0 0
  %1376 = vmatprep.subr.bf16.mxu0 0
  %1377 = vmatpush1.bf16.msra.mxu0 0
  %1378 = vmatprep.subr.bf16.mxu0 0
  %1379 = vmatpush1.bf16.msra.mxu0 0
  %1380 = vmatprep.mubr.bf16.mxu0 0
  %1381 = vmatmul.mubr.bf16.gmra.mrb[0].mxu0 %v53
  %v1382 = vpop.f32.mrb[0].mxu0
  %v1383 = vadd.f32 %v771, %v1382
  %v1384 = vpop.f32.mrb[0].mxu0
  %v1385 = vadd.f32 %v773, %v1384
  %v1386 = vpop.f32.mrb[0].mxu0
  %v1387 = vadd.f32 %v775, %v1386
  %v1388 = vpop.f32.mrb[0].mxu0
  %v1389 = vadd.f32 %v777, %v1388
  %1390 = vmatprep.mubr.bf16.mxu0 0
  %1391 = vmatmul.mubr.bf16.gmra.mrb[0].mxu0 %v54
  %v1392 = vpop.f32.mrb[0].mxu0
  %v1393 = vadd.f32 %v781, %v1392
  %v1394 = vpop.f32.mrb[0].mxu0
  %v1395 = vadd.f32 %v783, %v1394
  %v1396 = vpop.f32.mrb[0].mxu0
  %v1397 = vadd.f32 %v785, %v1396
  %v1398 = vpop.f32.mrb[0].mxu0
  %v1399 = vadd.f32 %v787, %v1398
  %1400 = vmatprep.mubr.bf16.mxu0 0
  %1401 = vmatmul.mubr.bf16.gmra.mrb[0].mxu0 %v55
  %v1402 = vpop.f32.mrb[0].mxu0
  %v1403 = vadd.f32 %v791, %v1402
  %v1404 = vpop.f32.mrb[0].mxu0
  %v1405 = vadd.f32 %v793, %v1404
  %v1406 = vpop.f32.mrb[0].mxu0
  %v1407 = vadd.f32 %v795, %v1406
  %v1408 = vpop.f32.mrb[0].mxu0
  %v1409 = vadd.f32 %v797, %v1408
  %1410 = vmatprep.mubr.bf16.mxu0 0
  %1411 = vmatmul.mubr.bf16.gmra.mrb[0].mxu0 %v56
  %v1412 = vpop.f32.mrb[0].mxu0
  %v1413 = vadd.f32 %v801, %v1412
  %v1414 = vpop.f32.mrb[0].mxu0
  %v1415 = vadd.f32 %v803, %v1414
  %v1416 = vpop.f32.mrb[0].mxu0
  %v1417 = vadd.f32 %v805, %v1416
  %v1418 = vpop.f32.mrb[0].mxu0
  %v1419 = vadd.f32 %v807, %v1418
  %1420 = vdwg.mxu0
  %v1421 = vld [vmem:[%s2] sm:$0xff]
  %v1422 = vld [vmem:[%s2 + $0x8] sm:$0xff]
  %v1423 = vld [vmem:[%s2 + $0x10] sm:$0xff]
  %v1424 = vld [vmem:[%s2 + $0x18] sm:$0xff]
  %v1425 = vld [vmem:[%s2 + $0x20] sm:$0xff]
  %v1426 = vld [vmem:[%s2 + $0x28] sm:$0xff]
  %v1427 = vld [vmem:[%s2 + $0x30] sm:$0xff]
  %v1428 = vld [vmem:[%s2 + $0x38] sm:$0xff]
  %v1429 = vpack.c.bf16 %v1422, %v1421
  %v1430 = vpack.c.bf16 %v1424, %v1423
  %v1431 = vpack.c.bf16 %v1426, %v1425
  %v1432 = vpack.c.bf16 %v1428, %v1427
  %v1433 = vld [vmem:[%s5] sm:$0xff]
  %v1434 = vld [vmem:[%s5 + $0x8] sm:$0xff]
  %v1435 = vld [vmem:[%s5 + $0x10] sm:$0xff]
  %v1436 = vld [vmem:[%s5 + $0x18] sm:$0xff]
  %v1437 = vld [vmem:[%s5 + $0x20] sm:$0xff]
  %v1438 = vld [vmem:[%s5 + $0x28] sm:$0xff]
  %v1439 = vld [vmem:[%s5 + $0x30] sm:$0xff]
  %v1440 = vld [vmem:[%s5 + $0x38] sm:$0xff]
  %v1441 = vld [vmem:[%s5 + $0x40] sm:$0xff]
  %v1442 = vld [vmem:[%s5 + $0x48] sm:$0xff]
  %v1443 = vld [vmem:[%s5 + $0x50] sm:$0xff]
  %v1444 = vld [vmem:[%s5 + $0x58] sm:$0xff]
  %v1445 = vld [vmem:[%s5 + $0x60] sm:$0xff]
  %v1446 = vld [vmem:[%s5 + $0x68] sm:$0xff]
  %v1447 = vld [vmem:[%s5 + $0x70] sm:$0xff]
  %v1448 = vld [vmem:[%s5 + $0x78] sm:$0xff]
  %v1449 = vld [vmem:[%s5 + $0x80] sm:$0xff]
  %v1450 = vld [vmem:[%s5 + $0x88] sm:$0xff]
  %v1451 = vld [vmem:[%s5 + $0x90] sm:$0xff]
  %v1452 = vld [vmem:[%s5 + $0x98] sm:$0xff]
  %v1453 = vld [vmem:[%s5 + $0xa0] sm:$0xff]
  %v1454 = vld [vmem:[%s5 + $0xa8] sm:$0xff]
  %v1455 = vld [vmem:[%s5 + $0xb0] sm:$0xff]
  %v1456 = vld [vmem:[%s5 + $0xb8] sm:$0xff]
  %v1457 = vld [vmem:[%s5 + $0xc0] sm:$0xff]
  %v1458 = vld [vmem:[%s5 + $0xc8] sm:$0xff]
  %v1459 = vld [vmem:[%s5 + $0xd0] sm:$0xff]
  %v1460 = vld [vmem:[%s5 + $0xd8] sm:$0xff]
  %v1461 = vld [vmem:[%s5 + $0xe0] sm:$0xff]
  %v1462 = vld [vmem:[%s5 + $0xe8] sm:$0xff]
  %v1463 = vld [vmem:[%s5 + $0xf0] sm:$0xff]
  %v1464 = vld [vmem:[%s5 + $0xf8] sm:$0xff]
  %v1465 = vld [vmem:[%s5 + $0x100] sm:$0xff]
  %v1466 = vld [vmem:[%s5 + $0x108] sm:$0xff]
  %v1467 = vld [vmem:[%s5 + $0x110] sm:$0xff]
  %v1468 = vld [vmem:[%s5 + $0x118] sm:$0xff]
  %v1469 = vld [vmem:[%s5 + $0x120] sm:$0xff]
  %v1470 = vld [vmem:[%s5 + $0x128] sm:$0xff]
  %v1471 = vld [vmem:[%s5 + $0x130] sm:$0xff]
  %v1472 = vld [vmem:[%s5 + $0x138] sm:$0xff]
  %v1473 = vld [vmem:[%s5 + $0x140] sm:$0xff]
  %v1474 = vld [vmem:[%s5 + $0x148] sm:$0xff]
  %v1475 = vld [vmem:[%s5 + $0x150] sm:$0xff]
  %v1476 = vld [vmem:[%s5 + $0x158] sm:$0xff]
  %v1477 = vld [vmem:[%s5 + $0x160] sm:$0xff]
  %v1478 = vld [vmem:[%s5 + $0x168] sm:$0xff]
  %v1479 = vld [vmem:[%s5 + $0x170] sm:$0xff]
  %v1480 = vld [vmem:[%s5 + $0x178] sm:$0xff]
  %v1481 = vld [vmem:[%s5 + $0x180] sm:$0xff]
  %v1482 = vld [vmem:[%s5 + $0x188] sm:$0xff]
  %v1483 = vld [vmem:[%s5 + $0x190] sm:$0xff]
  %v1484 = vld [vmem:[%s5 + $0x198] sm:$0xff]
  %v1485 = vld [vmem:[%s5 + $0x1a0] sm:$0xff]
  %v1486 = vld [vmem:[%s5 + $0x1a8] sm:$0xff]
  %v1487 = vld [vmem:[%s5 + $0x1b0] sm:$0xff]
  %v1488 = vld [vmem:[%s5 + $0x1b8] sm:$0xff]
  %v1489 = vld [vmem:[%s5 + $0x1c0] sm:$0xff]
  %v1490 = vld [vmem:[%s5 + $0x1c8] sm:$0xff]
  %v1491 = vld [vmem:[%s5 + $0x1d0] sm:$0xff]
  %v1492 = vld [vmem:[%s5 + $0x1d8] sm:$0xff]
  %v1493 = vld [vmem:[%s5 + $0x1e0] sm:$0xff]
  %v1494 = vld [vmem:[%s5 + $0x1e8] sm:$0xff]
  %v1495 = vld [vmem:[%s5 + $0x1f0] sm:$0xff]
  %v1496 = vld [vmem:[%s5 + $0x1f8] sm:$0xff]
  %v1561 = vunpack.c.l.b16 %v1433
  %v1562 = vunpack.c.h.b16 %v1433
  %v1563 = vunpack.c.l.b16 %v1434
  %v1564 = vunpack.c.h.b16 %v1434
  %v1565 = vunpack.c.l.b16 %v1435
  %v1566 = vunpack.c.h.b16 %v1435
  %v1567 = vunpack.c.l.b16 %v1436
  %v1568 = vunpack.c.h.b16 %v1436
  %v1569 = vunpack.c.l.b16 %v1437
  %v1570 = vunpack.c.h.b16 %v1437
  %v1571 = vunpack.c.l.b16 %v1438
  %v1572 = vunpack.c.h.b16 %v1438
  %v1573 = vunpack.c.l.b16 %v1439
  %v1574 = vunpack.c.h.b16 %v1439
  %v1575 = vunpack.c.l.b16 %v1440
  %v1576 = vunpack.c.h.b16 %v1440
  %v1577 = vunpack.c.l.b16 %v1441
  %v1578 = vunpack.c.h.b16 %v1441
  %v1579 = vunpack.c.l.b16 %v1442
  %v1580 = vunpack.c.h.b16 %v1442
  %v1581 = vunpack.c.l.b16 %v1443
  %v1582 = vunpack.c.h.b16 %v1443
  %v1583 = vunpack.c.l.b16 %v1444
  %v1584 = vunpack.c.h.b16 %v1444
  %v1585 = vunpack.c.l.b16 %v1445
  %v1586 = vunpack.c.h.b16 %v1445
  %v1587 = vunpack.c.l.b16 %v1446
  %v1588 = vunpack.c.h.b16 %v1446
  %v1589 = vunpack.c.l.b16 %v1447
  %v1590 = vunpack.c.h.b16 %v1447
  %v1591 = vunpack.c.l.b16 %v1448
  %v1592 = vunpack.c.h.b16 %v1448
  %v1593 = vunpack.c.l.b16 %v1449
  %v1594 = vunpack.c.h.b16 %v1449
  %v1595 = vunpack.c.l.b16 %v1450
  %v1596 = vunpack.c.h.b16 %v1450
  %v1597 = vunpack.c.l.b16 %v1451
  %v1598 = vunpack.c.h.b16 %v1451
  %v1599 = vunpack.c.l.b16 %v1452
  %v1600 = vunpack.c.h.b16 %v1452
  %v1601 = vunpack.c.l.b16 %v1453
  %v1602 = vunpack.c.h.b16 %v1453
  %v1603 = vunpack.c.l.b16 %v1454
  %v1604 = vunpack.c.h.b16 %v1454
  %v1605 = vunpack.c.l.b16 %v1455
  %v1606 = vunpack.c.h.b16 %v1455
  %v1607 = vunpack.c.l.b16 %v1456
  %v1608 = vunpack.c.h.b16 %v1456
  %v1609 = vunpack.c.l.b16 %v1457
  %v1610 = vunpack.c.h.b16 %v1457
  %v1611 = vunpack.c.l.b16 %v1458
  %v1612 = vunpack.c.h.b16 %v1458
  %v1613 = vunpack.c.l.b16 %v1459
  %v1614 = vunpack.c.h.b16 %v1459
  %v1615 = vunpack.c.l.b16 %v1460
  %v1616 = vunpack.c.h.b16 %v1460
  %v1617 = vunpack.c.l.b16 %v1461
  %v1618 = vunpack.c.h.b16 %v1461
  %v1619 = vunpack.c.l.b16 %v1462
  %v1620 = vunpack.c.h.b16 %v1462
  %v1621 = vunpack.c.l.b16 %v1463
  %v1622 = vunpack.c.h.b16 %v1463
  %v1623 = vunpack.c.l.b16 %v1464
  %v1624 = vunpack.c.h.b16 %v1464
  %v1625 = vunpack.c.l.b16 %v1465
  %v1626 = vunpack.c.h.b16 %v1465
  %v1627 = vunpack.c.l.b16 %v1466
  %v1628 = vunpack.c.h.b16 %v1466
  %v1629 = vunpack.c.l.b16 %v1467
  %v1630 = vunpack.c.h.b16 %v1467
  %v1631 = vunpack.c.l.b16 %v1468
  %v1632 = vunpack.c.h.b16 %v1468
  %v1633 = vunpack.c.l.b16 %v1469
  %v1634 = vunpack.c.h.b16 %v1469
  %v1635 = vunpack.c.l.b16 %v1470
  %v1636 = vunpack.c.h.b16 %v1470
  %v1637 = vunpack.c.l.b16 %v1471
  %v1638 = vunpack.c.h.b16 %v1471
  %v1639 = vunpack.c.l.b16 %v1472
  %v1640 = vunpack.c.h.b16 %v1472
  %v1641 = vunpack.c.l.b16 %v1473
  %v1642 = vunpack.c.h.b16 %v1473
  %v1643 = vunpack.c.l.b16 %v1474
  %v1644 = vunpack.c.h.b16 %v1474
  %v1645 = vunpack.c.l.b16 %v1475
  %v1646 = vunpack.c.h.b16 %v1475
  %v1647 = vunpack.c.l.b16 %v1476
  %v1648 = vunpack.c.h.b16 %v1476
  %v1649 = vunpack.c.l.b16 %v1477
  %v1650 = vunpack.c.h.b16 %v1477
  %v1651 = vunpack.c.l.b16 %v1478
  %v1652 = vunpack.c.h.b16 %v1478
  %v1653 = vunpack.c.l.b16 %v1479
  %v1654 = vunpack.c.h.b16 %v1479
  %v1655 = vunpack.c.l.b16 %v1480
  %v1656 = vunpack.c.h.b16 %v1480
  %v1657 = vunpack.c.l.b16 %v1481
  %v1658 = vunpack.c.h.b16 %v1481
  %v1659 = vunpack.c.l.b16 %v1482
  %v1660 = vunpack.c.h.b16 %v1482
  %v1661 = vunpack.c.l.b16 %v1483
  %v1662 = vunpack.c.h.b16 %v1483
  %v1663 = vunpack.c.l.b16 %v1484
  %v1664 = vunpack.c.h.b16 %v1484
  %v1665 = vunpack.c.l.b16 %v1485
  %v1666 = vunpack.c.h.b16 %v1485
  %v1667 = vunpack.c.l.b16 %v1486
  %v1668 = vunpack.c.h.b16 %v1486
  %v1669 = vunpack.c.l.b16 %v1487
  %v1670 = vunpack.c.h.b16 %v1487
  %v1671 = vunpack.c.l.b16 %v1488
  %v1672 = vunpack.c.h.b16 %v1488
  %v1673 = vunpack.c.l.b16 %v1489
  %v1674 = vunpack.c.h.b16 %v1489
  %v1675 = vunpack.c.l.b16 %v1490
  %v1676 = vunpack.c.h.b16 %v1490
  %v1677 = vunpack.c.l.b16 %v1491
  %v1678 = vunpack.c.h.b16 %v1491
  %v1679 = vunpack.c.l.b16 %v1492
  %v1680 = vunpack.c.h.b16 %v1492
  %v1681 = vunpack.c.l.b16 %v1493
  %v1682 = vunpack.c.h.b16 %v1493
  %v1683 = vunpack.c.l.b16 %v1494
  %v1684 = vunpack.c.h.b16 %v1494
  %v1685 = vunpack.c.l.b16 %v1495
  %v1686 = vunpack.c.h.b16 %v1495
  %v1687 = vunpack.c.l.b16 %v1496
  %v1688 = vunpack.c.h.b16 %v1496
  %v1689 = vpack.c.b16 %v1569, %v1561
  %v1690 = vpack.c.b16 %v1570, %v1562
  %v1691 = vpack.c.b16 %v1571, %v1563
  %v1692 = vpack.c.b16 %v1572, %v1564
  %v1693 = vpack.c.b16 %v1573, %v1565
  %v1694 = vpack.c.b16 %v1574, %v1566
  %v1695 = vpack.c.b16 %v1575, %v1567
  %v1696 = vpack.c.b16 %v1576, %v1568
  %v1697 = vpack.c.b16 %v1585, %v1577
  %v1698 = vpack.c.b16 %v1586, %v1578
  %v1699 = vpack.c.b16 %v1587, %v1579
  %v1700 = vpack.c.b16 %v1588, %v1580
  %v1701 = vpack.c.b16 %v1589, %v1581
  %v1702 = vpack.c.b16 %v1590, %v1582
  %v1703 = vpack.c.b16 %v1591, %v1583
  %v1704 = vpack.c.b16 %v1592, %v1584
  %v1705 = vpack.c.b16 %v1601, %v1593
  %v1706 = vpack.c.b16 %v1602, %v1594
  %v1707 = vpack.c.b16 %v1603, %v1595
  %v1708 = vpack.c.b16 %v1604, %v1596
  %v1709 = vpack.c.b16 %v1605, %v1597
  %v1710 = vpack.c.b16 %v1606, %v1598
  %v1711 = vpack.c.b16 %v1607, %v1599
  %v1712 = vpack.c.b16 %v1608, %v1600
  %v1713 = vpack.c.b16 %v1617, %v1609
  %v1714 = vpack.c.b16 %v1618, %v1610
  %v1715 = vpack.c.b16 %v1619, %v1611
  %v1716 = vpack.c.b16 %v1620, %v1612
  %v1717 = vpack.c.b16 %v1621, %v1613
  %v1718 = vpack.c.b16 %v1622, %v1614
  %v1719 = vpack.c.b16 %v1623, %v1615
  %v1720 = vpack.c.b16 %v1624, %v1616
  %v1721 = vpack.c.b16 %v1633, %v1625
  %v1722 = vpack.c.b16 %v1634, %v1626
  %v1723 = vpack.c.b16 %v1635, %v1627
  %v1724 = vpack.c.b16 %v1636, %v1628
  %v1725 = vpack.c.b16 %v1637, %v1629
  %v1726 = vpack.c.b16 %v1638, %v1630
  %v1727 = vpack.c.b16 %v1639, %v1631
  %v1728 = vpack.c.b16 %v1640, %v1632
  %v1729 = vpack.c.b16 %v1649, %v1641
  %v1730 = vpack.c.b16 %v1650, %v1642
  %v1731 = vpack.c.b16 %v1651, %v1643
  %v1732 = vpack.c.b16 %v1652, %v1644
  %v1733 = vpack.c.b16 %v1653, %v1645
  %v1734 = vpack.c.b16 %v1654, %v1646
  %v1735 = vpack.c.b16 %v1655, %v1647
  %v1736 = vpack.c.b16 %v1656, %v1648
  %v1737 = vpack.c.b16 %v1665, %v1657
  %v1738 = vpack.c.b16 %v1666, %v1658
  %v1739 = vpack.c.b16 %v1667, %v1659
  %v1740 = vpack.c.b16 %v1668, %v1660
  %v1741 = vpack.c.b16 %v1669, %v1661
  %v1742 = vpack.c.b16 %v1670, %v1662
  %v1743 = vpack.c.b16 %v1671, %v1663
  %v1744 = vpack.c.b16 %v1672, %v1664
  %v1745 = vpack.c.b16 %v1681, %v1673
  %v1746 = vpack.c.b16 %v1682, %v1674
  %v1747 = vpack.c.b16 %v1683, %v1675
  %v1748 = vpack.c.b16 %v1684, %v1676
  %v1749 = vpack.c.b16 %v1685, %v1677
  %v1750 = vpack.c.b16 %v1686, %v1678
  %v1751 = vpack.c.b16 %v1687, %v1679
  %v1752 = vpack.c.b16 %v1688, %v1680
  %1817 = vmatprep.subr.bf16.mxu0 %v1690
  %1818 = vmatpush1.bf16.msra.mxu0 %v1689
  %1819 = vmatprep.subr.bf16.mxu0 %v1698
  %1820 = vmatpush1.bf16.msra.mxu0 %v1697
  %1821 = vmatprep.subr.bf16.mxu0 %v1706
  %1822 = vmatpush1.bf16.msra.mxu0 %v1705
  %1823 = vmatprep.subr.bf16.mxu0 %v1714
  %1824 = vmatpush1.bf16.msra.mxu0 %v1713
  %1825 = vmatprep.subr.bf16.mxu0 %v1722
  %1826 = vmatpush1.bf16.msra.mxu0 %v1721
  %1827 = vmatprep.subr.bf16.mxu0 %v1730
  %1828 = vmatpush1.bf16.msra.mxu0 %v1729
  %1829 = vmatprep.subr.bf16.mxu0 %v1738
  %1830 = vmatpush1.bf16.msra.mxu0 %v1737
  %1831 = vmatprep.subr.bf16.mxu0 %v1746
  %1832 = vmatpush1.bf16.msra.mxu0 %v1745
  %1833 = vmatprep.subr.bf16.mxu0 0
  %1834 = vmatpush1.bf16.msra.mxu0 0
  %1835 = vmatprep.subr.bf16.mxu0 0
  %1836 = vmatpush1.bf16.msra.mxu0 0
  %1837 = vmatprep.subr.bf16.mxu0 0
  %1838 = vmatpush1.bf16.msra.mxu0 0
  %1839 = vmatprep.subr.bf16.mxu0 0
  %1840 = vmatpush1.bf16.msra.mxu0 0
  %1841 = vmatprep.subr.bf16.mxu0 0
  %1842 = vmatpush1.bf16.msra.mxu0 0
  %1843 = vmatprep.subr.bf16.mxu0 0
  %1844 = vmatpush1.bf16.msra.mxu0 0
  %1845 = vmatprep.subr.bf16.mxu0 0
  %1846 = vmatpush1.bf16.msra.mxu0 0
  %1847 = vmatprep.subr.bf16.mxu0 0
  %1848 = vmatpush1.bf16.msra.mxu0 0
  %1849 = vmatprep.mubr.bf16.mxu0 0
  %1850 = vmatmul.mubr.bf16.gmra.mrb[0].mxu0 %v1429
  %v1851 = vpop.f32.mrb[0].mxu0
  %v1852 = vadd.f32 0.0, %v1851
  %v1853 = vpop.f32.mrb[0].mxu0
  %v1854 = vadd.f32 0.0, %v1853
  %v1855 = vpop.f32.mrb[0].mxu0
  %v1856 = vadd.f32 0.0, %v1855
  %v1857 = vpop.f32.mrb[0].mxu0
  %v1858 = vadd.f32 0.0, %v1857
  %1859 = vmatprep.mubr.bf16.mxu0 0
  %1860 = vmatmul.mubr.bf16.gmra.mrb[0].mxu0 %v1430
  %v1861 = vpop.f32.mrb[0].mxu0
  %v1862 = vadd.f32 0.0, %v1861
  %v1863 = vpop.f32.mrb[0].mxu0
  %v1864 = vadd.f32 0.0, %v1863
  %v1865 = vpop.f32.mrb[0].mxu0
  %v1866 = vadd.f32 0.0, %v1865
  %v1867 = vpop.f32.mrb[0].mxu0
  %v1868 = vadd.f32 0.0, %v1867
  %1869 = vmatprep.mubr.bf16.mxu0 0
  %1870 = vmatmul.mubr.bf16.gmra.mrb[0].mxu0 %v1431
  %v1871 = vpop.f32.mrb[0].mxu0
  %v1872 = vadd.f32 0.0, %v1871
  %v1873 = vpop.f32.mrb[0].mxu0
  %v1874 = vadd.f32 0.0, %v1873
  %v1875 = vpop.f32.mrb[0].mxu0
  %v1876 = vadd.f32 0.0, %v1875
  %v1877 = vpop.f32.mrb[0].mxu0
  %v1878 = vadd.f32 0.0, %v1877
  %1879 = vmatprep.mubr.bf16.mxu0 0
  %1880 = vmatmul.mubr.bf16.gmra.mrb[0].mxu0 %v1432
  %v1881 = vpop.f32.mrb[0].mxu0
  %v1882 = vadd.f32 0.0, %v1881
  %v1883 = vpop.f32.mrb[0].mxu0
  %v1884 = vadd.f32 0.0, %v1883
  %v1885 = vpop.f32.mrb[0].mxu0
  %v1886 = vadd.f32 0.0, %v1885
  %v1887 = vpop.f32.mrb[0].mxu0
  %v1888 = vadd.f32 0.0, %v1887
  %1889 = vdwg.mxu0
  %1890 = vmatprep.subr.bf16.mxu0 %v1692
  %1891 = vmatpush1.bf16.msra.mxu0 %v1691
  %1892 = vmatprep.subr.bf16.mxu0 %v1700
  %1893 = vmatpush1.bf16.msra.mxu0 %v1699
  %1894 = vmatprep.subr.bf16.mxu0 %v1708
  %1895 = vmatpush1.bf16.msra.mxu0 %v1707
  %1896 = vmatprep.subr.bf16.mxu0 %v1716
  %1897 = vmatpush1.bf16.msra.mxu0 %v1715
  %1898 = vmatprep.subr.bf16.mxu0 %v1724
  %1899 = vmatpush1.bf16.msra.mxu0 %v1723
  %1900 = vmatprep.subr.bf16.mxu0 %v1732
  %1901 = vmatpush1.bf16.msra.mxu0 %v1731
  %1902 = vmatprep.subr.bf16.mxu0 %v1740
  %1903 = vmatpush1.bf16.msra.mxu0 %v1739
  %1904 = vmatprep.subr.bf16.mxu0 %v1748
  %1905 = vmatpush1.bf16.msra.mxu0 %v1747
  %1906 = vmatprep.subr.bf16.mxu0 0
  %1907 = vmatpush1.bf16.msra.mxu0 0
  %1908 = vmatprep.subr.bf16.mxu0 0
  %1909 = vmatpush1.bf16.msra.mxu0 0
  %1910 = vmatprep.subr.bf16.mxu0 0
  %1911 = vmatpush1.bf16.msra.mxu0 0
  %1912 = vmatprep.subr.bf16.mxu0 0
  %1913 = vmatpush1.bf16.msra.mxu0 0
  %1914 = vmatprep.subr.bf16.mxu0 0
  %1915 = vmatpush1.bf16.msra.mxu0 0
  %1916 = vmatprep.subr.bf16.mxu0 0
  %1917 = vmatpush1.bf16.msra.mxu0 0
  %1918 = vmatprep.subr.bf16.mxu0 0
  %1919 = vmatpush1.bf16.msra.mxu0 0
  %1920 = vmatprep.subr.bf16.mxu0 0
  %1921 = vmatpush1.bf16.msra.mxu0 0
  %1922 = vmatprep.mubr.bf16.mxu0 0
  %1923 = vmatmul.mubr.bf16.gmra.mrb[0].mxu0 %v1429
  %v1924 = vpop.f32.mrb[0].mxu0
  %v1925 = vadd.f32 0.0, %v1924
  %v1926 = vpop.f32.mrb[0].mxu0
  %v1927 = vadd.f32 0.0, %v1926
  %v1928 = vpop.f32.mrb[0].mxu0
  %v1929 = vadd.f32 0.0, %v1928
  %v1930 = vpop.f32.mrb[0].mxu0
  %v1931 = vadd.f32 0.0, %v1930
  %1932 = vmatprep.mubr.bf16.mxu0 0
  %1933 = vmatmul.mubr.bf16.gmra.mrb[0].mxu0 %v1430
  %v1934 = vpop.f32.mrb[0].mxu0
  %v1935 = vadd.f32 0.0, %v1934
  %v1936 = vpop.f32.mrb[0].mxu0
  %v1937 = vadd.f32 0.0, %v1936
  %v1938 = vpop.f32.mrb[0].mxu0
  %v1939 = vadd.f32 0.0, %v1938
  %v1940 = vpop.f32.mrb[0].mxu0
  %v1941 = vadd.f32 0.0, %v1940
  %1942 = vmatprep.mubr.bf16.mxu0 0
  %1943 = vmatmul.mubr.bf16.gmra.mrb[0].mxu0 %v1431
  %v1944 = vpop.f32.mrb[0].mxu0
  %v1945 = vadd.f32 0.0, %v1944
  %v1946 = vpop.f32.mrb[0].mxu0
  %v1947 = vadd.f32 0.0, %v1946
  %v1948 = vpop.f32.mrb[0].mxu0
  %v1949 = vadd.f32 0.0, %v1948
  %v1950 = vpop.f32.mrb[0].mxu0
  %v1951 = vadd.f32 0.0, %v1950
  %1952 = vmatprep.mubr.bf16.mxu0 0
  %1953 = vmatmul.mubr.bf16.gmra.mrb[0].mxu0 %v1432
  %v1954 = vpop.f32.mrb[0].mxu0
  %v1955 = vadd.f32 0.0, %v1954
  %v1956 = vpop.f32.mrb[0].mxu0
  %v1957 = vadd.f32 0.0, %v1956
  %v1958 = vpop.f32.mrb[0].mxu0
  %v1959 = vadd.f32 0.0, %v1958
  %v1960 = vpop.f32.mrb[0].mxu0
  %v1961 = vadd.f32 0.0, %v1960
  %1962 = vdwg.mxu0
  %1963 = vmatprep.subr.bf16.mxu0 %v1694
  %1964 = vmatpush1.bf16.msra.mxu0 %v1693
  %1965 = vmatprep.subr.bf16.mxu0 %v1702
  %1966 = vmatpush1.bf16.msra.mxu0 %v1701
  %1967 = vmatprep.subr.bf16.mxu0 %v1710
  %1968 = vmatpush1.bf16.msra.mxu0 %v1709
  %1969 = vmatprep.subr.bf16.mxu0 %v1718
  %1970 = vmatpush1.bf16.msra.mxu0 %v1717
  %1971 = vmatprep.subr.bf16.mxu0 %v1726
  %1972 = vmatpush1.bf16.msra.mxu0 %v1725
  %1973 = vmatprep.subr.bf16.mxu0 %v1734
  %1974 = vmatpush1.bf16.msra.mxu0 %v1733
  %1975 = vmatprep.subr.bf16.mxu0 %v1742
  %1976 = vmatpush1.bf16.msra.mxu0 %v1741
  %1977 = vmatprep.subr.bf16.mxu0 %v1750
  %1978 = vmatpush1.bf16.msra.mxu0 %v1749
  %1979 = vmatprep.subr.bf16.mxu0 0
  %1980 = vmatpush1.bf16.msra.mxu0 0
  %1981 = vmatprep.subr.bf16.mxu0 0
  %1982 = vmatpush1.bf16.msra.mxu0 0
  %1983 = vmatprep.subr.bf16.mxu0 0
  %1984 = vmatpush1.bf16.msra.mxu0 0
  %1985 = vmatprep.subr.bf16.mxu0 0
  %1986 = vmatpush1.bf16.msra.mxu0 0
  %1987 = vmatprep.subr.bf16.mxu0 0
  %1988 = vmatpush1.bf16.msra.mxu0 0
  %1989 = vmatprep.subr.bf16.mxu0 0
  %1990 = vmatpush1.bf16.msra.mxu0 0
  %1991 = vmatprep.subr.bf16.mxu0 0
  %1992 = vmatpush1.bf16.msra.mxu0 0
  %1993 = vmatprep.subr.bf16.mxu0 0
  %1994 = vmatpush1.bf16.msra.mxu0 0
  %1995 = vmatprep.mubr.bf16.mxu0 0
  %1996 = vmatmul.mubr.bf16.gmra.mrb[0].mxu0 %v1429
  %v1997 = vpop.f32.mrb[0].mxu0
  %v1998 = vadd.f32 0.0, %v1997
  %v1999 = vpop.f32.mrb[0].mxu0
  %v2000 = vadd.f32 0.0, %v1999
  %v2001 = vpop.f32.mrb[0].mxu0
  %v2002 = vadd.f32 0.0, %v2001
  %v2003 = vpop.f32.mrb[0].mxu0
  %v2004 = vadd.f32 0.0, %v2003
  %2005 = vmatprep.mubr.bf16.mxu0 0
  %2006 = vmatmul.mubr.bf16.gmra.mrb[0].mxu0 %v1430
  %v2007 = vpop.f32.mrb[0].mxu0
  %v2008 = vadd.f32 0.0, %v2007
  %v2009 = vpop.f32.mrb[0].mxu0
  %v2010 = vadd.f32 0.0, %v2009
  %v2011 = vpop.f32.mrb[0].mxu0
  %v2012 = vadd.f32 0.0, %v2011
  %v2013 = vpop.f32.mrb[0].mxu0
  %v2014 = vadd.f32 0.0, %v2013
  %2015 = vmatprep.mubr.bf16.mxu0 0
  %2016 = vmatmul.mubr.bf16.gmra.mrb[0].mxu0 %v1431
  %v2017 = vpop.f32.mrb[0].mxu0
  %v2018 = vadd.f32 0.0, %v2017
  %v2019 = vpop.f32.mrb[0].mxu0
  %v2020 = vadd.f32 0.0, %v2019
  %v2021 = vpop.f32.mrb[0].mxu0
  %v2022 = vadd.f32 0.0, %v2021
  %v2023 = vpop.f32.mrb[0].mxu0
  %v2024 = vadd.f32 0.0, %v2023
  %2025 = vmatprep.mubr.bf16.mxu0 0
  %2026 = vmatmul.mubr.bf16.gmra.mrb[0].mxu0 %v1432
  %v2027 = vpop.f32.mrb[0].mxu0
  %v2028 = vadd.f32 0.0, %v2027
  %v2029 = vpop.f32.mrb[0].mxu0
  %v2030 = vadd.f32 0.0, %v2029
  %v2031 = vpop.f32.mrb[0].mxu0
  %v2032 = vadd.f32 0.0, %v2031
  %v2033 = vpop.f32.mrb[0].mxu0
  %v2034 = vadd.f32 0.0, %v2033
  %2035 = vdwg.mxu0
  %2036 = vmatprep.subr.bf16.mxu0 %v1696
  %2037 = vmatpush1.bf16.msra.mxu0 %v1695
  %2038 = vmatprep.subr.bf16.mxu0 %v1704
  %2039 = vmatpush1.bf16.msra.mxu0 %v1703
  %2040 = vmatprep.subr.bf16.mxu0 %v1712
  %2041 = vmatpush1.bf16.msra.mxu0 %v1711
  %2042 = vmatprep.subr.bf16.mxu0 %v1720
  %2043 = vmatpush1.bf16.msra.mxu0 %v1719
  %2044 = vmatprep.subr.bf16.mxu0 %v1728
  %2045 = vmatpush1.bf16.msra.mxu0 %v1727
  %2046 = vmatprep.subr.bf16.mxu0 %v1736
  %2047 = vmatpush1.bf16.msra.mxu0 %v1735
  %2048 = vmatprep.subr.bf16.mxu0 %v1744
  %2049 = vmatpush1.bf16.msra.mxu0 %v1743
  %2050 = vmatprep.subr.bf16.mxu0 %v1752
  %2051 = vmatpush1.bf16.msra.mxu0 %v1751
  %2052 = vmatprep.subr.bf16.mxu0 0
  %2053 = vmatpush1.bf16.msra.mxu0 0
  %2054 = vmatprep.subr.bf16.mxu0 0
  %2055 = vmatpush1.bf16.msra.mxu0 0
  %2056 = vmatprep.subr.bf16.mxu0 0
  %2057 = vmatpush1.bf16.msra.mxu0 0
  %2058 = vmatprep.subr.bf16.mxu0 0
  %2059 = vmatpush1.bf16.msra.mxu0 0
  %2060 = vmatprep.subr.bf16.mxu0 0
  %2061 = vmatpush1.bf16.msra.mxu0 0
  %2062 = vmatprep.subr.bf16.mxu0 0
  %2063 = vmatpush1.bf16.msra.mxu0 0
  %2064 = vmatprep.subr.bf16.mxu0 0
  %2065 = vmatpush1.bf16.msra.mxu0 0
  %2066 = vmatprep.subr.bf16.mxu0 0
  %2067 = vmatpush1.bf16.msra.mxu0 0
  %2068 = vmatprep.mubr.bf16.mxu0 0
  %2069 = vmatmul.mubr.bf16.gmra.mrb[0].mxu0 %v1429
  %v2070 = vpop.f32.mrb[0].mxu0
  %v2071 = vadd.f32 0.0, %v2070
  %v2072 = vpop.f32.mrb[0].mxu0
  %v2073 = vadd.f32 0.0, %v2072
  %v2074 = vpop.f32.mrb[0].mxu0
  %v2075 = vadd.f32 0.0, %v2074
  %v2076 = vpop.f32.mrb[0].mxu0
  %v2077 = vadd.f32 0.0, %v2076
  %2078 = vmatprep.mubr.bf16.mxu0 0
  %2079 = vmatmul.mubr.bf16.gmra.mrb[0].mxu0 %v1430
  %v2080 = vpop.f32.mrb[0].mxu0
  %v2081 = vadd.f32 0.0, %v2080
  %v2082 = vpop.f32.mrb[0].mxu0
  %v2083 = vadd.f32 0.0, %v2082
  %v2084 = vpop.f32.mrb[0].mxu0
  %v2085 = vadd.f32 0.0, %v2084
  %v2086 = vpop.f32.mrb[0].mxu0
  %v2087 = vadd.f32 0.0, %v2086
  %2088 = vmatprep.mubr.bf16.mxu0 0
  %2089 = vmatmul.mubr.bf16.gmra.mrb[0].mxu0 %v1431
  %v2090 = vpop.f32.mrb[0].mxu0
  %v2091 = vadd.f32 0.0, %v2090
  %v2092 = vpop.f32.mrb[0].mxu0
  %v2093 = vadd.f32 0.0, %v2092
  %v2094 = vpop.f32.mrb[0].mxu0
  %v2095 = vadd.f32 0.0, %v2094
  %v2096 = vpop.f32.mrb[0].mxu0
  %v2097 = vadd.f32 0.0, %v2096
  %2098 = vmatprep.mubr.bf16.mxu0 0
  %2099 = vmatmul.mubr.bf16.gmra.mrb[0].mxu0 %v1432
  %v2100 = vpop.f32.mrb[0].mxu0
  %v2101 = vadd.f32 0.0, %v2100
  %v2102 = vpop.f32.mrb[0].mxu0
  %v2103 = vadd.f32 0.0, %v2102
  %v2104 = vpop.f32.mrb[0].mxu0
  %v2105 = vadd.f32 0.0, %v2104
  %v2106 = vpop.f32.mrb[0].mxu0
  %v2107 = vadd.f32 0.0, %v2106
  %2108 = vdwg.mxu0
  %v2109 = vadd.f32 %v1164, %v1852
  %v2110 = vadd.f32 %v1166, %v1854
  %v2111 = vadd.f32 %v1237, %v1925
  %v2112 = vadd.f32 %v1239, %v1927
  %v2113 = vadd.f32 %v1310, %v1998
  %v2114 = vadd.f32 %v1312, %v2000
  %v2115 = vadd.f32 %v1383, %v2071
  %v2116 = vadd.f32 %v1385, %v2073
  %v2117 = vadd.f32 %v1168, %v1856
  %v2118 = vadd.f32 %v1170, %v1858
  %v2119 = vadd.f32 %v1241, %v1929
  %v2120 = vadd.f32 %v1243, %v1931
  %v2121 = vadd.f32 %v1314, %v2002
  %v2122 = vadd.f32 %v1316, %v2004
  %v2123 = vadd.f32 %v1387, %v2075
  %v2124 = vadd.f32 %v1389, %v2077
  %v2125 = vadd.f32 %v1174, %v1862
  %v2126 = vadd.f32 %v1176, %v1864
  %v2127 = vadd.f32 %v1247, %v1935
  %v2128 = vadd.f32 %v1249, %v1937
  %v2129 = vadd.f32 %v1320, %v2008
  %v2130 = vadd.f32 %v1322, %v2010
  %v2131 = vadd.f32 %v1393, %v2081
  %v2132 = vadd.f32 %v1395, %v2083
  %v2133 = vadd.f32 %v1178, %v1866
  %v2134 = vadd.f32 %v1180, %v1868
  %v2135 = vadd.f32 %v1251, %v1939
  %v2136 = vadd.f32 %v1253, %v1941
  %v2137 = vadd.f32 %v1324, %v2012
  %v2138 = vadd.f32 %v1326, %v2014
  %v2139 = vadd.f32 %v1397, %v2085
  %v2140 = vadd.f32 %v1399, %v2087
  %v2141 = vadd.f32 %v1184, %v1872
  %v2142 = vadd.f32 %v1186, %v1874
  %v2143 = vadd.f32 %v1257, %v1945
  %v2144 = vadd.f32 %v1259, %v1947
  %v2145 = vadd.f32 %v1330, %v2018
  %v2146 = vadd.f32 %v1332, %v2020
  %v2147 = vadd.f32 %v1403, %v2091
  %v2148 = vadd.f32 %v1405, %v2093
  %v2149 = vadd.f32 %v1188, %v1876
  %v2150 = vadd.f32 %v1190, %v1878
  %v2151 = vadd.f32 %v1261, %v1949
  %v2152 = vadd.f32 %v1263, %v1951
  %v2153 = vadd.f32 %v1334, %v2022
  %v2154 = vadd.f32 %v1336, %v2024
  %v2155 = vadd.f32 %v1407, %v2095
  %v2156 = vadd.f32 %v1409, %v2097
  %v2157 = vadd.f32 %v1194, %v1882
  %v2158 = vadd.f32 %v1196, %v1884
  %v2159 = vadd.f32 %v1267, %v1955
  %v2160 = vadd.f32 %v1269, %v1957
  %v2161 = vadd.f32 %v1340, %v2028
  %v2162 = vadd.f32 %v1342, %v2030
  %v2163 = vadd.f32 %v1413, %v2101
  %v2164 = vadd.f32 %v1415, %v2103
  %v2165 = vadd.f32 %v1198, %v1886
  %v2166 = vadd.f32 %v1200, %v1888
  %v2167 = vadd.f32 %v1271, %v1959
  %v2168 = vadd.f32 %v1273, %v1961
  %v2169 = vadd.f32 %v1344, %v2032
  %v2170 = vadd.f32 %v1346, %v2034
  %v2171 = vadd.f32 %v1417, %v2105
  %v2172 = vadd.f32 %v1419, %v2107
  %v2173 = vld [vmem:[%s6] sm:$0xff]
  %v2175 = vlaneseq
  %v2176 = vshrl.u32 %v2175, 7
  %v2177 = vsub.s32 0, %v2176
  %v2178 = vrot.slane %v2173, %v2177
  %v2179 = vlaneseq
  %v2180 = vshrl.u32 %v2179, 7
  %v2181 = vsub.s32 1, %v2180
  %v2182 = vrot.slane %v2173, %v2181
  %v2183 = vlaneseq
  %v2184 = vshrl.u32 %v2183, 7
  %v2185 = vsub.s32 2, %v2184
  %v2186 = vrot.slane %v2173, %v2185
  %v2187 = vlaneseq
  %v2188 = vshrl.u32 %v2187, 7
  %v2189 = vsub.s32 3, %v2188
  %v2190 = vrot.slane %v2173, %v2189
  %v2191 = vlaneseq
  %v2192 = vshrl.u32 %v2191, 7
  %v2193 = vsub.s32 4, %v2192
  %v2194 = vrot.slane %v2173, %v2193
  %v2195 = vlaneseq
  %v2196 = vshrl.u32 %v2195, 7
  %v2197 = vsub.s32 5, %v2196
  %v2198 = vrot.slane %v2173, %v2197
  %v2199 = vlaneseq
  %v2200 = vshrl.u32 %v2199, 7
  %v2201 = vsub.s32 6, %v2200
  %v2202 = vrot.slane %v2173, %v2201
  %v2203 = vlaneseq
  %v2204 = vshrl.u32 %v2203, 7
  %v2205 = vsub.s32 7, %v2204
  %v2206 = vrot.slane %v2173, %v2205
  %v2215 = vadd.f32 %v2109, %v2178
  %v2216 = vadd.f32 %v2110, %v2182
  %v2217 = vadd.f32 %v2111, %v2186
  %v2218 = vadd.f32 %v2112, %v2190
  %v2219 = vadd.f32 %v2113, %v2194
  %v2220 = vadd.f32 %v2114, %v2198
  %v2221 = vadd.f32 %v2115, %v2202
  %v2222 = vadd.f32 %v2116, %v2206
  %v2223 = vadd.f32 %v2117, %v2178
  %v2224 = vadd.f32 %v2118, %v2182
  %v2225 = vadd.f32 %v2119, %v2186
  %v2226 = vadd.f32 %v2120, %v2190
  %v2227 = vadd.f32 %v2121, %v2194
  %v2228 = vadd.f32 %v2122, %v2198
  %v2229 = vadd.f32 %v2123, %v2202
  %v2230 = vadd.f32 %v2124, %v2206
  %v2231 = vadd.f32 %v2125, %v2178
  %v2232 = vadd.f32 %v2126, %v2182
  %v2233 = vadd.f32 %v2127, %v2186
  %v2234 = vadd.f32 %v2128, %v2190
  %v2235 = vadd.f32 %v2129, %v2194
  %v2236 = vadd.f32 %v2130, %v2198
  %v2237 = vadd.f32 %v2131, %v2202
  %v2238 = vadd.f32 %v2132, %v2206
  %v2239 = vadd.f32 %v2133, %v2178
  %v2240 = vadd.f32 %v2134, %v2182
  %v2241 = vadd.f32 %v2135, %v2186
  %v2242 = vadd.f32 %v2136, %v2190
  %v2243 = vadd.f32 %v2137, %v2194
  %v2244 = vadd.f32 %v2138, %v2198
  %v2245 = vadd.f32 %v2139, %v2202
  %v2246 = vadd.f32 %v2140, %v2206
  %v2247 = vadd.f32 %v2141, %v2178
  %v2248 = vadd.f32 %v2142, %v2182
  %v2249 = vadd.f32 %v2143, %v2186
  %v2250 = vadd.f32 %v2144, %v2190
  %v2251 = vadd.f32 %v2145, %v2194
  %v2252 = vadd.f32 %v2146, %v2198
  %v2253 = vadd.f32 %v2147, %v2202
  %v2254 = vadd.f32 %v2148, %v2206
  %v2255 = vadd.f32 %v2149, %v2178
  %v2256 = vadd.f32 %v2150, %v2182
  %v2257 = vadd.f32 %v2151, %v2186
  %v2258 = vadd.f32 %v2152, %v2190
  %v2259 = vadd.f32 %v2153, %v2194
  %v2260 = vadd.f32 %v2154, %v2198
  %v2261 = vadd.f32 %v2155, %v2202
  %v2262 = vadd.f32 %v2156, %v2206
  %v2263 = vadd.f32 %v2157, %v2178
  %v2264 = vadd.f32 %v2158, %v2182
  %v2265 = vadd.f32 %v2159, %v2186
  %v2266 = vadd.f32 %v2160, %v2190
  %v2267 = vadd.f32 %v2161, %v2194
  %v2268 = vadd.f32 %v2162, %v2198
  %v2269 = vadd.f32 %v2163, %v2202
  %v2270 = vadd.f32 %v2164, %v2206
  %v2271 = vadd.f32 %v2165, %v2178
  %v2272 = vadd.f32 %v2166, %v2182
  %v2273 = vadd.f32 %v2167, %v2186
  %v2274 = vadd.f32 %v2168, %v2190
  %v2275 = vadd.f32 %v2169, %v2194
  %v2276 = vadd.f32 %v2170, %v2198
  %v2277 = vadd.f32 %v2171, %v2202
  %v2278 = vadd.f32 %v2172, %v2206
  %vm2279 = vcmp.ge.f32.partialorder %v2215, 0.0
  %vm2280 = vcmp.ge.f32.partialorder %v2216, 0.0
  %vm2281 = vcmp.ge.f32.partialorder %v2217, 0.0
  %vm2282 = vcmp.ge.f32.partialorder %v2218, 0.0
  %vm2283 = vcmp.ge.f32.partialorder %v2219, 0.0
  %vm2284 = vcmp.ge.f32.partialorder %v2220, 0.0
  %vm2285 = vcmp.ge.f32.partialorder %v2221, 0.0
  %vm2286 = vcmp.ge.f32.partialorder %v2222, 0.0
  %vm2287 = vcmp.ge.f32.partialorder %v2223, 0.0
  %vm2288 = vcmp.ge.f32.partialorder %v2224, 0.0
  %vm2289 = vcmp.ge.f32.partialorder %v2225, 0.0
  %vm2290 = vcmp.ge.f32.partialorder %v2226, 0.0
  %vm2291 = vcmp.ge.f32.partialorder %v2227, 0.0
  %vm2292 = vcmp.ge.f32.partialorder %v2228, 0.0
  %vm2293 = vcmp.ge.f32.partialorder %v2229, 0.0
  %vm2294 = vcmp.ge.f32.partialorder %v2230, 0.0
  %vm2295 = vcmp.ge.f32.partialorder %v2231, 0.0
  %vm2296 = vcmp.ge.f32.partialorder %v2232, 0.0
  %vm2297 = vcmp.ge.f32.partialorder %v2233, 0.0
  %vm2298 = vcmp.ge.f32.partialorder %v2234, 0.0
  %vm2299 = vcmp.ge.f32.partialorder %v2235, 0.0
  %vm2300 = vcmp.ge.f32.partialorder %v2236, 0.0
  %vm2301 = vcmp.ge.f32.partialorder %v2237, 0.0
  %vm2302 = vcmp.ge.f32.partialorder %v2238, 0.0
  %vm2303 = vcmp.ge.f32.partialorder %v2239, 0.0
  %vm2304 = vcmp.ge.f32.partialorder %v2240, 0.0
  %vm2305 = vcmp.ge.f32.partialorder %v2241, 0.0
  %vm2306 = vcmp.ge.f32.partialorder %v2242, 0.0
  %vm2307 = vcmp.ge.f32.partialorder %v2243, 0.0
  %vm2308 = vcmp.ge.f32.partialorder %v2244, 0.0
  %vm2309 = vcmp.ge.f32.partialorder %v2245, 0.0
  %vm2310 = vcmp.ge.f32.partialorder %v2246, 0.0
  %vm2311 = vcmp.ge.f32.partialorder %v2247, 0.0
  %vm2312 = vcmp.ge.f32.partialorder %v2248, 0.0
  %vm2313 = vcmp.ge.f32.partialorder %v2249, 0.0
  %vm2314 = vcmp.ge.f32.partialorder %v2250, 0.0
  %vm2315 = vcmp.ge.f32.partialorder %v2251, 0.0
  %vm2316 = vcmp.ge.f32.partialorder %v2252, 0.0
  %vm2317 = vcmp.ge.f32.partialorder %v2253, 0.0
  %vm2318 = vcmp.ge.f32.partialorder %v2254, 0.0
  %vm2319 = vcmp.ge.f32.partialorder %v2255, 0.0
  %vm2320 = vcmp.ge.f32.partialorder %v2256, 0.0
  %vm2321 = vcmp.ge.f32.partialorder %v2257, 0.0
  %vm2322 = vcmp.ge.f32.partialorder %v2258, 0.0
  %vm2323 = vcmp.ge.f32.partialorder %v2259, 0.0
  %vm2324 = vcmp.ge.f32.partialorder %v2260, 0.0
  %vm2325 = vcmp.ge.f32.partialorder %v2261, 0.0
  %vm2326 = vcmp.ge.f32.partialorder %v2262, 0.0
  %vm2327 = vcmp.ge.f32.partialorder %v2263, 0.0
  %vm2328 = vcmp.ge.f32.partialorder %v2264, 0.0
  %vm2329 = vcmp.ge.f32.partialorder %v2265, 0.0
  %vm2330 = vcmp.ge.f32.partialorder %v2266, 0.0
  %vm2331 = vcmp.ge.f32.partialorder %v2267, 0.0
  %vm2332 = vcmp.ge.f32.partialorder %v2268, 0.0
  %vm2333 = vcmp.ge.f32.partialorder %v2269, 0.0
  %vm2334 = vcmp.ge.f32.partialorder %v2270, 0.0
  %vm2335 = vcmp.ge.f32.partialorder %v2271, 0.0
  %vm2336 = vcmp.ge.f32.partialorder %v2272, 0.0
  %vm2337 = vcmp.ge.f32.partialorder %v2273, 0.0
  %vm2338 = vcmp.ge.f32.partialorder %v2274, 0.0
  %vm2339 = vcmp.ge.f32.partialorder %v2275, 0.0
  %vm2340 = vcmp.ge.f32.partialorder %v2276, 0.0
  %vm2341 = vcmp.ge.f32.partialorder %v2277, 0.0
  %vm2342 = vcmp.ge.f32.partialorder %v2278, 0.0
  %v2343 = vmul.f32 %v2215, 0.2
  %v2344 = vmul.f32 %v2216, 0.2
  %v2345 = vmul.f32 %v2217, 0.2
  %v2346 = vmul.f32 %v2218, 0.2
  %v2347 = vmul.f32 %v2219, 0.2
  %v2348 = vmul.f32 %v2220, 0.2
  %v2349 = vmul.f32 %v2221, 0.2
  %v2350 = vmul.f32 %v2222, 0.2
  %v2351 = vmul.f32 %v2223, 0.2
  %v2352 = vmul.f32 %v2224, 0.2
  %v2353 = vmul.f32 %v2225, 0.2
  %v2354 = vmul.f32 %v2226, 0.2
  %v2355 = vmul.f32 %v2227, 0.2
  %v2356 = vmul.f32 %v2228, 0.2
  %v2357 = vmul.f32 %v2229, 0.2
  %v2358 = vmul.f32 %v2230, 0.2
  %v2359 = vmul.f32 %v2231, 0.2
  %v2360 = vmul.f32 %v2232, 0.2
  %v2361 = vmul.f32 %v2233, 0.2
  %v2362 = vmul.f32 %v2234, 0.2
  %v2363 = vmul.f32 %v2235, 0.2
  %v2364 = vmul.f32 %v2236, 0.2
  %v2365 = vmul.f32 %v2237, 0.2
  %v2366 = vmul.f32 %v2238, 0.2
  %v2367 = vmul.f32 %v2239, 0.2
  %v2368 = vmul.f32 %v2240, 0.2
  %v2369 = vmul.f32 %v2241, 0.2
  %v2370 = vmul.f32 %v2242, 0.2
  %v2371 = vmul.f32 %v2243, 0.2
  %v2372 = vmul.f32 %v2244, 0.2
  %v2373 = vmul.f32 %v2245, 0.2
  %v2374 = vmul.f32 %v2246, 0.2
  %v2375 = vmul.f32 %v2247, 0.2
  %v2376 = vmul.f32 %v2248, 0.2
  %v2377 = vmul.f32 %v2249, 0.2
  %v2378 = vmul.f32 %v2250, 0.2
  %v2379 = vmul.f32 %v2251, 0.2
  %v2380 = vmul.f32 %v2252, 0.2
  %v2381 = vmul.f32 %v2253, 0.2
  %v2382 = vmul.f32 %v2254, 0.2
  %v2383 = vmul.f32 %v2255, 0.2
  %v2384 = vmul.f32 %v2256, 0.2
  %v2385 = vmul.f32 %v2257, 0.2
  %v2386 = vmul.f32 %v2258, 0.2
  %v2387 = vmul.f32 %v2259, 0.2
  %v2388 = vmul.f32 %v2260, 0.2
  %v2389 = vmul.f32 %v2261, 0.2
  %v2390 = vmul.f32 %v2262, 0.2
  %v2391 = vmul.f32 %v2263, 0.2
  %v2392 = vmul.f32 %v2264, 0.2
  %v2393 = vmul.f32 %v2265, 0.2
  %v2394 = vmul.f32 %v2266, 0.2
  %v2395 = vmul.f32 %v2267, 0.2
  %v2396 = vmul.f32 %v2268, 0.2
  %v2397 = vmul.f32 %v2269, 0.2
  %v2398 = vmul.f32 %v2270, 0.2
  %v2399 = vmul.f32 %v2271, 0.2
  %v2400 = vmul.f32 %v2272, 0.2
  %v2401 = vmul.f32 %v2273, 0.2
  %v2402 = vmul.f32 %v2274, 0.2
  %v2403 = vmul.f32 %v2275, 0.2
  %v2404 = vmul.f32 %v2276, 0.2
  %v2405 = vmul.f32 %v2277, 0.2
  %v2406 = vmul.f32 %v2278, 0.2
  %v2407 = vsel %vm2279, %v2215, %v2343
  %v2408 = vsel %vm2280, %v2216, %v2344
  %v2409 = vsel %vm2281, %v2217, %v2345
  %v2410 = vsel %vm2282, %v2218, %v2346
  %v2411 = vsel %vm2283, %v2219, %v2347
  %v2412 = vsel %vm2284, %v2220, %v2348
  %v2413 = vsel %vm2285, %v2221, %v2349
  %v2414 = vsel %vm2286, %v2222, %v2350
  %v2415 = vsel %vm2287, %v2223, %v2351
  %v2416 = vsel %vm2288, %v2224, %v2352
  %v2417 = vsel %vm2289, %v2225, %v2353
  %v2418 = vsel %vm2290, %v2226, %v2354
  %v2419 = vsel %vm2291, %v2227, %v2355
  %v2420 = vsel %vm2292, %v2228, %v2356
  %v2421 = vsel %vm2293, %v2229, %v2357
  %v2422 = vsel %vm2294, %v2230, %v2358
  %v2423 = vsel %vm2295, %v2231, %v2359
  %v2424 = vsel %vm2296, %v2232, %v2360
  %v2425 = vsel %vm2297, %v2233, %v2361
  %v2426 = vsel %vm2298, %v2234, %v2362
  %v2427 = vsel %vm2299, %v2235, %v2363
  %v2428 = vsel %vm2300, %v2236, %v2364
  %v2429 = vsel %vm2301, %v2237, %v2365
  %v2430 = vsel %vm2302, %v2238, %v2366
  %v2431 = vsel %vm2303, %v2239, %v2367
  %v2432 = vsel %vm2304, %v2240, %v2368
  %v2433 = vsel %vm2305, %v2241, %v2369
  %v2434 = vsel %vm2306, %v2242, %v2370
  %v2435 = vsel %vm2307, %v2243, %v2371
  %v2436 = vsel %vm2308, %v2244, %v2372
  %v2437 = vsel %vm2309, %v2245, %v2373
  %v2438 = vsel %vm2310, %v2246, %v2374
  %v2439 = vsel %vm2311, %v2247, %v2375
  %v2440 = vsel %vm2312, %v2248, %v2376
  %v2441 = vsel %vm2313, %v2249, %v2377
  %v2442 = vsel %vm2314, %v2250, %v2378
  %v2443 = vsel %vm2315, %v2251, %v2379
  %v2444 = vsel %vm2316, %v2252, %v2380
  %v2445 = vsel %vm2317, %v2253, %v2381
  %v2446 = vsel %vm2318, %v2254, %v2382
  %v2447 = vsel %vm2319, %v2255, %v2383
  %v2448 = vsel %vm2320, %v2256, %v2384
  %v2449 = vsel %vm2321, %v2257, %v2385
  %v2450 = vsel %vm2322, %v2258, %v2386
  %v2451 = vsel %vm2323, %v2259, %v2387
  %v2452 = vsel %vm2324, %v2260, %v2388
  %v2453 = vsel %vm2325, %v2261, %v2389
  %v2454 = vsel %vm2326, %v2262, %v2390
  %v2455 = vsel %vm2327, %v2263, %v2391
  %v2456 = vsel %vm2328, %v2264, %v2392
  %v2457 = vsel %vm2329, %v2265, %v2393
  %v2458 = vsel %vm2330, %v2266, %v2394
  %v2459 = vsel %vm2331, %v2267, %v2395
  %v2460 = vsel %vm2332, %v2268, %v2396
  %v2461 = vsel %vm2333, %v2269, %v2397
  %v2462 = vsel %vm2334, %v2270, %v2398
  %v2463 = vsel %vm2335, %v2271, %v2399
  %v2464 = vsel %vm2336, %v2272, %v2400
  %v2465 = vsel %vm2337, %v2273, %v2401
  %v2466 = vsel %vm2338, %v2274, %v2402
  %v2467 = vsel %vm2339, %v2275, %v2403
  %v2468 = vsel %vm2340, %v2276, %v2404
  %v2469 = vsel %vm2341, %v2277, %v2405
  %v2470 = vsel %vm2342, %v2278, %v2406
  %v2471 = vpack.c.bf16 %v2415, %v2407
  %v2472 = vpack.c.bf16 %v2416, %v2408
  %v2473 = vpack.c.bf16 %v2417, %v2409
  %v2474 = vpack.c.bf16 %v2418, %v2410
  %v2475 = vpack.c.bf16 %v2419, %v2411
  %v2476 = vpack.c.bf16 %v2420, %v2412
  %v2477 = vpack.c.bf16 %v2421, %v2413
  %v2478 = vpack.c.bf16 %v2422, %v2414
  %v2479 = vpack.c.bf16 %v2431, %v2423
  %v2480 = vpack.c.bf16 %v2432, %v2424
  %v2481 = vpack.c.bf16 %v2433, %v2425
  %v2482 = vpack.c.bf16 %v2434, %v2426
  %v2483 = vpack.c.bf16 %v2435, %v2427
  %v2484 = vpack.c.bf16 %v2436, %v2428
  %v2485 = vpack.c.bf16 %v2437, %v2429
  %v2486 = vpack.c.bf16 %v2438, %v2430
  %v2487 = vpack.c.bf16 %v2447, %v2439
  %v2488 = vpack.c.bf16 %v2448, %v2440
  %v2489 = vpack.c.bf16 %v2449, %v2441
  %v2490 = vpack.c.bf16 %v2450, %v2442
  %v2491 = vpack.c.bf16 %v2451, %v2443
  %v2492 = vpack.c.bf16 %v2452, %v2444
  %v2493 = vpack.c.bf16 %v2453, %v2445
  %v2494 = vpack.c.bf16 %v2454, %v2446
  %v2495 = vpack.c.bf16 %v2463, %v2455
  %v2496 = vpack.c.bf16 %v2464, %v2456
  %v2497 = vpack.c.bf16 %v2465, %v2457
  %v2498 = vpack.c.bf16 %v2466, %v2458
  %v2499 = vpack.c.bf16 %v2467, %v2459
  %v2500 = vpack.c.bf16 %v2468, %v2460
  %v2501 = vpack.c.bf16 %v2469, %v2461
  %v2502 = vpack.c.bf16 %v2470, %v2462
  %v2503 = vld [vmem:[%s7] sm:$0xff]
  %v2504 = vld [vmem:[%s7 + $0x8] sm:$0xff]
  %v2505 = vld [vmem:[%s7 + $0x10] sm:$0xff]
  %v2506 = vld [vmem:[%s7 + $0x18] sm:$0xff]
  %v2507 = vld [vmem:[%s7 + $0x20] sm:$0xff]
  %v2508 = vld [vmem:[%s7 + $0x28] sm:$0xff]
  %v2509 = vld [vmem:[%s7 + $0x30] sm:$0xff]
  %v2510 = vld [vmem:[%s7 + $0x38] sm:$0xff]
  %v2511 = vld [vmem:[%s7 + $0x40] sm:$0xff]
  %v2512 = vld [vmem:[%s7 + $0x48] sm:$0xff]
  %v2513 = vld [vmem:[%s7 + $0x50] sm:$0xff]
  %v2514 = vld [vmem:[%s7 + $0x58] sm:$0xff]
  %v2515 = vld [vmem:[%s7 + $0x60] sm:$0xff]
  %v2516 = vld [vmem:[%s7 + $0x68] sm:$0xff]
  %v2517 = vld [vmem:[%s7 + $0x70] sm:$0xff]
  %v2518 = vld [vmem:[%s7 + $0x78] sm:$0xff]
  %v2519 = vld [vmem:[%s7 + $0x80] sm:$0xff]
  %v2520 = vld [vmem:[%s7 + $0x88] sm:$0xff]
  %v2521 = vld [vmem:[%s7 + $0x90] sm:$0xff]
  %v2522 = vld [vmem:[%s7 + $0x98] sm:$0xff]
  %v2523 = vld [vmem:[%s7 + $0xa0] sm:$0xff]
  %v2524 = vld [vmem:[%s7 + $0xa8] sm:$0xff]
  %v2525 = vld [vmem:[%s7 + $0xb0] sm:$0xff]
  %v2526 = vld [vmem:[%s7 + $0xb8] sm:$0xff]
  %v2527 = vld [vmem:[%s7 + $0xc0] sm:$0xff]
  %v2528 = vld [vmem:[%s7 + $0xc8] sm:$0xff]
  %v2529 = vld [vmem:[%s7 + $0xd0] sm:$0xff]
  %v2530 = vld [vmem:[%s7 + $0xd8] sm:$0xff]
  %v2531 = vld [vmem:[%s7 + $0xe0] sm:$0xff]
  %v2532 = vld [vmem:[%s7 + $0xe8] sm:$0xff]
  %v2533 = vld [vmem:[%s7 + $0xf0] sm:$0xff]
  %v2534 = vld [vmem:[%s7 + $0xf8] sm:$0xff]
  %v2535 = vld [vmem:[%s7 + $0x100] sm:$0xff]
  %v2536 = vld [vmem:[%s7 + $0x108] sm:$0xff]
  %v2537 = vld [vmem:[%s7 + $0x110] sm:$0xff]
  %v2538 = vld [vmem:[%s7 + $0x118] sm:$0xff]
  %v2539 = vld [vmem:[%s7 + $0x120] sm:$0xff]
  %v2540 = vld [vmem:[%s7 + $0x128] sm:$0xff]
  %v2541 = vld [vmem:[%s7 + $0x130] sm:$0xff]
  %v2542 = vld [vmem:[%s7 + $0x138] sm:$0xff]
  %v2543 = vld [vmem:[%s7 + $0x140] sm:$0xff]
  %v2544 = vld [vmem:[%s7 + $0x148] sm:$0xff]
  %v2545 = vld [vmem:[%s7 + $0x150] sm:$0xff]
  %v2546 = vld [vmem:[%s7 + $0x158] sm:$0xff]
  %v2547 = vld [vmem:[%s7 + $0x160] sm:$0xff]
  %v2548 = vld [vmem:[%s7 + $0x168] sm:$0xff]
  %v2549 = vld [vmem:[%s7 + $0x170] sm:$0xff]
  %v2550 = vld [vmem:[%s7 + $0x178] sm:$0xff]
  %v2551 = vld [vmem:[%s7 + $0x180] sm:$0xff]
  %v2552 = vld [vmem:[%s7 + $0x188] sm:$0xff]
  %v2553 = vld [vmem:[%s7 + $0x190] sm:$0xff]
  %v2554 = vld [vmem:[%s7 + $0x198] sm:$0xff]
  %v2555 = vld [vmem:[%s7 + $0x1a0] sm:$0xff]
  %v2556 = vld [vmem:[%s7 + $0x1a8] sm:$0xff]
  %v2557 = vld [vmem:[%s7 + $0x1b0] sm:$0xff]
  %v2558 = vld [vmem:[%s7 + $0x1b8] sm:$0xff]
  %v2559 = vld [vmem:[%s7 + $0x1c0] sm:$0xff]
  %v2560 = vld [vmem:[%s7 + $0x1c8] sm:$0xff]
  %v2561 = vld [vmem:[%s7 + $0x1d0] sm:$0xff]
  %v2562 = vld [vmem:[%s7 + $0x1d8] sm:$0xff]
  %v2563 = vld [vmem:[%s7 + $0x1e0] sm:$0xff]
  %v2564 = vld [vmem:[%s7 + $0x1e8] sm:$0xff]
  %v2565 = vld [vmem:[%s7 + $0x1f0] sm:$0xff]
  %v2566 = vld [vmem:[%s7 + $0x1f8] sm:$0xff]
  %v2567 = vld [vmem:[%s7 + $0x200] sm:$0xff]
  %v2568 = vld [vmem:[%s7 + $0x208] sm:$0xff]
  %v2569 = vld [vmem:[%s7 + $0x210] sm:$0xff]
  %v2570 = vld [vmem:[%s7 + $0x218] sm:$0xff]
  %v2571 = vld [vmem:[%s7 + $0x220] sm:$0xff]
  %v2572 = vld [vmem:[%s7 + $0x228] sm:$0xff]
  %v2573 = vld [vmem:[%s7 + $0x230] sm:$0xff]
  %v2574 = vld [vmem:[%s7 + $0x238] sm:$0xff]
  %v2575 = vld [vmem:[%s7 + $0x240] sm:$0xff]
  %v2576 = vld [vmem:[%s7 + $0x248] sm:$0xff]
  %v2577 = vld [vmem:[%s7 + $0x250] sm:$0xff]
  %v2578 = vld [vmem:[%s7 + $0x258] sm:$0xff]
  %v2579 = vld [vmem:[%s7 + $0x260] sm:$0xff]
  %v2580 = vld [vmem:[%s7 + $0x268] sm:$0xff]
  %v2581 = vld [vmem:[%s7 + $0x270] sm:$0xff]
  %v2582 = vld [vmem:[%s7 + $0x278] sm:$0xff]
  %v2583 = vld [vmem:[%s7 + $0x280] sm:$0xff]
  %v2584 = vld [vmem:[%s7 + $0x288] sm:$0xff]
  %v2585 = vld [vmem:[%s7 + $0x290] sm:$0xff]
  %v2586 = vld [vmem:[%s7 + $0x298] sm:$0xff]
  %v2587 = vld [vmem:[%s7 + $0x2a0] sm:$0xff]
  %v2588 = vld [vmem:[%s7 + $0x2a8] sm:$0xff]
  %v2589 = vld [vmem:[%s7 + $0x2b0] sm:$0xff]
  %v2590 = vld [vmem:[%s7 + $0x2b8] sm:$0xff]
  %v2591 = vld [vmem:[%s7 + $0x2c0] sm:$0xff]
  %v2592 = vld [vmem:[%s7 + $0x2c8] sm:$0xff]
  %v2593 = vld [vmem:[%s7 + $0x2d0] sm:$0xff]
  %v2594 = vld [vmem:[%s7 + $0x2d8] sm:$0xff]
  %v2595 = vld [vmem:[%s7 + $0x2e0] sm:$0xff]
  %v2596 = vld [vmem:[%s7 + $0x2e8] sm:$0xff]
  %v2597 = vld [vmem:[%s7 + $0x2f0] sm:$0xff]
  %v2598 = vld [vmem:[%s7 + $0x2f8] sm:$0xff]
  %v2599 = vld [vmem:[%s7 + $0x300] sm:$0xff]
  %v2600 = vld [vmem:[%s7 + $0x308] sm:$0xff]
  %v2601 = vld [vmem:[%s7 + $0x310] sm:$0xff]
  %v2602 = vld [vmem:[%s7 + $0x318] sm:$0xff]
  %v2603 = vld [vmem:[%s7 + $0x320] sm:$0xff]
  %v2604 = vld [vmem:[%s7 + $0x328] sm:$0xff]
  %v2605 = vld [vmem:[%s7 + $0x330] sm:$0xff]
  %v2606 = vld [vmem:[%s7 + $0x338] sm:$0xff]
  %v2607 = vld [vmem:[%s7 + $0x340] sm:$0xff]
  %v2608 = vld [vmem:[%s7 + $0x348] sm:$0xff]
  %v2609 = vld [vmem:[%s7 + $0x350] sm:$0xff]
  %v2610 = vld [vmem:[%s7 + $0x358] sm:$0xff]
  %v2611 = vld [vmem:[%s7 + $0x360] sm:$0xff]
  %v2612 = vld [vmem:[%s7 + $0x368] sm:$0xff]
  %v2613 = vld [vmem:[%s7 + $0x370] sm:$0xff]
  %v2614 = vld [vmem:[%s7 + $0x378] sm:$0xff]
  %v2615 = vld [vmem:[%s7 + $0x380] sm:$0xff]
  %v2616 = vld [vmem:[%s7 + $0x388] sm:$0xff]
  %v2617 = vld [vmem:[%s7 + $0x390] sm:$0xff]
  %v2618 = vld [vmem:[%s7 + $0x398] sm:$0xff]
  %v2619 = vld [vmem:[%s7 + $0x3a0] sm:$0xff]
  %v2620 = vld [vmem:[%s7 + $0x3a8] sm:$0xff]
  %v2621 = vld [vmem:[%s7 + $0x3b0] sm:$0xff]
  %v2622 = vld [vmem:[%s7 + $0x3b8] sm:$0xff]
  %v2623 = vld [vmem:[%s7 + $0x3c0] sm:$0xff]
  %v2624 = vld [vmem:[%s7 + $0x3c8] sm:$0xff]
  %v2625 = vld [vmem:[%s7 + $0x3d0] sm:$0xff]
  %v2626 = vld [vmem:[%s7 + $0x3d8] sm:$0xff]
  %v2627 = vld [vmem:[%s7 + $0x3e0] sm:$0xff]
  %v2628 = vld [vmem:[%s7 + $0x3e8] sm:$0xff]
  %v2629 = vld [vmem:[%s7 + $0x3f0] sm:$0xff]
  %v2630 = vld [vmem:[%s7 + $0x3f8] sm:$0xff]
  %v2631 = vld [vmem:[%s8] sm:$0x3]
  %v2633 = vlaneseq
  %v2634 = vshrl.u32 %v2633, 7
  %v2635 = vsub.s32 0, %v2634
  %v2636 = vrot.slane %v2631, %v2635
  %v2637 = vlaneseq
  %v2638 = vshrl.u32 %v2637, 7
  %v2639 = vsub.s32 1, %v2638
  %v2640 = vrot.slane %v2631, %v2639
  %v2771 = vunpack.c.l.b16 %v2503
  %v2772 = vunpack.c.h.b16 %v2503
  %v2773 = vunpack.c.l.b16 %v2504
  %v2774 = vunpack.c.h.b16 %v2504
  %v2775 = vunpack.c.l.b16 %v2505
  %v2776 = vunpack.c.h.b16 %v2505
  %v2777 = vunpack.c.l.b16 %v2506
  %v2778 = vunpack.c.h.b16 %v2506
  %v2779 = vunpack.c.l.b16 %v2507
  %v2780 = vunpack.c.h.b16 %v2507
  %v2781 = vunpack.c.l.b16 %v2508
  %v2782 = vunpack.c.h.b16 %v2508
  %v2783 = vunpack.c.l.b16 %v2509
  %v2784 = vunpack.c.h.b16 %v2509
  %v2785 = vunpack.c.l.b16 %v2510
  %v2786 = vunpack.c.h.b16 %v2510
  %v2787 = vunpack.c.l.b16 %v2511
  %v2788 = vunpack.c.h.b16 %v2511
  %v2789 = vunpack.c.l.b16 %v2512
  %v2790 = vunpack.c.h.b16 %v2512
  %v2791 = vunpack.c.l.b16 %v2513
  %v2792 = vunpack.c.h.b16 %v2513
  %v2793 = vunpack.c.l.b16 %v2514
  %v2794 = vunpack.c.h.b16 %v2514
  %v2795 = vunpack.c.l.b16 %v2515
  %v2796 = vunpack.c.h.b16 %v2515
  %v2797 = vunpack.c.l.b16 %v2516
  %v2798 = vunpack.c.h.b16 %v2516
  %v2799 = vunpack.c.l.b16 %v2517
  %v2800 = vunpack.c.h.b16 %v2517
  %v2801 = vunpack.c.l.b16 %v2518
  %v2802 = vunpack.c.h.b16 %v2518
  %v2803 = vunpack.c.l.b16 %v2519
  %v2804 = vunpack.c.h.b16 %v2519
  %v2805 = vunpack.c.l.b16 %v2520
  %v2806 = vunpack.c.h.b16 %v2520
  %v2807 = vunpack.c.l.b16 %v2521
  %v2808 = vunpack.c.h.b16 %v2521
  %v2809 = vunpack.c.l.b16 %v2522
  %v2810 = vunpack.c.h.b16 %v2522
  %v2811 = vunpack.c.l.b16 %v2523
  %v2812 = vunpack.c.h.b16 %v2523
  %v2813 = vunpack.c.l.b16 %v2524
  %v2814 = vunpack.c.h.b16 %v2524
  %v2815 = vunpack.c.l.b16 %v2525
  %v2816 = vunpack.c.h.b16 %v2525
  %v2817 = vunpack.c.l.b16 %v2526
  %v2818 = vunpack.c.h.b16 %v2526
  %v2819 = vunpack.c.l.b16 %v2527
  %v2820 = vunpack.c.h.b16 %v2527
  %v2821 = vunpack.c.l.b16 %v2528
  %v2822 = vunpack.c.h.b16 %v2528
  %v2823 = vunpack.c.l.b16 %v2529
  %v2824 = vunpack.c.h.b16 %v2529
  %v2825 = vunpack.c.l.b16 %v2530
  %v2826 = vunpack.c.h.b16 %v2530
  %v2827 = vunpack.c.l.b16 %v2531
  %v2828 = vunpack.c.h.b16 %v2531
  %v2829 = vunpack.c.l.b16 %v2532
  %v2830 = vunpack.c.h.b16 %v2532
  %v2831 = vunpack.c.l.b16 %v2533
  %v2832 = vunpack.c.h.b16 %v2533
  %v2833 = vunpack.c.l.b16 %v2534
  %v2834 = vunpack.c.h.b16 %v2534
  %v2835 = vunpack.c.l.b16 %v2535
  %v2836 = vunpack.c.h.b16 %v2535
  %v2837 = vunpack.c.l.b16 %v2536
  %v2838 = vunpack.c.h.b16 %v2536
  %v2839 = vunpack.c.l.b16 %v2537
  %v2840 = vunpack.c.h.b16 %v2537
  %v2841 = vunpack.c.l.b16 %v2538
  %v2842 = vunpack.c.h.b16 %v2538
  %v2843 = vunpack.c.l.b16 %v2539
  %v2844 = vunpack.c.h.b16 %v2539
  %v2845 = vunpack.c.l.b16 %v2540
  %v2846 = vunpack.c.h.b16 %v2540
  %v2847 = vunpack.c.l.b16 %v2541
  %v2848 = vunpack.c.h.b16 %v2541
  %v2849 = vunpack.c.l.b16 %v2542
  %v2850 = vunpack.c.h.b16 %v2542
  %v2851 = vunpack.c.l.b16 %v2543
  %v2852 = vunpack.c.h.b16 %v2543
  %v2853 = vunpack.c.l.b16 %v2544
  %v2854 = vunpack.c.h.b16 %v2544
  %v2855 = vunpack.c.l.b16 %v2545
  %v2856 = vunpack.c.h.b16 %v2545
  %v2857 = vunpack.c.l.b16 %v2546
  %v2858 = vunpack.c.h.b16 %v2546
  %v2859 = vunpack.c.l.b16 %v2547
  %v2860 = vunpack.c.h.b16 %v2547
  %v2861 = vunpack.c.l.b16 %v2548
  %v2862 = vunpack.c.h.b16 %v2548
  %v2863 = vunpack.c.l.b16 %v2549
  %v2864 = vunpack.c.h.b16 %v2549
  %v2865 = vunpack.c.l.b16 %v2550
  %v2866 = vunpack.c.h.b16 %v2550
  %v2867 = vunpack.c.l.b16 %v2551
  %v2868 = vunpack.c.h.b16 %v2551
  %v2869 = vunpack.c.l.b16 %v2552
  %v2870 = vunpack.c.h.b16 %v2552
  %v2871 = vunpack.c.l.b16 %v2553
  %v2872 = vunpack.c.h.b16 %v2553
  %v2873 = vunpack.c.l.b16 %v2554
  %v2874 = vunpack.c.h.b16 %v2554
  %v2875 = vunpack.c.l.b16 %v2555
  %v2876 = vunpack.c.h.b16 %v2555
  %v2877 = vunpack.c.l.b16 %v2556
  %v2878 = vunpack.c.h.b16 %v2556
  %v2879 = vunpack.c.l.b16 %v2557
  %v2880 = vunpack.c.h.b16 %v2557
  %v2881 = vunpack.c.l.b16 %v2558
  %v2882 = vunpack.c.h.b16 %v2558
  %v2883 = vunpack.c.l.b16 %v2559
  %v2884 = vunpack.c.h.b16 %v2559
  %v2885 = vunpack.c.l.b16 %v2560
  %v2886 = vunpack.c.h.b16 %v2560
  %v2887 = vunpack.c.l.b16 %v2561
  %v2888 = vunpack.c.h.b16 %v2561
  %v2889 = vunpack.c.l.b16 %v2562
  %v2890 = vunpack.c.h.b16 %v2562
  %v2891 = vunpack.c.l.b16 %v2563
  %v2892 = vunpack.c.h.b16 %v2563
  %v2893 = vunpack.c.l.b16 %v2564
  %v2894 = vunpack.c.h.b16 %v2564
  %v2895 = vunpack.c.l.b16 %v2565
  %v2896 = vunpack.c.h.b16 %v2565
  %v2897 = vunpack.c.l.b16 %v2566
  %v2898 = vunpack.c.h.b16 %v2566
  %v2899 = vunpack.c.l.b16 %v2567
  %v2900 = vunpack.c.h.b16 %v2567
  %v2901 = vunpack.c.l.b16 %v2568
  %v2902 = vunpack.c.h.b16 %v2568
  %v2903 = vunpack.c.l.b16 %v2569
  %v2904 = vunpack.c.h.b16 %v2569
  %v2905 = vunpack.c.l.b16 %v2570
  %v2906 = vunpack.c.h.b16 %v2570
  %v2907 = vunpack.c.l.b16 %v2571
  %v2908 = vunpack.c.h.b16 %v2571
  %v2909 = vunpack.c.l.b16 %v2572
  %v2910 = vunpack.c.h.b16 %v2572
  %v2911 = vunpack.c.l.b16 %v2573
  %v2912 = vunpack.c.h.b16 %v2573
  %v2913 = vunpack.c.l.b16 %v2574
  %v2914 = vunpack.c.h.b16 %v2574
  %v2915 = vunpack.c.l.b16 %v2575
  %v2916 = vunpack.c.h.b16 %v2575
  %v2917 = vunpack.c.l.b16 %v2576
  %v2918 = vunpack.c.h.b16 %v2576
  %v2919 = vunpack.c.l.b16 %v2577
  %v2920 = vunpack.c.h.b16 %v2577
  %v2921 = vunpack.c.l.b16 %v2578
  %v2922 = vunpack.c.h.b16 %v2578
  %v2923 = vunpack.c.l.b16 %v2579
  %v2924 = vunpack.c.h.b16 %v2579
  %v2925 = vunpack.c.l.b16 %v2580
  %v2926 = vunpack.c.h.b16 %v2580
  %v2927 = vunpack.c.l.b16 %v2581
  %v2928 = vunpack.c.h.b16 %v2581
  %v2929 = vunpack.c.l.b16 %v2582
  %v2930 = vunpack.c.h.b16 %v2582
  %v2931 = vunpack.c.l.b16 %v2583
  %v2932 = vunpack.c.h.b16 %v2583
  %v2933 = vunpack.c.l.b16 %v2584
  %v2934 = vunpack.c.h.b16 %v2584
  %v2935 = vunpack.c.l.b16 %v2585
  %v2936 = vunpack.c.h.b16 %v2585
  %v2937 = vunpack.c.l.b16 %v2586
  %v2938 = vunpack.c.h.b16 %v2586
  %v2939 = vunpack.c.l.b16 %v2587
  %v2940 = vunpack.c.h.b16 %v2587
  %v2941 = vunpack.c.l.b16 %v2588
  %v2942 = vunpack.c.h.b16 %v2588
  %v2943 = vunpack.c.l.b16 %v2589
  %v2944 = vunpack.c.h.b16 %v2589
  %v2945 = vunpack.c.l.b16 %v2590
  %v2946 = vunpack.c.h.b16 %v2590
  %v2947 = vunpack.c.l.b16 %v2591
  %v2948 = vunpack.c.h.b16 %v2591
  %v2949 = vunpack.c.l.b16 %v2592
  %v2950 = vunpack.c.h.b16 %v2592
  %v2951 = vunpack.c.l.b16 %v2593
  %v2952 = vunpack.c.h.b16 %v2593
  %v2953 = vunpack.c.l.b16 %v2594
  %v2954 = vunpack.c.h.b16 %v2594
  %v2955 = vunpack.c.l.b16 %v2595
  %v2956 = vunpack.c.h.b16 %v2595
  %v2957 = vunpack.c.l.b16 %v2596
  %v2958 = vunpack.c.h.b16 %v2596
  %v2959 = vunpack.c.l.b16 %v2597
  %v2960 = vunpack.c.h.b16 %v2597
  %v2961 = vunpack.c.l.b16 %v2598
  %v2962 = vunpack.c.h.b16 %v2598
  %v2963 = vunpack.c.l.b16 %v2599
  %v2964 = vunpack.c.h.b16 %v2599
  %v2965 = vunpack.c.l.b16 %v2600
  %v2966 = vunpack.c.h.b16 %v2600
  %v2967 = vunpack.c.l.b16 %v2601
  %v2968 = vunpack.c.h.b16 %v2601
  %v2969 = vunpack.c.l.b16 %v2602
  %v2970 = vunpack.c.h.b16 %v2602
  %v2971 = vunpack.c.l.b16 %v2603
  %v2972 = vunpack.c.h.b16 %v2603
  %v2973 = vunpack.c.l.b16 %v2604
  %v2974 = vunpack.c.h.b16 %v2604
  %v2975 = vunpack.c.l.b16 %v2605
  %v2976 = vunpack.c.h.b16 %v2605
  %v2977 = vunpack.c.l.b16 %v2606
  %v2978 = vunpack.c.h.b16 %v2606
  %v2979 = vunpack.c.l.b16 %v2607
  %v2980 = vunpack.c.h.b16 %v2607
  %v2981 = vunpack.c.l.b16 %v2608
  %v2982 = vunpack.c.h.b16 %v2608
  %v2983 = vunpack.c.l.b16 %v2609
  %v2984 = vunpack.c.h.b16 %v2609
  %v2985 = vunpack.c.l.b16 %v2610
  %v2986 = vunpack.c.h.b16 %v2610
  %v2987 = vunpack.c.l.b16 %v2611
  %v2988 = vunpack.c.h.b16 %v2611
  %v2989 = vunpack.c.l.b16 %v2612
  %v2990 = vunpack.c.h.b16 %v2612
  %v2991 = vunpack.c.l.b16 %v2613
  %v2992 = vunpack.c.h.b16 %v2613
  %v2993 = vunpack.c.l.b16 %v2614
  %v2994 = vunpack.c.h.b16 %v2614
  %v2995 = vunpack.c.l.b16 %v2615
  %v2996 = vunpack.c.h.b16 %v2615
  %v2997 = vunpack.c.l.b16 %v2616
  %v2998 = vunpack.c.h.b16 %v2616
  %v2999 = vunpack.c.l.b16 %v2617
  %v3000 = vunpack.c.h.b16 %v2617
  %v3001 = vunpack.c.l.b16 %v2618
  %v3002 = vunpack.c.h.b16 %v2618
  %v3003 = vunpack.c.l.b16 %v2619
  %v3004 = vunpack.c.h.b16 %v2619
  %v3005 = vunpack.c.l.b16 %v2620
  %v3006 = vunpack.c.h.b16 %v2620
  %v3007 = vunpack.c.l.b16 %v2621
  %v3008 = vunpack.c.h.b16 %v2621
  %v3009 = vunpack.c.l.b16 %v2622
  %v3010 = vunpack.c.h.b16 %v2622
  %v3011 = vunpack.c.l.b16 %v2623
  %v3012 = vunpack.c.h.b16 %v2623
  %v3013 = vunpack.c.l.b16 %v2624
  %v3014 = vunpack.c.h.b16 %v2624
  %v3015 = vunpack.c.l.b16 %v2625
  %v3016 = vunpack.c.h.b16 %v2625
  %v3017 = vunpack.c.l.b16 %v2626
  %v3018 = vunpack.c.h.b16 %v2626
  %v3019 = vunpack.c.l.b16 %v2627
  %v3020 = vunpack.c.h.b16 %v2627
  %v3021 = vunpack.c.l.b16 %v2628
  %v3022 = vunpack.c.h.b16 %v2628
  %v3023 = vunpack.c.l.b16 %v2629
  %v3024 = vunpack.c.h.b16 %v2629
  %v3025 = vunpack.c.l.b16 %v2630
  %v3026 = vunpack.c.h.b16 %v2630
  %v3027 = vpack.c.b16 %v2773, %v2771
  %v3028 = vpack.c.b16 %v2774, %v2772
  %v3029 = vpack.c.b16 %v2777, %v2775
  %v3030 = vpack.c.b16 %v2778, %v2776
  %v3031 = vpack.c.b16 %v2781, %v2779
  %v3032 = vpack.c.b16 %v2782, %v2780
  %v3033 = vpack.c.b16 %v2785, %v2783
  %v3034 = vpack.c.b16 %v2786, %v2784
  %v3035 = vpack.c.b16 %v2789, %v2787
  %v3036 = vpack.c.b16 %v2790, %v2788
  %v3037 = vpack.c.b16 %v2793, %v2791
  %v3038 = vpack.c.b16 %v2794, %v2792
  %v3039 = vpack.c.b16 %v2797, %v2795
  %v3040 = vpack.c.b16 %v2798, %v2796
  %v3041 = vpack.c.b16 %v2801, %v2799
  %v3042 = vpack.c.b16 %v2802, %v2800
  %v3043 = vpack.c.b16 %v2805, %v2803
  %v3044 = vpack.c.b16 %v2806, %v2804
  %v3045 = vpack.c.b16 %v2809, %v2807
  %v3046 = vpack.c.b16 %v2810, %v2808
  %v3047 = vpack.c.b16 %v2813, %v2811
  %v3048 = vpack.c.b16 %v2814, %v2812
  %v3049 = vpack.c.b16 %v2817, %v2815
  %v3050 = vpack.c.b16 %v2818, %v2816
  %v3051 = vpack.c.b16 %v2821, %v2819
  %v3052 = vpack.c.b16 %v2822, %v2820
  %v3053 = vpack.c.b16 %v2825, %v2823
  %v3054 = vpack.c.b16 %v2826, %v2824
  %v3055 = vpack.c.b16 %v2829, %v2827
  %v3056 = vpack.c.b16 %v2830, %v2828
  %v3057 = vpack.c.b16 %v2833, %v2831
  %v3058 = vpack.c.b16 %v2834, %v2832
  %v3059 = vpack.c.b16 %v2837, %v2835
  %v3060 = vpack.c.b16 %v2838, %v2836
  %v3061 = vpack.c.b16 %v2841, %v2839
  %v3062 = vpack.c.b16 %v2842, %v2840
  %v3063 = vpack.c.b16 %v2845, %v2843
  %v3064 = vpack.c.b16 %v2846, %v2844
  %v3065 = vpack.c.b16 %v2849, %v2847
  %v3066 = vpack.c.b16 %v2850, %v2848
  %v3067 = vpack.c.b16 %v2853, %v2851
  %v3068 = vpack.c.b16 %v2854, %v2852
  %v3069 = vpack.c.b16 %v2857, %v2855
  %v3070 = vpack.c.b16 %v2858, %v2856
  %v3071 = vpack.c.b16 %v2861, %v2859
  %v3072 = vpack.c.b16 %v2862, %v2860
  %v3073 = vpack.c.b16 %v2865, %v2863
  %v3074 = vpack.c.b16 %v2866, %v2864
  %v3075 = vpack.c.b16 %v2869, %v2867
  %v3076 = vpack.c.b16 %v2870, %v2868
  %v3077 = vpack.c.b16 %v2873, %v2871
  %v3078 = vpack.c.b16 %v2874, %v2872
  %v3079 = vpack.c.b16 %v2877, %v2875
  %v3080 = vpack.c.b16 %v2878, %v2876
  %v3081 = vpack.c.b16 %v2881, %v2879
  %v3082 = vpack.c.b16 %v2882, %v2880
  %v3083 = vpack.c.b16 %v2885, %v2883
  %v3084 = vpack.c.b16 %v2886, %v2884
  %v3085 = vpack.c.b16 %v2889, %v2887
  %v3086 = vpack.c.b16 %v2890, %v2888
  %v3087 = vpack.c.b16 %v2893, %v2891
  %v3088 = vpack.c.b16 %v2894, %v2892
  %v3089 = vpack.c.b16 %v2897, %v2895
  %v3090 = vpack.c.b16 %v2898, %v2896
  %v3091 = vpack.c.b16 %v2901, %v2899
  %v3092 = vpack.c.b16 %v2902, %v2900
  %v3093 = vpack.c.b16 %v2905, %v2903
  %v3094 = vpack.c.b16 %v2906, %v2904
  %v3095 = vpack.c.b16 %v2909, %v2907
  %v3096 = vpack.c.b16 %v2910, %v2908
  %v3097 = vpack.c.b16 %v2913, %v2911
  %v3098 = vpack.c.b16 %v2914, %v2912
  %v3099 = vpack.c.b16 %v2917, %v2915
  %v3100 = vpack.c.b16 %v2918, %v2916
  %v3101 = vpack.c.b16 %v2921, %v2919
  %v3102 = vpack.c.b16 %v2922, %v2920
  %v3103 = vpack.c.b16 %v2925, %v2923
  %v3104 = vpack.c.b16 %v2926, %v2924
  %v3105 = vpack.c.b16 %v2929, %v2927
  %v3106 = vpack.c.b16 %v2930, %v2928
  %v3107 = vpack.c.b16 %v2933, %v2931
  %v3108 = vpack.c.b16 %v2934, %v2932
  %v3109 = vpack.c.b16 %v2937, %v2935
  %v3110 = vpack.c.b16 %v2938, %v2936
  %v3111 = vpack.c.b16 %v2941, %v2939
  %v3112 = vpack.c.b16 %v2942, %v2940
  %v3113 = vpack.c.b16 %v2945, %v2943
  %v3114 = vpack.c.b16 %v2946, %v2944
  %v3115 = vpack.c.b16 %v2949, %v2947
  %v3116 = vpack.c.b16 %v2950, %v2948
  %v3117 = vpack.c.b16 %v2953, %v2951
  %v3118 = vpack.c.b16 %v2954, %v2952
  %v3119 = vpack.c.b16 %v2957, %v2955
  %v3120 = vpack.c.b16 %v2958, %v2956
  %v3121 = vpack.c.b16 %v2961, %v2959
  %v3122 = vpack.c.b16 %v2962, %v2960
  %v3123 = vpack.c.b16 %v2965, %v2963
  %v3124 = vpack.c.b16 %v2966, %v2964
  %v3125 = vpack.c.b16 %v2969, %v2967
  %v3126 = vpack.c.b16 %v2970, %v2968
  %v3127 = vpack.c.b16 %v2973, %v2971
  %v3128 = vpack.c.b16 %v2974, %v2972
  %v3129 = vpack.c.b16 %v2977, %v2975
  %v3130 = vpack.c.b16 %v2978, %v2976
  %v3131 = vpack.c.b16 %v2981, %v2979
  %v3132 = vpack.c.b16 %v2982, %v2980
  %v3133 = vpack.c.b16 %v2985, %v2983
  %v3134 = vpack.c.b16 %v2986, %v2984
  %v3135 = vpack.c.b16 %v2989, %v2987
  %v3136 = vpack.c.b16 %v2990, %v2988
  %v3137 = vpack.c.b16 %v2993, %v2991
  %v3138 = vpack.c.b16 %v2994, %v2992
  %v3139 = vpack.c.b16 %v2997, %v2995
  %v3140 = vpack.c.b16 %v2998, %v2996
  %v3141 = vpack.c.b16 %v3001, %v2999
  %v3142 = vpack.c.b16 %v3002, %v3000
  %v3143 = vpack.c.b16 %v3005, %v3003
  %v3144 = vpack.c.b16 %v3006, %v3004
  %v3145 = vpack.c.b16 %v3009, %v3007
  %v3146 = vpack.c.b16 %v3010, %v3008
  %v3147 = vpack.c.b16 %v3013, %v3011
  %v3148 = vpack.c.b16 %v3014, %v3012
  %v3149 = vpack.c.b16 %v3017, %v3015
  %v3150 = vpack.c.b16 %v3018, %v3016
  %v3151 = vpack.c.b16 %v3021, %v3019
  %v3152 = vpack.c.b16 %v3022, %v3020
  %v3153 = vpack.c.b16 %v3025, %v3023
  %v3154 = vpack.c.b16 %v3026, %v3024
  %3283 = vmatprep.subr.bf16.mxu0 %v3028
  %3284 = vmatpush1.bf16.msra.mxu0 %v3027
  %3285 = vmatprep.subr.bf16.mxu0 %v3030
  %3286 = vmatpush1.bf16.msra.mxu0 %v3029
  %3287 = vmatprep.subr.bf16.mxu0 %v3032
  %3288 = vmatpush1.bf16.msra.mxu0 %v3031
  %3289 = vmatprep.subr.bf16.mxu0 %v3034
  %3290 = vmatpush1.bf16.msra.mxu0 %v3033
  %3291 = vmatprep.subr.bf16.mxu0 %v3036
  %3292 = vmatpush1.bf16.msra.mxu0 %v3035
  %3293 = vmatprep.subr.bf16.mxu0 %v3038
  %3294 = vmatpush1.bf16.msra.mxu0 %v3037
  %3295 = vmatprep.subr.bf16.mxu0 %v3040
  %3296 = vmatpush1.bf16.msra.mxu0 %v3039
  %3297 = vmatprep.subr.bf16.mxu0 %v3042
  %3298 = vmatpush1.bf16.msra.mxu0 %v3041
  %3299 = vmatprep.subr.bf16.mxu0 %v3044
  %3300 = vmatpush1.bf16.msra.mxu0 %v3043
  %3301 = vmatprep.subr.bf16.mxu0 %v3046
  %3302 = vmatpush1.bf16.msra.mxu0 %v3045
  %3303 = vmatprep.subr.bf16.mxu0 %v3048
  %3304 = vmatpush1.bf16.msra.mxu0 %v3047
  %3305 = vmatprep.subr.bf16.mxu0 %v3050
  %3306 = vmatpush1.bf16.msra.mxu0 %v3049
  %3307 = vmatprep.subr.bf16.mxu0 %v3052
  %3308 = vmatpush1.bf16.msra.mxu0 %v3051
  %3309 = vmatprep.subr.bf16.mxu0 %v3054
  %3310 = vmatpush1.bf16.msra.mxu0 %v3053
  %3311 = vmatprep.subr.bf16.mxu0 %v3056
  %3312 = vmatpush1.bf16.msra.mxu0 %v3055
  %3313 = vmatprep.subr.bf16.mxu0 %v3058
  %3314 = vmatpush1.bf16.msra.mxu0 %v3057
  %3315 = vmatprep.mubr.bf16.mxu0 %v2472
  %3316 = vmatmul.mubr.bf16.gmra.mrb[0].mxu0 %v2471
  %v3317 = vpop.f32.mrb[0].mxu0
  %v3318 = vadd.f32 %v2636, %v3317
  %v3319 = vpop.f32.mrb[0].mxu0
  %v3320 = vadd.f32 %v2640, %v3319
  %v3321 = vpop.f32.mrb[0].mxu0
  %v3322 = vadd.f32 %v2636, %v3321
  %v3323 = vpop.f32.mrb[0].mxu0
  %v3324 = vadd.f32 %v2640, %v3323
  %3325 = vmatprep.mubr.bf16.mxu0 %v2480
  %3326 = vmatmul.mubr.bf16.gmra.mrb[0].mxu0 %v2479
  %v3327 = vpop.f32.mrb[0].mxu0
  %v3328 = vadd.f32 %v2636, %v3327
  %v3329 = vpop.f32.mrb[0].mxu0
  %v3330 = vadd.f32 %v2640, %v3329
  %v3331 = vpop.f32.mrb[0].mxu0
  %v3332 = vadd.f32 %v2636, %v3331
  %v3333 = vpop.f32.mrb[0].mxu0
  %v3334 = vadd.f32 %v2640, %v3333
  %3335 = vmatprep.mubr.bf16.mxu0 %v2488
  %3336 = vmatmul.mubr.bf16.gmra.mrb[0].mxu0 %v2487
  %v3337 = vpop.f32.mrb[0].mxu0
  %v3338 = vadd.f32 %v2636, %v3337
  %v3339 = vpop.f32.mrb[0].mxu0
  %v3340 = vadd.f32 %v2640, %v3339
  %v3341 = vpop.f32.mrb[0].mxu0
  %v3342 = vadd.f32 %v2636, %v3341
  %v3343 = vpop.f32.mrb[0].mxu0
  %v3344 = vadd.f32 %v2640, %v3343
  %3345 = vmatprep.mubr.bf16.mxu0 %v2496
  %3346 = vmatmul.mubr.bf16.gmra.mrb[0].mxu0 %v2495
  %v3347 = vpop.f32.mrb[0].mxu0
  %v3348 = vadd.f32 %v2636, %v3347
  %v3349 = vpop.f32.mrb[0].mxu0
  %v3350 = vadd.f32 %v2640, %v3349
  %v3351 = vpop.f32.mrb[0].mxu0
  %v3352 = vadd.f32 %v2636, %v3351
  %v3353 = vpop.f32.mrb[0].mxu0
  %v3354 = vadd.f32 %v2640, %v3353
  %3355 = vdwg.mxu0
  %3356 = vmatprep.subr.bf16.mxu0 %v3060
  %3357 = vmatpush1.bf16.msra.mxu0 %v3059
  %3358 = vmatprep.subr.bf16.mxu0 %v3062
  %3359 = vmatpush1.bf16.msra.mxu0 %v3061
  %3360 = vmatprep.subr.bf16.mxu0 %v3064
  %3361 = vmatpush1.bf16.msra.mxu0 %v3063
  %3362 = vmatprep.subr.bf16.mxu0 %v3066
  %3363 = vmatpush1.bf16.msra.mxu0 %v3065
  %3364 = vmatprep.subr.bf16.mxu0 %v3068
  %3365 = vmatpush1.bf16.msra.mxu0 %v3067
  %3366 = vmatprep.subr.bf16.mxu0 %v3070
  %3367 = vmatpush1.bf16.msra.mxu0 %v3069
  %3368 = vmatprep.subr.bf16.mxu0 %v3072
  %3369 = vmatpush1.bf16.msra.mxu0 %v3071
  %3370 = vmatprep.subr.bf16.mxu0 %v3074
  %3371 = vmatpush1.bf16.msra.mxu0 %v3073
  %3372 = vmatprep.subr.bf16.mxu0 %v3076
  %3373 = vmatpush1.bf16.msra.mxu0 %v3075
  %3374 = vmatprep.subr.bf16.mxu0 %v3078
  %3375 = vmatpush1.bf16.msra.mxu0 %v3077
  %3376 = vmatprep.subr.bf16.mxu0 %v3080
  %3377 = vmatpush1.bf16.msra.mxu0 %v3079
  %3378 = vmatprep.subr.bf16.mxu0 %v3082
  %3379 = vmatpush1.bf16.msra.mxu0 %v3081
  %3380 = vmatprep.subr.bf16.mxu0 %v3084
  %3381 = vmatpush1.bf16.msra.mxu0 %v3083
  %3382 = vmatprep.subr.bf16.mxu0 %v3086
  %3383 = vmatpush1.bf16.msra.mxu0 %v3085
  %3384 = vmatprep.subr.bf16.mxu0 %v3088
  %3385 = vmatpush1.bf16.msra.mxu0 %v3087
  %3386 = vmatprep.subr.bf16.mxu0 %v3090
  %3387 = vmatpush1.bf16.msra.mxu0 %v3089
  %3388 = vmatprep.mubr.bf16.mxu0 %v2474
  %3389 = vmatmul.mubr.bf16.gmra.mrb[0].mxu0 %v2473
  %v3390 = vpop.f32.mrb[0].mxu0
  %v3391 = vadd.f32 %v3318, %v3390
  %v3392 = vpop.f32.mrb[0].mxu0
  %v3393 = vadd.f32 %v3320, %v3392
  %v3394 = vpop.f32.mrb[0].mxu0
  %v3395 = vadd.f32 %v3322, %v3394
  %v3396 = vpop.f32.mrb[0].mxu0
  %v3397 = vadd.f32 %v3324, %v3396
  %3398 = vmatprep.mubr.bf16.mxu0 %v2482
  %3399 = vmatmul.mubr.bf16.gmra.mrb[0].mxu0 %v2481
  %v3400 = vpop.f32.mrb[0].mxu0
  %v3401 = vadd.f32 %v3328, %v3400
  %v3402 = vpop.f32.mrb[0].mxu0
  %v3403 = vadd.f32 %v3330, %v3402
  %v3404 = vpop.f32.mrb[0].mxu0
  %v3405 = vadd.f32 %v3332, %v3404
  %v3406 = vpop.f32.mrb[0].mxu0
  %v3407 = vadd.f32 %v3334, %v3406
  %3408 = vmatprep.mubr.bf16.mxu0 %v2490
  %3409 = vmatmul.mubr.bf16.gmra.mrb[0].mxu0 %v2489
  %v3410 = vpop.f32.mrb[0].mxu0
  %v3411 = vadd.f32 %v3338, %v3410
  %v3412 = vpop.f32.mrb[0].mxu0
  %v3413 = vadd.f32 %v3340, %v3412
  %v3414 = vpop.f32.mrb[0].mxu0
  %v3415 = vadd.f32 %v3342, %v3414
  %v3416 = vpop.f32.mrb[0].mxu0
  %v3417 = vadd.f32 %v3344, %v3416
  %3418 = vmatprep.mubr.bf16.mxu0 %v2498
  %3419 = vmatmul.mubr.bf16.gmra.mrb[0].mxu0 %v2497
  %v3420 = vpop.f32.mrb[0].mxu0
  %v3421 = vadd.f32 %v3348, %v3420
  %v3422 = vpop.f32.mrb[0].mxu0
  %v3423 = vadd.f32 %v3350, %v3422
  %v3424 = vpop.f32.mrb[0].mxu0
  %v3425 = vadd.f32 %v3352, %v3424
  %v3426 = vpop.f32.mrb[0].mxu0
  %v3427 = vadd.f32 %v3354, %v3426
  %3428 = vdwg.mxu0
  %3429 = vmatprep.subr.bf16.mxu0 %v3092
  %3430 = vmatpush1.bf16.msra.mxu0 %v3091
  %3431 = vmatprep.subr.bf16.mxu0 %v3094
  %3432 = vmatpush1.bf16.msra.mxu0 %v3093
  %3433 = vmatprep.subr.bf16.mxu0 %v3096
  %3434 = vmatpush1.bf16.msra.mxu0 %v3095
  %3435 = vmatprep.subr.bf16.mxu0 %v3098
  %3436 = vmatpush1.bf16.msra.mxu0 %v3097
  %3437 = vmatprep.subr.bf16.mxu0 %v3100
  %3438 = vmatpush1.bf16.msra.mxu0 %v3099
  %3439 = vmatprep.subr.bf16.mxu0 %v3102
  %3440 = vmatpush1.bf16.msra.mxu0 %v3101
  %3441 = vmatprep.subr.bf16.mxu0 %v3104
  %3442 = vmatpush1.bf16.msra.mxu0 %v3103
  %3443 = vmatprep.subr.bf16.mxu0 %v3106
  %3444 = vmatpush1.bf16.msra.mxu0 %v3105
  %3445 = vmatprep.subr.bf16.mxu0 %v3108
  %3446 = vmatpush1.bf16.msra.mxu0 %v3107
  %3447 = vmatprep.subr.bf16.mxu0 %v3110
  %3448 = vmatpush1.bf16.msra.mxu0 %v3109
  %3449 = vmatprep.subr.bf16.mxu0 %v3112
  %3450 = vmatpush1.bf16.msra.mxu0 %v3111
  %3451 = vmatprep.subr.bf16.mxu0 %v3114
  %3452 = vmatpush1.bf16.msra.mxu0 %v3113
  %3453 = vmatprep.subr.bf16.mxu0 %v3116
  %3454 = vmatpush1.bf16.msra.mxu0 %v3115
  %3455 = vmatprep.subr.bf16.mxu0 %v3118
  %3456 = vmatpush1.bf16.msra.mxu0 %v3117
  %3457 = vmatprep.subr.bf16.mxu0 %v3120
  %3458 = vmatpush1.bf16.msra.mxu0 %v3119
  %3459 = vmatprep.subr.bf16.mxu0 %v3122
  %3460 = vmatpush1.bf16.msra.mxu0 %v3121
  %3461 = vmatprep.mubr.bf16.mxu0 %v2476
  %3462 = vmatmul.mubr.bf16.gmra.mrb[0].mxu0 %v2475
  %v3463 = vpop.f32.mrb[0].mxu0
  %v3464 = vadd.f32 %v3391, %v3463
  %v3465 = vpop.f32.mrb[0].mxu0
  %v3466 = vadd.f32 %v3393, %v3465
  %v3467 = vpop.f32.mrb[0].mxu0
  %v3468 = vadd.f32 %v3395, %v3467
  %v3469 = vpop.f32.mrb[0].mxu0
  %v3470 = vadd.f32 %v3397, %v3469
  %3471 = vmatprep.mubr.bf16.mxu0 %v2484
  %3472 = vmatmul.mubr.bf16.gmra.mrb[0].mxu0 %v2483
  %v3473 = vpop.f32.mrb[0].mxu0
  %v3474 = vadd.f32 %v3401, %v3473
  %v3475 = vpop.f32.mrb[0].mxu0
  %v3476 = vadd.f32 %v3403, %v3475
  %v3477 = vpop.f32.mrb[0].mxu0
  %v3478 = vadd.f32 %v3405, %v3477
  %v3479 = vpop.f32.mrb[0].mxu0
  %v3480 = vadd.f32 %v3407, %v3479
  %3481 = vmatprep.mubr.bf16.mxu0 %v2492
  %3482 = vmatmul.mubr.bf16.gmra.mrb[0].mxu0 %v2491
  %v3483 = vpop.f32.mrb[0].mxu0
  %v3484 = vadd.f32 %v3411, %v3483
  %v3485 = vpop.f32.mrb[0].mxu0
  %v3486 = vadd.f32 %v3413, %v3485
  %v3487 = vpop.f32.mrb[0].mxu0
  %v3488 = vadd.f32 %v3415, %v3487
  %v3489 = vpop.f32.mrb[0].mxu0
  %v3490 = vadd.f32 %v3417, %v3489
  %3491 = vmatprep.mubr.bf16.mxu0 %v2500
  %3492 = vmatmul.mubr.bf16.gmra.mrb[0].mxu0 %v2499
  %v3493 = vpop.f32.mrb[0].mxu0
  %v3494 = vadd.f32 %v3421, %v3493
  %v3495 = vpop.f32.mrb[0].mxu0
  %v3496 = vadd.f32 %v3423, %v3495
  %v3497 = vpop.f32.mrb[0].mxu0
  %v3498 = vadd.f32 %v3425, %v3497
  %v3499 = vpop.f32.mrb[0].mxu0
  %v3500 = vadd.f32 %v3427, %v3499
  %3501 = vdwg.mxu0
  %3502 = vmatprep.subr.bf16.mxu0 %v3124
  %3503 = vmatpush1.bf16.msra.mxu0 %v3123
  %3504 = vmatprep.subr.bf16.mxu0 %v3126
  %3505 = vmatpush1.bf16.msra.mxu0 %v3125
  %3506 = vmatprep.subr.bf16.mxu0 %v3128
  %3507 = vmatpush1.bf16.msra.mxu0 %v3127
  %3508 = vmatprep.subr.bf16.mxu0 %v3130
  %3509 = vmatpush1.bf16.msra.mxu0 %v3129
  %3510 = vmatprep.subr.bf16.mxu0 %v3132
  %3511 = vmatpush1.bf16.msra.mxu0 %v3131
  %3512 = vmatprep.subr.bf16.mxu0 %v3134
  %3513 = vmatpush1.bf16.msra.mxu0 %v3133
  %3514 = vmatprep.subr.bf16.mxu0 %v3136
  %3515 = vmatpush1.bf16.msra.mxu0 %v3135
  %3516 = vmatprep.subr.bf16.mxu0 %v3138
  %3517 = vmatpush1.bf16.msra.mxu0 %v3137
  %3518 = vmatprep.subr.bf16.mxu0 %v3140
  %3519 = vmatpush1.bf16.msra.mxu0 %v3139
  %3520 = vmatprep.subr.bf16.mxu0 %v3142
  %3521 = vmatpush1.bf16.msra.mxu0 %v3141
  %3522 = vmatprep.subr.bf16.mxu0 %v3144
  %3523 = vmatpush1.bf16.msra.mxu0 %v3143
  %3524 = vmatprep.subr.bf16.mxu0 %v3146
  %3525 = vmatpush1.bf16.msra.mxu0 %v3145
  %3526 = vmatprep.subr.bf16.mxu0 %v3148
  %3527 = vmatpush1.bf16.msra.mxu0 %v3147
  %3528 = vmatprep.subr.bf16.mxu0 %v3150
  %3529 = vmatpush1.bf16.msra.mxu0 %v3149
  %3530 = vmatprep.subr.bf16.mxu0 %v3152
  %3531 = vmatpush1.bf16.msra.mxu0 %v3151
  %3532 = vmatprep.subr.bf16.mxu0 %v3154
  %3533 = vmatpush1.bf16.msra.mxu0 %v3153
  %3534 = vmatprep.mubr.bf16.mxu0 %v2478
  %3535 = vmatmul.mubr.bf16.gmra.mrb[0].mxu0 %v2477
  %v3536 = vpop.f32.mrb[0].mxu0
  %v3537 = vadd.f32 %v3464, %v3536
  %v3538 = vpop.f32.mrb[0].mxu0
  %v3539 = vadd.f32 %v3466, %v3538
  %v3540 = vpop.f32.mrb[0].mxu0
  %v3541 = vadd.f32 %v3468, %v3540
  %v3542 = vpop.f32.mrb[0].mxu0
  %v3543 = vadd.f32 %v3470, %v3542
  %3544 = vmatprep.mubr.bf16.mxu0 %v2486
  %3545 = vmatmul.mubr.bf16.gmra.mrb[0].mxu0 %v2485
  %v3546 = vpop.f32.mrb[0].mxu0
  %v3547 = vadd.f32 %v3474, %v3546
  %v3548 = vpop.f32.mrb[0].mxu0
  %v3549 = vadd.f32 %v3476, %v3548
  %v3550 = vpop.f32.mrb[0].mxu0
  %v3551 = vadd.f32 %v3478, %v3550
  %v3552 = vpop.f32.mrb[0].mxu0
  %v3553 = vadd.f32 %v3480, %v3552
  %3554 = vmatprep.mubr.bf16.mxu0 %v2494
  %3555 = vmatmul.mubr.bf16.gmra.mrb[0].mxu0 %v2493
  %v3556 = vpop.f32.mrb[0].mxu0
  %v3557 = vadd.f32 %v3484, %v3556
  %v3558 = vpop.f32.mrb[0].mxu0
  %v3559 = vadd.f32 %v3486, %v3558
  %v3560 = vpop.f32.mrb[0].mxu0
  %v3561 = vadd.f32 %v3488, %v3560
  %v3562 = vpop.f32.mrb[0].mxu0
  %v3563 = vadd.f32 %v3490, %v3562
  %3564 = vmatprep.mubr.bf16.mxu0 %v2502
  %3565 = vmatmul.mubr.bf16.gmra.mrb[0].mxu0 %v2501
  %v3566 = vpop.f32.mrb[0].mxu0
  %v3567 = vadd.f32 %v3494, %v3566
  %v3568 = vpop.f32.mrb[0].mxu0
  %v3569 = vadd.f32 %v3496, %v3568
  %v3570 = vpop.f32.mrb[0].mxu0
  %v3571 = vadd.f32 %v3498, %v3570
  %v3572 = vpop.f32.mrb[0].mxu0
  %v3573 = vadd.f32 %v3500, %v3572
  %3574 = vdwg.mxu0
  %vm3575 = vcmp.ge.f32.partialorder %v3537, 0.0
  %vm3576 = vcmp.ge.f32.partialorder %v3539, 0.0
  %vm3577 = vcmp.ge.f32.partialorder %v3541, 0.0
  %vm3578 = vcmp.ge.f32.partialorder %v3543, 0.0
  %vm3579 = vcmp.ge.f32.partialorder %v3547, 0.0
  %vm3580 = vcmp.ge.f32.partialorder %v3549, 0.0
  %vm3581 = vcmp.ge.f32.partialorder %v3551, 0.0
  %vm3582 = vcmp.ge.f32.partialorder %v3553, 0.0
  %vm3583 = vcmp.ge.f32.partialorder %v3557, 0.0
  %vm3584 = vcmp.ge.f32.partialorder %v3559, 0.0
  %vm3585 = vcmp.ge.f32.partialorder %v3561, 0.0
  %vm3586 = vcmp.ge.f32.partialorder %v3563, 0.0
  %vm3587 = vcmp.ge.f32.partialorder %v3567, 0.0
  %vm3588 = vcmp.ge.f32.partialorder %v3569, 0.0
  %vm3589 = vcmp.ge.f32.partialorder %v3571, 0.0
  %vm3590 = vcmp.ge.f32.partialorder %v3573, 0.0
  %v3591 = vmul.f32 %v3537, 0.2
  %v3592 = vmul.f32 %v3539, 0.2
  %v3593 = vmul.f32 %v3541, 0.2
  %v3594 = vmul.f32 %v3543, 0.2
  %v3595 = vmul.f32 %v3547, 0.2
  %v3596 = vmul.f32 %v3549, 0.2
  %v3597 = vmul.f32 %v3551, 0.2
  %v3598 = vmul.f32 %v3553, 0.2
  %v3599 = vmul.f32 %v3557, 0.2
  %v3600 = vmul.f32 %v3559, 0.2
  %v3601 = vmul.f32 %v3561, 0.2
  %v3602 = vmul.f32 %v3563, 0.2
  %v3603 = vmul.f32 %v3567, 0.2
  %v3604 = vmul.f32 %v3569, 0.2
  %v3605 = vmul.f32 %v3571, 0.2
  %v3606 = vmul.f32 %v3573, 0.2
  %v3607 = vsel %vm3575, %v3537, %v3591
  %v3608 = vsel %vm3576, %v3539, %v3592
  %v3609 = vsel %vm3577, %v3541, %v3593
  %v3610 = vsel %vm3578, %v3543, %v3594
  %v3611 = vsel %vm3579, %v3547, %v3595
  %v3612 = vsel %vm3580, %v3549, %v3596
  %v3613 = vsel %vm3581, %v3551, %v3597
  %v3614 = vsel %vm3582, %v3553, %v3598
  %v3615 = vsel %vm3583, %v3557, %v3599
  %v3616 = vsel %vm3584, %v3559, %v3600
  %v3617 = vsel %vm3585, %v3561, %v3601
  %v3618 = vsel %vm3586, %v3563, %v3602
  %v3619 = vsel %vm3587, %v3567, %v3603
  %v3620 = vsel %vm3588, %v3569, %v3604
  %v3621 = vsel %vm3589, %v3571, %v3605
  %v3622 = vsel %vm3590, %v3573, %v3606
  %v3623 = vpack.c.bf16 %v3609, %v3607
  %v3624 = vpack.c.bf16 %v3610, %v3608
  %v3625 = vpack.c.bf16 %v3613, %v3611
  %v3626 = vpack.c.bf16 %v3614, %v3612
  %v3627 = vpack.c.bf16 %v3617, %v3615
  %v3628 = vpack.c.bf16 %v3618, %v3616
  %v3629 = vpack.c.bf16 %v3621, %v3619
  %v3630 = vpack.c.bf16 %v3622, %v3620
  %v3631 = vld [vmem:[%s9] sm:$0xf]
  %v3632 = vld [vmem:[%s9 + $0x4] sm:$0xf]
  %v3633 = vld [vmem:[%s9 + $0x8] sm:$0xf]
  %v3634 = vld [vmem:[%s9 + $0xc] sm:$0xf]
  %v3635 = vld [vmem:[%s9 + $0x10] sm:$0xf]
  %v3636 = vld [vmem:[%s9 + $0x14] sm:$0xf]
  %v3637 = vld [vmem:[%s9 + $0x18] sm:$0xf]
  %v3638 = vld [vmem:[%s9 + $0x1c] sm:$0xf]
  %v3639 = vld [vmem:[%s9 + $0x20] sm:$0xf]
  %v3640 = vld [vmem:[%s9 + $0x24] sm:$0xf]
  %v3641 = vld [vmem:[%s9 + $0x28] sm:$0xf]
  %v3642 = vld [vmem:[%s9 + $0x2c] sm:$0xf]
  %v3643 = vld [vmem:[%s9 + $0x30] sm:$0xf]
  %v3644 = vld [vmem:[%s9 + $0x34] sm:$0xf]
  %v3645 = vld [vmem:[%s9 + $0x38] sm:$0xf]
  %v3646 = vld [vmem:[%s9 + $0x3c] sm:$0xf]
  %v3647 = vld [vmem:[%s9 + $0x40] sm:$0xf]
  %v3648 = vld [vmem:[%s9 + $0x44] sm:$0xf]
  %v3649 = vld [vmem:[%s9 + $0x48] sm:$0xf]
  %v3650 = vld [vmem:[%s9 + $0x4c] sm:$0xf]
  %v3651 = vld [vmem:[%s9 + $0x50] sm:$0xf]
  %v3652 = vld [vmem:[%s9 + $0x54] sm:$0xf]
  %v3653 = vld [vmem:[%s9 + $0x58] sm:$0xf]
  %v3654 = vld [vmem:[%s9 + $0x5c] sm:$0xf]
  %v3655 = vld [vmem:[%s9 + $0x60] sm:$0xf]
  %v3656 = vld [vmem:[%s9 + $0x64] sm:$0xf]
  %v3657 = vld [vmem:[%s9 + $0x68] sm:$0xf]
  %v3658 = vld [vmem:[%s9 + $0x6c] sm:$0xf]
  %v3659 = vld [vmem:[%s9 + $0x70] sm:$0xf]
  %v3660 = vld [vmem:[%s9 + $0x74] sm:$0xf]
  %v3661 = vld [vmem:[%s9 + $0x78] sm:$0xf]
  %v3662 = vld [vmem:[%s9 + $0x7c] sm:$0xf]
  %v3663 = vld [vmem:[%s10] sm:$0x1]
  %v3665 = vlaneseq
  %v3666 = vshrl.u32 %v3665, 7
  %v3667 = vsub.s32 0, %v3666
  %v3668 = vrot.slane %v3663, %v3667
  %v3702 = vunpack.c.l.b16 %v3631
  %v3703 = vunpack.c.l.b16 %v3632
  %v3704 = vunpack.c.l.b16 %v3633
  %v3705 = vunpack.c.l.b16 %v3634
  %v3706 = vunpack.c.l.b16 %v3635
  %v3707 = vunpack.c.l.b16 %v3636
  %v3708 = vunpack.c.l.b16 %v3637
  %v3709 = vunpack.c.l.b16 %v3638
  %v3710 = vunpack.c.l.b16 %v3639
  %v3711 = vunpack.c.l.b16 %v3640
  %v3712 = vunpack.c.l.b16 %v3641
  %v3713 = vunpack.c.l.b16 %v3642
  %v3714 = vunpack.c.l.b16 %v3643
  %v3715 = vunpack.c.l.b16 %v3644
  %v3716 = vunpack.c.l.b16 %v3645
  %v3717 = vunpack.c.l.b16 %v3646
  %v3718 = vunpack.c.l.b16 %v3647
  %v3719 = vunpack.c.l.b16 %v3648
  %v3720 = vunpack.c.l.b16 %v3649
  %v3721 = vunpack.c.l.b16 %v3650
  %v3722 = vunpack.c.l.b16 %v3651
  %v3723 = vunpack.c.l.b16 %v3652
  %v3724 = vunpack.c.l.b16 %v3653
  %v3725 = vunpack.c.l.b16 %v3654
  %v3726 = vunpack.c.l.b16 %v3655
  %v3727 = vunpack.c.l.b16 %v3656
  %v3728 = vunpack.c.l.b16 %v3657
  %v3729 = vunpack.c.l.b16 %v3658
  %v3730 = vunpack.c.l.b16 %v3659
  %v3731 = vunpack.c.l.b16 %v3660
  %v3732 = vunpack.c.l.b16 %v3661
  %v3733 = vunpack.c.l.b16 %v3662
  %v3734 = vpack.c.b16 %v3703, %v3702
  %v3735 = vpack.c.b16 %v3705, %v3704
  %v3736 = vpack.c.b16 %v3707, %v3706
  %v3737 = vpack.c.b16 %v3709, %v3708
  %v3738 = vpack.c.b16 %v3711, %v3710
  %v3739 = vpack.c.b16 %v3713, %v3712
  %v3740 = vpack.c.b16 %v3715, %v3714
  %v3741 = vpack.c.b16 %v3717, %v3716
  %v3742 = vpack.c.b16 %v3719, %v3718
  %v3743 = vpack.c.b16 %v3721, %v3720
  %v3744 = vpack.c.b16 %v3723, %v3722
  %v3745 = vpack.c.b16 %v3725, %v3724
  %v3746 = vpack.c.b16 %v3727, %v3726
  %v3747 = vpack.c.b16 %v3729, %v3728
  %v3748 = vpack.c.b16 %v3731, %v3730
  %v3749 = vpack.c.b16 %v3733, %v3732
  %3766 = vmatprep.subr.bf16.mxu0 0
  %3767 = vmatpush1.bf16.msra.mxu0 %v3734
  %3768 = vmatprep.subr.bf16.mxu0 0
  %3769 = vmatpush1.bf16.msra.mxu0 %v3735
  %3770 = vmatprep.subr.bf16.mxu0 0
  %3771 = vmatpush1.bf16.msra.mxu0 %v3736
  %3772 = vmatprep.subr.bf16.mxu0 0
  %3773 = vmatpush1.bf16.msra.mxu0 %v3737
  %3774 = vmatprep.subr.bf16.mxu0 0
  %3775 = vmatpush1.bf16.msra.mxu0 %v3738
  %3776 = vmatprep.subr.bf16.mxu0 0
  %3777 = vmatpush1.bf16.msra.mxu0 %v3739
  %3778 = vmatprep.subr.bf16.mxu0 0
  %3779 = vmatpush1.bf16.msra.mxu0 %v3740
  %3780 = vmatprep.subr.bf16.mxu0 0
  %3781 = vmatpush1.bf16.msra.mxu0 %v3741
  %3782 = vmatprep.subr.bf16.mxu0 0
  %3783 = vmatpush1.bf16.msra.mxu0 %v3742
  %3784 = vmatprep.subr.bf16.mxu0 0
  %3785 = vmatpush1.bf16.msra.mxu0 %v3743
  %3786 = vmatprep.subr.bf16.mxu0 0
  %3787 = vmatpush1.bf16.msra.mxu0 %v3744
  %3788 = vmatprep.subr.bf16.mxu0 0
  %3789 = vmatpush1.bf16.msra.mxu0 %v3745
  %3790 = vmatprep.subr.bf16.mxu0 0
  %3791 = vmatpush1.bf16.msra.mxu0 %v3746
  %3792 = vmatprep.subr.bf16.mxu0 0
  %3793 = vmatpush1.bf16.msra.mxu0 %v3747
  %3794 = vmatprep.subr.bf16.mxu0 0
  %3795 = vmatpush1.bf16.msra.mxu0 %v3748
  %3796 = vmatprep.subr.bf16.mxu0 0
  %3797 = vmatpush1.bf16.msra.mxu0 %v3749
  %3798 = vmatprep.mubr.bf16.mxu0 %v3624
  %3799 = vmatmul.mubr.bf16.gmra.mrb[0].mxu0 %v3623
  %v3800 = vpop.f32.mrb[0].mxu0
  %v3801 = vadd.f32 %v3668, %v3800
  %v3802 = vpop.f32.mrb[0].mxu0
  %v3803 = vpop.f32.mrb[0].mxu0
  %v3804 = vadd.f32 %v3668, %v3803
  %v3805 = vpop.f32.mrb[0].mxu0
  %3806 = vmatprep.mubr.bf16.mxu0 %v3626
  %3807 = vmatmul.mubr.bf16.gmra.mrb[0].mxu0 %v3625
  %v3808 = vpop.f32.mrb[0].mxu0
  %v3809 = vadd.f32 %v3668, %v3808
  %v3810 = vpop.f32.mrb[0].mxu0
  %v3811 = vpop.f32.mrb[0].mxu0
  %v3812 = vadd.f32 %v3668, %v3811
  %v3813 = vpop.f32.mrb[0].mxu0
  %3814 = vmatprep.mubr.bf16.mxu0 %v3628
  %3815 = vmatmul.mubr.bf16.gmra.mrb[0].mxu0 %v3627
  %v3816 = vpop.f32.mrb[0].mxu0
  %v3817 = vadd.f32 %v3668, %v3816
  %v3818 = vpop.f32.mrb[0].mxu0
  %v3819 = vpop.f32.mrb[0].mxu0
  %v3820 = vadd.f32 %v3668, %v3819
  %v3821 = vpop.f32.mrb[0].mxu0
  %3822 = vmatprep.mubr.bf16.mxu0 %v3630
  %3823 = vmatmul.mubr.bf16.gmra.mrb[0].mxu0 %v3629
  %v3824 = vpop.f32.mrb[0].mxu0
  %v3825 = vadd.f32 %v3668, %v3824
  %v3826 = vpop.f32.mrb[0].mxu0
  %v3827 = vpop.f32.mrb[0].mxu0
  %v3828 = vadd.f32 %v3668, %v3827
  %v3829 = vpop.f32.mrb[0].mxu0
  %3830 = vdwg.mxu0
  %vm3831 = vcmp.ge.f32.partialorder %v3801, 0.0
  %vm3832 = vcmp.ge.f32.partialorder %v3804, 0.0
  %vm3833 = vcmp.ge.f32.partialorder %v3809, 0.0
  %vm3834 = vcmp.ge.f32.partialorder %v3812, 0.0
  %vm3835 = vcmp.ge.f32.partialorder %v3817, 0.0
  %vm3836 = vcmp.ge.f32.partialorder %v3820, 0.0
  %vm3837 = vcmp.ge.f32.partialorder %v3825, 0.0
  %vm3838 = vcmp.ge.f32.partialorder %v3828, 0.0
  %v3839 = vmul.f32 %v3801, 0.2
  %v3840 = vmul.f32 %v3804, 0.2
  %v3841 = vmul.f32 %v3809, 0.2
  %v3842 = vmul.f32 %v3812, 0.2
  %v3843 = vmul.f32 %v3817, 0.2
  %v3844 = vmul.f32 %v3820, 0.2
  %v3845 = vmul.f32 %v3825, 0.2
  %v3846 = vmul.f32 %v3828, 0.2
  %v3847 = vsel %vm3831, %v3801, %v3839
  %v3848 = vsel %vm3832, %v3804, %v3840
  %v3849 = vsel %vm3833, %v3809, %v3841
  %v3850 = vsel %vm3834, %v3812, %v3842
  %v3851 = vsel %vm3835, %v3817, %v3843
  %v3852 = vsel %vm3836, %v3820, %v3844
  %v3853 = vsel %vm3837, %v3825, %v3845
  %v3854 = vsel %vm3838, %v3828, %v3846
  %v3855 = vpack.c.bf16 %v3848, %v3847
  %v3856 = vpack.c.bf16 %v3850, %v3849
  %v3857 = vpack.c.bf16 %v3852, %v3851
  %v3858 = vpack.c.bf16 %v3854, %v3853
  %v3859 = vld [vmem:[%s11] sm:$0xf]
  %v3860 = vld [vmem:[%s11 + $0x4] sm:$0xf]
  %v3861 = vld [vmem:[%s11 + $0x8] sm:$0xf]
  %v3862 = vld [vmem:[%s11 + $0xc] sm:$0xf]
  %v3863 = vld [vmem:[%s11 + $0x10] sm:$0xf]
  %v3864 = vld [vmem:[%s11 + $0x14] sm:$0xf]
  %v3865 = vld [vmem:[%s11 + $0x18] sm:$0xf]
  %v3866 = vld [vmem:[%s11 + $0x1c] sm:$0xf]
  %v3867 = vld [vmem:[%s11 + $0x20] sm:$0xf]
  %v3868 = vld [vmem:[%s11 + $0x24] sm:$0xf]
  %v3869 = vld [vmem:[%s11 + $0x28] sm:$0xf]
  %v3870 = vld [vmem:[%s11 + $0x2c] sm:$0xf]
  %v3871 = vld [vmem:[%s11 + $0x30] sm:$0xf]
  %v3872 = vld [vmem:[%s11 + $0x34] sm:$0xf]
  %v3873 = vld [vmem:[%s11 + $0x38] sm:$0xf]
  %v3874 = vld [vmem:[%s11 + $0x3c] sm:$0xf]
  %v3875 = vld [vmem:[%s12] sm:$0x1]
  %v3877 = vlaneseq
  %v3878 = vshrl.u32 %v3877, 7
  %v3879 = vsub.s32 0, %v3878
  %v3880 = vrot.slane %v3875, %v3879
  %v3898 = vunpack.c.l.b16 %v3859
  %v3899 = vunpack.c.l.b16 %v3860
  %v3900 = vunpack.c.l.b16 %v3861
  %v3901 = vunpack.c.l.b16 %v3862
  %v3902 = vunpack.c.l.b16 %v3863
  %v3903 = vunpack.c.l.b16 %v3864
  %v3904 = vunpack.c.l.b16 %v3865
  %v3905 = vunpack.c.l.b16 %v3866
  %v3906 = vunpack.c.l.b16 %v3867
  %v3907 = vunpack.c.l.b16 %v3868
  %v3908 = vunpack.c.l.b16 %v3869
  %v3909 = vunpack.c.l.b16 %v3870
  %v3910 = vunpack.c.l.b16 %v3871
  %v3911 = vunpack.c.l.b16 %v3872
  %v3912 = vunpack.c.l.b16 %v3873
  %v3913 = vunpack.c.l.b16 %v3874
  %v3914 = vpack.c.b16 %v3899, %v3898
  %v3915 = vpack.c.b16 %v3901, %v3900
  %v3916 = vpack.c.b16 %v3903, %v3902
  %v3917 = vpack.c.b16 %v3905, %v3904
  %v3918 = vpack.c.b16 %v3907, %v3906
  %v3919 = vpack.c.b16 %v3909, %v3908
  %v3920 = vpack.c.b16 %v3911, %v3910
  %v3921 = vpack.c.b16 %v3913, %v3912
  %3930 = vmatprep.subr.bf16.mxu0 0
  %3931 = vmatpush1.bf16.msra.mxu0 %v3914
  %3932 = vmatprep.subr.bf16.mxu0 0
  %3933 = vmatpush1.bf16.msra.mxu0 %v3915
  %3934 = vmatprep.subr.bf16.mxu0 0
  %3935 = vmatpush1.bf16.msra.mxu0 %v3916
  %3936 = vmatprep.subr.bf16.mxu0 0
  %3937 = vmatpush1.bf16.msra.mxu0 %v3917
  %3938 = vmatprep.subr.bf16.mxu0 0
  %3939 = vmatpush1.bf16.msra.mxu0 %v3918
  %3940 = vmatprep.subr.bf16.mxu0 0
  %3941 = vmatpush1.bf16.msra.mxu0 %v3919
  %3942 = vmatprep.subr.bf16.mxu0 0
  %3943 = vmatpush1.bf16.msra.mxu0 %v3920
  %3944 = vmatprep.subr.bf16.mxu0 0
  %3945 = vmatpush1.bf16.msra.mxu0 %v3921
  %3946 = vmatprep.subr.bf16.mxu0 0
  %3947 = vmatpush1.bf16.msra.mxu0 0
  %3948 = vmatprep.subr.bf16.mxu0 0
  %3949 = vmatpush1.bf16.msra.mxu0 0
  %3950 = vmatprep.subr.bf16.mxu0 0
  %3951 = vmatpush1.bf16.msra.mxu0 0
  %3952 = vmatprep.subr.bf16.mxu0 0
  %3953 = vmatpush1.bf16.msra.mxu0 0
  %3954 = vmatprep.subr.bf16.mxu0 0
  %3955 = vmatpush1.bf16.msra.mxu0 0
  %3956 = vmatprep.subr.bf16.mxu0 0
  %3957 = vmatpush1.bf16.msra.mxu0 0
  %3958 = vmatprep.subr.bf16.mxu0 0
  %3959 = vmatpush1.bf16.msra.mxu0 0
  %3960 = vmatprep.subr.bf16.mxu0 0
  %3961 = vmatpush1.bf16.msra.mxu0 0
  %3962 = vmatprep.mubr.bf16.mxu0 0
  %3963 = vmatmul.mubr.bf16.gmra.mrb[0].mxu0 %v3855
  %v3964 = vpop.f32.mrb[0].mxu0
  %v3965 = vadd.f32 %v3880, %v3964
  %v3966 = vpop.f32.mrb[0].mxu0
  %v3967 = vpop.f32.mrb[0].mxu0
  %v3968 = vadd.f32 %v3880, %v3967
  %v3969 = vpop.f32.mrb[0].mxu0
  %3970 = vmatprep.mubr.bf16.mxu0 0
  %3971 = vmatmul.mubr.bf16.gmra.mrb[0].mxu0 %v3856
  %v3972 = vpop.f32.mrb[0].mxu0
  %v3973 = vadd.f32 %v3880, %v3972
  %v3974 = vpop.f32.mrb[0].mxu0
  %v3975 = vpop.f32.mrb[0].mxu0
  %v3976 = vadd.f32 %v3880, %v3975
  %v3977 = vpop.f32.mrb[0].mxu0
  %3978 = vmatprep.mubr.bf16.mxu0 0
  %3979 = vmatmul.mubr.bf16.gmra.mrb[0].mxu0 %v3857
  %v3980 = vpop.f32.mrb[0].mxu0
  %v3981 = vadd.f32 %v3880, %v3980
  %v3982 = vpop.f32.mrb[0].mxu0
  %v3983 = vpop.f32.mrb[0].mxu0
  %v3984 = vadd.f32 %v3880, %v3983
  %v3985 = vpop.f32.mrb[0].mxu0
  %3986 = vmatprep.mubr.bf16.mxu0 0
  %3987 = vmatmul.mubr.bf16.gmra.mrb[0].mxu0 %v3858
  %v3988 = vpop.f32.mrb[0].mxu0
  %v3989 = vadd.f32 %v3880, %v3988
  %v3990 = vpop.f32.mrb[0].mxu0
  %v3991 = vpop.f32.mrb[0].mxu0
  %v3992 = vadd.f32 %v3880, %v3991
  %v3993 = vpop.f32.mrb[0].mxu0
  %3994 = vdwg.mxu0
  %v3995 = vlaneseq
  %v3996 = vand.u32 %v3995, 127
  %vm3997 = vcmp.lt.s32.totalorder %v3996, 8
  %v3998 = vsel %vm3997, %v3965, -1e+30
  %v3999 = vsel %vm3997, %v3968, -1e+30
  %v4000 = vsel %vm3997, %v3973, -1e+30
  %v4001 = vsel %vm3997, %v3976, -1e+30
  %v4002 = vsel %vm3997, %v3981, -1e+30
  %v4003 = vsel %vm3997, %v3984, -1e+30
  %v4004 = vsel %vm3997, %v3989, -1e+30
  %v4005 = vsel %vm3997, %v3992, -1e+30
  %4006 = vmax.xlane.f32.xlu0 %v3998
  %v4007 = vpop.xlane.xlu0 %4006
  %4008 = vmax.xlane.f32.xlu0 %v3999
  %v4009 = vpop.xlane.xlu0 %4008
  %4010 = vmax.xlane.f32.xlu0 %v4000
  %v4011 = vpop.xlane.xlu0 %4010
  %4012 = vmax.xlane.f32.xlu0 %v4001
  %v4013 = vpop.xlane.xlu0 %4012
  %4014 = vmax.xlane.f32.xlu0 %v4002
  %v4015 = vpop.xlane.xlu0 %4014
  %4016 = vmax.xlane.f32.xlu0 %v4003
  %v4017 = vpop.xlane.xlu0 %4016
  %4018 = vmax.xlane.f32.xlu0 %v4004
  %v4019 = vpop.xlane.xlu0 %4018
  %4020 = vmax.xlane.f32.xlu0 %v4005
  %v4021 = vpop.xlane.xlu0 %4020
  %v4022 = vsub.f32 %v3998, %v4007
  %v4023 = vsub.f32 %v3999, %v4009
  %v4024 = vsub.f32 %v4000, %v4011
  %v4025 = vsub.f32 %v4001, %v4013
  %v4026 = vsub.f32 %v4002, %v4015
  %v4027 = vsub.f32 %v4003, %v4017
  %v4028 = vsub.f32 %v4004, %v4019
  %v4029 = vsub.f32 %v4005, %v4021
  %v4030 = vmul.f32 %v4022, 1.442695
  %v4031 = vpow.pop %v4030
  %v4032 = vmul.f32 %v4023, 1.442695
  %v4033 = vpow.pop %v4032
  %v4034 = vmul.f32 %v4024, 1.442695
  %v4035 = vpow.pop %v4034
  %v4036 = vmul.f32 %v4025, 1.442695
  %v4037 = vpow.pop %v4036
  %v4038 = vmul.f32 %v4026, 1.442695
  %v4039 = vpow.pop %v4038
  %v4040 = vmul.f32 %v4027, 1.442695
  %v4041 = vpow.pop %v4040
  %v4042 = vmul.f32 %v4028, 1.442695
  %v4043 = vpow.pop %v4042
  %v4044 = vmul.f32 %v4029, 1.442695
  %v4045 = vpow.pop %v4044
  %v4046 = vsel %vm3997, %v4031, 0.0
  %v4047 = vsel %vm3997, %v4033, 0.0
  %v4048 = vsel %vm3997, %v4035, 0.0
  %v4049 = vsel %vm3997, %v4037, 0.0
  %v4050 = vsel %vm3997, %v4039, 0.0
  %v4051 = vsel %vm3997, %v4041, 0.0
  %v4052 = vsel %vm3997, %v4043, 0.0
  %v4053 = vsel %vm3997, %v4045, 0.0
  %4054 = vadd.xlane.f32.xlu0 %v4046
  %v4055 = vpop.xlane.xlu0 %4054
  %4056 = vadd.xlane.f32.xlu0 %v4047
  %v4057 = vpop.xlane.xlu0 %4056
  %4058 = vadd.xlane.f32.xlu0 %v4048
  %v4059 = vpop.xlane.xlu0 %4058
  %4060 = vadd.xlane.f32.xlu0 %v4049
  %v4061 = vpop.xlane.xlu0 %4060
  %4062 = vadd.xlane.f32.xlu0 %v4050
  %v4063 = vpop.xlane.xlu0 %4062
  %4064 = vadd.xlane.f32.xlu0 %v4051
  %v4065 = vpop.xlane.xlu0 %4064
  %4066 = vadd.xlane.f32.xlu0 %v4052
  %v4067 = vpop.xlane.xlu0 %4066
  %4068 = vadd.xlane.f32.xlu0 %v4053
  %v4069 = vpop.xlane.xlu0 %4068
  %v4070 = vlog2.pop %v4055
  %v4071 = vmul.f32 %v4070, 0.6931472
  %v4072 = vlog2.pop %v4057
  %v4073 = vmul.f32 %v4072, 0.6931472
  %v4074 = vlog2.pop %v4059
  %v4075 = vmul.f32 %v4074, 0.6931472
  %v4076 = vlog2.pop %v4061
  %v4077 = vmul.f32 %v4076, 0.6931472
  %v4078 = vlog2.pop %v4063
  %v4079 = vmul.f32 %v4078, 0.6931472
  %v4080 = vlog2.pop %v4065
  %v4081 = vmul.f32 %v4080, 0.6931472
  %v4082 = vlog2.pop %v4067
  %v4083 = vmul.f32 %v4082, 0.6931472
  %v4084 = vlog2.pop %v4069
  %v4085 = vmul.f32 %v4084, 0.6931472
  %v4086 = vsub.f32 %v4022, %v4071
  %v4087 = vsub.f32 %v4023, %v4073
  %v4088 = vsub.f32 %v4024, %v4075
  %v4089 = vsub.f32 %v4025, %v4077
  %v4090 = vsub.f32 %v4026, %v4079
  %v4091 = vsub.f32 %v4027, %v4081
  %v4092 = vsub.f32 %v4028, %v4083
  %v4093 = vsub.f32 %v4029, %v4085
  %4094 = vst [vmem:[%s13] sm:$0xff] %v4086
  %4095 = vst [vmem:[%s13 + $0x8] sm:$0xff] %v4087
  %4096 = vst [vmem:[%s13 + $0x10] sm:$0xff] %v4088
  %4097 = vst [vmem:[%s13 + $0x18] sm:$0xff] %v4089
  %4098 = vst [vmem:[%s13 + $0x20] sm:$0xff] %v4090
  %4099 = vst [vmem:[%s13 + $0x28] sm:$0xff] %v4091
  %4100 = vst [vmem:[%s13 + $0x30] sm:$0xff] %v4092
  %4101 = vst [vmem:[%s13 + $0x38] sm:$0xff] %v4093
  // Predicated region
  $region54: #{_lambda_.7} parent=0 // pred_check
    _
  $region55: #{_lambda_.7} parent=0 // pred_check_branch
    %4103 = sbr.rel (0) target = $region57
  $region56: #{_lambda_.7} parent=0 // pred_region
    _
  $region57: #{_lambda_.7} parent=0 // pred_fallthru
    _
  // Predicated region
  $region58: #{_lambda_.7} parent=0 // pred_check
    _
  $region59: #{_lambda_.7} parent=0 // pred_check_branch
    %4105 = sbr.rel (0) target = $region61
  $region60: #{_lambda_.7} parent=0 // pred_region
    _
  $region61: #{_lambda_.7} parent=0 // pred_fallthru
    _

</llo_original>
